<compile_context>
chip_gen: v7x
topology: tpu7x:2x2x1
jax: 0.10.0
libtpu: 0.0.40
codegen_flags: <defaults>
</compile_context>

<pallas_src>
import jax
import jax.numpy as jnp
from jax.experimental import pallas as pl
from jax.experimental.pallas import tpu as pltpu

IN_FEATURES = 16380
HIDDEN = 32
OUT_FEATURES = 4

K_PAD = 16384          # 16380 rounded up to a multiple of 128 (lane dim)
OUT_PAD = 128          # lane-dense output width (sliced back to 4 outside the kernel)


def _round_up(x, m):
    return ((x + m - 1) // m) * m


def _pick_tile_and_vmem():
    """Pick batch-tile size and scoped-VMEM budget from the chip's physical VMEM."""
    try:
        vmem_bytes = pltpu.get_tpu_info().vmem_capacity_bytes
    except Exception:
        vmem_bytes = 64 << 20  # conservative fallback (v7x-sized VMEM)
    if vmem_bytes >= (96 << 20):
        # v5e / v6e: 128 MiB physical VMEM -> TB=512 (x double-buffer ~67 MB + 2.1 MB W1)
        return 512, 96 << 20
    # v7x: 64 MiB physical VMEM per TC -> TB=256 (~36 MB footprint), leave headroom
    return 256, 48 << 20


def _mlp_kernel(x_ref, w1_ref, b1_ref, w2_ref, b2_ref, o_ref):
    # x_ref:  [TB, K_PAD]
    # w1_ref: [K_PAD, 32], b1_ref: [1, 32]
    # w2_ref: [32, OUT_PAD], b2_ref: [1, OUT_PAD]
    # o_ref:  [TB, OUT_PAD]
    h = jnp.dot(x_ref[...], w1_ref[...], preferred_element_type=jnp.float32) + b1_ref[...]
    h = jnp.maximum(h, 0.0)  # ReLU
    y = jnp.dot(h, w2_ref[...], preferred_element_type=jnp.float32) + b2_ref[...]
    o_ref[...] = y.astype(o_ref.dtype)


def classical_encoder_forward(x, w1, b1, w2, b2):
    """x: [B, 16380] f32, w1: [16380, 32], b1: [1, 32], w2: [32, 4], b2: [1, 4] -> [B, 4]."""
    B = x.shape[0]
    tb, vmem_limit = _pick_tile_and_vmem()
    TB = min(tb, _round_up(B, 8))          # don't over-tile tiny batches
    B_pad = _round_up(B, TB)

    # Zero-pad: batch to a multiple of TB, contraction to 16384, output lanes to 128.
    x_p = jnp.pad(x, ((0, B_pad - B), (0, K_PAD - IN_FEATURES)))
    w1_p = jnp.pad(w1, ((0, K_PAD - IN_FEATURES), (0, 0)))
    w2_p = jnp.pad(w2, ((0, 0), (0, OUT_PAD - OUT_FEATURES)))
    b2_p = jnp.pad(b2, ((0, 0), (0, OUT_PAD - OUT_FEATURES)))

    grid = (B_pad // TB,)
    out = pl.pallas_call(
        _mlp_kernel,
        out_shape=jax.ShapeDtypeStruct((B_pad, OUT_PAD), jnp.float32),
        grid_spec=pltpu.PrefetchScalarGridSpec(
            num_scalar_prefetch=0,
            grid=grid,
            in_specs=[
                pl.BlockSpec((TB, K_PAD), lambda i: (i, 0)),       # x: streams per batch tile
                pl.BlockSpec((K_PAD, HIDDEN), lambda i: (0, 0)),   # W1: resident, DMA'd once
                pl.BlockSpec((1, HIDDEN), lambda i: (0, 0)),       # b1
                pl.BlockSpec((HIDDEN, OUT_PAD), lambda i: (0, 0)), # W2 (padded to 128 cols)
                pl.BlockSpec((1, OUT_PAD), lambda i: (0, 0)),      # b2 (padded)
            ],
            out_specs=pl.BlockSpec((TB, OUT_PAD), lambda i: (i, 0)),
        ),
        compiler_params=pltpu.CompilerParams(
            dimension_semantics=("parallel",),   # batch tiles are independent
            vmem_limit_bytes=vmem_limit,
        ),
    )(x_p, w1_p, b1, w2_p, b2_p)

    return out[:B, :OUT_FEATURES]


def init_params(key):
    """Deterministic init mimicking nn.Linear's uniform(-1/sqrt(fan_in), 1/sqrt(fan_in))."""
    k1, k2, k3, k4 = jax.random.split(key, 4)
    bound1 = 1.0 / jnp.sqrt(jnp.float32(IN_FEATURES))
    bound2 = 1.0 / jnp.sqrt(jnp.float32(HIDDEN))
    # Stored as [in, out] (transposed relative to PyTorch nn.Linear).
    w1 = jax.random.uniform(k1, (IN_FEATURES, HIDDEN), jnp.float32, -bound1, bound1)
    b1 = jax.random.uniform(k2, (1, HIDDEN), jnp.float32, -bound1, bound1)
    w2 = jax.random.uniform(k3, (HIDDEN, OUT_FEATURES), jnp.float32, -bound2, bound2)
    b2 = jax.random.uniform(k4, (1, OUT_FEATURES), jnp.float32, -bound2, bound2)
    return w1, b1, w2, b2


if __name__ == "__main__":
    key = jax.random.PRNGKey(0)
    k_x, k_p = jax.random.split(key)

    B = 2  # small batch
    x = jax.random.normal(k_x, (B, IN_FEATURES), jnp.float32)
    w1, b1, w2, b2 = init_params(k_p)

    y = classical_encoder_forward(x, w1, b1, w2, b2)
    y = jax.block_until_ready(y)

    # Reference check in plain JAX (same semantics as the PyTorch module).
    h_ref = jnp.maximum(x @ w1 + b1, 0.0)
    y_ref = h_ref @ w2 + b2
    assert y.shape == (B, OUT_FEATURES)
    assert jnp.allclose(y, y_ref, atol=1e-4, rtol=1e-4)

    print("KERNEL_OK")
</pallas_src>

<mosaic_0001>
module attributes {stable_mosaic.version = 11 : i64} {
  func.func @_mlp_kernel(%arg0: i32, %arg1: memref<8x16384xf32, #tpu.memory_space<vmem>>, %arg2: memref<16384x32xf32, #tpu.memory_space<vmem>>, %arg3: memref<1x32xf32, #tpu.memory_space<vmem>>, %arg4: memref<32x128xf32, #tpu.memory_space<vmem>>, %arg5: memref<1x128xf32, #tpu.memory_space<vmem>>, %arg6: memref<8x128xf32, #tpu.memory_space<vmem>>) attributes {dimension_semantics = [#tpu.dimension_semantics<parallel>], iteration_bounds = array<i64: 1>, scalar_prefetch = 0 : i64, scratch_operands = 0 : i64, tpu.core_type = #tpu.core_type<tc>, window_params = [{transform_indices = @transform_0, window_bounds = array<i64: 8, 16384>}, {pipeline_mode = #tpu.pipeline_mode<synchronous>, transform_indices = @transform_1, window_bounds = array<i64: 16384, 32>}, {pipeline_mode = #tpu.pipeline_mode<synchronous>, transform_indices = @transform_2, window_bounds = array<i64: 1, 32>}, {pipeline_mode = #tpu.pipeline_mode<synchronous>, transform_indices = @transform_3, window_bounds = array<i64: 32, 128>}, {pipeline_mode = #tpu.pipeline_mode<synchronous>, transform_indices = @transform_4, window_bounds = array<i64: 1, 128>}, {transform_indices = @transform_5, window_bounds = array<i64: 8, 128>}]} {
    %c0 = arith.constant 0 : index
    %c0_0 = arith.constant 0 : index
    %0 = vector.load %arg1[%c0, %c0_0] : memref<8x16384xf32, #tpu.memory_space<vmem>>, vector<8x16384xf32>
    %c0_1 = arith.constant 0 : index
    %c0_2 = arith.constant 0 : index
    %1 = vector.load %arg2[%c0_1, %c0_2] : memref<16384x32xf32, #tpu.memory_space<vmem>>, vector<16384x32xf32>
    %cst = arith.constant dense<0.000000e+00> : vector<8x32xf32>
    %2 = tpu.matmul %0, %1, %cst {dimension_numbers = #tpu.dot_dimension_numbers<[1], [0], [0], [1], [0, 0, 1, 1], [], []>} : vector<8x16384xf32>, vector<16384x32xf32>, vector<8x32xf32> -> vector<8x32xf32>
    %c0_3 = arith.constant 0 : index
    %c0_4 = arith.constant 0 : index
    %3 = vector.load %arg3[%c0_3, %c0_4] : memref<1x32xf32, #tpu.memory_space<vmem>>, vector<1x32xf32>
    %4 = vector.broadcast %3 : vector<1x32xf32> to vector<8x32xf32>
    %5 = arith.addf %2, %4 : vector<8x32xf32>
    %cst_5 = arith.constant 0.000000e+00 : f32
    %6 = vector.broadcast %cst_5 : f32 to vector<8x32xf32>
    %7 = arith.maximumf %5, %6 : vector<8x32xf32>
    %c0_6 = arith.constant 0 : index
    %c0_7 = arith.constant 0 : index
    %8 = vector.load %arg4[%c0_6, %c0_7] : memref<32x128xf32, #tpu.memory_space<vmem>>, vector<32x128xf32>
    %cst_8 = arith.constant dense<0.000000e+00> : vector<8x128xf32>
    %9 = tpu.matmul %7, %8, %cst_8 {dimension_numbers = #tpu.dot_dimension_numbers<[1], [0], [0], [1], [0, 0, 1, 1], [], []>} : vector<8x32xf32>, vector<32x128xf32>, vector<8x128xf32> -> vector<8x128xf32>
    %c0_9 = arith.constant 0 : index
    %c0_10 = arith.constant 0 : index
    %10 = vector.load %arg5[%c0_9, %c0_10] : memref<1x128xf32, #tpu.memory_space<vmem>>, vector<1x128xf32>
    %11 = vector.broadcast %10 : vector<1x128xf32> to vector<8x128xf32>
    %12 = arith.addf %9, %11 : vector<8x128xf32>
    %c0_11 = arith.constant 0 : index
    %c0_12 = arith.constant 0 : index
    %13 = vector.load %arg6[%c0_11, %c0_12] : memref<8x128xf32, #tpu.memory_space<vmem>>, vector<8x128xf32>
    tpu.vector_store %arg6[%c0_11, %c0_12], %12 {strides = array<i32>} : memref<8x128xf32, #tpu.memory_space<vmem>>, vector<8x128xf32>,
    return
  }
  func.func @transform_0(%arg0: i32) -> (i32, i32) {
    %c0_i32 = arith.constant 0 : i32
    %c0_i32_0 = arith.constant 0 : i32
    return %arg0, %c0_i32 : i32, i32
  }
  func.func @transform_1(%arg0: i32) -> (i32, i32) {
    %c0_i32 = arith.constant 0 : i32
    %c0_i32_0 = arith.constant 0 : i32
    %c0_i32_1 = arith.constant 0 : i32
    return %c0_i32, %c0_i32_0 : i32, i32
  }
  func.func @transform_2(%arg0: i32) -> (i32, i32) {
    %c0_i32 = arith.constant 0 : i32
    %c0_i32_0 = arith.constant 0 : i32
    %c0_i32_1 = arith.constant 0 : i32
    return %c0_i32, %c0_i32_0 : i32, i32
  }
  func.func @transform_3(%arg0: i32) -> (i32, i32) {
    %c0_i32 = arith.constant 0 : i32
    %c0_i32_0 = arith.constant 0 : i32
    %c0_i32_1 = arith.constant 0 : i32
    return %c0_i32, %c0_i32_0 : i32, i32
  }
  func.func @transform_4(%arg0: i32) -> (i32, i32) {
    %c0_i32 = arith.constant 0 : i32
    %c0_i32_0 = arith.constant 0 : i32
    %c0_i32_1 = arith.constant 0 : i32
    return %c0_i32, %c0_i32_0 : i32, i32
  }
  func.func @transform_5(%arg0: i32) -> (i32, i32) {
    %c0_i32 = arith.constant 0 : i32
    %c0_i32_0 = arith.constant 0 : i32
    return %arg0, %c0_i32 : i32, i32
  }
}

</mosaic_0001>

<llo_original>
// kernel: tpu_custom_call.1
$region0: #{tpu_custom_call.1}
  #allocation0 [shape = 'u32[]', space=smem, size = 0x4, offset = 0x4, fixed_abs, tag = 'smem constant byte address 0x4 - core index']
  #allocation1 [shape = 'u32[144,128]{1,0:T(1,128)}', space=vmem, size = 0x12000, scoped, tag = 'internal scratch']
  %s0 = inlined_call_operand.vmem [shape: f32[8,16384], index: 0, kind: input, shape index: {}]
  %s1 = inlined_call_operand.vmem [shape: f32[16384,32], index: 1, kind: input, shape index: {}]
  %s2 = inlined_call_operand.vmem [shape: f32[1,32], index: 2, kind: input, shape index: {}]
  %s3 = inlined_call_operand.vmem [shape: f32[32,128], index: 3, kind: input, shape index: {}]
  %s4 = inlined_call_operand.vmem [shape: f32[1,128], index: 4, kind: input, shape index: {}]
  %s5 = inlined_call_operand.hbm [shape: f32[8,128], index: 5, kind: output, shape index: {}]
  %s6 = sld [smem:[#allocation0]]
  $region30: #{tpu_custom_call.1} parent=0
    _
  %s8 = ssub.s32 1, %s6
  %s9 = scalar_select 0, %s8, %s6
  $region1: #{tpu_custom_call.1} parent=0
    #allocation2 [shape = 'u8[4096]{0}', space=vmem, size = 0x1000, scoped, tag = 'output window, operand 0, single buffered']
    #allocation3 [shape = 's32[1]{0}', space=sflag, size = 0x4, scoped, tag = 'scoped memory for tpu_custom_call.1']
    %10 = vsyncpa [#allocation3], 0
    // Predicated region
    $region2: #{tpu_custom_call.1} parent=1 // pred_check
      _
    $region3: #{tpu_custom_call.1} parent=1 // pred_check_branch
      %12 = sbr.rel (0) target = $region5
    $region4: #{tpu_custom_call.1} parent=1 // pred_region
      _
    $region5: #{tpu_custom_call.1} parent=1 // pred_fallthru
      _
    // Predicated region
    $region6: #{tpu_custom_call.1} parent=1 // pred_check
      _
    $region7: #{tpu_custom_call.1} parent=1 // pred_check_branch
      %14 = sbr.rel (0) target = $region9
    $region8: #{tpu_custom_call.1} parent=1 // pred_region
      _
    $region9: #{tpu_custom_call.1} parent=1 // pred_fallthru
      _
    // Predicated region
    $region10: #{tpu_custom_call.1} parent=1 // pred_check
      _
    $region11: #{tpu_custom_call.1} parent=1 // pred_check_branch
      %16 = sbr.rel (0) target = $region13
    $region12: #{tpu_custom_call.1} parent=1 // pred_region
      _
    $region13: #{tpu_custom_call.1} parent=1 // pred_fallthru
      _
    // Predicated region
    $region14: #{tpu_custom_call.1} parent=1 // pred_check
      _
    $region15: #{tpu_custom_call.1} parent=1 // pred_check_branch
      %18 = sbr.rel (0) target = $region17
    $region16: #{tpu_custom_call.1} parent=1 // pred_region
      _
    $region17: #{tpu_custom_call.1} parent=1 // pred_fallthru
      _
    // Predicated region
    $region18: #{tpu_custom_call.1} parent=1 // pred_check
      _
    $region19: #{tpu_custom_call.1} parent=1 // pred_check_branch
      %20 = sbr.rel (0) target = $region21
    $region20: #{tpu_custom_call.1} parent=1 // pred_region
      _
    $region21: #{tpu_custom_call.1} parent=1 // pred_fallthru
      _
    %v21 = vld [vmem:[%s0] sm:$0xff]
    %v22 = vld [vmem:[%s0 + $0x8] sm:$0xff]
    %v23 = vld [vmem:[%s0 + $0x10] sm:$0xff]
    %v24 = vld [vmem:[%s0 + $0x18] sm:$0xff]
    %v25 = vld [vmem:[%s0 + $0x20] sm:$0xff]
    %v26 = vld [vmem:[%s0 + $0x28] sm:$0xff]
    %v27 = vld [vmem:[%s0 + $0x30] sm:$0xff]
    %v28 = vld [vmem:[%s0 + $0x38] sm:$0xff]
    %v29 = vld [vmem:[%s0 + $0x40] sm:$0xff]
    %v30 = vld [vmem:[%s0 + $0x48] sm:$0xff]
    %v31 = vld [vmem:[%s0 + $0x50] sm:$0xff]
    %v32 = vld [vmem:[%s0 + $0x58] sm:$0xff]
    %v33 = vld [vmem:[%s0 + $0x60] sm:$0xff]
    %v34 = vld [vmem:[%s0 + $0x68] sm:$0xff]
    %v35 = vld [vmem:[%s0 + $0x70] sm:$0xff]
    %v36 = vld [vmem:[%s0 + $0x78] sm:$0xff]
    %v37 = vld [vmem:[%s0 + $0x80] sm:$0xff]
    %v38 = vld [vmem:[%s0 + $0x88] sm:$0xff]
    %v39 = vld [vmem:[%s0 + $0x90] sm:$0xff]
    %v40 = vld [vmem:[%s0 + $0x98] sm:$0xff]
    %v41 = vld [vmem:[%s0 + $0xa0] sm:$0xff]
    %v42 = vld [vmem:[%s0 + $0xa8] sm:$0xff]
    %v43 = vld [vmem:[%s0 + $0xb0] sm:$0xff]
    %v44 = vld [vmem:[%s0 + $0xb8] sm:$0xff]
    %v45 = vld [vmem:[%s0 + $0xc0] sm:$0xff]
    %v46 = vld [vmem:[%s0 + $0xc8] sm:$0xff]
    %v47 = vld [vmem:[%s0 + $0xd0] sm:$0xff]
    %v48 = vld [vmem:[%s0 + $0xd8] sm:$0xff]
    %v49 = vld [vmem:[%s0 + $0xe0] sm:$0xff]
    %v50 = vld [vmem:[%s0 + $0xe8] sm:$0xff]
    %v51 = vld [vmem:[%s0 + $0xf0] sm:$0xff]
    %v52 = vld [vmem:[%s0 + $0xf8] sm:$0xff]
    %v53 = vld [vmem:[%s0 + $0x100] sm:$0xff]
    %v54 = vld [vmem:[%s0 + $0x108] sm:$0xff]
    %v55 = vld [vmem:[%s0 + $0x110] sm:$0xff]
    %v56 = vld [vmem:[%s0 + $0x118] sm:$0xff]
    %v57 = vld [vmem:[%s0 + $0x120] sm:$0xff]
    %v58 = vld [vmem:[%s0 + $0x128] sm:$0xff]
    %v59 = vld [vmem:[%s0 + $0x130] sm:$0xff]
    %v60 = vld [vmem:[%s0 + $0x138] sm:$0xff]
    %v61 = vld [vmem:[%s0 + $0x140] sm:$0xff]
    %v62 = vld [vmem:[%s0 + $0x148] sm:$0xff]
    %v63 = vld [vmem:[%s0 + $0x150] sm:$0xff]
    %v64 = vld [vmem:[%s0 + $0x158] sm:$0xff]
    %v65 = vld [vmem:[%s0 + $0x160] sm:$0xff]
    %v66 = vld [vmem:[%s0 + $0x168] sm:$0xff]
    %v67 = vld [vmem:[%s0 + $0x170] sm:$0xff]
    %v68 = vld [vmem:[%s0 + $0x178] sm:$0xff]
    %v69 = vld [vmem:[%s0 + $0x180] sm:$0xff]
    %v70 = vld [vmem:[%s0 + $0x188] sm:$0xff]
    %v71 = vld [vmem:[%s0 + $0x190] sm:$0xff]
    %v72 = vld [vmem:[%s0 + $0x198] sm:$0xff]
    %v73 = vld [vmem:[%s0 + $0x1a0] sm:$0xff]
    %v74 = vld [vmem:[%s0 + $0x1a8] sm:$0xff]
    %v75 = vld [vmem:[%s0 + $0x1b0] sm:$0xff]
    %v76 = vld [vmem:[%s0 + $0x1b8] sm:$0xff]
    %v77 = vld [vmem:[%s0 + $0x1c0] sm:$0xff]
    %v78 = vld [vmem:[%s0 + $0x1c8] sm:$0xff]
    %v79 = vld [vmem:[%s0 + $0x1d0] sm:$0xff]
    %v80 = vld [vmem:[%s0 + $0x1d8] sm:$0xff]
    %v81 = vld [vmem:[%s0 + $0x1e0] sm:$0xff]
    %v82 = vld [vmem:[%s0 + $0x1e8] sm:$0xff]
    %v83 = vld [vmem:[%s0 + $0x1f0] sm:$0xff]
    %v84 = vld [vmem:[%s0 + $0x1f8] sm:$0xff]
    %v85 = vld [vmem:[%s0 + $0x200] sm:$0xff]
    %v86 = vld [vmem:[%s0 + $0x208] sm:$0xff]
    %v87 = vld [vmem:[%s0 + $0x210] sm:$0xff]
    %v88 = vld [vmem:[%s0 + $0x218] sm:$0xff]
    %v89 = vld [vmem:[%s0 + $0x220] sm:$0xff]
    %v90 = vld [vmem:[%s0 + $0x228] sm:$0xff]
    %v91 = vld [vmem:[%s0 + $0x230] sm:$0xff]
    %v92 = vld [vmem:[%s0 + $0x238] sm:$0xff]
    %v93 = vld [vmem:[%s0 + $0x240] sm:$0xff]
    %v94 = vld [vmem:[%s0 + $0x248] sm:$0xff]
    %v95 = vld [vmem:[%s0 + $0x250] sm:$0xff]
    %v96 = vld [vmem:[%s0 + $0x258] sm:$0xff]
    %v97 = vld [vmem:[%s0 + $0x260] sm:$0xff]
    %v98 = vld [vmem:[%s0 + $0x268] sm:$0xff]
    %v99 = vld [vmem:[%s0 + $0x270] sm:$0xff]
    %v100 = vld [vmem:[%s0 + $0x278] sm:$0xff]
    %v101 = vld [vmem:[%s0 + $0x280] sm:$0xff]
    %v102 = vld [vmem:[%s0 + $0x288] sm:$0xff]
    %v103 = vld [vmem:[%s0 + $0x290] sm:$0xff]
    %v104 = vld [vmem:[%s0 + $0x298] sm:$0xff]
    %v105 = vld [vmem:[%s0 + $0x2a0] sm:$0xff]
    %v106 = vld [vmem:[%s0 + $0x2a8] sm:$0xff]
    %v107 = vld [vmem:[%s0 + $0x2b0] sm:$0xff]
    %v108 = vld [vmem:[%s0 + $0x2b8] sm:$0xff]
    %v109 = vld [vmem:[%s0 + $0x2c0] sm:$0xff]
    %v110 = vld [vmem:[%s0 + $0x2c8] sm:$0xff]
    %v111 = vld [vmem:[%s0 + $0x2d0] sm:$0xff]
    %v112 = vld [vmem:[%s0 + $0x2d8] sm:$0xff]
    %v113 = vld [vmem:[%s0 + $0x2e0] sm:$0xff]
    %v114 = vld [vmem:[%s0 + $0x2e8] sm:$0xff]
    %v115 = vld [vmem:[%s0 + $0x2f0] sm:$0xff]
    %v116 = vld [vmem:[%s0 + $0x2f8] sm:$0xff]
    %v117 = vld [vmem:[%s0 + $0x300] sm:$0xff]
    %v118 = vld [vmem:[%s0 + $0x308] sm:$0xff]
    %v119 = vld [vmem:[%s0 + $0x310] sm:$0xff]
    %v120 = vld [vmem:[%s0 + $0x318] sm:$0xff]
    %v121 = vld [vmem:[%s0 + $0x320] sm:$0xff]
    %v122 = vld [vmem:[%s0 + $0x328] sm:$0xff]
    %v123 = vld [vmem:[%s0 + $0x330] sm:$0xff]
    %v124 = vld [vmem:[%s0 + $0x338] sm:$0xff]
    %v125 = vld [vmem:[%s0 + $0x340] sm:$0xff]
    %v126 = vld [vmem:[%s0 + $0x348] sm:$0xff]
    %v127 = vld [vmem:[%s0 + $0x350] sm:$0xff]
    %v128 = vld [vmem:[%s0 + $0x358] sm:$0xff]
    %v129 = vld [vmem:[%s0 + $0x360] sm:$0xff]
    %v130 = vld [vmem:[%s0 + $0x368] sm:$0xff]
    %v131 = vld [vmem:[%s0 + $0x370] sm:$0xff]
    %v132 = vld [vmem:[%s0 + $0x378] sm:$0xff]
    %v133 = vld [vmem:[%s0 + $0x380] sm:$0xff]
    %v134 = vld [vmem:[%s0 + $0x388] sm:$0xff]
    %v135 = vld [vmem:[%s0 + $0x390] sm:$0xff]
    %v136 = vld [vmem:[%s0 + $0x398] sm:$0xff]
    %v137 = vld [vmem:[%s0 + $0x3a0] sm:$0xff]
    %v138 = vld [vmem:[%s0 + $0x3a8] sm:$0xff]
    %v139 = vld [vmem:[%s0 + $0x3b0] sm:$0xff]
    %v140 = vld [vmem:[%s0 + $0x3b8] sm:$0xff]
    %v141 = vld [vmem:[%s0 + $0x3c0] sm:$0xff]
    %v142 = vld [vmem:[%s0 + $0x3c8] sm:$0xff]
    %v143 = vld [vmem:[%s0 + $0x3d0] sm:$0xff]
    %v144 = vld [vmem:[%s0 + $0x3d8] sm:$0xff]
    %v145 = vld [vmem:[%s0 + $0x3e0] sm:$0xff]
    %v146 = vld [vmem:[%s0 + $0x3e8] sm:$0xff]
    %v147 = vld [vmem:[%s0 + $0x3f0] sm:$0xff]
    %v148 = vld [vmem:[%s0 + $0x3f8] sm:$0xff]
    %v149 = vld [vmem:[%s1] sm:$0xff]
    %v150 = vld [vmem:[%s1 + $0x8] sm:$0xff]
    %v151 = vld [vmem:[%s1 + $0x10] sm:$0xff]
    %v152 = vld [vmem:[%s1 + $0x18] sm:$0xff]
    %v153 = vld [vmem:[%s1 + $0x20] sm:$0xff]
    %v154 = vld [vmem:[%s1 + $0x28] sm:$0xff]
    %v155 = vld [vmem:[%s1 + $0x30] sm:$0xff]
    %v156 = vld [vmem:[%s1 + $0x38] sm:$0xff]
    %v157 = vld [vmem:[%s1 + $0x40] sm:$0xff]
    %v158 = vld [vmem:[%s1 + $0x48] sm:$0xff]
    %v159 = vld [vmem:[%s1 + $0x50] sm:$0xff]
    %v160 = vld [vmem:[%s1 + $0x58] sm:$0xff]
    %v161 = vld [vmem:[%s1 + $0x60] sm:$0xff]
    %v162 = vld [vmem:[%s1 + $0x68] sm:$0xff]
    %v163 = vld [vmem:[%s1 + $0x70] sm:$0xff]
    %v164 = vld [vmem:[%s1 + $0x78] sm:$0xff]
    %v165 = vld [vmem:[%s1 + $0x80] sm:$0xff]
    %v166 = vld [vmem:[%s1 + $0x88] sm:$0xff]
    %v167 = vld [vmem:[%s1 + $0x90] sm:$0xff]
    %v168 = vld [vmem:[%s1 + $0x98] sm:$0xff]
    %v169 = vld [vmem:[%s1 + $0xa0] sm:$0xff]
    %v170 = vld [vmem:[%s1 + $0xa8] sm:$0xff]
    %v171 = vld [vmem:[%s1 + $0xb0] sm:$0xff]
    %v172 = vld [vmem:[%s1 + $0xb8] sm:$0xff]
    %v173 = vld [vmem:[%s1 + $0xc0] sm:$0xff]
    %v174 = vld [vmem:[%s1 + $0xc8] sm:$0xff]
    %v175 = vld [vmem:[%s1 + $0xd0] sm:$0xff]
    %v176 = vld [vmem:[%s1 + $0xd8] sm:$0xff]
    %v177 = vld [vmem:[%s1 + $0xe0] sm:$0xff]
    %v178 = vld [vmem:[%s1 + $0xe8] sm:$0xff]
    %v179 = vld [vmem:[%s1 + $0xf0] sm:$0xff]
    %v180 = vld [vmem:[%s1 + $0xf8] sm:$0xff]
    %v181 = vld [vmem:[%s1 + $0x100] sm:$0xff]
    %v182 = vld [vmem:[%s1 + $0x108] sm:$0xff]
    %v183 = vld [vmem:[%s1 + $0x110] sm:$0xff]
    %v184 = vld [vmem:[%s1 + $0x118] sm:$0xff]
    %v185 = vld [vmem:[%s1 + $0x120] sm:$0xff]
    %v186 = vld [vmem:[%s1 + $0x128] sm:$0xff]
    %v187 = vld [vmem:[%s1 + $0x130] sm:$0xff]
    %v188 = vld [vmem:[%s1 + $0x138] sm:$0xff]
    %v189 = vld [vmem:[%s1 + $0x140] sm:$0xff]
    %v190 = vld [vmem:[%s1 + $0x148] sm:$0xff]
    %v191 = vld [vmem:[%s1 + $0x150] sm:$0xff]
    %v192 = vld [vmem:[%s1 + $0x158] sm:$0xff]
    %v193 = vld [vmem:[%s1 + $0x160] sm:$0xff]
    %v194 = vld [vmem:[%s1 + $0x168] sm:$0xff]
    %v195 = vld [vmem:[%s1 + $0x170] sm:$0xff]
    %v196 = vld [vmem:[%s1 + $0x178] sm:$0xff]
    %v197 = vld [vmem:[%s1 + $0x180] sm:$0xff]
    %v198 = vld [vmem:[%s1 + $0x188] sm:$0xff]
    %v199 = vld [vmem:[%s1 + $0x190] sm:$0xff]
    %v200 = vld [vmem:[%s1 + $0x198] sm:$0xff]
    %v201 = vld [vmem:[%s1 + $0x1a0] sm:$0xff]
    %v202 = vld [vmem:[%s1 + $0x1a8] sm:$0xff]
    %v203 = vld [vmem:[%s1 + $0x1b0] sm:$0xff]
    %v204 = vld [vmem:[%s1 + $0x1b8] sm:$0xff]
    %v205 = vld [vmem:[%s1 + $0x1c0] sm:$0xff]
    %v206 = vld [vmem:[%s1 + $0x1c8] sm:$0xff]
    %v207 = vld [vmem:[%s1 + $0x1d0] sm:$0xff]
    %v208 = vld [vmem:[%s1 + $0x1d8] sm:$0xff]
    %v209 = vld [vmem:[%s1 + $0x1e0] sm:$0xff]
    %v210 = vld [vmem:[%s1 + $0x1e8] sm:$0xff]
    %v211 = vld [vmem:[%s1 + $0x1f0] sm:$0xff]
    %v212 = vld [vmem:[%s1 + $0x1f8] sm:$0xff]
    %v213 = vld [vmem:[%s1 + $0x200] sm:$0xff]
    %v214 = vld [vmem:[%s1 + $0x208] sm:$0xff]
    %v215 = vld [vmem:[%s1 + $0x210] sm:$0xff]
    %v216 = vld [vmem:[%s1 + $0x218] sm:$0xff]
    %v217 = vld [vmem:[%s1 + $0x220] sm:$0xff]
    %v218 = vld [vmem:[%s1 + $0x228] sm:$0xff]
    %v219 = vld [vmem:[%s1 + $0x230] sm:$0xff]
    %v220 = vld [vmem:[%s1 + $0x238] sm:$0xff]
    %v221 = vld [vmem:[%s1 + $0x240] sm:$0xff]
    %v222 = vld [vmem:[%s1 + $0x248] sm:$0xff]
    %v223 = vld [vmem:[%s1 + $0x250] sm:$0xff]
    %v224 = vld [vmem:[%s1 + $0x258] sm:$0xff]
    %v225 = vld [vmem:[%s1 + $0x260] sm:$0xff]
    %v226 = vld [vmem:[%s1 + $0x268] sm:$0xff]
    %v227 = vld [vmem:[%s1 + $0x270] sm:$0xff]
    %v228 = vld [vmem:[%s1 + $0x278] sm:$0xff]
    %v229 = vld [vmem:[%s1 + $0x280] sm:$0xff]
    %v230 = vld [vmem:[%s1 + $0x288] sm:$0xff]
    %v231 = vld [vmem:[%s1 + $0x290] sm:$0xff]
    %v232 = vld [vmem:[%s1 + $0x298] sm:$0xff]
    %v233 = vld [vmem:[%s1 + $0x2a0] sm:$0xff]
    %v234 = vld [vmem:[%s1 + $0x2a8] sm:$0xff]
    %v235 = vld [vmem:[%s1 + $0x2b0] sm:$0xff]
    %v236 = vld [vmem:[%s1 + $0x2b8] sm:$0xff]
    %v237 = vld [vmem:[%s1 + $0x2c0] sm:$0xff]
    %v238 = vld [vmem:[%s1 + $0x2c8] sm:$0xff]
    %v239 = vld [vmem:[%s1 + $0x2d0] sm:$0xff]
    %v240 = vld [vmem:[%s1 + $0x2d8] sm:$0xff]
    %v241 = vld [vmem:[%s1 + $0x2e0] sm:$0xff]
    %v242 = vld [vmem:[%s1 + $0x2e8] sm:$0xff]
    %v243 = vld [vmem:[%s1 + $0x2f0] sm:$0xff]
    %v244 = vld [vmem:[%s1 + $0x2f8] sm:$0xff]
    %v245 = vld [vmem:[%s1 + $0x300] sm:$0xff]
    %v246 = vld [vmem:[%s1 + $0x308] sm:$0xff]
    %v247 = vld [vmem:[%s1 + $0x310] sm:$0xff]
    %v248 = vld [vmem:[%s1 + $0x318] sm:$0xff]
    %v249 = vld [vmem:[%s1 + $0x320] sm:$0xff]
    %v250 = vld [vmem:[%s1 + $0x328] sm:$0xff]
    %v251 = vld [vmem:[%s1 + $0x330] sm:$0xff]
    %v252 = vld [vmem:[%s1 + $0x338] sm:$0xff]
    %v253 = vld [vmem:[%s1 + $0x340] sm:$0xff]
    %v254 = vld [vmem:[%s1 + $0x348] sm:$0xff]
    %v255 = vld [vmem:[%s1 + $0x350] sm:$0xff]
    %v256 = vld [vmem:[%s1 + $0x358] sm:$0xff]
    %v257 = vld [vmem:[%s1 + $0x360] sm:$0xff]
    %v258 = vld [vmem:[%s1 + $0x368] sm:$0xff]
    %v259 = vld [vmem:[%s1 + $0x370] sm:$0xff]
    %v260 = vld [vmem:[%s1 + $0x378] sm:$0xff]
    %v261 = vld [vmem:[%s1 + $0x380] sm:$0xff]
    %v262 = vld [vmem:[%s1 + $0x388] sm:$0xff]
    %v263 = vld [vmem:[%s1 + $0x390] sm:$0xff]
    %v264 = vld [vmem:[%s1 + $0x398] sm:$0xff]
    %v265 = vld [vmem:[%s1 + $0x3a0] sm:$0xff]
    %v266 = vld [vmem:[%s1 + $0x3a8] sm:$0xff]
    %v267 = vld [vmem:[%s1 + $0x3b0] sm:$0xff]
    %v268 = vld [vmem:[%s1 + $0x3b8] sm:$0xff]
    %v269 = vld [vmem:[%s1 + $0x3c0] sm:$0xff]
    %v270 = vld [vmem:[%s1 + $0x3c8] sm:$0xff]
    %v271 = vld [vmem:[%s1 + $0x3d0] sm:$0xff]
    %v272 = vld [vmem:[%s1 + $0x3d8] sm:$0xff]
    %v273 = vld [vmem:[%s1 + $0x3e0] sm:$0xff]
    %v274 = vld [vmem:[%s1 + $0x3e8] sm:$0xff]
    %v275 = vld [vmem:[%s1 + $0x3f0] sm:$0xff]
    %v276 = vld [vmem:[%s1 + $0x3f8] sm:$0xff]
    %v277 = vld [vmem:[%s1 + $0x400] sm:$0xff]
    %v278 = vld [vmem:[%s1 + $0x408] sm:$0xff]
    %v279 = vld [vmem:[%s1 + $0x410] sm:$0xff]
    %v280 = vld [vmem:[%s1 + $0x418] sm:$0xff]
    %v281 = vld [vmem:[%s1 + $0x420] sm:$0xff]
    %v282 = vld [vmem:[%s1 + $0x428] sm:$0xff]
    %v283 = vld [vmem:[%s1 + $0x430] sm:$0xff]
    %v284 = vld [vmem:[%s1 + $0x438] sm:$0xff]
    %v285 = vld [vmem:[%s1 + $0x440] sm:$0xff]
    %v286 = vld [vmem:[%s1 + $0x448] sm:$0xff]
    %v287 = vld [vmem:[%s1 + $0x450] sm:$0xff]
    %v288 = vld [vmem:[%s1 + $0x458] sm:$0xff]
    %v289 = vld [vmem:[%s1 + $0x460] sm:$0xff]
    %v290 = vld [vmem:[%s1 + $0x468] sm:$0xff]
    %v291 = vld [vmem:[%s1 + $0x470] sm:$0xff]
    %v292 = vld [vmem:[%s1 + $0x478] sm:$0xff]
    %v293 = vld [vmem:[%s1 + $0x480] sm:$0xff]
    %v294 = vld [vmem:[%s1 + $0x488] sm:$0xff]
    %v295 = vld [vmem:[%s1 + $0x490] sm:$0xff]
    %v296 = vld [vmem:[%s1 + $0x498] sm:$0xff]
    %v297 = vld [vmem:[%s1 + $0x4a0] sm:$0xff]
    %v298 = vld [vmem:[%s1 + $0x4a8] sm:$0xff]
    %v299 = vld [vmem:[%s1 + $0x4b0] sm:$0xff]
    %v300 = vld [vmem:[%s1 + $0x4b8] sm:$0xff]
    %v301 = vld [vmem:[%s1 + $0x4c0] sm:$0xff]
    %v302 = vld [vmem:[%s1 + $0x4c8] sm:$0xff]
    %v303 = vld [vmem:[%s1 + $0x4d0] sm:$0xff]
    %v304 = vld [vmem:[%s1 + $0x4d8] sm:$0xff]
    %v305 = vld [vmem:[%s1 + $0x4e0] sm:$0xff]
    %v306 = vld [vmem:[%s1 + $0x4e8] sm:$0xff]
    %v307 = vld [vmem:[%s1 + $0x4f0] sm:$0xff]
    %v308 = vld [vmem:[%s1 + $0x4f8] sm:$0xff]
    %v309 = vld [vmem:[%s1 + $0x500] sm:$0xff]
    %v310 = vld [vmem:[%s1 + $0x508] sm:$0xff]
    %v311 = vld [vmem:[%s1 + $0x510] sm:$0xff]
    %v312 = vld [vmem:[%s1 + $0x518] sm:$0xff]
    %v313 = vld [vmem:[%s1 + $0x520] sm:$0xff]
    %v314 = vld [vmem:[%s1 + $0x528] sm:$0xff]
    %v315 = vld [vmem:[%s1 + $0x530] sm:$0xff]
    %v316 = vld [vmem:[%s1 + $0x538] sm:$0xff]
    %v317 = vld [vmem:[%s1 + $0x540] sm:$0xff]
    %v318 = vld [vmem:[%s1 + $0x548] sm:$0xff]
    %v319 = vld [vmem:[%s1 + $0x550] sm:$0xff]
    %v320 = vld [vmem:[%s1 + $0x558] sm:$0xff]
    %v321 = vld [vmem:[%s1 + $0x560] sm:$0xff]
    %v322 = vld [vmem:[%s1 + $0x568] sm:$0xff]
    %v323 = vld [vmem:[%s1 + $0x570] sm:$0xff]
    %v324 = vld [vmem:[%s1 + $0x578] sm:$0xff]
    %v325 = vld [vmem:[%s1 + $0x580] sm:$0xff]
    %v326 = vld [vmem:[%s1 + $0x588] sm:$0xff]
    %v327 = vld [vmem:[%s1 + $0x590] sm:$0xff]
    %v328 = vld [vmem:[%s1 + $0x598] sm:$0xff]
    %v329 = vld [vmem:[%s1 + $0x5a0] sm:$0xff]
    %v330 = vld [vmem:[%s1 + $0x5a8] sm:$0xff]
    %v331 = vld [vmem:[%s1 + $0x5b0] sm:$0xff]
    %v332 = vld [vmem:[%s1 + $0x5b8] sm:$0xff]
    %v333 = vld [vmem:[%s1 + $0x5c0] sm:$0xff]
    %v334 = vld [vmem:[%s1 + $0x5c8] sm:$0xff]
    %v335 = vld [vmem:[%s1 + $0x5d0] sm:$0xff]
    %v336 = vld [vmem:[%s1 + $0x5d8] sm:$0xff]
    %v337 = vld [vmem:[%s1 + $0x5e0] sm:$0xff]
    %v338 = vld [vmem:[%s1 + $0x5e8] sm:$0xff]
    %v339 = vld [vmem:[%s1 + $0x5f0] sm:$0xff]
    %v340 = vld [vmem:[%s1 + $0x5f8] sm:$0xff]
    %v341 = vld [vmem:[%s1 + $0x600] sm:$0xff]
    %v342 = vld [vmem:[%s1 + $0x608] sm:$0xff]
    %v343 = vld [vmem:[%s1 + $0x610] sm:$0xff]
    %v344 = vld [vmem:[%s1 + $0x618] sm:$0xff]
    %v345 = vld [vmem:[%s1 + $0x620] sm:$0xff]
    %v346 = vld [vmem:[%s1 + $0x628] sm:$0xff]
    %v347 = vld [vmem:[%s1 + $0x630] sm:$0xff]
    %v348 = vld [vmem:[%s1 + $0x638] sm:$0xff]
    %v349 = vld [vmem:[%s1 + $0x640] sm:$0xff]
    %v350 = vld [vmem:[%s1 + $0x648] sm:$0xff]
    %v351 = vld [vmem:[%s1 + $0x650] sm:$0xff]
    %v352 = vld [vmem:[%s1 + $0x658] sm:$0xff]
    %v353 = vld [vmem:[%s1 + $0x660] sm:$0xff]
    %v354 = vld [vmem:[%s1 + $0x668] sm:$0xff]
    %v355 = vld [vmem:[%s1 + $0x670] sm:$0xff]
    %v356 = vld [vmem:[%s1 + $0x678] sm:$0xff]
    %v357 = vld [vmem:[%s1 + $0x680] sm:$0xff]
    %v358 = vld [vmem:[%s1 + $0x688] sm:$0xff]
    %v359 = vld [vmem:[%s1 + $0x690] sm:$0xff]
    %v360 = vld [vmem:[%s1 + $0x698] sm:$0xff]
    %v361 = vld [vmem:[%s1 + $0x6a0] sm:$0xff]
    %v362 = vld [vmem:[%s1 + $0x6a8] sm:$0xff]
    %v363 = vld [vmem:[%s1 + $0x6b0] sm:$0xff]
    %v364 = vld [vmem:[%s1 + $0x6b8] sm:$0xff]
    %v365 = vld [vmem:[%s1 + $0x6c0] sm:$0xff]
    %v366 = vld [vmem:[%s1 + $0x6c8] sm:$0xff]
    %v367 = vld [vmem:[%s1 + $0x6d0] sm:$0xff]
    %v368 = vld [vmem:[%s1 + $0x6d8] sm:$0xff]
    %v369 = vld [vmem:[%s1 + $0x6e0] sm:$0xff]
    %v370 = vld [vmem:[%s1 + $0x6e8] sm:$0xff]
    %v371 = vld [vmem:[%s1 + $0x6f0] sm:$0xff]
    %v372 = vld [vmem:[%s1 + $0x6f8] sm:$0xff]
    %v373 = vld [vmem:[%s1 + $0x700] sm:$0xff]
    %v374 = vld [vmem:[%s1 + $0x708] sm:$0xff]
    %v375 = vld [vmem:[%s1 + $0x710] sm:$0xff]
    %v376 = vld [vmem:[%s1 + $0x718] sm:$0xff]
    %v377 = vld [vmem:[%s1 + $0x720] sm:$0xff]
    %v378 = vld [vmem:[%s1 + $0x728] sm:$0xff]
    %v379 = vld [vmem:[%s1 + $0x730] sm:$0xff]
    %v380 = vld [vmem:[%s1 + $0x738] sm:$0xff]
    %v381 = vld [vmem:[%s1 + $0x740] sm:$0xff]
    %v382 = vld [vmem:[%s1 + $0x748] sm:$0xff]
    %v383 = vld [vmem:[%s1 + $0x750] sm:$0xff]
    %v384 = vld [vmem:[%s1 + $0x758] sm:$0xff]
    %v385 = vld [vmem:[%s1 + $0x760] sm:$0xff]
    %v386 = vld [vmem:[%s1 + $0x768] sm:$0xff]
    %v387 = vld [vmem:[%s1 + $0x770] sm:$0xff]
    %v388 = vld [vmem:[%s1 + $0x778] sm:$0xff]
    %v389 = vld [vmem:[%s1 + $0x780] sm:$0xff]
    %v390 = vld [vmem:[%s1 + $0x788] sm:$0xff]
    %v391 = vld [vmem:[%s1 + $0x790] sm:$0xff]
    %v392 = vld [vmem:[%s1 + $0x798] sm:$0xff]
    %v393 = vld [vmem:[%s1 + $0x7a0] sm:$0xff]
    %v394 = vld [vmem:[%s1 + $0x7a8] sm:$0xff]
    %v395 = vld [vmem:[%s1 + $0x7b0] sm:$0xff]
    %v396 = vld [vmem:[%s1 + $0x7b8] sm:$0xff]
    %v397 = vld [vmem:[%s1 + $0x7c0] sm:$0xff]
    %v398 = vld [vmem:[%s1 + $0x7c8] sm:$0xff]
    %v399 = vld [vmem:[%s1 + $0x7d0] sm:$0xff]
    %v400 = vld [vmem:[%s1 + $0x7d8] sm:$0xff]
    %v401 = vld [vmem:[%s1 + $0x7e0] sm:$0xff]
    %v402 = vld [vmem:[%s1 + $0x7e8] sm:$0xff]
    %v403 = vld [vmem:[%s1 + $0x7f0] sm:$0xff]
    %v404 = vld [vmem:[%s1 + $0x7f8] sm:$0xff]
    %v405 = vld [vmem:[%s1 + $0x800] sm:$0xff]
    %v406 = vld [vmem:[%s1 + $0x808] sm:$0xff]
    %v407 = vld [vmem:[%s1 + $0x810] sm:$0xff]
    %v408 = vld [vmem:[%s1 + $0x818] sm:$0xff]
    %v409 = vld [vmem:[%s1 + $0x820] sm:$0xff]
    %v410 = vld [vmem:[%s1 + $0x828] sm:$0xff]
    %v411 = vld [vmem:[%s1 + $0x830] sm:$0xff]
    %v412 = vld [vmem:[%s1 + $0x838] sm:$0xff]
    %v413 = vld [vmem:[%s1 + $0x840] sm:$0xff]
    %v414 = vld [vmem:[%s1 + $0x848] sm:$0xff]
    %v415 = vld [vmem:[%s1 + $0x850] sm:$0xff]
    %v416 = vld [vmem:[%s1 + $0x858] sm:$0xff]
    %v417 = vld [vmem:[%s1 + $0x860] sm:$0xff]
    %v418 = vld [vmem:[%s1 + $0x868] sm:$0xff]
    %v419 = vld [vmem:[%s1 + $0x870] sm:$0xff]
    %v420 = vld [vmem:[%s1 + $0x878] sm:$0xff]
    %v421 = vld [vmem:[%s1 + $0x880] sm:$0xff]
    %v422 = vld [vmem:[%s1 + $0x888] sm:$0xff]
    %v423 = vld [vmem:[%s1 + $0x890] sm:$0xff]
    %v424 = vld [vmem:[%s1 + $0x898] sm:$0xff]
    %v425 = vld [vmem:[%s1 + $0x8a0] sm:$0xff]
    %v426 = vld [vmem:[%s1 + $0x8a8] sm:$0xff]
    %v427 = vld [vmem:[%s1 + $0x8b0] sm:$0xff]
    %v428 = vld [vmem:[%s1 + $0x8b8] sm:$0xff]
    %v429 = vld [vmem:[%s1 + $0x8c0] sm:$0xff]
    %v430 = vld [vmem:[%s1 + $0x8c8] sm:$0xff]
    %v431 = vld [vmem:[%s1 + $0x8d0] sm:$0xff]
    %v432 = vld [vmem:[%s1 + $0x8d8] sm:$0xff]
    %v433 = vld [vmem:[%s1 + $0x8e0] sm:$0xff]
    %v434 = vld [vmem:[%s1 + $0x8e8] sm:$0xff]
    %v435 = vld [vmem:[%s1 + $0x8f0] sm:$0xff]
    %v436 = vld [vmem:[%s1 + $0x8f8] sm:$0xff]
    %v437 = vld [vmem:[%s1 + $0x900] sm:$0xff]
    %v438 = vld [vmem:[%s1 + $0x908] sm:$0xff]
    %v439 = vld [vmem:[%s1 + $0x910] sm:$0xff]
    %v440 = vld [vmem:[%s1 + $0x918] sm:$0xff]
    %v441 = vld [vmem:[%s1 + $0x920] sm:$0xff]
    %v442 = vld [vmem:[%s1 + $0x928] sm:$0xff]
    %v443 = vld [vmem:[%s1 + $0x930] sm:$0xff]
    %v444 = vld [vmem:[%s1 + $0x938] sm:$0xff]
    %v445 = vld [vmem:[%s1 + $0x940] sm:$0xff]
    %v446 = vld [vmem:[%s1 + $0x948] sm:$0xff]
    %v447 = vld [vmem:[%s1 + $0x950] sm:$0xff]
    %v448 = vld [vmem:[%s1 + $0x958] sm:$0xff]
    %v449 = vld [vmem:[%s1 + $0x960] sm:$0xff]
    %v450 = vld [vmem:[%s1 + $0x968] sm:$0xff]
    %v451 = vld [vmem:[%s1 + $0x970] sm:$0xff]
    %v452 = vld [vmem:[%s1 + $0x978] sm:$0xff]
    %v453 = vld [vmem:[%s1 + $0x980] sm:$0xff]
    %v454 = vld [vmem:[%s1 + $0x988] sm:$0xff]
    %v455 = vld [vmem:[%s1 + $0x990] sm:$0xff]
    %v456 = vld [vmem:[%s1 + $0x998] sm:$0xff]
    %v457 = vld [vmem:[%s1 + $0x9a0] sm:$0xff]
    %v458 = vld [vmem:[%s1 + $0x9a8] sm:$0xff]
    %v459 = vld [vmem:[%s1 + $0x9b0] sm:$0xff]
    %v460 = vld [vmem:[%s1 + $0x9b8] sm:$0xff]
    %v461 = vld [vmem:[%s1 + $0x9c0] sm:$0xff]
    %v462 = vld [vmem:[%s1 + $0x9c8] sm:$0xff]
    %v463 = vld [vmem:[%s1 + $0x9d0] sm:$0xff]
    %v464 = vld [vmem:[%s1 + $0x9d8] sm:$0xff]
    %v465 = vld [vmem:[%s1 + $0x9e0] sm:$0xff]
    %v466 = vld [vmem:[%s1 + $0x9e8] sm:$0xff]
    %v467 = vld [vmem:[%s1 + $0x9f0] sm:$0xff]
    %v468 = vld [vmem:[%s1 + $0x9f8] sm:$0xff]
    %v469 = vld [vmem:[%s1 + $0xa00] sm:$0xff]
    %v470 = vld [vmem:[%s1 + $0xa08] sm:$0xff]
    %v471 = vld [vmem:[%s1 + $0xa10] sm:$0xff]
    %v472 = vld [vmem:[%s1 + $0xa18] sm:$0xff]
    %v473 = vld [vmem:[%s1 + $0xa20] sm:$0xff]
    %v474 = vld [vmem:[%s1 + $0xa28] sm:$0xff]
    %v475 = vld [vmem:[%s1 + $0xa30] sm:$0xff]
    %v476 = vld [vmem:[%s1 + $0xa38] sm:$0xff]
    %v477 = vld [vmem:[%s1 + $0xa40] sm:$0xff]
    %v478 = vld [vmem:[%s1 + $0xa48] sm:$0xff]
    %v479 = vld [vmem:[%s1 + $0xa50] sm:$0xff]
    %v480 = vld [vmem:[%s1 + $0xa58] sm:$0xff]
    %v481 = vld [vmem:[%s1 + $0xa60] sm:$0xff]
    %v482 = vld [vmem:[%s1 + $0xa68] sm:$0xff]
    %v483 = vld [vmem:[%s1 + $0xa70] sm:$0xff]
    %v484 = vld [vmem:[%s1 + $0xa78] sm:$0xff]
    %v485 = vld [vmem:[%s1 + $0xa80] sm:$0xff]
    %v486 = vld [vmem:[%s1 + $0xa88] sm:$0xff]
    %v487 = vld [vmem:[%s1 + $0xa90] sm:$0xff]
    %v488 = vld [vmem:[%s1 + $0xa98] sm:$0xff]
    %v489 = vld [vmem:[%s1 + $0xaa0] sm:$0xff]
    %v490 = vld [vmem:[%s1 + $0xaa8] sm:$0xff]
    %v491 = vld [vmem:[%s1 + $0xab0] sm:$0xff]
    %v492 = vld [vmem:[%s1 + $0xab8] sm:$0xff]
    %v493 = vld [vmem:[%s1 + $0xac0] sm:$0xff]
    %v494 = vld [vmem:[%s1 + $0xac8] sm:$0xff]
    %v495 = vld [vmem:[%s1 + $0xad0] sm:$0xff]
    %v496 = vld [vmem:[%s1 + $0xad8] sm:$0xff]
    %v497 = vld [vmem:[%s1 + $0xae0] sm:$0xff]
    %v498 = vld [vmem:[%s1 + $0xae8] sm:$0xff]
    %v499 = vld [vmem:[%s1 + $0xaf0] sm:$0xff]
    %v500 = vld [vmem:[%s1 + $0xaf8] sm:$0xff]
    %v501 = vld [vmem:[%s1 + $0xb00] sm:$0xff]
    %v502 = vld [vmem:[%s1 + $0xb08] sm:$0xff]
    %v503 = vld [vmem:[%s1 + $0xb10] sm:$0xff]
    %v504 = vld [vmem:[%s1 + $0xb18] sm:$0xff]
    %v505 = vld [vmem:[%s1 + $0xb20] sm:$0xff]
    %v506 = vld [vmem:[%s1 + $0xb28] sm:$0xff]
    %v507 = vld [vmem:[%s1 + $0xb30] sm:$0xff]
    %v508 = vld [vmem:[%s1 + $0xb38] sm:$0xff]
    %v509 = vld [vmem:[%s1 + $0xb40] sm:$0xff]
    %v510 = vld [vmem:[%s1 + $0xb48] sm:$0xff]
    %v511 = vld [vmem:[%s1 + $0xb50] sm:$0xff]
    %v512 = vld [vmem:[%s1 + $0xb58] sm:$0xff]
    %v513 = vld [vmem:[%s1 + $0xb60] sm:$0xff]
    %v514 = vld [vmem:[%s1 + $0xb68] sm:$0xff]
    %v515 = vld [vmem:[%s1 + $0xb70] sm:$0xff]
    %v516 = vld [vmem:[%s1 + $0xb78] sm:$0xff]
    %v517 = vld [vmem:[%s1 + $0xb80] sm:$0xff]
    %v518 = vld [vmem:[%s1 + $0xb88] sm:$0xff]
    %v519 = vld [vmem:[%s1 + $0xb90] sm:$0xff]
    %v520 = vld [vmem:[%s1 + $0xb98] sm:$0xff]
    %v521 = vld [vmem:[%s1 + $0xba0] sm:$0xff]
    %v522 = vld [vmem:[%s1 + $0xba8] sm:$0xff]
    %v523 = vld [vmem:[%s1 + $0xbb0] sm:$0xff]
    %v524 = vld [vmem:[%s1 + $0xbb8] sm:$0xff]
    %v525 = vld [vmem:[%s1 + $0xbc0] sm:$0xff]
    %v526 = vld [vmem:[%s1 + $0xbc8] sm:$0xff]
    %v527 = vld [vmem:[%s1 + $0xbd0] sm:$0xff]
    %v528 = vld [vmem:[%s1 + $0xbd8] sm:$0xff]
    %v529 = vld [vmem:[%s1 + $0xbe0] sm:$0xff]
    %v530 = vld [vmem:[%s1 + $0xbe8] sm:$0xff]
    %v531 = vld [vmem:[%s1 + $0xbf0] sm:$0xff]
    %v532 = vld [vmem:[%s1 + $0xbf8] sm:$0xff]
    %v533 = vld [vmem:[%s1 + $0xc00] sm:$0xff]
    %v534 = vld [vmem:[%s1 + $0xc08] sm:$0xff]
    %v535 = vld [vmem:[%s1 + $0xc10] sm:$0xff]
    %v536 = vld [vmem:[%s1 + $0xc18] sm:$0xff]
    %v537 = vld [vmem:[%s1 + $0xc20] sm:$0xff]
    %v538 = vld [vmem:[%s1 + $0xc28] sm:$0xff]
    %v539 = vld [vmem:[%s1 + $0xc30] sm:$0xff]
    %v540 = vld [vmem:[%s1 + $0xc38] sm:$0xff]
    %v541 = vld [vmem:[%s1 + $0xc40] sm:$0xff]
    %v542 = vld [vmem:[%s1 + $0xc48] sm:$0xff]
    %v543 = vld [vmem:[%s1 + $0xc50] sm:$0xff]
    %v544 = vld [vmem:[%s1 + $0xc58] sm:$0xff]
    %v545 = vld [vmem:[%s1 + $0xc60] sm:$0xff]
    %v546 = vld [vmem:[%s1 + $0xc68] sm:$0xff]
    %v547 = vld [vmem:[%s1 + $0xc70] sm:$0xff]
    %v548 = vld [vmem:[%s1 + $0xc78] sm:$0xff]
    %v549 = vld [vmem:[%s1 + $0xc80] sm:$0xff]
    %v550 = vld [vmem:[%s1 + $0xc88] sm:$0xff]
    %v551 = vld [vmem:[%s1 + $0xc90] sm:$0xff]
    %v552 = vld [vmem:[%s1 + $0xc98] sm:$0xff]
    %v553 = vld [vmem:[%s1 + $0xca0] sm:$0xff]
    %v554 = vld [vmem:[%s1 + $0xca8] sm:$0xff]
    %v555 = vld [vmem:[%s1 + $0xcb0] sm:$0xff]
    %v556 = vld [vmem:[%s1 + $0xcb8] sm:$0xff]
    %v557 = vld [vmem:[%s1 + $0xcc0] sm:$0xff]
    %v558 = vld [vmem:[%s1 + $0xcc8] sm:$0xff]
    %v559 = vld [vmem:[%s1 + $0xcd0] sm:$0xff]
    %v560 = vld [vmem:[%s1 + $0xcd8] sm:$0xff]
    %v561 = vld [vmem:[%s1 + $0xce0] sm:$0xff]
    %v562 = vld [vmem:[%s1 + $0xce8] sm:$0xff]
    %v563 = vld [vmem:[%s1 + $0xcf0] sm:$0xff]
    %v564 = vld [vmem:[%s1 + $0xcf8] sm:$0xff]
    %v565 = vld [vmem:[%s1 + $0xd00] sm:$0xff]
    %v566 = vld [vmem:[%s1 + $0xd08] sm:$0xff]
    %v567 = vld [vmem:[%s1 + $0xd10] sm:$0xff]
    %v568 = vld [vmem:[%s1 + $0xd18] sm:$0xff]
    %v569 = vld [vmem:[%s1 + $0xd20] sm:$0xff]
    %v570 = vld [vmem:[%s1 + $0xd28] sm:$0xff]
    %v571 = vld [vmem:[%s1 + $0xd30] sm:$0xff]
    %v572 = vld [vmem:[%s1 + $0xd38] sm:$0xff]
    %v573 = vld [vmem:[%s1 + $0xd40] sm:$0xff]
    %v574 = vld [vmem:[%s1 + $0xd48] sm:$0xff]
    %v575 = vld [vmem:[%s1 + $0xd50] sm:$0xff]
    %v576 = vld [vmem:[%s1 + $0xd58] sm:$0xff]
    %v577 = vld [vmem:[%s1 + $0xd60] sm:$0xff]
    %v578 = vld [vmem:[%s1 + $0xd68] sm:$0xff]
    %v579 = vld [vmem:[%s1 + $0xd70] sm:$0xff]
    %v580 = vld [vmem:[%s1 + $0xd78] sm:$0xff]
    %v581 = vld [vmem:[%s1 + $0xd80] sm:$0xff]
    %v582 = vld [vmem:[%s1 + $0xd88] sm:$0xff]
    %v583 = vld [vmem:[%s1 + $0xd90] sm:$0xff]
    %v584 = vld [vmem:[%s1 + $0xd98] sm:$0xff]
    %v585 = vld [vmem:[%s1 + $0xda0] sm:$0xff]
    %v586 = vld [vmem:[%s1 + $0xda8] sm:$0xff]
    %v587 = vld [vmem:[%s1 + $0xdb0] sm:$0xff]
    %v588 = vld [vmem:[%s1 + $0xdb8] sm:$0xff]
    %v589 = vld [vmem:[%s1 + $0xdc0] sm:$0xff]
    %v590 = vld [vmem:[%s1 + $0xdc8] sm:$0xff]
    %v591 = vld [vmem:[%s1 + $0xdd0] sm:$0xff]
    %v592 = vld [vmem:[%s1 + $0xdd8] sm:$0xff]
    %v593 = vld [vmem:[%s1 + $0xde0] sm:$0xff]
    %v594 = vld [vmem:[%s1 + $0xde8] sm:$0xff]
    %v595 = vld [vmem:[%s1 + $0xdf0] sm:$0xff]
    %v596 = vld [vmem:[%s1 + $0xdf8] sm:$0xff]
    %v597 = vld [vmem:[%s1 + $0xe00] sm:$0xff]
    %v598 = vld [vmem:[%s1 + $0xe08] sm:$0xff]
    %v599 = vld [vmem:[%s1 + $0xe10] sm:$0xff]
    %v600 = vld [vmem:[%s1 + $0xe18] sm:$0xff]
    %v601 = vld [vmem:[%s1 + $0xe20] sm:$0xff]
    %v602 = vld [vmem:[%s1 + $0xe28] sm:$0xff]
    %v603 = vld [vmem:[%s1 + $0xe30] sm:$0xff]
    %v604 = vld [vmem:[%s1 + $0xe38] sm:$0xff]
    %v605 = vld [vmem:[%s1 + $0xe40] sm:$0xff]
    %v606 = vld [vmem:[%s1 + $0xe48] sm:$0xff]
    %v607 = vld [vmem:[%s1 + $0xe50] sm:$0xff]
    %v608 = vld [vmem:[%s1 + $0xe58] sm:$0xff]
    %v609 = vld [vmem:[%s1 + $0xe60] sm:$0xff]
    %v610 = vld [vmem:[%s1 + $0xe68] sm:$0xff]
    %v611 = vld [vmem:[%s1 + $0xe70] sm:$0xff]
    %v612 = vld [vmem:[%s1 + $0xe78] sm:$0xff]
    %v613 = vld [vmem:[%s1 + $0xe80] sm:$0xff]
    %v614 = vld [vmem:[%s1 + $0xe88] sm:$0xff]
    %v615 = vld [vmem:[%s1 + $0xe90] sm:$0xff]
    %v616 = vld [vmem:[%s1 + $0xe98] sm:$0xff]
    %v617 = vld [vmem:[%s1 + $0xea0] sm:$0xff]
    %v618 = vld [vmem:[%s1 + $0xea8] sm:$0xff]
    %v619 = vld [vmem:[%s1 + $0xeb0] sm:$0xff]
    %v620 = vld [vmem:[%s1 + $0xeb8] sm:$0xff]
    %v621 = vld [vmem:[%s1 + $0xec0] sm:$0xff]
    %v622 = vld [vmem:[%s1 + $0xec8] sm:$0xff]
    %v623 = vld [vmem:[%s1 + $0xed0] sm:$0xff]
    %v624 = vld [vmem:[%s1 + $0xed8] sm:$0xff]
    %v625 = vld [vmem:[%s1 + $0xee0] sm:$0xff]
    %v626 = vld [vmem:[%s1 + $0xee8] sm:$0xff]
    %v627 = vld [vmem:[%s1 + $0xef0] sm:$0xff]
    %v628 = vld [vmem:[%s1 + $0xef8] sm:$0xff]
    %v629 = vld [vmem:[%s1 + $0xf00] sm:$0xff]
    %v630 = vld [vmem:[%s1 + $0xf08] sm:$0xff]
    %v631 = vld [vmem:[%s1 + $0xf10] sm:$0xff]
    %v632 = vld [vmem:[%s1 + $0xf18] sm:$0xff]
    %v633 = vld [vmem:[%s1 + $0xf20] sm:$0xff]
    %v634 = vld [vmem:[%s1 + $0xf28] sm:$0xff]
    %v635 = vld [vmem:[%s1 + $0xf30] sm:$0xff]
    %v636 = vld [vmem:[%s1 + $0xf38] sm:$0xff]
    %v637 = vld [vmem:[%s1 + $0xf40] sm:$0xff]
    %v638 = vld [vmem:[%s1 + $0xf48] sm:$0xff]
    %v639 = vld [vmem:[%s1 + $0xf50] sm:$0xff]
    %v640 = vld [vmem:[%s1 + $0xf58] sm:$0xff]
    %v641 = vld [vmem:[%s1 + $0xf60] sm:$0xff]
    %v642 = vld [vmem:[%s1 + $0xf68] sm:$0xff]
    %v643 = vld [vmem:[%s1 + $0xf70] sm:$0xff]
    %v644 = vld [vmem:[%s1 + $0xf78] sm:$0xff]
    %v645 = vld [vmem:[%s1 + $0xf80] sm:$0xff]
    %v646 = vld [vmem:[%s1 + $0xf88] sm:$0xff]
    %v647 = vld [vmem:[%s1 + $0xf90] sm:$0xff]
    %v648 = vld [vmem:[%s1 + $0xf98] sm:$0xff]
    %v649 = vld [vmem:[%s1 + $0xfa0] sm:$0xff]
    %v650 = vld [vmem:[%s1 + $0xfa8] sm:$0xff]
    %v651 = vld [vmem:[%s1 + $0xfb0] sm:$0xff]
    %v652 = vld [vmem:[%s1 + $0xfb8] sm:$0xff]
    %v653 = vld [vmem:[%s1 + $0xfc0] sm:$0xff]
    %v654 = vld [vmem:[%s1 + $0xfc8] sm:$0xff]
    %v655 = vld [vmem:[%s1 + $0xfd0] sm:$0xff]
    %v656 = vld [vmem:[%s1 + $0xfd8] sm:$0xff]
    %v657 = vld [vmem:[%s1 + $0xfe0] sm:$0xff]
    %v658 = vld [vmem:[%s1 + $0xfe8] sm:$0xff]
    %v659 = vld [vmem:[%s1 + $0xff0] sm:$0xff]
    %v660 = vld [vmem:[%s1 + $0xff8] sm:$0xff]
    %v661 = vld [vmem:[%s1 + $0x1000] sm:$0xff]
    %v662 = vld [vmem:[%s1 + $0x1008] sm:$0xff]
    %v663 = vld [vmem:[%s1 + $0x1010] sm:$0xff]
    %v664 = vld [vmem:[%s1 + $0x1018] sm:$0xff]
    %v665 = vld [vmem:[%s1 + $0x1020] sm:$0xff]
    %v666 = vld [vmem:[%s1 + $0x1028] sm:$0xff]
    %v667 = vld [vmem:[%s1 + $0x1030] sm:$0xff]
    %v668 = vld [vmem:[%s1 + $0x1038] sm:$0xff]
    %v669 = vld [vmem:[%s1 + $0x1040] sm:$0xff]
    %v670 = vld [vmem:[%s1 + $0x1048] sm:$0xff]
    %v671 = vld [vmem:[%s1 + $0x1050] sm:$0xff]
    %v672 = vld [vmem:[%s1 + $0x1058] sm:$0xff]
    %v673 = vld [vmem:[%s1 + $0x1060] sm:$0xff]
    %v674 = vld [vmem:[%s1 + $0x1068] sm:$0xff]
    %v675 = vld [vmem:[%s1 + $0x1070] sm:$0xff]
    %v676 = vld [vmem:[%s1 + $0x1078] sm:$0xff]
    %v677 = vld [vmem:[%s1 + $0x1080] sm:$0xff]
    %v678 = vld [vmem:[%s1 + $0x1088] sm:$0xff]
    %v679 = vld [vmem:[%s1 + $0x1090] sm:$0xff]
    %v680 = vld [vmem:[%s1 + $0x1098] sm:$0xff]
    %v681 = vld [vmem:[%s1 + $0x10a0] sm:$0xff]
    %v682 = vld [vmem:[%s1 + $0x10a8] sm:$0xff]
    %v683 = vld [vmem:[%s1 + $0x10b0] sm:$0xff]
    %v684 = vld [vmem:[%s1 + $0x10b8] sm:$0xff]
    %v685 = vld [vmem:[%s1 + $0x10c0] sm:$0xff]
    %v686 = vld [vmem:[%s1 + $0x10c8] sm:$0xff]
    %v687 = vld [vmem:[%s1 + $0x10d0] sm:$0xff]
    %v688 = vld [vmem:[%s1 + $0x10d8] sm:$0xff]
    %v689 = vld [vmem:[%s1 + $0x10e0] sm:$0xff]
    %v690 = vld [vmem:[%s1 + $0x10e8] sm:$0xff]
    %v691 = vld [vmem:[%s1 + $0x10f0] sm:$0xff]
    %v692 = vld [vmem:[%s1 + $0x10f8] sm:$0xff]
    %v693 = vld [vmem:[%s1 + $0x1100] sm:$0xff]
    %v694 = vld [vmem:[%s1 + $0x1108] sm:$0xff]
    %v695 = vld [vmem:[%s1 + $0x1110] sm:$0xff]
    %v696 = vld [vmem:[%s1 + $0x1118] sm:$0xff]
    %v697 = vld [vmem:[%s1 + $0x1120] sm:$0xff]
    %v698 = vld [vmem:[%s1 + $0x1128] sm:$0xff]
    %v699 = vld [vmem:[%s1 + $0x1130] sm:$0xff]
    %v700 = vld [vmem:[%s1 + $0x1138] sm:$0xff]
    %v701 = vld [vmem:[%s1 + $0x1140] sm:$0xff]
    %v702 = vld [vmem:[%s1 + $0x1148] sm:$0xff]
    %v703 = vld [vmem:[%s1 + $0x1150] sm:$0xff]
    %v704 = vld [vmem:[%s1 + $0x1158] sm:$0xff]
    %v705 = vld [vmem:[%s1 + $0x1160] sm:$0xff]
    %v706 = vld [vmem:[%s1 + $0x1168] sm:$0xff]
    %v707 = vld [vmem:[%s1 + $0x1170] sm:$0xff]
    %v708 = vld [vmem:[%s1 + $0x1178] sm:$0xff]
    %v709 = vld [vmem:[%s1 + $0x1180] sm:$0xff]
    %v710 = vld [vmem:[%s1 + $0x1188] sm:$0xff]
    %v711 = vld [vmem:[%s1 + $0x1190] sm:$0xff]
    %v712 = vld [vmem:[%s1 + $0x1198] sm:$0xff]
    %v713 = vld [vmem:[%s1 + $0x11a0] sm:$0xff]
    %v714 = vld [vmem:[%s1 + $0x11a8] sm:$0xff]
    %v715 = vld [vmem:[%s1 + $0x11b0] sm:$0xff]
    %v716 = vld [vmem:[%s1 + $0x11b8] sm:$0xff]
    %v717 = vld [vmem:[%s1 + $0x11c0] sm:$0xff]
    %v718 = vld [vmem:[%s1 + $0x11c8] sm:$0xff]
    %v719 = vld [vmem:[%s1 + $0x11d0] sm:$0xff]
    %v720 = vld [vmem:[%s1 + $0x11d8] sm:$0xff]
    %v721 = vld [vmem:[%s1 + $0x11e0] sm:$0xff]
    %v722 = vld [vmem:[%s1 + $0x11e8] sm:$0xff]
    %v723 = vld [vmem:[%s1 + $0x11f0] sm:$0xff]
    %v724 = vld [vmem:[%s1 + $0x11f8] sm:$0xff]
    %v725 = vld [vmem:[%s1 + $0x1200] sm:$0xff]
    %v726 = vld [vmem:[%s1 + $0x1208] sm:$0xff]
    %v727 = vld [vmem:[%s1 + $0x1210] sm:$0xff]
    %v728 = vld [vmem:[%s1 + $0x1218] sm:$0xff]
    %v729 = vld [vmem:[%s1 + $0x1220] sm:$0xff]
    %v730 = vld [vmem:[%s1 + $0x1228] sm:$0xff]
    %v731 = vld [vmem:[%s1 + $0x1230] sm:$0xff]
    %v732 = vld [vmem:[%s1 + $0x1238] sm:$0xff]
    %v733 = vld [vmem:[%s1 + $0x1240] sm:$0xff]
    %v734 = vld [vmem:[%s1 + $0x1248] sm:$0xff]
    %v735 = vld [vmem:[%s1 + $0x1250] sm:$0xff]
    %v736 = vld [vmem:[%s1 + $0x1258] sm:$0xff]
    %v737 = vld [vmem:[%s1 + $0x1260] sm:$0xff]
    %v738 = vld [vmem:[%s1 + $0x1268] sm:$0xff]
    %v739 = vld [vmem:[%s1 + $0x1270] sm:$0xff]
    %v740 = vld [vmem:[%s1 + $0x1278] sm:$0xff]
    %v741 = vld [vmem:[%s1 + $0x1280] sm:$0xff]
    %v742 = vld [vmem:[%s1 + $0x1288] sm:$0xff]
    %v743 = vld [vmem:[%s1 + $0x1290] sm:$0xff]
    %v744 = vld [vmem:[%s1 + $0x1298] sm:$0xff]
    %v745 = vld [vmem:[%s1 + $0x12a0] sm:$0xff]
    %v746 = vld [vmem:[%s1 + $0x12a8] sm:$0xff]
    %v747 = vld [vmem:[%s1 + $0x12b0] sm:$0xff]
    %v748 = vld [vmem:[%s1 + $0x12b8] sm:$0xff]
    %v749 = vld [vmem:[%s1 + $0x12c0] sm:$0xff]
    %v750 = vld [vmem:[%s1 + $0x12c8] sm:$0xff]
    %v751 = vld [vmem:[%s1 + $0x12d0] sm:$0xff]
    %v752 = vld [vmem:[%s1 + $0x12d8] sm:$0xff]
    %v753 = vld [vmem:[%s1 + $0x12e0] sm:$0xff]
    %v754 = vld [vmem:[%s1 + $0x12e8] sm:$0xff]
    %v755 = vld [vmem:[%s1 + $0x12f0] sm:$0xff]
    %v756 = vld [vmem:[%s1 + $0x12f8] sm:$0xff]
    %v757 = vld [vmem:[%s1 + $0x1300] sm:$0xff]
    %v758 = vld [vmem:[%s1 + $0x1308] sm:$0xff]
    %v759 = vld [vmem:[%s1 + $0x1310] sm:$0xff]
    %v760 = vld [vmem:[%s1 + $0x1318] sm:$0xff]
    %v761 = vld [vmem:[%s1 + $0x1320] sm:$0xff]
    %v762 = vld [vmem:[%s1 + $0x1328] sm:$0xff]
    %v763 = vld [vmem:[%s1 + $0x1330] sm:$0xff]
    %v764 = vld [vmem:[%s1 + $0x1338] sm:$0xff]
    %v765 = vld [vmem:[%s1 + $0x1340] sm:$0xff]
    %v766 = vld [vmem:[%s1 + $0x1348] sm:$0xff]
    %v767 = vld [vmem:[%s1 + $0x1350] sm:$0xff]
    %v768 = vld [vmem:[%s1 + $0x1358] sm:$0xff]
    %v769 = vld [vmem:[%s1 + $0x1360] sm:$0xff]
    %v770 = vld [vmem:[%s1 + $0x1368] sm:$0xff]
    %v771 = vld [vmem:[%s1 + $0x1370] sm:$0xff]
    %v772 = vld [vmem:[%s1 + $0x1378] sm:$0xff]
    %v773 = vld [vmem:[%s1 + $0x1380] sm:$0xff]
    %v774 = vld [vmem:[%s1 + $0x1388] sm:$0xff]
    %v775 = vld [vmem:[%s1 + $0x1390] sm:$0xff]
    %v776 = vld [vmem:[%s1 + $0x1398] sm:$0xff]
    %v777 = vld [vmem:[%s1 + $0x13a0] sm:$0xff]
    %v778 = vld [vmem:[%s1 + $0x13a8] sm:$0xff]
    %v779 = vld [vmem:[%s1 + $0x13b0] sm:$0xff]
    %v780 = vld [vmem:[%s1 + $0x13b8] sm:$0xff]
    %v781 = vld [vmem:[%s1 + $0x13c0] sm:$0xff]
    %v782 = vld [vmem:[%s1 + $0x13c8] sm:$0xff]
    %v783 = vld [vmem:[%s1 + $0x13d0] sm:$0xff]
    %v784 = vld [vmem:[%s1 + $0x13d8] sm:$0xff]
    %v785 = vld [vmem:[%s1 + $0x13e0] sm:$0xff]
    %v786 = vld [vmem:[%s1 + $0x13e8] sm:$0xff]
    %v787 = vld [vmem:[%s1 + $0x13f0] sm:$0xff]
    %v788 = vld [vmem:[%s1 + $0x13f8] sm:$0xff]
    %v789 = vld [vmem:[%s1 + $0x1400] sm:$0xff]
    %v790 = vld [vmem:[%s1 + $0x1408] sm:$0xff]
    %v791 = vld [vmem:[%s1 + $0x1410] sm:$0xff]
    %v792 = vld [vmem:[%s1 + $0x1418] sm:$0xff]
    %v793 = vld [vmem:[%s1 + $0x1420] sm:$0xff]
    %v794 = vld [vmem:[%s1 + $0x1428] sm:$0xff]
    %v795 = vld [vmem:[%s1 + $0x1430] sm:$0xff]
    %v796 = vld [vmem:[%s1 + $0x1438] sm:$0xff]
    %v797 = vld [vmem:[%s1 + $0x1440] sm:$0xff]
    %v798 = vld [vmem:[%s1 + $0x1448] sm:$0xff]
    %v799 = vld [vmem:[%s1 + $0x1450] sm:$0xff]
    %v800 = vld [vmem:[%s1 + $0x1458] sm:$0xff]
    %v801 = vld [vmem:[%s1 + $0x1460] sm:$0xff]
    %v802 = vld [vmem:[%s1 + $0x1468] sm:$0xff]
    %v803 = vld [vmem:[%s1 + $0x1470] sm:$0xff]
    %v804 = vld [vmem:[%s1 + $0x1478] sm:$0xff]
    %v805 = vld [vmem:[%s1 + $0x1480] sm:$0xff]
    %v806 = vld [vmem:[%s1 + $0x1488] sm:$0xff]
    %v807 = vld [vmem:[%s1 + $0x1490] sm:$0xff]
    %v808 = vld [vmem:[%s1 + $0x1498] sm:$0xff]
    %v809 = vld [vmem:[%s1 + $0x14a0] sm:$0xff]
    %v810 = vld [vmem:[%s1 + $0x14a8] sm:$0xff]
    %v811 = vld [vmem:[%s1 + $0x14b0] sm:$0xff]
    %v812 = vld [vmem:[%s1 + $0x14b8] sm:$0xff]
    %v813 = vld [vmem:[%s1 + $0x14c0] sm:$0xff]
    %v814 = vld [vmem:[%s1 + $0x14c8] sm:$0xff]
    %v815 = vld [vmem:[%s1 + $0x14d0] sm:$0xff]
    %v816 = vld [vmem:[%s1 + $0x14d8] sm:$0xff]
    %v817 = vld [vmem:[%s1 + $0x14e0] sm:$0xff]
    %v818 = vld [vmem:[%s1 + $0x14e8] sm:$0xff]
    %v819 = vld [vmem:[%s1 + $0x14f0] sm:$0xff]
    %v820 = vld [vmem:[%s1 + $0x14f8] sm:$0xff]
    %v821 = vld [vmem:[%s1 + $0x1500] sm:$0xff]
    %v822 = vld [vmem:[%s1 + $0x1508] sm:$0xff]
    %v823 = vld [vmem:[%s1 + $0x1510] sm:$0xff]
    %v824 = vld [vmem:[%s1 + $0x1518] sm:$0xff]
    %v825 = vld [vmem:[%s1 + $0x1520] sm:$0xff]
    %v826 = vld [vmem:[%s1 + $0x1528] sm:$0xff]
    %v827 = vld [vmem:[%s1 + $0x1530] sm:$0xff]
    %v828 = vld [vmem:[%s1 + $0x1538] sm:$0xff]
    %v829 = vld [vmem:[%s1 + $0x1540] sm:$0xff]
    %v830 = vld [vmem:[%s1 + $0x1548] sm:$0xff]
    %v831 = vld [vmem:[%s1 + $0x1550] sm:$0xff]
    %v832 = vld [vmem:[%s1 + $0x1558] sm:$0xff]
    %v833 = vld [vmem:[%s1 + $0x1560] sm:$0xff]
    %v834 = vld [vmem:[%s1 + $0x1568] sm:$0xff]
    %v835 = vld [vmem:[%s1 + $0x1570] sm:$0xff]
    %v836 = vld [vmem:[%s1 + $0x1578] sm:$0xff]
    %v837 = vld [vmem:[%s1 + $0x1580] sm:$0xff]
    %v838 = vld [vmem:[%s1 + $0x1588] sm:$0xff]
    %v839 = vld [vmem:[%s1 + $0x1590] sm:$0xff]
    %v840 = vld [vmem:[%s1 + $0x1598] sm:$0xff]
    %v841 = vld [vmem:[%s1 + $0x15a0] sm:$0xff]
    %v842 = vld [vmem:[%s1 + $0x15a8] sm:$0xff]
    %v843 = vld [vmem:[%s1 + $0x15b0] sm:$0xff]
    %v844 = vld [vmem:[%s1 + $0x15b8] sm:$0xff]
    %v845 = vld [vmem:[%s1 + $0x15c0] sm:$0xff]
    %v846 = vld [vmem:[%s1 + $0x15c8] sm:$0xff]
    %v847 = vld [vmem:[%s1 + $0x15d0] sm:$0xff]
    %v848 = vld [vmem:[%s1 + $0x15d8] sm:$0xff]
    %v849 = vld [vmem:[%s1 + $0x15e0] sm:$0xff]
    %v850 = vld [vmem:[%s1 + $0x15e8] sm:$0xff]
    %v851 = vld [vmem:[%s1 + $0x15f0] sm:$0xff]
    %v852 = vld [vmem:[%s1 + $0x15f8] sm:$0xff]
    %v853 = vld [vmem:[%s1 + $0x1600] sm:$0xff]
    %v854 = vld [vmem:[%s1 + $0x1608] sm:$0xff]
    %v855 = vld [vmem:[%s1 + $0x1610] sm:$0xff]
    %v856 = vld [vmem:[%s1 + $0x1618] sm:$0xff]
    %v857 = vld [vmem:[%s1 + $0x1620] sm:$0xff]
    %v858 = vld [vmem:[%s1 + $0x1628] sm:$0xff]
    %v859 = vld [vmem:[%s1 + $0x1630] sm:$0xff]
    %v860 = vld [vmem:[%s1 + $0x1638] sm:$0xff]
    %v861 = vld [vmem:[%s1 + $0x1640] sm:$0xff]
    %v862 = vld [vmem:[%s1 + $0x1648] sm:$0xff]
    %v863 = vld [vmem:[%s1 + $0x1650] sm:$0xff]
    %v864 = vld [vmem:[%s1 + $0x1658] sm:$0xff]
    %v865 = vld [vmem:[%s1 + $0x1660] sm:$0xff]
    %v866 = vld [vmem:[%s1 + $0x1668] sm:$0xff]
    %v867 = vld [vmem:[%s1 + $0x1670] sm:$0xff]
    %v868 = vld [vmem:[%s1 + $0x1678] sm:$0xff]
    %v869 = vld [vmem:[%s1 + $0x1680] sm:$0xff]
    %v870 = vld [vmem:[%s1 + $0x1688] sm:$0xff]
    %v871 = vld [vmem:[%s1 + $0x1690] sm:$0xff]
    %v872 = vld [vmem:[%s1 + $0x1698] sm:$0xff]
    %v873 = vld [vmem:[%s1 + $0x16a0] sm:$0xff]
    %v874 = vld [vmem:[%s1 + $0x16a8] sm:$0xff]
    %v875 = vld [vmem:[%s1 + $0x16b0] sm:$0xff]
    %v876 = vld [vmem:[%s1 + $0x16b8] sm:$0xff]
    %v877 = vld [vmem:[%s1 + $0x16c0] sm:$0xff]
    %v878 = vld [vmem:[%s1 + $0x16c8] sm:$0xff]
    %v879 = vld [vmem:[%s1 + $0x16d0] sm:$0xff]
    %v880 = vld [vmem:[%s1 + $0x16d8] sm:$0xff]
    %v881 = vld [vmem:[%s1 + $0x16e0] sm:$0xff]
    %v882 = vld [vmem:[%s1 + $0x16e8] sm:$0xff]
    %v883 = vld [vmem:[%s1 + $0x16f0] sm:$0xff]
    %v884 = vld [vmem:[%s1 + $0x16f8] sm:$0xff]
    %v885 = vld [vmem:[%s1 + $0x1700] sm:$0xff]
    %v886 = vld [vmem:[%s1 + $0x1708] sm:$0xff]
    %v887 = vld [vmem:[%s1 + $0x1710] sm:$0xff]
    %v888 = vld [vmem:[%s1 + $0x1718] sm:$0xff]
    %v889 = vld [vmem:[%s1 + $0x1720] sm:$0xff]
    %v890 = vld [vmem:[%s1 + $0x1728] sm:$0xff]
    %v891 = vld [vmem:[%s1 + $0x1730] sm:$0xff]
    %v892 = vld [vmem:[%s1 + $0x1738] sm:$0xff]
    %v893 = vld [vmem:[%s1 + $0x1740] sm:$0xff]
    %v894 = vld [vmem:[%s1 + $0x1748] sm:$0xff]
    %v895 = vld [vmem:[%s1 + $0x1750] sm:$0xff]
    %v896 = vld [vmem:[%s1 + $0x1758] sm:$0xff]
    %v897 = vld [vmem:[%s1 + $0x1760] sm:$0xff]
    %v898 = vld [vmem:[%s1 + $0x1768] sm:$0xff]
    %v899 = vld [vmem:[%s1 + $0x1770] sm:$0xff]
    %v900 = vld [vmem:[%s1 + $0x1778] sm:$0xff]
    %v901 = vld [vmem:[%s1 + $0x1780] sm:$0xff]
    %v902 = vld [vmem:[%s1 + $0x1788] sm:$0xff]
    %v903 = vld [vmem:[%s1 + $0x1790] sm:$0xff]
    %v904 = vld [vmem:[%s1 + $0x1798] sm:$0xff]
    %v905 = vld [vmem:[%s1 + $0x17a0] sm:$0xff]
    %v906 = vld [vmem:[%s1 + $0x17a8] sm:$0xff]
    %v907 = vld [vmem:[%s1 + $0x17b0] sm:$0xff]
    %v908 = vld [vmem:[%s1 + $0x17b8] sm:$0xff]
    %v909 = vld [vmem:[%s1 + $0x17c0] sm:$0xff]
    %v910 = vld [vmem:[%s1 + $0x17c8] sm:$0xff]
    %v911 = vld [vmem:[%s1 + $0x17d0] sm:$0xff]
    %v912 = vld [vmem:[%s1 + $0x17d8] sm:$0xff]
    %v913 = vld [vmem:[%s1 + $0x17e0] sm:$0xff]
    %v914 = vld [vmem:[%s1 + $0x17e8] sm:$0xff]
    %v915 = vld [vmem:[%s1 + $0x17f0] sm:$0xff]
    %v916 = vld [vmem:[%s1 + $0x17f8] sm:$0xff]
    %v917 = vld [vmem:[%s1 + $0x1800] sm:$0xff]
    %v918 = vld [vmem:[%s1 + $0x1808] sm:$0xff]
    %v919 = vld [vmem:[%s1 + $0x1810] sm:$0xff]
    %v920 = vld [vmem:[%s1 + $0x1818] sm:$0xff]
    %v921 = vld [vmem:[%s1 + $0x1820] sm:$0xff]
    %v922 = vld [vmem:[%s1 + $0x1828] sm:$0xff]
    %v923 = vld [vmem:[%s1 + $0x1830] sm:$0xff]
    %v924 = vld [vmem:[%s1 + $0x1838] sm:$0xff]
    %v925 = vld [vmem:[%s1 + $0x1840] sm:$0xff]
    %v926 = vld [vmem:[%s1 + $0x1848] sm:$0xff]
    %v927 = vld [vmem:[%s1 + $0x1850] sm:$0xff]
    %v928 = vld [vmem:[%s1 + $0x1858] sm:$0xff]
    %v929 = vld [vmem:[%s1 + $0x1860] sm:$0xff]
    %v930 = vld [vmem:[%s1 + $0x1868] sm:$0xff]
    %v931 = vld [vmem:[%s1 + $0x1870] sm:$0xff]
    %v932 = vld [vmem:[%s1 + $0x1878] sm:$0xff]
    %v933 = vld [vmem:[%s1 + $0x1880] sm:$0xff]
    %v934 = vld [vmem:[%s1 + $0x1888] sm:$0xff]
    %v935 = vld [vmem:[%s1 + $0x1890] sm:$0xff]
    %v936 = vld [vmem:[%s1 + $0x1898] sm:$0xff]
    %v937 = vld [vmem:[%s1 + $0x18a0] sm:$0xff]
    %v938 = vld [vmem:[%s1 + $0x18a8] sm:$0xff]
    %v939 = vld [vmem:[%s1 + $0x18b0] sm:$0xff]
    %v940 = vld [vmem:[%s1 + $0x18b8] sm:$0xff]
    %v941 = vld [vmem:[%s1 + $0x18c0] sm:$0xff]
    %v942 = vld [vmem:[%s1 + $0x18c8] sm:$0xff]
    %v943 = vld [vmem:[%s1 + $0x18d0] sm:$0xff]
    %v944 = vld [vmem:[%s1 + $0x18d8] sm:$0xff]
    %v945 = vld [vmem:[%s1 + $0x18e0] sm:$0xff]
    %v946 = vld [vmem:[%s1 + $0x18e8] sm:$0xff]
    %v947 = vld [vmem:[%s1 + $0x18f0] sm:$0xff]
    %v948 = vld [vmem:[%s1 + $0x18f8] sm:$0xff]
    %v949 = vld [vmem:[%s1 + $0x1900] sm:$0xff]
    %v950 = vld [vmem:[%s1 + $0x1908] sm:$0xff]
    %v951 = vld [vmem:[%s1 + $0x1910] sm:$0xff]
    %v952 = vld [vmem:[%s1 + $0x1918] sm:$0xff]
    %v953 = vld [vmem:[%s1 + $0x1920] sm:$0xff]
    %v954 = vld [vmem:[%s1 + $0x1928] sm:$0xff]
    %v955 = vld [vmem:[%s1 + $0x1930] sm:$0xff]
    %v956 = vld [vmem:[%s1 + $0x1938] sm:$0xff]
    %v957 = vld [vmem:[%s1 + $0x1940] sm:$0xff]
    %v958 = vld [vmem:[%s1 + $0x1948] sm:$0xff]
    %v959 = vld [vmem:[%s1 + $0x1950] sm:$0xff]
    %v960 = vld [vmem:[%s1 + $0x1958] sm:$0xff]
    %v961 = vld [vmem:[%s1 + $0x1960] sm:$0xff]
    %v962 = vld [vmem:[%s1 + $0x1968] sm:$0xff]
    %v963 = vld [vmem:[%s1 + $0x1970] sm:$0xff]
    %v964 = vld [vmem:[%s1 + $0x1978] sm:$0xff]
    %v965 = vld [vmem:[%s1 + $0x1980] sm:$0xff]
    %v966 = vld [vmem:[%s1 + $0x1988] sm:$0xff]
    %v967 = vld [vmem:[%s1 + $0x1990] sm:$0xff]
    %v968 = vld [vmem:[%s1 + $0x1998] sm:$0xff]
    %v969 = vld [vmem:[%s1 + $0x19a0] sm:$0xff]
    %v970 = vld [vmem:[%s1 + $0x19a8] sm:$0xff]
    %v971 = vld [vmem:[%s1 + $0x19b0] sm:$0xff]
    %v972 = vld [vmem:[%s1 + $0x19b8] sm:$0xff]
    %v973 = vld [vmem:[%s1 + $0x19c0] sm:$0xff]
    %v974 = vld [vmem:[%s1 + $0x19c8] sm:$0xff]
    %v975 = vld [vmem:[%s1 + $0x19d0] sm:$0xff]
    %v976 = vld [vmem:[%s1 + $0x19d8] sm:$0xff]
    %v977 = vld [vmem:[%s1 + $0x19e0] sm:$0xff]
    %v978 = vld [vmem:[%s1 + $0x19e8] sm:$0xff]
    %v979 = vld [vmem:[%s1 + $0x19f0] sm:$0xff]
    %v980 = vld [vmem:[%s1 + $0x19f8] sm:$0xff]
    %v981 = vld [vmem:[%s1 + $0x1a00] sm:$0xff]
    %v982 = vld [vmem:[%s1 + $0x1a08] sm:$0xff]
    %v983 = vld [vmem:[%s1 + $0x1a10] sm:$0xff]
    %v984 = vld [vmem:[%s1 + $0x1a18] sm:$0xff]
    %v985 = vld [vmem:[%s1 + $0x1a20] sm:$0xff]
    %v986 = vld [vmem:[%s1 + $0x1a28] sm:$0xff]
    %v987 = vld [vmem:[%s1 + $0x1a30] sm:$0xff]
    %v988 = vld [vmem:[%s1 + $0x1a38] sm:$0xff]
    %v989 = vld [vmem:[%s1 + $0x1a40] sm:$0xff]
    %v990 = vld [vmem:[%s1 + $0x1a48] sm:$0xff]
    %v991 = vld [vmem:[%s1 + $0x1a50] sm:$0xff]
    %v992 = vld [vmem:[%s1 + $0x1a58] sm:$0xff]
    %v993 = vld [vmem:[%s1 + $0x1a60] sm:$0xff]
    %v994 = vld [vmem:[%s1 + $0x1a68] sm:$0xff]
    %v995 = vld [vmem:[%s1 + $0x1a70] sm:$0xff]
    %v996 = vld [vmem:[%s1 + $0x1a78] sm:$0xff]
    %v997 = vld [vmem:[%s1 + $0x1a80] sm:$0xff]
    %v998 = vld [vmem:[%s1 + $0x1a88] sm:$0xff]
    %v999 = vld [vmem:[%s1 + $0x1a90] sm:$0xff]
    %v1000 = vld [vmem:[%s1 + $0x1a98] sm:$0xff]
    %v1001 = vld [vmem:[%s1 + $0x1aa0] sm:$0xff]
    %v1002 = vld [vmem:[%s1 + $0x1aa8] sm:$0xff]
    %v1003 = vld [vmem:[%s1 + $0x1ab0] sm:$0xff]
    %v1004 = vld [vmem:[%s1 + $0x1ab8] sm:$0xff]
    %v1005 = vld [vmem:[%s1 + $0x1ac0] sm:$0xff]
    %v1006 = vld [vmem:[%s1 + $0x1ac8] sm:$0xff]
    %v1007 = vld [vmem:[%s1 + $0x1ad0] sm:$0xff]
    %v1008 = vld [vmem:[%s1 + $0x1ad8] sm:$0xff]
    %v1009 = vld [vmem:[%s1 + $0x1ae0] sm:$0xff]
    %v1010 = vld [vmem:[%s1 + $0x1ae8] sm:$0xff]
    %v1011 = vld [vmem:[%s1 + $0x1af0] sm:$0xff]
    %v1012 = vld [vmem:[%s1 + $0x1af8] sm:$0xff]
    %v1013 = vld [vmem:[%s1 + $0x1b00] sm:$0xff]
    %v1014 = vld [vmem:[%s1 + $0x1b08] sm:$0xff]
    %v1015 = vld [vmem:[%s1 + $0x1b10] sm:$0xff]
    %v1016 = vld [vmem:[%s1 + $0x1b18] sm:$0xff]
    %v1017 = vld [vmem:[%s1 + $0x1b20] sm:$0xff]
    %v1018 = vld [vmem:[%s1 + $0x1b28] sm:$0xff]
    %v1019 = vld [vmem:[%s1 + $0x1b30] sm:$0xff]
    %v1020 = vld [vmem:[%s1 + $0x1b38] sm:$0xff]
    %v1021 = vld [vmem:[%s1 + $0x1b40] sm:$0xff]
    %v1022 = vld [vmem:[%s1 + $0x1b48] sm:$0xff]
    %v1023 = vld [vmem:[%s1 + $0x1b50] sm:$0xff]
    %v1024 = vld [vmem:[%s1 + $0x1b58] sm:$0xff]
    %v1025 = vld [vmem:[%s1 + $0x1b60] sm:$0xff]
    %v1026 = vld [vmem:[%s1 + $0x1b68] sm:$0xff]
    %v1027 = vld [vmem:[%s1 + $0x1b70] sm:$0xff]
    %v1028 = vld [vmem:[%s1 + $0x1b78] sm:$0xff]
    %v1029 = vld [vmem:[%s1 + $0x1b80] sm:$0xff]
    %v1030 = vld [vmem:[%s1 + $0x1b88] sm:$0xff]
    %v1031 = vld [vmem:[%s1 + $0x1b90] sm:$0xff]
    %v1032 = vld [vmem:[%s1 + $0x1b98] sm:$0xff]
    %v1033 = vld [vmem:[%s1 + $0x1ba0] sm:$0xff]
    %v1034 = vld [vmem:[%s1 + $0x1ba8] sm:$0xff]
    %v1035 = vld [vmem:[%s1 + $0x1bb0] sm:$0xff]
    %v1036 = vld [vmem:[%s1 + $0x1bb8] sm:$0xff]
    %v1037 = vld [vmem:[%s1 + $0x1bc0] sm:$0xff]
    %v1038 = vld [vmem:[%s1 + $0x1bc8] sm:$0xff]
    %v1039 = vld [vmem:[%s1 + $0x1bd0] sm:$0xff]
    %v1040 = vld [vmem:[%s1 + $0x1bd8] sm:$0xff]
    %v1041 = vld [vmem:[%s1 + $0x1be0] sm:$0xff]
    %v1042 = vld [vmem:[%s1 + $0x1be8] sm:$0xff]
    %v1043 = vld [vmem:[%s1 + $0x1bf0] sm:$0xff]
    %v1044 = vld [vmem:[%s1 + $0x1bf8] sm:$0xff]
    %v1045 = vld [vmem:[%s1 + $0x1c00] sm:$0xff]
    %v1046 = vld [vmem:[%s1 + $0x1c08] sm:$0xff]
    %v1047 = vld [vmem:[%s1 + $0x1c10] sm:$0xff]
    %v1048 = vld [vmem:[%s1 + $0x1c18] sm:$0xff]
    %v1049 = vld [vmem:[%s1 + $0x1c20] sm:$0xff]
    %v1050 = vld [vmem:[%s1 + $0x1c28] sm:$0xff]
    %v1051 = vld [vmem:[%s1 + $0x1c30] sm:$0xff]
    %v1052 = vld [vmem:[%s1 + $0x1c38] sm:$0xff]
    %v1053 = vld [vmem:[%s1 + $0x1c40] sm:$0xff]
    %v1054 = vld [vmem:[%s1 + $0x1c48] sm:$0xff]
    %v1055 = vld [vmem:[%s1 + $0x1c50] sm:$0xff]
    %v1056 = vld [vmem:[%s1 + $0x1c58] sm:$0xff]
    %v1057 = vld [vmem:[%s1 + $0x1c60] sm:$0xff]
    %v1058 = vld [vmem:[%s1 + $0x1c68] sm:$0xff]
    %v1059 = vld [vmem:[%s1 + $0x1c70] sm:$0xff]
    %v1060 = vld [vmem:[%s1 + $0x1c78] sm:$0xff]
    %v1061 = vld [vmem:[%s1 + $0x1c80] sm:$0xff]
    %v1062 = vld [vmem:[%s1 + $0x1c88] sm:$0xff]
    %v1063 = vld [vmem:[%s1 + $0x1c90] sm:$0xff]
    %v1064 = vld [vmem:[%s1 + $0x1c98] sm:$0xff]
    %v1065 = vld [vmem:[%s1 + $0x1ca0] sm:$0xff]
    %v1066 = vld [vmem:[%s1 + $0x1ca8] sm:$0xff]
    %v1067 = vld [vmem:[%s1 + $0x1cb0] sm:$0xff]
    %v1068 = vld [vmem:[%s1 + $0x1cb8] sm:$0xff]
    %v1069 = vld [vmem:[%s1 + $0x1cc0] sm:$0xff]
    %v1070 = vld [vmem:[%s1 + $0x1cc8] sm:$0xff]
    %v1071 = vld [vmem:[%s1 + $0x1cd0] sm:$0xff]
    %v1072 = vld [vmem:[%s1 + $0x1cd8] sm:$0xff]
    %v1073 = vld [vmem:[%s1 + $0x1ce0] sm:$0xff]
    %v1074 = vld [vmem:[%s1 + $0x1ce8] sm:$0xff]
    %v1075 = vld [vmem:[%s1 + $0x1cf0] sm:$0xff]
    %v1076 = vld [vmem:[%s1 + $0x1cf8] sm:$0xff]
    %v1077 = vld [vmem:[%s1 + $0x1d00] sm:$0xff]
    %v1078 = vld [vmem:[%s1 + $0x1d08] sm:$0xff]
    %v1079 = vld [vmem:[%s1 + $0x1d10] sm:$0xff]
    %v1080 = vld [vmem:[%s1 + $0x1d18] sm:$0xff]
    %v1081 = vld [vmem:[%s1 + $0x1d20] sm:$0xff]
    %v1082 = vld [vmem:[%s1 + $0x1d28] sm:$0xff]
    %v1083 = vld [vmem:[%s1 + $0x1d30] sm:$0xff]
    %v1084 = vld [vmem:[%s1 + $0x1d38] sm:$0xff]
    %v1085 = vld [vmem:[%s1 + $0x1d40] sm:$0xff]
    %v1086 = vld [vmem:[%s1 + $0x1d48] sm:$0xff]
    %v1087 = vld [vmem:[%s1 + $0x1d50] sm:$0xff]
    %v1088 = vld [vmem:[%s1 + $0x1d58] sm:$0xff]
    %v1089 = vld [vmem:[%s1 + $0x1d60] sm:$0xff]
    %v1090 = vld [vmem:[%s1 + $0x1d68] sm:$0xff]
    %v1091 = vld [vmem:[%s1 + $0x1d70] sm:$0xff]
    %v1092 = vld [vmem:[%s1 + $0x1d78] sm:$0xff]
    %v1093 = vld [vmem:[%s1 + $0x1d80] sm:$0xff]
    %v1094 = vld [vmem:[%s1 + $0x1d88] sm:$0xff]
    %v1095 = vld [vmem:[%s1 + $0x1d90] sm:$0xff]
    %v1096 = vld [vmem:[%s1 + $0x1d98] sm:$0xff]
    %v1097 = vld [vmem:[%s1 + $0x1da0] sm:$0xff]
    %v1098 = vld [vmem:[%s1 + $0x1da8] sm:$0xff]
    %v1099 = vld [vmem:[%s1 + $0x1db0] sm:$0xff]
    %v1100 = vld [vmem:[%s1 + $0x1db8] sm:$0xff]
    %v1101 = vld [vmem:[%s1 + $0x1dc0] sm:$0xff]
    %v1102 = vld [vmem:[%s1 + $0x1dc8] sm:$0xff]
    %v1103 = vld [vmem:[%s1 + $0x1dd0] sm:$0xff]
    %v1104 = vld [vmem:[%s1 + $0x1dd8] sm:$0xff]
    %v1105 = vld [vmem:[%s1 + $0x1de0] sm:$0xff]
    %v1106 = vld [vmem:[%s1 + $0x1de8] sm:$0xff]
    %v1107 = vld [vmem:[%s1 + $0x1df0] sm:$0xff]
    %v1108 = vld [vmem:[%s1 + $0x1df8] sm:$0xff]
    %v1109 = vld [vmem:[%s1 + $0x1e00] sm:$0xff]
    %v1110 = vld [vmem:[%s1 + $0x1e08] sm:$0xff]
    %v1111 = vld [vmem:[%s1 + $0x1e10] sm:$0xff]
    %v1112 = vld [vmem:[%s1 + $0x1e18] sm:$0xff]
    %v1113 = vld [vmem:[%s1 + $0x1e20] sm:$0xff]
    %v1114 = vld [vmem:[%s1 + $0x1e28] sm:$0xff]
    %v1115 = vld [vmem:[%s1 + $0x1e30] sm:$0xff]
    %v1116 = vld [vmem:[%s1 + $0x1e38] sm:$0xff]
    %v1117 = vld [vmem:[%s1 + $0x1e40] sm:$0xff]
    %v1118 = vld [vmem:[%s1 + $0x1e48] sm:$0xff]
    %v1119 = vld [vmem:[%s1 + $0x1e50] sm:$0xff]
    %v1120 = vld [vmem:[%s1 + $0x1e58] sm:$0xff]
    %v1121 = vld [vmem:[%s1 + $0x1e60] sm:$0xff]
    %v1122 = vld [vmem:[%s1 + $0x1e68] sm:$0xff]
    %v1123 = vld [vmem:[%s1 + $0x1e70] sm:$0xff]
    %v1124 = vld [vmem:[%s1 + $0x1e78] sm:$0xff]
    %v1125 = vld [vmem:[%s1 + $0x1e80] sm:$0xff]
    %v1126 = vld [vmem:[%s1 + $0x1e88] sm:$0xff]
    %v1127 = vld [vmem:[%s1 + $0x1e90] sm:$0xff]
    %v1128 = vld [vmem:[%s1 + $0x1e98] sm:$0xff]
    %v1129 = vld [vmem:[%s1 + $0x1ea0] sm:$0xff]
    %v1130 = vld [vmem:[%s1 + $0x1ea8] sm:$0xff]
    %v1131 = vld [vmem:[%s1 + $0x1eb0] sm:$0xff]
    %v1132 = vld [vmem:[%s1 + $0x1eb8] sm:$0xff]
    %v1133 = vld [vmem:[%s1 + $0x1ec0] sm:$0xff]
    %v1134 = vld [vmem:[%s1 + $0x1ec8] sm:$0xff]
    %v1135 = vld [vmem:[%s1 + $0x1ed0] sm:$0xff]
    %v1136 = vld [vmem:[%s1 + $0x1ed8] sm:$0xff]
    %v1137 = vld [vmem:[%s1 + $0x1ee0] sm:$0xff]
    %v1138 = vld [vmem:[%s1 + $0x1ee8] sm:$0xff]
    %v1139 = vld [vmem:[%s1 + $0x1ef0] sm:$0xff]
    %v1140 = vld [vmem:[%s1 + $0x1ef8] sm:$0xff]
    %v1141 = vld [vmem:[%s1 + $0x1f00] sm:$0xff]
    %v1142 = vld [vmem:[%s1 + $0x1f08] sm:$0xff]
    %v1143 = vld [vmem:[%s1 + $0x1f10] sm:$0xff]
    %v1144 = vld [vmem:[%s1 + $0x1f18] sm:$0xff]
    %v1145 = vld [vmem:[%s1 + $0x1f20] sm:$0xff]
    %v1146 = vld [vmem:[%s1 + $0x1f28] sm:$0xff]
    %v1147 = vld [vmem:[%s1 + $0x1f30] sm:$0xff]
    %v1148 = vld [vmem:[%s1 + $0x1f38] sm:$0xff]
    %v1149 = vld [vmem:[%s1 + $0x1f40] sm:$0xff]
    %v1150 = vld [vmem:[%s1 + $0x1f48] sm:$0xff]
    %v1151 = vld [vmem:[%s1 + $0x1f50] sm:$0xff]
    %v1152 = vld [vmem:[%s1 + $0x1f58] sm:$0xff]
    %v1153 = vld [vmem:[%s1 + $0x1f60] sm:$0xff]
    %v1154 = vld [vmem:[%s1 + $0x1f68] sm:$0xff]
    %v1155 = vld [vmem:[%s1 + $0x1f70] sm:$0xff]
    %v1156 = vld [vmem:[%s1 + $0x1f78] sm:$0xff]
    %v1157 = vld [vmem:[%s1 + $0x1f80] sm:$0xff]
    %v1158 = vld [vmem:[%s1 + $0x1f88] sm:$0xff]
    %v1159 = vld [vmem:[%s1 + $0x1f90] sm:$0xff]
    %v1160 = vld [vmem:[%s1 + $0x1f98] sm:$0xff]
    %v1161 = vld [vmem:[%s1 + $0x1fa0] sm:$0xff]
    %v1162 = vld [vmem:[%s1 + $0x1fa8] sm:$0xff]
    %v1163 = vld [vmem:[%s1 + $0x1fb0] sm:$0xff]
    %v1164 = vld [vmem:[%s1 + $0x1fb8] sm:$0xff]
    %v1165 = vld [vmem:[%s1 + $0x1fc0] sm:$0xff]
    %v1166 = vld [vmem:[%s1 + $0x1fc8] sm:$0xff]
    %v1167 = vld [vmem:[%s1 + $0x1fd0] sm:$0xff]
    %v1168 = vld [vmem:[%s1 + $0x1fd8] sm:$0xff]
    %v1169 = vld [vmem:[%s1 + $0x1fe0] sm:$0xff]
    %v1170 = vld [vmem:[%s1 + $0x1fe8] sm:$0xff]
    %v1171 = vld [vmem:[%s1 + $0x1ff0] sm:$0xff]
    %v1172 = vld [vmem:[%s1 + $0x1ff8] sm:$0xff]
    %v1173 = vld [vmem:[%s1 + $0x2000] sm:$0xff]
    %v1174 = vld [vmem:[%s1 + $0x2008] sm:$0xff]
    %v1175 = vld [vmem:[%s1 + $0x2010] sm:$0xff]
    %v1176 = vld [vmem:[%s1 + $0x2018] sm:$0xff]
    %v1177 = vld [vmem:[%s1 + $0x2020] sm:$0xff]
    %v1178 = vld [vmem:[%s1 + $0x2028] sm:$0xff]
    %v1179 = vld [vmem:[%s1 + $0x2030] sm:$0xff]
    %v1180 = vld [vmem:[%s1 + $0x2038] sm:$0xff]
    %v1181 = vld [vmem:[%s1 + $0x2040] sm:$0xff]
    %v1182 = vld [vmem:[%s1 + $0x2048] sm:$0xff]
    %v1183 = vld [vmem:[%s1 + $0x2050] sm:$0xff]
    %v1184 = vld [vmem:[%s1 + $0x2058] sm:$0xff]
    %v1185 = vld [vmem:[%s1 + $0x2060] sm:$0xff]
    %v1186 = vld [vmem:[%s1 + $0x2068] sm:$0xff]
    %v1187 = vld [vmem:[%s1 + $0x2070] sm:$0xff]
    %v1188 = vld [vmem:[%s1 + $0x2078] sm:$0xff]
    %v1189 = vld [vmem:[%s1 + $0x2080] sm:$0xff]
    %v1190 = vld [vmem:[%s1 + $0x2088] sm:$0xff]
    %v1191 = vld [vmem:[%s1 + $0x2090] sm:$0xff]
    %v1192 = vld [vmem:[%s1 + $0x2098] sm:$0xff]
    %v1193 = vld [vmem:[%s1 + $0x20a0] sm:$0xff]
    %v1194 = vld [vmem:[%s1 + $0x20a8] sm:$0xff]
    %v1195 = vld [vmem:[%s1 + $0x20b0] sm:$0xff]
    %v1196 = vld [vmem:[%s1 + $0x20b8] sm:$0xff]
    %v1197 = vld [vmem:[%s1 + $0x20c0] sm:$0xff]
    %v1198 = vld [vmem:[%s1 + $0x20c8] sm:$0xff]
    %v1199 = vld [vmem:[%s1 + $0x20d0] sm:$0xff]
    %v1200 = vld [vmem:[%s1 + $0x20d8] sm:$0xff]
    %v1201 = vld [vmem:[%s1 + $0x20e0] sm:$0xff]
    %v1202 = vld [vmem:[%s1 + $0x20e8] sm:$0xff]
    %v1203 = vld [vmem:[%s1 + $0x20f0] sm:$0xff]
    %v1204 = vld [vmem:[%s1 + $0x20f8] sm:$0xff]
    %v1205 = vld [vmem:[%s1 + $0x2100] sm:$0xff]
    %v1206 = vld [vmem:[%s1 + $0x2108] sm:$0xff]
    %v1207 = vld [vmem:[%s1 + $0x2110] sm:$0xff]
    %v1208 = vld [vmem:[%s1 + $0x2118] sm:$0xff]
    %v1209 = vld [vmem:[%s1 + $0x2120] sm:$0xff]
    %v1210 = vld [vmem:[%s1 + $0x2128] sm:$0xff]
    %v1211 = vld [vmem:[%s1 + $0x2130] sm:$0xff]
    %v1212 = vld [vmem:[%s1 + $0x2138] sm:$0xff]
    %v1213 = vld [vmem:[%s1 + $0x2140] sm:$0xff]
    %v1214 = vld [vmem:[%s1 + $0x2148] sm:$0xff]
    %v1215 = vld [vmem:[%s1 + $0x2150] sm:$0xff]
    %v1216 = vld [vmem:[%s1 + $0x2158] sm:$0xff]
    %v1217 = vld [vmem:[%s1 + $0x2160] sm:$0xff]
    %v1218 = vld [vmem:[%s1 + $0x2168] sm:$0xff]
    %v1219 = vld [vmem:[%s1 + $0x2170] sm:$0xff]
    %v1220 = vld [vmem:[%s1 + $0x2178] sm:$0xff]
    %v1221 = vld [vmem:[%s1 + $0x2180] sm:$0xff]
    %v1222 = vld [vmem:[%s1 + $0x2188] sm:$0xff]
    %v1223 = vld [vmem:[%s1 + $0x2190] sm:$0xff]
    %v1224 = vld [vmem:[%s1 + $0x2198] sm:$0xff]
    %v1225 = vld [vmem:[%s1 + $0x21a0] sm:$0xff]
    %v1226 = vld [vmem:[%s1 + $0x21a8] sm:$0xff]
    %v1227 = vld [vmem:[%s1 + $0x21b0] sm:$0xff]
    %v1228 = vld [vmem:[%s1 + $0x21b8] sm:$0xff]
    %v1229 = vld [vmem:[%s1 + $0x21c0] sm:$0xff]
    %v1230 = vld [vmem:[%s1 + $0x21c8] sm:$0xff]
    %v1231 = vld [vmem:[%s1 + $0x21d0] sm:$0xff]
    %v1232 = vld [vmem:[%s1 + $0x21d8] sm:$0xff]
    %v1233 = vld [vmem:[%s1 + $0x21e0] sm:$0xff]
    %v1234 = vld [vmem:[%s1 + $0x21e8] sm:$0xff]
    %v1235 = vld [vmem:[%s1 + $0x21f0] sm:$0xff]
    %v1236 = vld [vmem:[%s1 + $0x21f8] sm:$0xff]
    %v1237 = vld [vmem:[%s1 + $0x2200] sm:$0xff]
    %v1238 = vld [vmem:[%s1 + $0x2208] sm:$0xff]
    %v1239 = vld [vmem:[%s1 + $0x2210] sm:$0xff]
    %v1240 = vld [vmem:[%s1 + $0x2218] sm:$0xff]
    %v1241 = vld [vmem:[%s1 + $0x2220] sm:$0xff]
    %v1242 = vld [vmem:[%s1 + $0x2228] sm:$0xff]
    %v1243 = vld [vmem:[%s1 + $0x2230] sm:$0xff]
    %v1244 = vld [vmem:[%s1 + $0x2238] sm:$0xff]
    %v1245 = vld [vmem:[%s1 + $0x2240] sm:$0xff]
    %v1246 = vld [vmem:[%s1 + $0x2248] sm:$0xff]
    %v1247 = vld [vmem:[%s1 + $0x2250] sm:$0xff]
    %v1248 = vld [vmem:[%s1 + $0x2258] sm:$0xff]
    %v1249 = vld [vmem:[%s1 + $0x2260] sm:$0xff]
    %v1250 = vld [vmem:[%s1 + $0x2268] sm:$0xff]
    %v1251 = vld [vmem:[%s1 + $0x2270] sm:$0xff]
    %v1252 = vld [vmem:[%s1 + $0x2278] sm:$0xff]
    %v1253 = vld [vmem:[%s1 + $0x2280] sm:$0xff]
    %v1254 = vld [vmem:[%s1 + $0x2288] sm:$0xff]
    %v1255 = vld [vmem:[%s1 + $0x2290] sm:$0xff]
    %v1256 = vld [vmem:[%s1 + $0x2298] sm:$0xff]
    %v1257 = vld [vmem:[%s1 + $0x22a0] sm:$0xff]
    %v1258 = vld [vmem:[%s1 + $0x22a8] sm:$0xff]
    %v1259 = vld [vmem:[%s1 + $0x22b0] sm:$0xff]
    %v1260 = vld [vmem:[%s1 + $0x22b8] sm:$0xff]
    %v1261 = vld [vmem:[%s1 + $0x22c0] sm:$0xff]
    %v1262 = vld [vmem:[%s1 + $0x22c8] sm:$0xff]
    %v1263 = vld [vmem:[%s1 + $0x22d0] sm:$0xff]
    %v1264 = vld [vmem:[%s1 + $0x22d8] sm:$0xff]
    %v1265 = vld [vmem:[%s1 + $0x22e0] sm:$0xff]
    %v1266 = vld [vmem:[%s1 + $0x22e8] sm:$0xff]
    %v1267 = vld [vmem:[%s1 + $0x22f0] sm:$0xff]
    %v1268 = vld [vmem:[%s1 + $0x22f8] sm:$0xff]
    %v1269 = vld [vmem:[%s1 + $0x2300] sm:$0xff]
    %v1270 = vld [vmem:[%s1 + $0x2308] sm:$0xff]
    %v1271 = vld [vmem:[%s1 + $0x2310] sm:$0xff]
    %v1272 = vld [vmem:[%s1 + $0x2318] sm:$0xff]
    %v1273 = vld [vmem:[%s1 + $0x2320] sm:$0xff]
    %v1274 = vld [vmem:[%s1 + $0x2328] sm:$0xff]
    %v1275 = vld [vmem:[%s1 + $0x2330] sm:$0xff]
    %v1276 = vld [vmem:[%s1 + $0x2338] sm:$0xff]
    %v1277 = vld [vmem:[%s1 + $0x2340] sm:$0xff]
    %v1278 = vld [vmem:[%s1 + $0x2348] sm:$0xff]
    %v1279 = vld [vmem:[%s1 + $0x2350] sm:$0xff]
    %v1280 = vld [vmem:[%s1 + $0x2358] sm:$0xff]
    %v1281 = vld [vmem:[%s1 + $0x2360] sm:$0xff]
    %v1282 = vld [vmem:[%s1 + $0x2368] sm:$0xff]
    %v1283 = vld [vmem:[%s1 + $0x2370] sm:$0xff]
    %v1284 = vld [vmem:[%s1 + $0x2378] sm:$0xff]
    %v1285 = vld [vmem:[%s1 + $0x2380] sm:$0xff]
    %v1286 = vld [vmem:[%s1 + $0x2388] sm:$0xff]
    %v1287 = vld [vmem:[%s1 + $0x2390] sm:$0xff]
    %v1288 = vld [vmem:[%s1 + $0x2398] sm:$0xff]
    %v1289 = vld [vmem:[%s1 + $0x23a0] sm:$0xff]
    %v1290 = vld [vmem:[%s1 + $0x23a8] sm:$0xff]
    %v1291 = vld [vmem:[%s1 + $0x23b0] sm:$0xff]
    %v1292 = vld [vmem:[%s1 + $0x23b8] sm:$0xff]
    %v1293 = vld [vmem:[%s1 + $0x23c0] sm:$0xff]
    %v1294 = vld [vmem:[%s1 + $0x23c8] sm:$0xff]
    %v1295 = vld [vmem:[%s1 + $0x23d0] sm:$0xff]
    %v1296 = vld [vmem:[%s1 + $0x23d8] sm:$0xff]
    %v1297 = vld [vmem:[%s1 + $0x23e0] sm:$0xff]
    %v1298 = vld [vmem:[%s1 + $0x23e8] sm:$0xff]
    %v1299 = vld [vmem:[%s1 + $0x23f0] sm:$0xff]
    %v1300 = vld [vmem:[%s1 + $0x23f8] sm:$0xff]
    %v1301 = vld [vmem:[%s1 + $0x2400] sm:$0xff]
    %v1302 = vld [vmem:[%s1 + $0x2408] sm:$0xff]
    %v1303 = vld [vmem:[%s1 + $0x2410] sm:$0xff]
    %v1304 = vld [vmem:[%s1 + $0x2418] sm:$0xff]
    %v1305 = vld [vmem:[%s1 + $0x2420] sm:$0xff]
    %v1306 = vld [vmem:[%s1 + $0x2428] sm:$0xff]
    %v1307 = vld [vmem:[%s1 + $0x2430] sm:$0xff]
    %v1308 = vld [vmem:[%s1 + $0x2438] sm:$0xff]
    %v1309 = vld [vmem:[%s1 + $0x2440] sm:$0xff]
    %v1310 = vld [vmem:[%s1 + $0x2448] sm:$0xff]
    %v1311 = vld [vmem:[%s1 + $0x2450] sm:$0xff]
    %v1312 = vld [vmem:[%s1 + $0x2458] sm:$0xff]
    %v1313 = vld [vmem:[%s1 + $0x2460] sm:$0xff]
    %v1314 = vld [vmem:[%s1 + $0x2468] sm:$0xff]
    %v1315 = vld [vmem:[%s1 + $0x2470] sm:$0xff]
    %v1316 = vld [vmem:[%s1 + $0x2478] sm:$0xff]
    %v1317 = vld [vmem:[%s1 + $0x2480] sm:$0xff]
    %v1318 = vld [vmem:[%s1 + $0x2488] sm:$0xff]
    %v1319 = vld [vmem:[%s1 + $0x2490] sm:$0xff]
    %v1320 = vld [vmem:[%s1 + $0x2498] sm:$0xff]
    %v1321 = vld [vmem:[%s1 + $0x24a0] sm:$0xff]
    %v1322 = vld [vmem:[%s1 + $0x24a8] sm:$0xff]
    %v1323 = vld [vmem:[%s1 + $0x24b0] sm:$0xff]
    %v1324 = vld [vmem:[%s1 + $0x24b8] sm:$0xff]
    %v1325 = vld [vmem:[%s1 + $0x24c0] sm:$0xff]
    %v1326 = vld [vmem:[%s1 + $0x24c8] sm:$0xff]
    %v1327 = vld [vmem:[%s1 + $0x24d0] sm:$0xff]
    %v1328 = vld [vmem:[%s1 + $0x24d8] sm:$0xff]
    %v1329 = vld [vmem:[%s1 + $0x24e0] sm:$0xff]
    %v1330 = vld [vmem:[%s1 + $0x24e8] sm:$0xff]
    %v1331 = vld [vmem:[%s1 + $0x24f0] sm:$0xff]
    %v1332 = vld [vmem:[%s1 + $0x24f8] sm:$0xff]
    %v1333 = vld [vmem:[%s1 + $0x2500] sm:$0xff]
    %v1334 = vld [vmem:[%s1 + $0x2508] sm:$0xff]
    %v1335 = vld [vmem:[%s1 + $0x2510] sm:$0xff]
    %v1336 = vld [vmem:[%s1 + $0x2518] sm:$0xff]
    %v1337 = vld [vmem:[%s1 + $0x2520] sm:$0xff]
    %v1338 = vld [vmem:[%s1 + $0x2528] sm:$0xff]
    %v1339 = vld [vmem:[%s1 + $0x2530] sm:$0xff]
    %v1340 = vld [vmem:[%s1 + $0x2538] sm:$0xff]
    %v1341 = vld [vmem:[%s1 + $0x2540] sm:$0xff]
    %v1342 = vld [vmem:[%s1 + $0x2548] sm:$0xff]
    %v1343 = vld [vmem:[%s1 + $0x2550] sm:$0xff]
    %v1344 = vld [vmem:[%s1 + $0x2558] sm:$0xff]
    %v1345 = vld [vmem:[%s1 + $0x2560] sm:$0xff]
    %v1346 = vld [vmem:[%s1 + $0x2568] sm:$0xff]
    %v1347 = vld [vmem:[%s1 + $0x2570] sm:$0xff]
    %v1348 = vld [vmem:[%s1 + $0x2578] sm:$0xff]
    %v1349 = vld [vmem:[%s1 + $0x2580] sm:$0xff]
    %v1350 = vld [vmem:[%s1 + $0x2588] sm:$0xff]
    %v1351 = vld [vmem:[%s1 + $0x2590] sm:$0xff]
    %v1352 = vld [vmem:[%s1 + $0x2598] sm:$0xff]
    %v1353 = vld [vmem:[%s1 + $0x25a0] sm:$0xff]
    %v1354 = vld [vmem:[%s1 + $0x25a8] sm:$0xff]
    %v1355 = vld [vmem:[%s1 + $0x25b0] sm:$0xff]
    %v1356 = vld [vmem:[%s1 + $0x25b8] sm:$0xff]
    %v1357 = vld [vmem:[%s1 + $0x25c0] sm:$0xff]
    %v1358 = vld [vmem:[%s1 + $0x25c8] sm:$0xff]
    %v1359 = vld [vmem:[%s1 + $0x25d0] sm:$0xff]
    %v1360 = vld [vmem:[%s1 + $0x25d8] sm:$0xff]
    %v1361 = vld [vmem:[%s1 + $0x25e0] sm:$0xff]
    %v1362 = vld [vmem:[%s1 + $0x25e8] sm:$0xff]
    %v1363 = vld [vmem:[%s1 + $0x25f0] sm:$0xff]
    %v1364 = vld [vmem:[%s1 + $0x25f8] sm:$0xff]
    %v1365 = vld [vmem:[%s1 + $0x2600] sm:$0xff]
    %v1366 = vld [vmem:[%s1 + $0x2608] sm:$0xff]
    %v1367 = vld [vmem:[%s1 + $0x2610] sm:$0xff]
    %v1368 = vld [vmem:[%s1 + $0x2618] sm:$0xff]
    %v1369 = vld [vmem:[%s1 + $0x2620] sm:$0xff]
    %v1370 = vld [vmem:[%s1 + $0x2628] sm:$0xff]
    %v1371 = vld [vmem:[%s1 + $0x2630] sm:$0xff]
    %v1372 = vld [vmem:[%s1 + $0x2638] sm:$0xff]
    %v1373 = vld [vmem:[%s1 + $0x2640] sm:$0xff]
    %v1374 = vld [vmem:[%s1 + $0x2648] sm:$0xff]
    %v1375 = vld [vmem:[%s1 + $0x2650] sm:$0xff]
    %v1376 = vld [vmem:[%s1 + $0x2658] sm:$0xff]
    %v1377 = vld [vmem:[%s1 + $0x2660] sm:$0xff]
    %v1378 = vld [vmem:[%s1 + $0x2668] sm:$0xff]
    %v1379 = vld [vmem:[%s1 + $0x2670] sm:$0xff]
    %v1380 = vld [vmem:[%s1 + $0x2678] sm:$0xff]
    %v1381 = vld [vmem:[%s1 + $0x2680] sm:$0xff]
    %v1382 = vld [vmem:[%s1 + $0x2688] sm:$0xff]
    %v1383 = vld [vmem:[%s1 + $0x2690] sm:$0xff]
    %v1384 = vld [vmem:[%s1 + $0x2698] sm:$0xff]
    %v1385 = vld [vmem:[%s1 + $0x26a0] sm:$0xff]
    %v1386 = vld [vmem:[%s1 + $0x26a8] sm:$0xff]
    %v1387 = vld [vmem:[%s1 + $0x26b0] sm:$0xff]
    %v1388 = vld [vmem:[%s1 + $0x26b8] sm:$0xff]
    %v1389 = vld [vmem:[%s1 + $0x26c0] sm:$0xff]
    %v1390 = vld [vmem:[%s1 + $0x26c8] sm:$0xff]
    %v1391 = vld [vmem:[%s1 + $0x26d0] sm:$0xff]
    %v1392 = vld [vmem:[%s1 + $0x26d8] sm:$0xff]
    %v1393 = vld [vmem:[%s1 + $0x26e0] sm:$0xff]
    %v1394 = vld [vmem:[%s1 + $0x26e8] sm:$0xff]
    %v1395 = vld [vmem:[%s1 + $0x26f0] sm:$0xff]
    %v1396 = vld [vmem:[%s1 + $0x26f8] sm:$0xff]
    %v1397 = vld [vmem:[%s1 + $0x2700] sm:$0xff]
    %v1398 = vld [vmem:[%s1 + $0x2708] sm:$0xff]
    %v1399 = vld [vmem:[%s1 + $0x2710] sm:$0xff]
    %v1400 = vld [vmem:[%s1 + $0x2718] sm:$0xff]
    %v1401 = vld [vmem:[%s1 + $0x2720] sm:$0xff]
    %v1402 = vld [vmem:[%s1 + $0x2728] sm:$0xff]
    %v1403 = vld [vmem:[%s1 + $0x2730] sm:$0xff]
    %v1404 = vld [vmem:[%s1 + $0x2738] sm:$0xff]
    %v1405 = vld [vmem:[%s1 + $0x2740] sm:$0xff]
    %v1406 = vld [vmem:[%s1 + $0x2748] sm:$0xff]
    %v1407 = vld [vmem:[%s1 + $0x2750] sm:$0xff]
    %v1408 = vld [vmem:[%s1 + $0x2758] sm:$0xff]
    %v1409 = vld [vmem:[%s1 + $0x2760] sm:$0xff]
    %v1410 = vld [vmem:[%s1 + $0x2768] sm:$0xff]
    %v1411 = vld [vmem:[%s1 + $0x2770] sm:$0xff]
    %v1412 = vld [vmem:[%s1 + $0x2778] sm:$0xff]
    %v1413 = vld [vmem:[%s1 + $0x2780] sm:$0xff]
    %v1414 = vld [vmem:[%s1 + $0x2788] sm:$0xff]
    %v1415 = vld [vmem:[%s1 + $0x2790] sm:$0xff]
    %v1416 = vld [vmem:[%s1 + $0x2798] sm:$0xff]
    %v1417 = vld [vmem:[%s1 + $0x27a0] sm:$0xff]
    %v1418 = vld [vmem:[%s1 + $0x27a8] sm:$0xff]
    %v1419 = vld [vmem:[%s1 + $0x27b0] sm:$0xff]
    %v1420 = vld [vmem:[%s1 + $0x27b8] sm:$0xff]
    %v1421 = vld [vmem:[%s1 + $0x27c0] sm:$0xff]
    %v1422 = vld [vmem:[%s1 + $0x27c8] sm:$0xff]
    %v1423 = vld [vmem:[%s1 + $0x27d0] sm:$0xff]
    %v1424 = vld [vmem:[%s1 + $0x27d8] sm:$0xff]
    %v1425 = vld [vmem:[%s1 + $0x27e0] sm:$0xff]
    %v1426 = vld [vmem:[%s1 + $0x27e8] sm:$0xff]
    %v1427 = vld [vmem:[%s1 + $0x27f0] sm:$0xff]
    %v1428 = vld [vmem:[%s1 + $0x27f8] sm:$0xff]
    %v1429 = vld [vmem:[%s1 + $0x2800] sm:$0xff]
    %v1430 = vld [vmem:[%s1 + $0x2808] sm:$0xff]
    %v1431 = vld [vmem:[%s1 + $0x2810] sm:$0xff]
    %v1432 = vld [vmem:[%s1 + $0x2818] sm:$0xff]
    %v1433 = vld [vmem:[%s1 + $0x2820] sm:$0xff]
    %v1434 = vld [vmem:[%s1 + $0x2828] sm:$0xff]
    %v1435 = vld [vmem:[%s1 + $0x2830] sm:$0xff]
    %v1436 = vld [vmem:[%s1 + $0x2838] sm:$0xff]
    %v1437 = vld [vmem:[%s1 + $0x2840] sm:$0xff]
    %v1438 = vld [vmem:[%s1 + $0x2848] sm:$0xff]
    %v1439 = vld [vmem:[%s1 + $0x2850] sm:$0xff]
    %v1440 = vld [vmem:[%s1 + $0x2858] sm:$0xff]
    %v1441 = vld [vmem:[%s1 + $0x2860] sm:$0xff]
    %v1442 = vld [vmem:[%s1 + $0x2868] sm:$0xff]
    %v1443 = vld [vmem:[%s1 + $0x2870] sm:$0xff]
    %v1444 = vld [vmem:[%s1 + $0x2878] sm:$0xff]
    %v1445 = vld [vmem:[%s1 + $0x2880] sm:$0xff]
    %v1446 = vld [vmem:[%s1 + $0x2888] sm:$0xff]
    %v1447 = vld [vmem:[%s1 + $0x2890] sm:$0xff]
    %v1448 = vld [vmem:[%s1 + $0x2898] sm:$0xff]
    %v1449 = vld [vmem:[%s1 + $0x28a0] sm:$0xff]
    %v1450 = vld [vmem:[%s1 + $0x28a8] sm:$0xff]
    %v1451 = vld [vmem:[%s1 + $0x28b0] sm:$0xff]
    %v1452 = vld [vmem:[%s1 + $0x28b8] sm:$0xff]
    %v1453 = vld [vmem:[%s1 + $0x28c0] sm:$0xff]
    %v1454 = vld [vmem:[%s1 + $0x28c8] sm:$0xff]
    %v1455 = vld [vmem:[%s1 + $0x28d0] sm:$0xff]
    %v1456 = vld [vmem:[%s1 + $0x28d8] sm:$0xff]
    %v1457 = vld [vmem:[%s1 + $0x28e0] sm:$0xff]
    %v1458 = vld [vmem:[%s1 + $0x28e8] sm:$0xff]
    %v1459 = vld [vmem:[%s1 + $0x28f0] sm:$0xff]
    %v1460 = vld [vmem:[%s1 + $0x28f8] sm:$0xff]
    %v1461 = vld [vmem:[%s1 + $0x2900] sm:$0xff]
    %v1462 = vld [vmem:[%s1 + $0x2908] sm:$0xff]
    %v1463 = vld [vmem:[%s1 + $0x2910] sm:$0xff]
    %v1464 = vld [vmem:[%s1 + $0x2918] sm:$0xff]
    %v1465 = vld [vmem:[%s1 + $0x2920] sm:$0xff]
    %v1466 = vld [vmem:[%s1 + $0x2928] sm:$0xff]
    %v1467 = vld [vmem:[%s1 + $0x2930] sm:$0xff]
    %v1468 = vld [vmem:[%s1 + $0x2938] sm:$0xff]
    %v1469 = vld [vmem:[%s1 + $0x2940] sm:$0xff]
    %v1470 = vld [vmem:[%s1 + $0x2948] sm:$0xff]
    %v1471 = vld [vmem:[%s1 + $0x2950] sm:$0xff]
    %v1472 = vld [vmem:[%s1 + $0x2958] sm:$0xff]
    %v1473 = vld [vmem:[%s1 + $0x2960] sm:$0xff]
    %v1474 = vld [vmem:[%s1 + $0x2968] sm:$0xff]
    %v1475 = vld [vmem:[%s1 + $0x2970] sm:$0xff]
    %v1476 = vld [vmem:[%s1 + $0x2978] sm:$0xff]
    %v1477 = vld [vmem:[%s1 + $0x2980] sm:$0xff]
    %v1478 = vld [vmem:[%s1 + $0x2988] sm:$0xff]
    %v1479 = vld [vmem:[%s1 + $0x2990] sm:$0xff]
    %v1480 = vld [vmem:[%s1 + $0x2998] sm:$0xff]
    %v1481 = vld [vmem:[%s1 + $0x29a0] sm:$0xff]
    %v1482 = vld [vmem:[%s1 + $0x29a8] sm:$0xff]
    %v1483 = vld [vmem:[%s1 + $0x29b0] sm:$0xff]
    %v1484 = vld [vmem:[%s1 + $0x29b8] sm:$0xff]
    %v1485 = vld [vmem:[%s1 + $0x29c0] sm:$0xff]
    %v1486 = vld [vmem:[%s1 + $0x29c8] sm:$0xff]
    %v1487 = vld [vmem:[%s1 + $0x29d0] sm:$0xff]
    %v1488 = vld [vmem:[%s1 + $0x29d8] sm:$0xff]
    %v1489 = vld [vmem:[%s1 + $0x29e0] sm:$0xff]
    %v1490 = vld [vmem:[%s1 + $0x29e8] sm:$0xff]
    %v1491 = vld [vmem:[%s1 + $0x29f0] sm:$0xff]
    %v1492 = vld [vmem:[%s1 + $0x29f8] sm:$0xff]
    %v1493 = vld [vmem:[%s1 + $0x2a00] sm:$0xff]
    %v1494 = vld [vmem:[%s1 + $0x2a08] sm:$0xff]
    %v1495 = vld [vmem:[%s1 + $0x2a10] sm:$0xff]
    %v1496 = vld [vmem:[%s1 + $0x2a18] sm:$0xff]
    %v1497 = vld [vmem:[%s1 + $0x2a20] sm:$0xff]
    %v1498 = vld [vmem:[%s1 + $0x2a28] sm:$0xff]
    %v1499 = vld [vmem:[%s1 + $0x2a30] sm:$0xff]
    %v1500 = vld [vmem:[%s1 + $0x2a38] sm:$0xff]
    %v1501 = vld [vmem:[%s1 + $0x2a40] sm:$0xff]
    %v1502 = vld [vmem:[%s1 + $0x2a48] sm:$0xff]
    %v1503 = vld [vmem:[%s1 + $0x2a50] sm:$0xff]
    %v1504 = vld [vmem:[%s1 + $0x2a58] sm:$0xff]
    %v1505 = vld [vmem:[%s1 + $0x2a60] sm:$0xff]
    %v1506 = vld [vmem:[%s1 + $0x2a68] sm:$0xff]
    %v1507 = vld [vmem:[%s1 + $0x2a70] sm:$0xff]
    %v1508 = vld [vmem:[%s1 + $0x2a78] sm:$0xff]
    %v1509 = vld [vmem:[%s1 + $0x2a80] sm:$0xff]
    %v1510 = vld [vmem:[%s1 + $0x2a88] sm:$0xff]
    %v1511 = vld [vmem:[%s1 + $0x2a90] sm:$0xff]
    %v1512 = vld [vmem:[%s1 + $0x2a98] sm:$0xff]
    %v1513 = vld [vmem:[%s1 + $0x2aa0] sm:$0xff]
    %v1514 = vld [vmem:[%s1 + $0x2aa8] sm:$0xff]
    %v1515 = vld [vmem:[%s1 + $0x2ab0] sm:$0xff]
    %v1516 = vld [vmem:[%s1 + $0x2ab8] sm:$0xff]
    %v1517 = vld [vmem:[%s1 + $0x2ac0] sm:$0xff]
    %v1518 = vld [vmem:[%s1 + $0x2ac8] sm:$0xff]
    %v1519 = vld [vmem:[%s1 + $0x2ad0] sm:$0xff]
    %v1520 = vld [vmem:[%s1 + $0x2ad8] sm:$0xff]
    %v1521 = vld [vmem:[%s1 + $0x2ae0] sm:$0xff]
    %v1522 = vld [vmem:[%s1 + $0x2ae8] sm:$0xff]
    %v1523 = vld [vmem:[%s1 + $0x2af0] sm:$0xff]
    %v1524 = vld [vmem:[%s1 + $0x2af8] sm:$0xff]
    %v1525 = vld [vmem:[%s1 + $0x2b00] sm:$0xff]
    %v1526 = vld [vmem:[%s1 + $0x2b08] sm:$0xff]
    %v1527 = vld [vmem:[%s1 + $0x2b10] sm:$0xff]
    %v1528 = vld [vmem:[%s1 + $0x2b18] sm:$0xff]
    %v1529 = vld [vmem:[%s1 + $0x2b20] sm:$0xff]
    %v1530 = vld [vmem:[%s1 + $0x2b28] sm:$0xff]
    %v1531 = vld [vmem:[%s1 + $0x2b30] sm:$0xff]
    %v1532 = vld [vmem:[%s1 + $0x2b38] sm:$0xff]
    %v1533 = vld [vmem:[%s1 + $0x2b40] sm:$0xff]
    %v1534 = vld [vmem:[%s1 + $0x2b48] sm:$0xff]
    %v1535 = vld [vmem:[%s1 + $0x2b50] sm:$0xff]
    %v1536 = vld [vmem:[%s1 + $0x2b58] sm:$0xff]
    %v1537 = vld [vmem:[%s1 + $0x2b60] sm:$0xff]
    %v1538 = vld [vmem:[%s1 + $0x2b68] sm:$0xff]
    %v1539 = vld [vmem:[%s1 + $0x2b70] sm:$0xff]
    %v1540 = vld [vmem:[%s1 + $0x2b78] sm:$0xff]
    %v1541 = vld [vmem:[%s1 + $0x2b80] sm:$0xff]
    %v1542 = vld [vmem:[%s1 + $0x2b88] sm:$0xff]
    %v1543 = vld [vmem:[%s1 + $0x2b90] sm:$0xff]
    %v1544 = vld [vmem:[%s1 + $0x2b98] sm:$0xff]
    %v1545 = vld [vmem:[%s1 + $0x2ba0] sm:$0xff]
    %v1546 = vld [vmem:[%s1 + $0x2ba8] sm:$0xff]
    %v1547 = vld [vmem:[%s1 + $0x2bb0] sm:$0xff]
    %v1548 = vld [vmem:[%s1 + $0x2bb8] sm:$0xff]
    %v1549 = vld [vmem:[%s1 + $0x2bc0] sm:$0xff]
    %v1550 = vld [vmem:[%s1 + $0x2bc8] sm:$0xff]
    %v1551 = vld [vmem:[%s1 + $0x2bd0] sm:$0xff]
    %v1552 = vld [vmem:[%s1 + $0x2bd8] sm:$0xff]
    %v1553 = vld [vmem:[%s1 + $0x2be0] sm:$0xff]
    %v1554 = vld [vmem:[%s1 + $0x2be8] sm:$0xff]
    %v1555 = vld [vmem:[%s1 + $0x2bf0] sm:$0xff]
    %v1556 = vld [vmem:[%s1 + $0x2bf8] sm:$0xff]
    %v1557 = vld [vmem:[%s1 + $0x2c00] sm:$0xff]
    %v1558 = vld [vmem:[%s1 + $0x2c08] sm:$0xff]
    %v1559 = vld [vmem:[%s1 + $0x2c10] sm:$0xff]
    %v1560 = vld [vmem:[%s1 + $0x2c18] sm:$0xff]
    %v1561 = vld [vmem:[%s1 + $0x2c20] sm:$0xff]
    %v1562 = vld [vmem:[%s1 + $0x2c28] sm:$0xff]
    %v1563 = vld [vmem:[%s1 + $0x2c30] sm:$0xff]
    %v1564 = vld [vmem:[%s1 + $0x2c38] sm:$0xff]
    %v1565 = vld [vmem:[%s1 + $0x2c40] sm:$0xff]
    %v1566 = vld [vmem:[%s1 + $0x2c48] sm:$0xff]
    %v1567 = vld [vmem:[%s1 + $0x2c50] sm:$0xff]
    %v1568 = vld [vmem:[%s1 + $0x2c58] sm:$0xff]
    %v1569 = vld [vmem:[%s1 + $0x2c60] sm:$0xff]
    %v1570 = vld [vmem:[%s1 + $0x2c68] sm:$0xff]
    %v1571 = vld [vmem:[%s1 + $0x2c70] sm:$0xff]
    %v1572 = vld [vmem:[%s1 + $0x2c78] sm:$0xff]
    %v1573 = vld [vmem:[%s1 + $0x2c80] sm:$0xff]
    %v1574 = vld [vmem:[%s1 + $0x2c88] sm:$0xff]
    %v1575 = vld [vmem:[%s1 + $0x2c90] sm:$0xff]
    %v1576 = vld [vmem:[%s1 + $0x2c98] sm:$0xff]
    %v1577 = vld [vmem:[%s1 + $0x2ca0] sm:$0xff]
    %v1578 = vld [vmem:[%s1 + $0x2ca8] sm:$0xff]
    %v1579 = vld [vmem:[%s1 + $0x2cb0] sm:$0xff]
    %v1580 = vld [vmem:[%s1 + $0x2cb8] sm:$0xff]
    %v1581 = vld [vmem:[%s1 + $0x2cc0] sm:$0xff]
    %v1582 = vld [vmem:[%s1 + $0x2cc8] sm:$0xff]
    %v1583 = vld [vmem:[%s1 + $0x2cd0] sm:$0xff]
    %v1584 = vld [vmem:[%s1 + $0x2cd8] sm:$0xff]
    %v1585 = vld [vmem:[%s1 + $0x2ce0] sm:$0xff]
    %v1586 = vld [vmem:[%s1 + $0x2ce8] sm:$0xff]
    %v1587 = vld [vmem:[%s1 + $0x2cf0] sm:$0xff]
    %v1588 = vld [vmem:[%s1 + $0x2cf8] sm:$0xff]
    %v1589 = vld [vmem:[%s1 + $0x2d00] sm:$0xff]
    %v1590 = vld [vmem:[%s1 + $0x2d08] sm:$0xff]
    %v1591 = vld [vmem:[%s1 + $0x2d10] sm:$0xff]
    %v1592 = vld [vmem:[%s1 + $0x2d18] sm:$0xff]
    %v1593 = vld [vmem:[%s1 + $0x2d20] sm:$0xff]
    %v1594 = vld [vmem:[%s1 + $0x2d28] sm:$0xff]
    %v1595 = vld [vmem:[%s1 + $0x2d30] sm:$0xff]
    %v1596 = vld [vmem:[%s1 + $0x2d38] sm:$0xff]
    %v1597 = vld [vmem:[%s1 + $0x2d40] sm:$0xff]
    %v1598 = vld [vmem:[%s1 + $0x2d48] sm:$0xff]
    %v1599 = vld [vmem:[%s1 + $0x2d50] sm:$0xff]
    %v1600 = vld [vmem:[%s1 + $0x2d58] sm:$0xff]
    %v1601 = vld [vmem:[%s1 + $0x2d60] sm:$0xff]
    %v1602 = vld [vmem:[%s1 + $0x2d68] sm:$0xff]
    %v1603 = vld [vmem:[%s1 + $0x2d70] sm:$0xff]
    %v1604 = vld [vmem:[%s1 + $0x2d78] sm:$0xff]
    %v1605 = vld [vmem:[%s1 + $0x2d80] sm:$0xff]
    %v1606 = vld [vmem:[%s1 + $0x2d88] sm:$0xff]
    %v1607 = vld [vmem:[%s1 + $0x2d90] sm:$0xff]
    %v1608 = vld [vmem:[%s1 + $0x2d98] sm:$0xff]
    %v1609 = vld [vmem:[%s1 + $0x2da0] sm:$0xff]
    %v1610 = vld [vmem:[%s1 + $0x2da8] sm:$0xff]
    %v1611 = vld [vmem:[%s1 + $0x2db0] sm:$0xff]
    %v1612 = vld [vmem:[%s1 + $0x2db8] sm:$0xff]
    %v1613 = vld [vmem:[%s1 + $0x2dc0] sm:$0xff]
    %v1614 = vld [vmem:[%s1 + $0x2dc8] sm:$0xff]
    %v1615 = vld [vmem:[%s1 + $0x2dd0] sm:$0xff]
    %v1616 = vld [vmem:[%s1 + $0x2dd8] sm:$0xff]
    %v1617 = vld [vmem:[%s1 + $0x2de0] sm:$0xff]
    %v1618 = vld [vmem:[%s1 + $0x2de8] sm:$0xff]
    %v1619 = vld [vmem:[%s1 + $0x2df0] sm:$0xff]
    %v1620 = vld [vmem:[%s1 + $0x2df8] sm:$0xff]
    %v1621 = vld [vmem:[%s1 + $0x2e00] sm:$0xff]
    %v1622 = vld [vmem:[%s1 + $0x2e08] sm:$0xff]
    %v1623 = vld [vmem:[%s1 + $0x2e10] sm:$0xff]
    %v1624 = vld [vmem:[%s1 + $0x2e18] sm:$0xff]
    %v1625 = vld [vmem:[%s1 + $0x2e20] sm:$0xff]
    %v1626 = vld [vmem:[%s1 + $0x2e28] sm:$0xff]
    %v1627 = vld [vmem:[%s1 + $0x2e30] sm:$0xff]
    %v1628 = vld [vmem:[%s1 + $0x2e38] sm:$0xff]
    %v1629 = vld [vmem:[%s1 + $0x2e40] sm:$0xff]
    %v1630 = vld [vmem:[%s1 + $0x2e48] sm:$0xff]
    %v1631 = vld [vmem:[%s1 + $0x2e50] sm:$0xff]
    %v1632 = vld [vmem:[%s1 + $0x2e58] sm:$0xff]
    %v1633 = vld [vmem:[%s1 + $0x2e60] sm:$0xff]
    %v1634 = vld [vmem:[%s1 + $0x2e68] sm:$0xff]
    %v1635 = vld [vmem:[%s1 + $0x2e70] sm:$0xff]
    %v1636 = vld [vmem:[%s1 + $0x2e78] sm:$0xff]
    %v1637 = vld [vmem:[%s1 + $0x2e80] sm:$0xff]
    %v1638 = vld [vmem:[%s1 + $0x2e88] sm:$0xff]
    %v1639 = vld [vmem:[%s1 + $0x2e90] sm:$0xff]
    %v1640 = vld [vmem:[%s1 + $0x2e98] sm:$0xff]
    %v1641 = vld [vmem:[%s1 + $0x2ea0] sm:$0xff]
    %v1642 = vld [vmem:[%s1 + $0x2ea8] sm:$0xff]
    %v1643 = vld [vmem:[%s1 + $0x2eb0] sm:$0xff]
    %v1644 = vld [vmem:[%s1 + $0x2eb8] sm:$0xff]
    %v1645 = vld [vmem:[%s1 + $0x2ec0] sm:$0xff]
    %v1646 = vld [vmem:[%s1 + $0x2ec8] sm:$0xff]
    %v1647 = vld [vmem:[%s1 + $0x2ed0] sm:$0xff]
    %v1648 = vld [vmem:[%s1 + $0x2ed8] sm:$0xff]
    %v1649 = vld [vmem:[%s1 + $0x2ee0] sm:$0xff]
    %v1650 = vld [vmem:[%s1 + $0x2ee8] sm:$0xff]
    %v1651 = vld [vmem:[%s1 + $0x2ef0] sm:$0xff]
    %v1652 = vld [vmem:[%s1 + $0x2ef8] sm:$0xff]
    %v1653 = vld [vmem:[%s1 + $0x2f00] sm:$0xff]
    %v1654 = vld [vmem:[%s1 + $0x2f08] sm:$0xff]
    %v1655 = vld [vmem:[%s1 + $0x2f10] sm:$0xff]
    %v1656 = vld [vmem:[%s1 + $0x2f18] sm:$0xff]
    %v1657 = vld [vmem:[%s1 + $0x2f20] sm:$0xff]
    %v1658 = vld [vmem:[%s1 + $0x2f28] sm:$0xff]
    %v1659 = vld [vmem:[%s1 + $0x2f30] sm:$0xff]
    %v1660 = vld [vmem:[%s1 + $0x2f38] sm:$0xff]
    %v1661 = vld [vmem:[%s1 + $0x2f40] sm:$0xff]
    %v1662 = vld [vmem:[%s1 + $0x2f48] sm:$0xff]
    %v1663 = vld [vmem:[%s1 + $0x2f50] sm:$0xff]
    %v1664 = vld [vmem:[%s1 + $0x2f58] sm:$0xff]
    %v1665 = vld [vmem:[%s1 + $0x2f60] sm:$0xff]
    %v1666 = vld [vmem:[%s1 + $0x2f68] sm:$0xff]
    %v1667 = vld [vmem:[%s1 + $0x2f70] sm:$0xff]
    %v1668 = vld [vmem:[%s1 + $0x2f78] sm:$0xff]
    %v1669 = vld [vmem:[%s1 + $0x2f80] sm:$0xff]
    %v1670 = vld [vmem:[%s1 + $0x2f88] sm:$0xff]
    %v1671 = vld [vmem:[%s1 + $0x2f90] sm:$0xff]
    %v1672 = vld [vmem:[%s1 + $0x2f98] sm:$0xff]
    %v1673 = vld [vmem:[%s1 + $0x2fa0] sm:$0xff]
    %v1674 = vld [vmem:[%s1 + $0x2fa8] sm:$0xff]
    %v1675 = vld [vmem:[%s1 + $0x2fb0] sm:$0xff]
    %v1676 = vld [vmem:[%s1 + $0x2fb8] sm:$0xff]
    %v1677 = vld [vmem:[%s1 + $0x2fc0] sm:$0xff]
    %v1678 = vld [vmem:[%s1 + $0x2fc8] sm:$0xff]
    %v1679 = vld [vmem:[%s1 + $0x2fd0] sm:$0xff]
    %v1680 = vld [vmem:[%s1 + $0x2fd8] sm:$0xff]
    %v1681 = vld [vmem:[%s1 + $0x2fe0] sm:$0xff]
    %v1682 = vld [vmem:[%s1 + $0x2fe8] sm:$0xff]
    %v1683 = vld [vmem:[%s1 + $0x2ff0] sm:$0xff]
    %v1684 = vld [vmem:[%s1 + $0x2ff8] sm:$0xff]
    %v1685 = vld [vmem:[%s1 + $0x3000] sm:$0xff]
    %v1686 = vld [vmem:[%s1 + $0x3008] sm:$0xff]
    %v1687 = vld [vmem:[%s1 + $0x3010] sm:$0xff]
    %v1688 = vld [vmem:[%s1 + $0x3018] sm:$0xff]
    %v1689 = vld [vmem:[%s1 + $0x3020] sm:$0xff]
    %v1690 = vld [vmem:[%s1 + $0x3028] sm:$0xff]
    %v1691 = vld [vmem:[%s1 + $0x3030] sm:$0xff]
    %v1692 = vld [vmem:[%s1 + $0x3038] sm:$0xff]
    %v1693 = vld [vmem:[%s1 + $0x3040] sm:$0xff]
    %v1694 = vld [vmem:[%s1 + $0x3048] sm:$0xff]
    %v1695 = vld [vmem:[%s1 + $0x3050] sm:$0xff]
    %v1696 = vld [vmem:[%s1 + $0x3058] sm:$0xff]
    %v1697 = vld [vmem:[%s1 + $0x3060] sm:$0xff]
    %v1698 = vld [vmem:[%s1 + $0x3068] sm:$0xff]
    %v1699 = vld [vmem:[%s1 + $0x3070] sm:$0xff]
    %v1700 = vld [vmem:[%s1 + $0x3078] sm:$0xff]
    %v1701 = vld [vmem:[%s1 + $0x3080] sm:$0xff]
    %v1702 = vld [vmem:[%s1 + $0x3088] sm:$0xff]
    %v1703 = vld [vmem:[%s1 + $0x3090] sm:$0xff]
    %v1704 = vld [vmem:[%s1 + $0x3098] sm:$0xff]
    %v1705 = vld [vmem:[%s1 + $0x30a0] sm:$0xff]
    %v1706 = vld [vmem:[%s1 + $0x30a8] sm:$0xff]
    %v1707 = vld [vmem:[%s1 + $0x30b0] sm:$0xff]
    %v1708 = vld [vmem:[%s1 + $0x30b8] sm:$0xff]
    %v1709 = vld [vmem:[%s1 + $0x30c0] sm:$0xff]
    %v1710 = vld [vmem:[%s1 + $0x30c8] sm:$0xff]
    %v1711 = vld [vmem:[%s1 + $0x30d0] sm:$0xff]
    %v1712 = vld [vmem:[%s1 + $0x30d8] sm:$0xff]
    %v1713 = vld [vmem:[%s1 + $0x30e0] sm:$0xff]
    %v1714 = vld [vmem:[%s1 + $0x30e8] sm:$0xff]
    %v1715 = vld [vmem:[%s1 + $0x30f0] sm:$0xff]
    %v1716 = vld [vmem:[%s1 + $0x30f8] sm:$0xff]
    %v1717 = vld [vmem:[%s1 + $0x3100] sm:$0xff]
    %v1718 = vld [vmem:[%s1 + $0x3108] sm:$0xff]
    %v1719 = vld [vmem:[%s1 + $0x3110] sm:$0xff]
    %v1720 = vld [vmem:[%s1 + $0x3118] sm:$0xff]
    %v1721 = vld [vmem:[%s1 + $0x3120] sm:$0xff]
    %v1722 = vld [vmem:[%s1 + $0x3128] sm:$0xff]
    %v1723 = vld [vmem:[%s1 + $0x3130] sm:$0xff]
    %v1724 = vld [vmem:[%s1 + $0x3138] sm:$0xff]
    %v1725 = vld [vmem:[%s1 + $0x3140] sm:$0xff]
    %v1726 = vld [vmem:[%s1 + $0x3148] sm:$0xff]
    %v1727 = vld [vmem:[%s1 + $0x3150] sm:$0xff]
    %v1728 = vld [vmem:[%s1 + $0x3158] sm:$0xff]
    %v1729 = vld [vmem:[%s1 + $0x3160] sm:$0xff]
    %v1730 = vld [vmem:[%s1 + $0x3168] sm:$0xff]
    %v1731 = vld [vmem:[%s1 + $0x3170] sm:$0xff]
    %v1732 = vld [vmem:[%s1 + $0x3178] sm:$0xff]
    %v1733 = vld [vmem:[%s1 + $0x3180] sm:$0xff]
    %v1734 = vld [vmem:[%s1 + $0x3188] sm:$0xff]
    %v1735 = vld [vmem:[%s1 + $0x3190] sm:$0xff]
    %v1736 = vld [vmem:[%s1 + $0x3198] sm:$0xff]
    %v1737 = vld [vmem:[%s1 + $0x31a0] sm:$0xff]
    %v1738 = vld [vmem:[%s1 + $0x31a8] sm:$0xff]
    %v1739 = vld [vmem:[%s1 + $0x31b0] sm:$0xff]
    %v1740 = vld [vmem:[%s1 + $0x31b8] sm:$0xff]
    %v1741 = vld [vmem:[%s1 + $0x31c0] sm:$0xff]
    %v1742 = vld [vmem:[%s1 + $0x31c8] sm:$0xff]
    %v1743 = vld [vmem:[%s1 + $0x31d0] sm:$0xff]
    %v1744 = vld [vmem:[%s1 + $0x31d8] sm:$0xff]
    %v1745 = vld [vmem:[%s1 + $0x31e0] sm:$0xff]
    %v1746 = vld [vmem:[%s1 + $0x31e8] sm:$0xff]
    %v1747 = vld [vmem:[%s1 + $0x31f0] sm:$0xff]
    %v1748 = vld [vmem:[%s1 + $0x31f8] sm:$0xff]
    %v1749 = vld [vmem:[%s1 + $0x3200] sm:$0xff]
    %v1750 = vld [vmem:[%s1 + $0x3208] sm:$0xff]
    %v1751 = vld [vmem:[%s1 + $0x3210] sm:$0xff]
    %v1752 = vld [vmem:[%s1 + $0x3218] sm:$0xff]
    %v1753 = vld [vmem:[%s1 + $0x3220] sm:$0xff]
    %v1754 = vld [vmem:[%s1 + $0x3228] sm:$0xff]
    %v1755 = vld [vmem:[%s1 + $0x3230] sm:$0xff]
    %v1756 = vld [vmem:[%s1 + $0x3238] sm:$0xff]
    %v1757 = vld [vmem:[%s1 + $0x3240] sm:$0xff]
    %v1758 = vld [vmem:[%s1 + $0x3248] sm:$0xff]
    %v1759 = vld [vmem:[%s1 + $0x3250] sm:$0xff]
    %v1760 = vld [vmem:[%s1 + $0x3258] sm:$0xff]
    %v1761 = vld [vmem:[%s1 + $0x3260] sm:$0xff]
    %v1762 = vld [vmem:[%s1 + $0x3268] sm:$0xff]
    %v1763 = vld [vmem:[%s1 + $0x3270] sm:$0xff]
    %v1764 = vld [vmem:[%s1 + $0x3278] sm:$0xff]
    %v1765 = vld [vmem:[%s1 + $0x3280] sm:$0xff]
    %v1766 = vld [vmem:[%s1 + $0x3288] sm:$0xff]
    %v1767 = vld [vmem:[%s1 + $0x3290] sm:$0xff]
    %v1768 = vld [vmem:[%s1 + $0x3298] sm:$0xff]
    %v1769 = vld [vmem:[%s1 + $0x32a0] sm:$0xff]
    %v1770 = vld [vmem:[%s1 + $0x32a8] sm:$0xff]
    %v1771 = vld [vmem:[%s1 + $0x32b0] sm:$0xff]
    %v1772 = vld [vmem:[%s1 + $0x32b8] sm:$0xff]
    %v1773 = vld [vmem:[%s1 + $0x32c0] sm:$0xff]
    %v1774 = vld [vmem:[%s1 + $0x32c8] sm:$0xff]
    %v1775 = vld [vmem:[%s1 + $0x32d0] sm:$0xff]
    %v1776 = vld [vmem:[%s1 + $0x32d8] sm:$0xff]
    %v1777 = vld [vmem:[%s1 + $0x32e0] sm:$0xff]
    %v1778 = vld [vmem:[%s1 + $0x32e8] sm:$0xff]
    %v1779 = vld [vmem:[%s1 + $0x32f0] sm:$0xff]
    %v1780 = vld [vmem:[%s1 + $0x32f8] sm:$0xff]
    %v1781 = vld [vmem:[%s1 + $0x3300] sm:$0xff]
    %v1782 = vld [vmem:[%s1 + $0x3308] sm:$0xff]
    %v1783 = vld [vmem:[%s1 + $0x3310] sm:$0xff]
    %v1784 = vld [vmem:[%s1 + $0x3318] sm:$0xff]
    %v1785 = vld [vmem:[%s1 + $0x3320] sm:$0xff]
    %v1786 = vld [vmem:[%s1 + $0x3328] sm:$0xff]
    %v1787 = vld [vmem:[%s1 + $0x3330] sm:$0xff]
    %v1788 = vld [vmem:[%s1 + $0x3338] sm:$0xff]
    %v1789 = vld [vmem:[%s1 + $0x3340] sm:$0xff]
    %v1790 = vld [vmem:[%s1 + $0x3348] sm:$0xff]
    %v1791 = vld [vmem:[%s1 + $0x3350] sm:$0xff]
    %v1792 = vld [vmem:[%s1 + $0x3358] sm:$0xff]
    %v1793 = vld [vmem:[%s1 + $0x3360] sm:$0xff]
    %v1794 = vld [vmem:[%s1 + $0x3368] sm:$0xff]
    %v1795 = vld [vmem:[%s1 + $0x3370] sm:$0xff]
    %v1796 = vld [vmem:[%s1 + $0x3378] sm:$0xff]
    %v1797 = vld [vmem:[%s1 + $0x3380] sm:$0xff]
    %v1798 = vld [vmem:[%s1 + $0x3388] sm:$0xff]
    %v1799 = vld [vmem:[%s1 + $0x3390] sm:$0xff]
    %v1800 = vld [vmem:[%s1 + $0x3398] sm:$0xff]
    %v1801 = vld [vmem:[%s1 + $0x33a0] sm:$0xff]
    %v1802 = vld [vmem:[%s1 + $0x33a8] sm:$0xff]
    %v1803 = vld [vmem:[%s1 + $0x33b0] sm:$0xff]
    %v1804 = vld [vmem:[%s1 + $0x33b8] sm:$0xff]
    %v1805 = vld [vmem:[%s1 + $0x33c0] sm:$0xff]
    %v1806 = vld [vmem:[%s1 + $0x33c8] sm:$0xff]
    %v1807 = vld [vmem:[%s1 + $0x33d0] sm:$0xff]
    %v1808 = vld [vmem:[%s1 + $0x33d8] sm:$0xff]
    %v1809 = vld [vmem:[%s1 + $0x33e0] sm:$0xff]
    %v1810 = vld [vmem:[%s1 + $0x33e8] sm:$0xff]
    %v1811 = vld [vmem:[%s1 + $0x33f0] sm:$0xff]
    %v1812 = vld [vmem:[%s1 + $0x33f8] sm:$0xff]
    %v1813 = vld [vmem:[%s1 + $0x3400] sm:$0xff]
    %v1814 = vld [vmem:[%s1 + $0x3408] sm:$0xff]
    %v1815 = vld [vmem:[%s1 + $0x3410] sm:$0xff]
    %v1816 = vld [vmem:[%s1 + $0x3418] sm:$0xff]
    %v1817 = vld [vmem:[%s1 + $0x3420] sm:$0xff]
    %v1818 = vld [vmem:[%s1 + $0x3428] sm:$0xff]
    %v1819 = vld [vmem:[%s1 + $0x3430] sm:$0xff]
    %v1820 = vld [vmem:[%s1 + $0x3438] sm:$0xff]
    %v1821 = vld [vmem:[%s1 + $0x3440] sm:$0xff]
    %v1822 = vld [vmem:[%s1 + $0x3448] sm:$0xff]
    %v1823 = vld [vmem:[%s1 + $0x3450] sm:$0xff]
    %v1824 = vld [vmem:[%s1 + $0x3458] sm:$0xff]
    %v1825 = vld [vmem:[%s1 + $0x3460] sm:$0xff]
    %v1826 = vld [vmem:[%s1 + $0x3468] sm:$0xff]
    %v1827 = vld [vmem:[%s1 + $0x3470] sm:$0xff]
    %v1828 = vld [vmem:[%s1 + $0x3478] sm:$0xff]
    %v1829 = vld [vmem:[%s1 + $0x3480] sm:$0xff]
    %v1830 = vld [vmem:[%s1 + $0x3488] sm:$0xff]
    %v1831 = vld [vmem:[%s1 + $0x3490] sm:$0xff]
    %v1832 = vld [vmem:[%s1 + $0x3498] sm:$0xff]
    %v1833 = vld [vmem:[%s1 + $0x34a0] sm:$0xff]
    %v1834 = vld [vmem:[%s1 + $0x34a8] sm:$0xff]
    %v1835 = vld [vmem:[%s1 + $0x34b0] sm:$0xff]
    %v1836 = vld [vmem:[%s1 + $0x34b8] sm:$0xff]
    %v1837 = vld [vmem:[%s1 + $0x34c0] sm:$0xff]
    %v1838 = vld [vmem:[%s1 + $0x34c8] sm:$0xff]
    %v1839 = vld [vmem:[%s1 + $0x34d0] sm:$0xff]
    %v1840 = vld [vmem:[%s1 + $0x34d8] sm:$0xff]
    %v1841 = vld [vmem:[%s1 + $0x34e0] sm:$0xff]
    %v1842 = vld [vmem:[%s1 + $0x34e8] sm:$0xff]
    %v1843 = vld [vmem:[%s1 + $0x34f0] sm:$0xff]
    %v1844 = vld [vmem:[%s1 + $0x34f8] sm:$0xff]
    %v1845 = vld [vmem:[%s1 + $0x3500] sm:$0xff]
    %v1846 = vld [vmem:[%s1 + $0x3508] sm:$0xff]
    %v1847 = vld [vmem:[%s1 + $0x3510] sm:$0xff]
    %v1848 = vld [vmem:[%s1 + $0x3518] sm:$0xff]
    %v1849 = vld [vmem:[%s1 + $0x3520] sm:$0xff]
    %v1850 = vld [vmem:[%s1 + $0x3528] sm:$0xff]
    %v1851 = vld [vmem:[%s1 + $0x3530] sm:$0xff]
    %v1852 = vld [vmem:[%s1 + $0x3538] sm:$0xff]
    %v1853 = vld [vmem:[%s1 + $0x3540] sm:$0xff]
    %v1854 = vld [vmem:[%s1 + $0x3548] sm:$0xff]
    %v1855 = vld [vmem:[%s1 + $0x3550] sm:$0xff]
    %v1856 = vld [vmem:[%s1 + $0x3558] sm:$0xff]
    %v1857 = vld [vmem:[%s1 + $0x3560] sm:$0xff]
    %v1858 = vld [vmem:[%s1 + $0x3568] sm:$0xff]
    %v1859 = vld [vmem:[%s1 + $0x3570] sm:$0xff]
    %v1860 = vld [vmem:[%s1 + $0x3578] sm:$0xff]
    %v1861 = vld [vmem:[%s1 + $0x3580] sm:$0xff]
    %v1862 = vld [vmem:[%s1 + $0x3588] sm:$0xff]
    %v1863 = vld [vmem:[%s1 + $0x3590] sm:$0xff]
    %v1864 = vld [vmem:[%s1 + $0x3598] sm:$0xff]
    %v1865 = vld [vmem:[%s1 + $0x35a0] sm:$0xff]
    %v1866 = vld [vmem:[%s1 + $0x35a8] sm:$0xff]
    %v1867 = vld [vmem:[%s1 + $0x35b0] sm:$0xff]
    %v1868 = vld [vmem:[%s1 + $0x35b8] sm:$0xff]
    %v1869 = vld [vmem:[%s1 + $0x35c0] sm:$0xff]
    %v1870 = vld [vmem:[%s1 + $0x35c8] sm:$0xff]
    %v1871 = vld [vmem:[%s1 + $0x35d0] sm:$0xff]
    %v1872 = vld [vmem:[%s1 + $0x35d8] sm:$0xff]
    %v1873 = vld [vmem:[%s1 + $0x35e0] sm:$0xff]
    %v1874 = vld [vmem:[%s1 + $0x35e8] sm:$0xff]
    %v1875 = vld [vmem:[%s1 + $0x35f0] sm:$0xff]
    %v1876 = vld [vmem:[%s1 + $0x35f8] sm:$0xff]
    %v1877 = vld [vmem:[%s1 + $0x3600] sm:$0xff]
    %v1878 = vld [vmem:[%s1 + $0x3608] sm:$0xff]
    %v1879 = vld [vmem:[%s1 + $0x3610] sm:$0xff]
    %v1880 = vld [vmem:[%s1 + $0x3618] sm:$0xff]
    %v1881 = vld [vmem:[%s1 + $0x3620] sm:$0xff]
    %v1882 = vld [vmem:[%s1 + $0x3628] sm:$0xff]
    %v1883 = vld [vmem:[%s1 + $0x3630] sm:$0xff]
    %v1884 = vld [vmem:[%s1 + $0x3638] sm:$0xff]
    %v1885 = vld [vmem:[%s1 + $0x3640] sm:$0xff]
    %v1886 = vld [vmem:[%s1 + $0x3648] sm:$0xff]
    %v1887 = vld [vmem:[%s1 + $0x3650] sm:$0xff]
    %v1888 = vld [vmem:[%s1 + $0x3658] sm:$0xff]
    %v1889 = vld [vmem:[%s1 + $0x3660] sm:$0xff]
    %v1890 = vld [vmem:[%s1 + $0x3668] sm:$0xff]
    %v1891 = vld [vmem:[%s1 + $0x3670] sm:$0xff]
    %v1892 = vld [vmem:[%s1 + $0x3678] sm:$0xff]
    %v1893 = vld [vmem:[%s1 + $0x3680] sm:$0xff]
    %v1894 = vld [vmem:[%s1 + $0x3688] sm:$0xff]
    %v1895 = vld [vmem:[%s1 + $0x3690] sm:$0xff]
    %v1896 = vld [vmem:[%s1 + $0x3698] sm:$0xff]
    %v1897 = vld [vmem:[%s1 + $0x36a0] sm:$0xff]
    %v1898 = vld [vmem:[%s1 + $0x36a8] sm:$0xff]
    %v1899 = vld [vmem:[%s1 + $0x36b0] sm:$0xff]
    %v1900 = vld [vmem:[%s1 + $0x36b8] sm:$0xff]
    %v1901 = vld [vmem:[%s1 + $0x36c0] sm:$0xff]
    %v1902 = vld [vmem:[%s1 + $0x36c8] sm:$0xff]
    %v1903 = vld [vmem:[%s1 + $0x36d0] sm:$0xff]
    %v1904 = vld [vmem:[%s1 + $0x36d8] sm:$0xff]
    %v1905 = vld [vmem:[%s1 + $0x36e0] sm:$0xff]
    %v1906 = vld [vmem:[%s1 + $0x36e8] sm:$0xff]
    %v1907 = vld [vmem:[%s1 + $0x36f0] sm:$0xff]
    %v1908 = vld [vmem:[%s1 + $0x36f8] sm:$0xff]
    %v1909 = vld [vmem:[%s1 + $0x3700] sm:$0xff]
    %v1910 = vld [vmem:[%s1 + $0x3708] sm:$0xff]
    %v1911 = vld [vmem:[%s1 + $0x3710] sm:$0xff]
    %v1912 = vld [vmem:[%s1 + $0x3718] sm:$0xff]
    %v1913 = vld [vmem:[%s1 + $0x3720] sm:$0xff]
    %v1914 = vld [vmem:[%s1 + $0x3728] sm:$0xff]
    %v1915 = vld [vmem:[%s1 + $0x3730] sm:$0xff]
    %v1916 = vld [vmem:[%s1 + $0x3738] sm:$0xff]
    %v1917 = vld [vmem:[%s1 + $0x3740] sm:$0xff]
    %v1918 = vld [vmem:[%s1 + $0x3748] sm:$0xff]
    %v1919 = vld [vmem:[%s1 + $0x3750] sm:$0xff]
    %v1920 = vld [vmem:[%s1 + $0x3758] sm:$0xff]
    %v1921 = vld [vmem:[%s1 + $0x3760] sm:$0xff]
    %v1922 = vld [vmem:[%s1 + $0x3768] sm:$0xff]
    %v1923 = vld [vmem:[%s1 + $0x3770] sm:$0xff]
    %v1924 = vld [vmem:[%s1 + $0x3778] sm:$0xff]
    %v1925 = vld [vmem:[%s1 + $0x3780] sm:$0xff]
    %v1926 = vld [vmem:[%s1 + $0x3788] sm:$0xff]
    %v1927 = vld [vmem:[%s1 + $0x3790] sm:$0xff]
    %v1928 = vld [vmem:[%s1 + $0x3798] sm:$0xff]
    %v1929 = vld [vmem:[%s1 + $0x37a0] sm:$0xff]
    %v1930 = vld [vmem:[%s1 + $0x37a8] sm:$0xff]
    %v1931 = vld [vmem:[%s1 + $0x37b0] sm:$0xff]
    %v1932 = vld [vmem:[%s1 + $0x37b8] sm:$0xff]
    %v1933 = vld [vmem:[%s1 + $0x37c0] sm:$0xff]
    %v1934 = vld [vmem:[%s1 + $0x37c8] sm:$0xff]
    %v1935 = vld [vmem:[%s1 + $0x37d0] sm:$0xff]
    %v1936 = vld [vmem:[%s1 + $0x37d8] sm:$0xff]
    %v1937 = vld [vmem:[%s1 + $0x37e0] sm:$0xff]
    %v1938 = vld [vmem:[%s1 + $0x37e8] sm:$0xff]
    %v1939 = vld [vmem:[%s1 + $0x37f0] sm:$0xff]
    %v1940 = vld [vmem:[%s1 + $0x37f8] sm:$0xff]
    %v1941 = vld [vmem:[%s1 + $0x3800] sm:$0xff]
    %v1942 = vld [vmem:[%s1 + $0x3808] sm:$0xff]
    %v1943 = vld [vmem:[%s1 + $0x3810] sm:$0xff]
    %v1944 = vld [vmem:[%s1 + $0x3818] sm:$0xff]
    %v1945 = vld [vmem:[%s1 + $0x3820] sm:$0xff]
    %v1946 = vld [vmem:[%s1 + $0x3828] sm:$0xff]
    %v1947 = vld [vmem:[%s1 + $0x3830] sm:$0xff]
    %v1948 = vld [vmem:[%s1 + $0x3838] sm:$0xff]
    %v1949 = vld [vmem:[%s1 + $0x3840] sm:$0xff]
    %v1950 = vld [vmem:[%s1 + $0x3848] sm:$0xff]
    %v1951 = vld [vmem:[%s1 + $0x3850] sm:$0xff]
    %v1952 = vld [vmem:[%s1 + $0x3858] sm:$0xff]
    %v1953 = vld [vmem:[%s1 + $0x3860] sm:$0xff]
    %v1954 = vld [vmem:[%s1 + $0x3868] sm:$0xff]
    %v1955 = vld [vmem:[%s1 + $0x3870] sm:$0xff]
    %v1956 = vld [vmem:[%s1 + $0x3878] sm:$0xff]
    %v1957 = vld [vmem:[%s1 + $0x3880] sm:$0xff]
    %v1958 = vld [vmem:[%s1 + $0x3888] sm:$0xff]
    %v1959 = vld [vmem:[%s1 + $0x3890] sm:$0xff]
    %v1960 = vld [vmem:[%s1 + $0x3898] sm:$0xff]
    %v1961 = vld [vmem:[%s1 + $0x38a0] sm:$0xff]
    %v1962 = vld [vmem:[%s1 + $0x38a8] sm:$0xff]
    %v1963 = vld [vmem:[%s1 + $0x38b0] sm:$0xff]
    %v1964 = vld [vmem:[%s1 + $0x38b8] sm:$0xff]
    %v1965 = vld [vmem:[%s1 + $0x38c0] sm:$0xff]
    %v1966 = vld [vmem:[%s1 + $0x38c8] sm:$0xff]
    %v1967 = vld [vmem:[%s1 + $0x38d0] sm:$0xff]
    %v1968 = vld [vmem:[%s1 + $0x38d8] sm:$0xff]
    %v1969 = vld [vmem:[%s1 + $0x38e0] sm:$0xff]
    %v1970 = vld [vmem:[%s1 + $0x38e8] sm:$0xff]
    %v1971 = vld [vmem:[%s1 + $0x38f0] sm:$0xff]
    %v1972 = vld [vmem:[%s1 + $0x38f8] sm:$0xff]
    %v1973 = vld [vmem:[%s1 + $0x3900] sm:$0xff]
    %v1974 = vld [vmem:[%s1 + $0x3908] sm:$0xff]
    %v1975 = vld [vmem:[%s1 + $0x3910] sm:$0xff]
    %v1976 = vld [vmem:[%s1 + $0x3918] sm:$0xff]
    %v1977 = vld [vmem:[%s1 + $0x3920] sm:$0xff]
    %v1978 = vld [vmem:[%s1 + $0x3928] sm:$0xff]
    %v1979 = vld [vmem:[%s1 + $0x3930] sm:$0xff]
    %v1980 = vld [vmem:[%s1 + $0x3938] sm:$0xff]
    %v1981 = vld [vmem:[%s1 + $0x3940] sm:$0xff]
    %v1982 = vld [vmem:[%s1 + $0x3948] sm:$0xff]
    %v1983 = vld [vmem:[%s1 + $0x3950] sm:$0xff]
    %v1984 = vld [vmem:[%s1 + $0x3958] sm:$0xff]
    %v1985 = vld [vmem:[%s1 + $0x3960] sm:$0xff]
    %v1986 = vld [vmem:[%s1 + $0x3968] sm:$0xff]
    %v1987 = vld [vmem:[%s1 + $0x3970] sm:$0xff]
    %v1988 = vld [vmem:[%s1 + $0x3978] sm:$0xff]
    %v1989 = vld [vmem:[%s1 + $0x3980] sm:$0xff]
    %v1990 = vld [vmem:[%s1 + $0x3988] sm:$0xff]
    %v1991 = vld [vmem:[%s1 + $0x3990] sm:$0xff]
    %v1992 = vld [vmem:[%s1 + $0x3998] sm:$0xff]
    %v1993 = vld [vmem:[%s1 + $0x39a0] sm:$0xff]
    %v1994 = vld [vmem:[%s1 + $0x39a8] sm:$0xff]
    %v1995 = vld [vmem:[%s1 + $0x39b0] sm:$0xff]
    %v1996 = vld [vmem:[%s1 + $0x39b8] sm:$0xff]
    %v1997 = vld [vmem:[%s1 + $0x39c0] sm:$0xff]
    %v1998 = vld [vmem:[%s1 + $0x39c8] sm:$0xff]
    %v1999 = vld [vmem:[%s1 + $0x39d0] sm:$0xff]
    %v2000 = vld [vmem:[%s1 + $0x39d8] sm:$0xff]
    %v2001 = vld [vmem:[%s1 + $0x39e0] sm:$0xff]
    %v2002 = vld [vmem:[%s1 + $0x39e8] sm:$0xff]
    %v2003 = vld [vmem:[%s1 + $0x39f0] sm:$0xff]
    %v2004 = vld [vmem:[%s1 + $0x39f8] sm:$0xff]
    %v2005 = vld [vmem:[%s1 + $0x3a00] sm:$0xff]
    %v2006 = vld [vmem:[%s1 + $0x3a08] sm:$0xff]
    %v2007 = vld [vmem:[%s1 + $0x3a10] sm:$0xff]
    %v2008 = vld [vmem:[%s1 + $0x3a18] sm:$0xff]
    %v2009 = vld [vmem:[%s1 + $0x3a20] sm:$0xff]
    %v2010 = vld [vmem:[%s1 + $0x3a28] sm:$0xff]
    %v2011 = vld [vmem:[%s1 + $0x3a30] sm:$0xff]
    %v2012 = vld [vmem:[%s1 + $0x3a38] sm:$0xff]
    %v2013 = vld [vmem:[%s1 + $0x3a40] sm:$0xff]
    %v2014 = vld [vmem:[%s1 + $0x3a48] sm:$0xff]
    %v2015 = vld [vmem:[%s1 + $0x3a50] sm:$0xff]
    %v2016 = vld [vmem:[%s1 + $0x3a58] sm:$0xff]
    %v2017 = vld [vmem:[%s1 + $0x3a60] sm:$0xff]
    %v2018 = vld [vmem:[%s1 + $0x3a68] sm:$0xff]
    %v2019 = vld [vmem:[%s1 + $0x3a70] sm:$0xff]
    %v2020 = vld [vmem:[%s1 + $0x3a78] sm:$0xff]
    %v2021 = vld [vmem:[%s1 + $0x3a80] sm:$0xff]
    %v2022 = vld [vmem:[%s1 + $0x3a88] sm:$0xff]
    %v2023 = vld [vmem:[%s1 + $0x3a90] sm:$0xff]
    %v2024 = vld [vmem:[%s1 + $0x3a98] sm:$0xff]
    %v2025 = vld [vmem:[%s1 + $0x3aa0] sm:$0xff]
    %v2026 = vld [vmem:[%s1 + $0x3aa8] sm:$0xff]
    %v2027 = vld [vmem:[%s1 + $0x3ab0] sm:$0xff]
    %v2028 = vld [vmem:[%s1 + $0x3ab8] sm:$0xff]
    %v2029 = vld [vmem:[%s1 + $0x3ac0] sm:$0xff]
    %v2030 = vld [vmem:[%s1 + $0x3ac8] sm:$0xff]
    %v2031 = vld [vmem:[%s1 + $0x3ad0] sm:$0xff]
    %v2032 = vld [vmem:[%s1 + $0x3ad8] sm:$0xff]
    %v2033 = vld [vmem:[%s1 + $0x3ae0] sm:$0xff]
    %v2034 = vld [vmem:[%s1 + $0x3ae8] sm:$0xff]
    %v2035 = vld [vmem:[%s1 + $0x3af0] sm:$0xff]
    %v2036 = vld [vmem:[%s1 + $0x3af8] sm:$0xff]
    %v2037 = vld [vmem:[%s1 + $0x3b00] sm:$0xff]
    %v2038 = vld [vmem:[%s1 + $0x3b08] sm:$0xff]
    %v2039 = vld [vmem:[%s1 + $0x3b10] sm:$0xff]
    %v2040 = vld [vmem:[%s1 + $0x3b18] sm:$0xff]
    %v2041 = vld [vmem:[%s1 + $0x3b20] sm:$0xff]
    %v2042 = vld [vmem:[%s1 + $0x3b28] sm:$0xff]
    %v2043 = vld [vmem:[%s1 + $0x3b30] sm:$0xff]
    %v2044 = vld [vmem:[%s1 + $0x3b38] sm:$0xff]
    %v2045 = vld [vmem:[%s1 + $0x3b40] sm:$0xff]
    %v2046 = vld [vmem:[%s1 + $0x3b48] sm:$0xff]
    %v2047 = vld [vmem:[%s1 + $0x3b50] sm:$0xff]
    %v2048 = vld [vmem:[%s1 + $0x3b58] sm:$0xff]
    %v2049 = vld [vmem:[%s1 + $0x3b60] sm:$0xff]
    %v2050 = vld [vmem:[%s1 + $0x3b68] sm:$0xff]
    %v2051 = vld [vmem:[%s1 + $0x3b70] sm:$0xff]
    %v2052 = vld [vmem:[%s1 + $0x3b78] sm:$0xff]
    %v2053 = vld [vmem:[%s1 + $0x3b80] sm:$0xff]
    %v2054 = vld [vmem:[%s1 + $0x3b88] sm:$0xff]
    %v2055 = vld [vmem:[%s1 + $0x3b90] sm:$0xff]
    %v2056 = vld [vmem:[%s1 + $0x3b98] sm:$0xff]
    %v2057 = vld [vmem:[%s1 + $0x3ba0] sm:$0xff]
    %v2058 = vld [vmem:[%s1 + $0x3ba8] sm:$0xff]
    %v2059 = vld [vmem:[%s1 + $0x3bb0] sm:$0xff]
    %v2060 = vld [vmem:[%s1 + $0x3bb8] sm:$0xff]
    %v2061 = vld [vmem:[%s1 + $0x3bc0] sm:$0xff]
    %v2062 = vld [vmem:[%s1 + $0x3bc8] sm:$0xff]
    %v2063 = vld [vmem:[%s1 + $0x3bd0] sm:$0xff]
    %v2064 = vld [vmem:[%s1 + $0x3bd8] sm:$0xff]
    %v2065 = vld [vmem:[%s1 + $0x3be0] sm:$0xff]
    %v2066 = vld [vmem:[%s1 + $0x3be8] sm:$0xff]
    %v2067 = vld [vmem:[%s1 + $0x3bf0] sm:$0xff]
    %v2068 = vld [vmem:[%s1 + $0x3bf8] sm:$0xff]
    %v2069 = vld [vmem:[%s1 + $0x3c00] sm:$0xff]
    %v2070 = vld [vmem:[%s1 + $0x3c08] sm:$0xff]
    %v2071 = vld [vmem:[%s1 + $0x3c10] sm:$0xff]
    %v2072 = vld [vmem:[%s1 + $0x3c18] sm:$0xff]
    %v2073 = vld [vmem:[%s1 + $0x3c20] sm:$0xff]
    %v2074 = vld [vmem:[%s1 + $0x3c28] sm:$0xff]
    %v2075 = vld [vmem:[%s1 + $0x3c30] sm:$0xff]
    %v2076 = vld [vmem:[%s1 + $0x3c38] sm:$0xff]
    %v2077 = vld [vmem:[%s1 + $0x3c40] sm:$0xff]
    %v2078 = vld [vmem:[%s1 + $0x3c48] sm:$0xff]
    %v2079 = vld [vmem:[%s1 + $0x3c50] sm:$0xff]
    %v2080 = vld [vmem:[%s1 + $0x3c58] sm:$0xff]
    %v2081 = vld [vmem:[%s1 + $0x3c60] sm:$0xff]
    %v2082 = vld [vmem:[%s1 + $0x3c68] sm:$0xff]
    %v2083 = vld [vmem:[%s1 + $0x3c70] sm:$0xff]
    %v2084 = vld [vmem:[%s1 + $0x3c78] sm:$0xff]
    %v2085 = vld [vmem:[%s1 + $0x3c80] sm:$0xff]
    %v2086 = vld [vmem:[%s1 + $0x3c88] sm:$0xff]
    %v2087 = vld [vmem:[%s1 + $0x3c90] sm:$0xff]
    %v2088 = vld [vmem:[%s1 + $0x3c98] sm:$0xff]
    %v2089 = vld [vmem:[%s1 + $0x3ca0] sm:$0xff]
    %v2090 = vld [vmem:[%s1 + $0x3ca8] sm:$0xff]
    %v2091 = vld [vmem:[%s1 + $0x3cb0] sm:$0xff]
    %v2092 = vld [vmem:[%s1 + $0x3cb8] sm:$0xff]
    %v2093 = vld [vmem:[%s1 + $0x3cc0] sm:$0xff]
    %v2094 = vld [vmem:[%s1 + $0x3cc8] sm:$0xff]
    %v2095 = vld [vmem:[%s1 + $0x3cd0] sm:$0xff]
    %v2096 = vld [vmem:[%s1 + $0x3cd8] sm:$0xff]
    %v2097 = vld [vmem:[%s1 + $0x3ce0] sm:$0xff]
    %v2098 = vld [vmem:[%s1 + $0x3ce8] sm:$0xff]
    %v2099 = vld [vmem:[%s1 + $0x3cf0] sm:$0xff]
    %v2100 = vld [vmem:[%s1 + $0x3cf8] sm:$0xff]
    %v2101 = vld [vmem:[%s1 + $0x3d00] sm:$0xff]
    %v2102 = vld [vmem:[%s1 + $0x3d08] sm:$0xff]
    %v2103 = vld [vmem:[%s1 + $0x3d10] sm:$0xff]
    %v2104 = vld [vmem:[%s1 + $0x3d18] sm:$0xff]
    %v2105 = vld [vmem:[%s1 + $0x3d20] sm:$0xff]
    %v2106 = vld [vmem:[%s1 + $0x3d28] sm:$0xff]
    %v2107 = vld [vmem:[%s1 + $0x3d30] sm:$0xff]
    %v2108 = vld [vmem:[%s1 + $0x3d38] sm:$0xff]
    %v2109 = vld [vmem:[%s1 + $0x3d40] sm:$0xff]
    %v2110 = vld [vmem:[%s1 + $0x3d48] sm:$0xff]
    %v2111 = vld [vmem:[%s1 + $0x3d50] sm:$0xff]
    %v2112 = vld [vmem:[%s1 + $0x3d58] sm:$0xff]
    %v2113 = vld [vmem:[%s1 + $0x3d60] sm:$0xff]
    %v2114 = vld [vmem:[%s1 + $0x3d68] sm:$0xff]
    %v2115 = vld [vmem:[%s1 + $0x3d70] sm:$0xff]
    %v2116 = vld [vmem:[%s1 + $0x3d78] sm:$0xff]
    %v2117 = vld [vmem:[%s1 + $0x3d80] sm:$0xff]
    %v2118 = vld [vmem:[%s1 + $0x3d88] sm:$0xff]
    %v2119 = vld [vmem:[%s1 + $0x3d90] sm:$0xff]
    %v2120 = vld [vmem:[%s1 + $0x3d98] sm:$0xff]
    %v2121 = vld [vmem:[%s1 + $0x3da0] sm:$0xff]
    %v2122 = vld [vmem:[%s1 + $0x3da8] sm:$0xff]
    %v2123 = vld [vmem:[%s1 + $0x3db0] sm:$0xff]
    %v2124 = vld [vmem:[%s1 + $0x3db8] sm:$0xff]
    %v2125 = vld [vmem:[%s1 + $0x3dc0] sm:$0xff]
    %v2126 = vld [vmem:[%s1 + $0x3dc8] sm:$0xff]
    %v2127 = vld [vmem:[%s1 + $0x3dd0] sm:$0xff]
    %v2128 = vld [vmem:[%s1 + $0x3dd8] sm:$0xff]
    %v2129 = vld [vmem:[%s1 + $0x3de0] sm:$0xff]
    %v2130 = vld [vmem:[%s1 + $0x3de8] sm:$0xff]
    %v2131 = vld [vmem:[%s1 + $0x3df0] sm:$0xff]
    %v2132 = vld [vmem:[%s1 + $0x3df8] sm:$0xff]
    %v2133 = vld [vmem:[%s1 + $0x3e00] sm:$0xff]
    %v2134 = vld [vmem:[%s1 + $0x3e08] sm:$0xff]
    %v2135 = vld [vmem:[%s1 + $0x3e10] sm:$0xff]
    %v2136 = vld [vmem:[%s1 + $0x3e18] sm:$0xff]
    %v2137 = vld [vmem:[%s1 + $0x3e20] sm:$0xff]
    %v2138 = vld [vmem:[%s1 + $0x3e28] sm:$0xff]
    %v2139 = vld [vmem:[%s1 + $0x3e30] sm:$0xff]
    %v2140 = vld [vmem:[%s1 + $0x3e38] sm:$0xff]
    %v2141 = vld [vmem:[%s1 + $0x3e40] sm:$0xff]
    %v2142 = vld [vmem:[%s1 + $0x3e48] sm:$0xff]
    %v2143 = vld [vmem:[%s1 + $0x3e50] sm:$0xff]
    %v2144 = vld [vmem:[%s1 + $0x3e58] sm:$0xff]
    %v2145 = vld [vmem:[%s1 + $0x3e60] sm:$0xff]
    %v2146 = vld [vmem:[%s1 + $0x3e68] sm:$0xff]
    %v2147 = vld [vmem:[%s1 + $0x3e70] sm:$0xff]
    %v2148 = vld [vmem:[%s1 + $0x3e78] sm:$0xff]
    %v2149 = vld [vmem:[%s1 + $0x3e80] sm:$0xff]
    %v2150 = vld [vmem:[%s1 + $0x3e88] sm:$0xff]
    %v2151 = vld [vmem:[%s1 + $0x3e90] sm:$0xff]
    %v2152 = vld [vmem:[%s1 + $0x3e98] sm:$0xff]
    %v2153 = vld [vmem:[%s1 + $0x3ea0] sm:$0xff]
    %v2154 = vld [vmem:[%s1 + $0x3ea8] sm:$0xff]
    %v2155 = vld [vmem:[%s1 + $0x3eb0] sm:$0xff]
    %v2156 = vld [vmem:[%s1 + $0x3eb8] sm:$0xff]
    %v2157 = vld [vmem:[%s1 + $0x3ec0] sm:$0xff]
    %v2158 = vld [vmem:[%s1 + $0x3ec8] sm:$0xff]
    %v2159 = vld [vmem:[%s1 + $0x3ed0] sm:$0xff]
    %v2160 = vld [vmem:[%s1 + $0x3ed8] sm:$0xff]
    %v2161 = vld [vmem:[%s1 + $0x3ee0] sm:$0xff]
    %v2162 = vld [vmem:[%s1 + $0x3ee8] sm:$0xff]
    %v2163 = vld [vmem:[%s1 + $0x3ef0] sm:$0xff]
    %v2164 = vld [vmem:[%s1 + $0x3ef8] sm:$0xff]
    %v2165 = vld [vmem:[%s1 + $0x3f00] sm:$0xff]
    %v2166 = vld [vmem:[%s1 + $0x3f08] sm:$0xff]
    %v2167 = vld [vmem:[%s1 + $0x3f10] sm:$0xff]
    %v2168 = vld [vmem:[%s1 + $0x3f18] sm:$0xff]
    %v2169 = vld [vmem:[%s1 + $0x3f20] sm:$0xff]
    %v2170 = vld [vmem:[%s1 + $0x3f28] sm:$0xff]
    %v2171 = vld [vmem:[%s1 + $0x3f30] sm:$0xff]
    %v2172 = vld [vmem:[%s1 + $0x3f38] sm:$0xff]
    %v2173 = vld [vmem:[%s1 + $0x3f40] sm:$0xff]
    %v2174 = vld [vmem:[%s1 + $0x3f48] sm:$0xff]
    %v2175 = vld [vmem:[%s1 + $0x3f50] sm:$0xff]
    %v2176 = vld [vmem:[%s1 + $0x3f58] sm:$0xff]
    %v2177 = vld [vmem:[%s1 + $0x3f60] sm:$0xff]
    %v2178 = vld [vmem:[%s1 + $0x3f68] sm:$0xff]
    %v2179 = vld [vmem:[%s1 + $0x3f70] sm:$0xff]
    %v2180 = vld [vmem:[%s1 + $0x3f78] sm:$0xff]
    %v2181 = vld [vmem:[%s1 + $0x3f80] sm:$0xff]
    %v2182 = vld [vmem:[%s1 + $0x3f88] sm:$0xff]
    %v2183 = vld [vmem:[%s1 + $0x3f90] sm:$0xff]
    %v2184 = vld [vmem:[%s1 + $0x3f98] sm:$0xff]
    %v2185 = vld [vmem:[%s1 + $0x3fa0] sm:$0xff]
    %v2186 = vld [vmem:[%s1 + $0x3fa8] sm:$0xff]
    %v2187 = vld [vmem:[%s1 + $0x3fb0] sm:$0xff]
    %v2188 = vld [vmem:[%s1 + $0x3fb8] sm:$0xff]
    %v2189 = vld [vmem:[%s1 + $0x3fc0] sm:$0xff]
    %v2190 = vld [vmem:[%s1 + $0x3fc8] sm:$0xff]
    %v2191 = vld [vmem:[%s1 + $0x3fd0] sm:$0xff]
    %v2192 = vld [vmem:[%s1 + $0x3fd8] sm:$0xff]
    %v2193 = vld [vmem:[%s1 + $0x3fe0] sm:$0xff]
    %v2194 = vld [vmem:[%s1 + $0x3fe8] sm:$0xff]
    %v2195 = vld [vmem:[%s1 + $0x3ff0] sm:$0xff]
    %v2196 = vld [vmem:[%s1 + $0x3ff8] sm:$0xff]
    %v2197 = vld [vmem:[%s2] sm:$0x1]
    %v2199 = vlaneseq
    %v2200 = vshrl.u32 %v2199, 7
    %v2201 = vsub.s32 0, %v2200
    %v2202 = vrot.slane %v2197, %v2201
    %2204 = vmatprep.subr.mxu0 0.0
    %2205 = vmatpush1.msra.mxu0 %v149
    %2206 = vmatprep.subr.mxu0 0.0
    %2207 = vmatpush1.msra.mxu0 %v150
    %2208 = vmatprep.subr.mxu0 0.0
    %2209 = vmatpush1.msra.mxu0 %v151
    %2210 = vmatprep.subr.mxu0 0.0
    %2211 = vmatpush1.msra.mxu0 %v152
    %2212 = vmatprep.subr.mxu0 0.0
    %2213 = vmatpush1.msra.mxu0 %v153
    %2214 = vmatprep.subr.mxu0 0.0
    %2215 = vmatpush1.msra.mxu0 %v154
    %2216 = vmatprep.subr.mxu0 0.0
    %2217 = vmatpush1.msra.mxu0 %v155
    %2218 = vmatprep.subr.mxu0 0.0
    %2219 = vmatpush1.msra.mxu0 %v156
    %2220 = vmatprep.subr.mxu0 0.0
    %2221 = vmatpush1.msra.mxu0 %v157
    %2222 = vmatprep.subr.mxu0 0.0
    %2223 = vmatpush1.msra.mxu0 %v158
    %2224 = vmatprep.subr.mxu0 0.0
    %2225 = vmatpush1.msra.mxu0 %v159
    %2226 = vmatprep.subr.mxu0 0.0
    %2227 = vmatpush1.msra.mxu0 %v160
    %2228 = vmatprep.subr.mxu0 0.0
    %2229 = vmatpush1.msra.mxu0 %v161
    %2230 = vmatprep.subr.mxu0 0.0
    %2231 = vmatpush1.msra.mxu0 %v162
    %2232 = vmatprep.subr.mxu0 0.0
    %2233 = vmatpush1.msra.mxu0 %v163
    %2234 = vmatprep.subr.mxu0 0.0
    %2235 = vmatpush1.msra.mxu0 %v164
    %2236 = vmatprep.subr.mxu0 0.0
    %2237 = vmatpush1.msra.mxu0 %v165
    %2238 = vmatprep.subr.mxu0 0.0
    %2239 = vmatpush1.msra.mxu0 %v166
    %2240 = vmatprep.subr.mxu0 0.0
    %2241 = vmatpush1.msra.mxu0 %v167
    %2242 = vmatprep.subr.mxu0 0.0
    %2243 = vmatpush1.msra.mxu0 %v168
    %2244 = vmatprep.subr.mxu0 0.0
    %2245 = vmatpush1.msra.mxu0 %v169
    %2246 = vmatprep.subr.mxu0 0.0
    %2247 = vmatpush1.msra.mxu0 %v170
    %2248 = vmatprep.subr.mxu0 0.0
    %2249 = vmatpush1.msra.mxu0 %v171
    %2250 = vmatprep.subr.mxu0 0.0
    %2251 = vmatpush1.msra.mxu0 %v172
    %2252 = vmatprep.subr.mxu0 0.0
    %2253 = vmatpush1.msra.mxu0 %v173
    %2254 = vmatprep.subr.mxu0 0.0
    %2255 = vmatpush1.msra.mxu0 %v174
    %2256 = vmatprep.subr.mxu0 0.0
    %2257 = vmatpush1.msra.mxu0 %v175
    %2258 = vmatprep.subr.mxu0 0.0
    %2259 = vmatpush1.msra.mxu0 %v176
    %2260 = vmatprep.subr.mxu0 0.0
    %2261 = vmatpush1.msra.mxu0 %v177
    %2262 = vmatprep.subr.mxu0 0.0
    %2263 = vmatpush1.msra.mxu0 %v178
    %2264 = vmatprep.subr.mxu0 0.0
    %2265 = vmatpush1.msra.mxu0 %v179
    %2266 = vmatprep.subr.mxu0 0.0
    %2267 = vmatpush1.msra.mxu0 %v180
    %2268 = vmatprep.mubr.f32.mxu0 %v22
    %2269 = vmatmul.mubr.f32.gmra.mrb[0].mxu0 %v21
    %v2270 = vpop.f32.mrb[0].mxu0
    %v2271 = vadd.f32 %v2202, %v2270
    %v2272 = vpop.f32.mrb[0].mxu0
    %2273 = vdwg.mxu0
    %2274 = vmatprep.subr.mxu0 0.0
    %2275 = vmatpush1.msra.mxu0 %v181
    %2276 = vmatprep.subr.mxu0 0.0
    %2277 = vmatpush1.msra.mxu0 %v182
    %2278 = vmatprep.subr.mxu0 0.0
    %2279 = vmatpush1.msra.mxu0 %v183
    %2280 = vmatprep.subr.mxu0 0.0
    %2281 = vmatpush1.msra.mxu0 %v184
    %2282 = vmatprep.subr.mxu0 0.0
    %2283 = vmatpush1.msra.mxu0 %v185
    %2284 = vmatprep.subr.mxu0 0.0
    %2285 = vmatpush1.msra.mxu0 %v186
    %2286 = vmatprep.subr.mxu0 0.0
    %2287 = vmatpush1.msra.mxu0 %v187
    %2288 = vmatprep.subr.mxu0 0.0
    %2289 = vmatpush1.msra.mxu0 %v188
    %2290 = vmatprep.subr.mxu0 0.0
    %2291 = vmatpush1.msra.mxu0 %v189
    %2292 = vmatprep.subr.mxu0 0.0
    %2293 = vmatpush1.msra.mxu0 %v190
    %2294 = vmatprep.subr.mxu0 0.0
    %2295 = vmatpush1.msra.mxu0 %v191
    %2296 = vmatprep.subr.mxu0 0.0
    %2297 = vmatpush1.msra.mxu0 %v192
    %2298 = vmatprep.subr.mxu0 0.0
    %2299 = vmatpush1.msra.mxu0 %v193
    %2300 = vmatprep.subr.mxu0 0.0
    %2301 = vmatpush1.msra.mxu0 %v194
    %2302 = vmatprep.subr.mxu0 0.0
    %2303 = vmatpush1.msra.mxu0 %v195
    %2304 = vmatprep.subr.mxu0 0.0
    %2305 = vmatpush1.msra.mxu0 %v196
    %2306 = vmatprep.subr.mxu0 0.0
    %2307 = vmatpush1.msra.mxu0 %v197
    %2308 = vmatprep.subr.mxu0 0.0
    %2309 = vmatpush1.msra.mxu0 %v198
    %2310 = vmatprep.subr.mxu0 0.0
    %2311 = vmatpush1.msra.mxu0 %v199
    %2312 = vmatprep.subr.mxu0 0.0
    %2313 = vmatpush1.msra.mxu0 %v200
    %2314 = vmatprep.subr.mxu0 0.0
    %2315 = vmatpush1.msra.mxu0 %v201
    %2316 = vmatprep.subr.mxu0 0.0
    %2317 = vmatpush1.msra.mxu0 %v202
    %2318 = vmatprep.subr.mxu0 0.0
    %2319 = vmatpush1.msra.mxu0 %v203
    %2320 = vmatprep.subr.mxu0 0.0
    %2321 = vmatpush1.msra.mxu0 %v204
    %2322 = vmatprep.subr.mxu0 0.0
    %2323 = vmatpush1.msra.mxu0 %v205
    %2324 = vmatprep.subr.mxu0 0.0
    %2325 = vmatpush1.msra.mxu0 %v206
    %2326 = vmatprep.subr.mxu0 0.0
    %2327 = vmatpush1.msra.mxu0 %v207
    %2328 = vmatprep.subr.mxu0 0.0
    %2329 = vmatpush1.msra.mxu0 %v208
    %2330 = vmatprep.subr.mxu0 0.0
    %2331 = vmatpush1.msra.mxu0 %v209
    %2332 = vmatprep.subr.mxu0 0.0
    %2333 = vmatpush1.msra.mxu0 %v210
    %2334 = vmatprep.subr.mxu0 0.0
    %2335 = vmatpush1.msra.mxu0 %v211
    %2336 = vmatprep.subr.mxu0 0.0
    %2337 = vmatpush1.msra.mxu0 %v212
    %2338 = vmatprep.mubr.f32.mxu0 %v24
    %2339 = vmatmul.mubr.f32.gmra.mrb[0].mxu0 %v23
    %v2340 = vpop.f32.mrb[0].mxu0
    %v2341 = vadd.f32 %v2271, %v2340
    %v2342 = vpop.f32.mrb[0].mxu0
    %2343 = vdwg.mxu0
    %2344 = vmatprep.subr.mxu0 0.0
    %2345 = vmatpush1.msra.mxu0 %v213
    %2346 = vmatprep.subr.mxu0 0.0
    %2347 = vmatpush1.msra.mxu0 %v214
    %2348 = vmatprep.subr.mxu0 0.0
    %2349 = vmatpush1.msra.mxu0 %v215
    %2350 = vmatprep.subr.mxu0 0.0
    %2351 = vmatpush1.msra.mxu0 %v216
    %2352 = vmatprep.subr.mxu0 0.0
    %2353 = vmatpush1.msra.mxu0 %v217
    %2354 = vmatprep.subr.mxu0 0.0
    %2355 = vmatpush1.msra.mxu0 %v218
    %2356 = vmatprep.subr.mxu0 0.0
    %2357 = vmatpush1.msra.mxu0 %v219
    %2358 = vmatprep.subr.mxu0 0.0
    %2359 = vmatpush1.msra.mxu0 %v220
    %2360 = vmatprep.subr.mxu0 0.0
    %2361 = vmatpush1.msra.mxu0 %v221
    %2362 = vmatprep.subr.mxu0 0.0
    %2363 = vmatpush1.msra.mxu0 %v222
    %2364 = vmatprep.subr.mxu0 0.0
    %2365 = vmatpush1.msra.mxu0 %v223
    %2366 = vmatprep.subr.mxu0 0.0
    %2367 = vmatpush1.msra.mxu0 %v224
    %2368 = vmatprep.subr.mxu0 0.0
    %2369 = vmatpush1.msra.mxu0 %v225
    %2370 = vmatprep.subr.mxu0 0.0
    %2371 = vmatpush1.msra.mxu0 %v226
    %2372 = vmatprep.subr.mxu0 0.0
    %2373 = vmatpush1.msra.mxu0 %v227
    %2374 = vmatprep.subr.mxu0 0.0
    %2375 = vmatpush1.msra.mxu0 %v228
    %2376 = vmatprep.subr.mxu0 0.0
    %2377 = vmatpush1.msra.mxu0 %v229
    %2378 = vmatprep.subr.mxu0 0.0
    %2379 = vmatpush1.msra.mxu0 %v230
    %2380 = vmatprep.subr.mxu0 0.0
    %2381 = vmatpush1.msra.mxu0 %v231
    %2382 = vmatprep.subr.mxu0 0.0
    %2383 = vmatpush1.msra.mxu0 %v232
    %2384 = vmatprep.subr.mxu0 0.0
    %2385 = vmatpush1.msra.mxu0 %v233
    %2386 = vmatprep.subr.mxu0 0.0
    %2387 = vmatpush1.msra.mxu0 %v234
    %2388 = vmatprep.subr.mxu0 0.0
    %2389 = vmatpush1.msra.mxu0 %v235
    %2390 = vmatprep.subr.mxu0 0.0
    %2391 = vmatpush1.msra.mxu0 %v236
    %2392 = vmatprep.subr.mxu0 0.0
    %2393 = vmatpush1.msra.mxu0 %v237
    %2394 = vmatprep.subr.mxu0 0.0
    %2395 = vmatpush1.msra.mxu0 %v238
    %2396 = vmatprep.subr.mxu0 0.0
    %2397 = vmatpush1.msra.mxu0 %v239
    %2398 = vmatprep.subr.mxu0 0.0
    %2399 = vmatpush1.msra.mxu0 %v240
    %2400 = vmatprep.subr.mxu0 0.0
    %2401 = vmatpush1.msra.mxu0 %v241
    %2402 = vmatprep.subr.mxu0 0.0
    %2403 = vmatpush1.msra.mxu0 %v242
    %2404 = vmatprep.subr.mxu0 0.0
    %2405 = vmatpush1.msra.mxu0 %v243
    %2406 = vmatprep.subr.mxu0 0.0
    %2407 = vmatpush1.msra.mxu0 %v244
    %2408 = vmatprep.mubr.f32.mxu0 %v26
    %2409 = vmatmul.mubr.f32.gmra.mrb[0].mxu0 %v25
    %v2410 = vpop.f32.mrb[0].mxu0
    %v2411 = vadd.f32 %v2341, %v2410
    %v2412 = vpop.f32.mrb[0].mxu0
    %2413 = vdwg.mxu0
    %2414 = vmatprep.subr.mxu0 0.0
    %2415 = vmatpush1.msra.mxu0 %v245
    %2416 = vmatprep.subr.mxu0 0.0
    %2417 = vmatpush1.msra.mxu0 %v246
    %2418 = vmatprep.subr.mxu0 0.0
    %2419 = vmatpush1.msra.mxu0 %v247
    %2420 = vmatprep.subr.mxu0 0.0
    %2421 = vmatpush1.msra.mxu0 %v248
    %2422 = vmatprep.subr.mxu0 0.0
    %2423 = vmatpush1.msra.mxu0 %v249
    %2424 = vmatprep.subr.mxu0 0.0
    %2425 = vmatpush1.msra.mxu0 %v250
    %2426 = vmatprep.subr.mxu0 0.0
    %2427 = vmatpush1.msra.mxu0 %v251
    %2428 = vmatprep.subr.mxu0 0.0
    %2429 = vmatpush1.msra.mxu0 %v252
    %2430 = vmatprep.subr.mxu0 0.0
    %2431 = vmatpush1.msra.mxu0 %v253
    %2432 = vmatprep.subr.mxu0 0.0
    %2433 = vmatpush1.msra.mxu0 %v254
    %2434 = vmatprep.subr.mxu0 0.0
    %2435 = vmatpush1.msra.mxu0 %v255
    %2436 = vmatprep.subr.mxu0 0.0
    %2437 = vmatpush1.msra.mxu0 %v256
    %2438 = vmatprep.subr.mxu0 0.0
    %2439 = vmatpush1.msra.mxu0 %v257
    %2440 = vmatprep.subr.mxu0 0.0
    %2441 = vmatpush1.msra.mxu0 %v258
    %2442 = vmatprep.subr.mxu0 0.0
    %2443 = vmatpush1.msra.mxu0 %v259
    %2444 = vmatprep.subr.mxu0 0.0
    %2445 = vmatpush1.msra.mxu0 %v260
    %2446 = vmatprep.subr.mxu0 0.0
    %2447 = vmatpush1.msra.mxu0 %v261
    %2448 = vmatprep.subr.mxu0 0.0
    %2449 = vmatpush1.msra.mxu0 %v262
    %2450 = vmatprep.subr.mxu0 0.0
    %2451 = vmatpush1.msra.mxu0 %v263
    %2452 = vmatprep.subr.mxu0 0.0
    %2453 = vmatpush1.msra.mxu0 %v264
    %2454 = vmatprep.subr.mxu0 0.0
    %2455 = vmatpush1.msra.mxu0 %v265
    %2456 = vmatprep.subr.mxu0 0.0
    %2457 = vmatpush1.msra.mxu0 %v266
    %2458 = vmatprep.subr.mxu0 0.0
    %2459 = vmatpush1.msra.mxu0 %v267
    %2460 = vmatprep.subr.mxu0 0.0
    %2461 = vmatpush1.msra.mxu0 %v268
    %2462 = vmatprep.subr.mxu0 0.0
    %2463 = vmatpush1.msra.mxu0 %v269
    %2464 = vmatprep.subr.mxu0 0.0
    %2465 = vmatpush1.msra.mxu0 %v270
    %2466 = vmatprep.subr.mxu0 0.0
    %2467 = vmatpush1.msra.mxu0 %v271
    %2468 = vmatprep.subr.mxu0 0.0
    %2469 = vmatpush1.msra.mxu0 %v272
    %2470 = vmatprep.subr.mxu0 0.0
    %2471 = vmatpush1.msra.mxu0 %v273
    %2472 = vmatprep.subr.mxu0 0.0
    %2473 = vmatpush1.msra.mxu0 %v274
    %2474 = vmatprep.subr.mxu0 0.0
    %2475 = vmatpush1.msra.mxu0 %v275
    %2476 = vmatprep.subr.mxu0 0.0
    %2477 = vmatpush1.msra.mxu0 %v276
    %2478 = vmatprep.mubr.f32.mxu0 %v28
    %2479 = vmatmul.mubr.f32.gmra.mrb[0].mxu0 %v27
    %v2480 = vpop.f32.mrb[0].mxu0
    %v2481 = vadd.f32 %v2411, %v2480
    %v2482 = vpop.f32.mrb[0].mxu0
    %2483 = vdwg.mxu0
    %2484 = vmatprep.subr.mxu0 0.0
    %2485 = vmatpush1.msra.mxu0 %v277
    %2486 = vmatprep.subr.mxu0 0.0
    %2487 = vmatpush1.msra.mxu0 %v278
    %2488 = vmatprep.subr.mxu0 0.0
    %2489 = vmatpush1.msra.mxu0 %v279
    %2490 = vmatprep.subr.mxu0 0.0
    %2491 = vmatpush1.msra.mxu0 %v280
    %2492 = vmatprep.subr.mxu0 0.0
    %2493 = vmatpush1.msra.mxu0 %v281
    %2494 = vmatprep.subr.mxu0 0.0
    %2495 = vmatpush1.msra.mxu0 %v282
    %2496 = vmatprep.subr.mxu0 0.0
    %2497 = vmatpush1.msra.mxu0 %v283
    %2498 = vmatprep.subr.mxu0 0.0
    %2499 = vmatpush1.msra.mxu0 %v284
    %2500 = vmatprep.subr.mxu0 0.0
    %2501 = vmatpush1.msra.mxu0 %v285
    %2502 = vmatprep.subr.mxu0 0.0
    %2503 = vmatpush1.msra.mxu0 %v286
    %2504 = vmatprep.subr.mxu0 0.0
    %2505 = vmatpush1.msra.mxu0 %v287
    %2506 = vmatprep.subr.mxu0 0.0
    %2507 = vmatpush1.msra.mxu0 %v288
    %2508 = vmatprep.subr.mxu0 0.0
    %2509 = vmatpush1.msra.mxu0 %v289
    %2510 = vmatprep.subr.mxu0 0.0
    %2511 = vmatpush1.msra.mxu0 %v290
    %2512 = vmatprep.subr.mxu0 0.0
    %2513 = vmatpush1.msra.mxu0 %v291
    %2514 = vmatprep.subr.mxu0 0.0
    %2515 = vmatpush1.msra.mxu0 %v292
    %2516 = vmatprep.subr.mxu0 0.0
    %2517 = vmatpush1.msra.mxu0 %v293
    %2518 = vmatprep.subr.mxu0 0.0
    %2519 = vmatpush1.msra.mxu0 %v294
    %2520 = vmatprep.subr.mxu0 0.0
    %2521 = vmatpush1.msra.mxu0 %v295
    %2522 = vmatprep.subr.mxu0 0.0
    %2523 = vmatpush1.msra.mxu0 %v296
    %2524 = vmatprep.subr.mxu0 0.0
    %2525 = vmatpush1.msra.mxu0 %v297
    %2526 = vmatprep.subr.mxu0 0.0
    %2527 = vmatpush1.msra.mxu0 %v298
    %2528 = vmatprep.subr.mxu0 0.0
    %2529 = vmatpush1.msra.mxu0 %v299
    %2530 = vmatprep.subr.mxu0 0.0
    %2531 = vmatpush1.msra.mxu0 %v300
    %2532 = vmatprep.subr.mxu0 0.0
    %2533 = vmatpush1.msra.mxu0 %v301
    %2534 = vmatprep.subr.mxu0 0.0
    %2535 = vmatpush1.msra.mxu0 %v302
    %2536 = vmatprep.subr.mxu0 0.0
    %2537 = vmatpush1.msra.mxu0 %v303
    %2538 = vmatprep.subr.mxu0 0.0
    %2539 = vmatpush1.msra.mxu0 %v304
    %2540 = vmatprep.subr.mxu0 0.0
    %2541 = vmatpush1.msra.mxu0 %v305
    %2542 = vmatprep.subr.mxu0 0.0
    %2543 = vmatpush1.msra.mxu0 %v306
    %2544 = vmatprep.subr.mxu0 0.0
    %2545 = vmatpush1.msra.mxu0 %v307
    %2546 = vmatprep.subr.mxu0 0.0
    %2547 = vmatpush1.msra.mxu0 %v308
    %2548 = vmatprep.mubr.f32.mxu0 %v30
    %2549 = vmatmul.mubr.f32.gmra.mrb[0].mxu0 %v29
    %v2550 = vpop.f32.mrb[0].mxu0
    %v2551 = vadd.f32 %v2481, %v2550
    %v2552 = vpop.f32.mrb[0].mxu0
    %2553 = vdwg.mxu0
    %2554 = vmatprep.subr.mxu0 0.0
    %2555 = vmatpush1.msra.mxu0 %v309
    %2556 = vmatprep.subr.mxu0 0.0
    %2557 = vmatpush1.msra.mxu0 %v310
    %2558 = vmatprep.subr.mxu0 0.0
    %2559 = vmatpush1.msra.mxu0 %v311
    %2560 = vmatprep.subr.mxu0 0.0
    %2561 = vmatpush1.msra.mxu0 %v312
    %2562 = vmatprep.subr.mxu0 0.0
    %2563 = vmatpush1.msra.mxu0 %v313
    %2564 = vmatprep.subr.mxu0 0.0
    %2565 = vmatpush1.msra.mxu0 %v314
    %2566 = vmatprep.subr.mxu0 0.0
    %2567 = vmatpush1.msra.mxu0 %v315
    %2568 = vmatprep.subr.mxu0 0.0
    %2569 = vmatpush1.msra.mxu0 %v316
    %2570 = vmatprep.subr.mxu0 0.0
    %2571 = vmatpush1.msra.mxu0 %v317
    %2572 = vmatprep.subr.mxu0 0.0
    %2573 = vmatpush1.msra.mxu0 %v318
    %2574 = vmatprep.subr.mxu0 0.0
    %2575 = vmatpush1.msra.mxu0 %v319
    %2576 = vmatprep.subr.mxu0 0.0
    %2577 = vmatpush1.msra.mxu0 %v320
    %2578 = vmatprep.subr.mxu0 0.0
    %2579 = vmatpush1.msra.mxu0 %v321
    %2580 = vmatprep.subr.mxu0 0.0
    %2581 = vmatpush1.msra.mxu0 %v322
    %2582 = vmatprep.subr.mxu0 0.0
    %2583 = vmatpush1.msra.mxu0 %v323
    %2584 = vmatprep.subr.mxu0 0.0
    %2585 = vmatpush1.msra.mxu0 %v324
    %2586 = vmatprep.subr.mxu0 0.0
    %2587 = vmatpush1.msra.mxu0 %v325
    %2588 = vmatprep.subr.mxu0 0.0
    %2589 = vmatpush1.msra.mxu0 %v326
    %2590 = vmatprep.subr.mxu0 0.0
    %2591 = vmatpush1.msra.mxu0 %v327
    %2592 = vmatprep.subr.mxu0 0.0
    %2593 = vmatpush1.msra.mxu0 %v328
    %2594 = vmatprep.subr.mxu0 0.0
    %2595 = vmatpush1.msra.mxu0 %v329
    %2596 = vmatprep.subr.mxu0 0.0
    %2597 = vmatpush1.msra.mxu0 %v330
    %2598 = vmatprep.subr.mxu0 0.0
    %2599 = vmatpush1.msra.mxu0 %v331
    %2600 = vmatprep.subr.mxu0 0.0
    %2601 = vmatpush1.msra.mxu0 %v332
    %2602 = vmatprep.subr.mxu0 0.0
    %2603 = vmatpush1.msra.mxu0 %v333
    %2604 = vmatprep.subr.mxu0 0.0
    %2605 = vmatpush1.msra.mxu0 %v334
    %2606 = vmatprep.subr.mxu0 0.0
    %2607 = vmatpush1.msra.mxu0 %v335
    %2608 = vmatprep.subr.mxu0 0.0
    %2609 = vmatpush1.msra.mxu0 %v336
    %2610 = vmatprep.subr.mxu0 0.0
    %2611 = vmatpush1.msra.mxu0 %v337
    %2612 = vmatprep.subr.mxu0 0.0
    %2613 = vmatpush1.msra.mxu0 %v338
    %2614 = vmatprep.subr.mxu0 0.0
    %2615 = vmatpush1.msra.mxu0 %v339
    %2616 = vmatprep.subr.mxu0 0.0
    %2617 = vmatpush1.msra.mxu0 %v340
    %2618 = vmatprep.mubr.f32.mxu0 %v32
    %2619 = vmatmul.mubr.f32.gmra.mrb[0].mxu0 %v31
    %v2620 = vpop.f32.mrb[0].mxu0
    %v2621 = vadd.f32 %v2551, %v2620
    %v2622 = vpop.f32.mrb[0].mxu0
    %2623 = vdwg.mxu0
    %2624 = vmatprep.subr.mxu0 0.0
    %2625 = vmatpush1.msra.mxu0 %v341
    %2626 = vmatprep.subr.mxu0 0.0
    %2627 = vmatpush1.msra.mxu0 %v342
    %2628 = vmatprep.subr.mxu0 0.0
    %2629 = vmatpush1.msra.mxu0 %v343
    %2630 = vmatprep.subr.mxu0 0.0
    %2631 = vmatpush1.msra.mxu0 %v344
    %2632 = vmatprep.subr.mxu0 0.0
    %2633 = vmatpush1.msra.mxu0 %v345
    %2634 = vmatprep.subr.mxu0 0.0
    %2635 = vmatpush1.msra.mxu0 %v346
    %2636 = vmatprep.subr.mxu0 0.0
    %2637 = vmatpush1.msra.mxu0 %v347
    %2638 = vmatprep.subr.mxu0 0.0
    %2639 = vmatpush1.msra.mxu0 %v348
    %2640 = vmatprep.subr.mxu0 0.0
    %2641 = vmatpush1.msra.mxu0 %v349
    %2642 = vmatprep.subr.mxu0 0.0
    %2643 = vmatpush1.msra.mxu0 %v350
    %2644 = vmatprep.subr.mxu0 0.0
    %2645 = vmatpush1.msra.mxu0 %v351
    %2646 = vmatprep.subr.mxu0 0.0
    %2647 = vmatpush1.msra.mxu0 %v352
    %2648 = vmatprep.subr.mxu0 0.0
    %2649 = vmatpush1.msra.mxu0 %v353
    %2650 = vmatprep.subr.mxu0 0.0
    %2651 = vmatpush1.msra.mxu0 %v354
    %2652 = vmatprep.subr.mxu0 0.0
    %2653 = vmatpush1.msra.mxu0 %v355
    %2654 = vmatprep.subr.mxu0 0.0
    %2655 = vmatpush1.msra.mxu0 %v356
    %2656 = vmatprep.subr.mxu0 0.0
    %2657 = vmatpush1.msra.mxu0 %v357
    %2658 = vmatprep.subr.mxu0 0.0
    %2659 = vmatpush1.msra.mxu0 %v358
    %2660 = vmatprep.subr.mxu0 0.0
    %2661 = vmatpush1.msra.mxu0 %v359
    %2662 = vmatprep.subr.mxu0 0.0
    %2663 = vmatpush1.msra.mxu0 %v360
    %2664 = vmatprep.subr.mxu0 0.0
    %2665 = vmatpush1.msra.mxu0 %v361
    %2666 = vmatprep.subr.mxu0 0.0
    %2667 = vmatpush1.msra.mxu0 %v362
    %2668 = vmatprep.subr.mxu0 0.0
    %2669 = vmatpush1.msra.mxu0 %v363
    %2670 = vmatprep.subr.mxu0 0.0
    %2671 = vmatpush1.msra.mxu0 %v364
    %2672 = vmatprep.subr.mxu0 0.0
    %2673 = vmatpush1.msra.mxu0 %v365
    %2674 = vmatprep.subr.mxu0 0.0
    %2675 = vmatpush1.msra.mxu0 %v366
    %2676 = vmatprep.subr.mxu0 0.0
    %2677 = vmatpush1.msra.mxu0 %v367
    %2678 = vmatprep.subr.mxu0 0.0
    %2679 = vmatpush1.msra.mxu0 %v368
    %2680 = vmatprep.subr.mxu0 0.0
    %2681 = vmatpush1.msra.mxu0 %v369
    %2682 = vmatprep.subr.mxu0 0.0
    %2683 = vmatpush1.msra.mxu0 %v370
    %2684 = vmatprep.subr.mxu0 0.0
    %2685 = vmatpush1.msra.mxu0 %v371
    %2686 = vmatprep.subr.mxu0 0.0
    %2687 = vmatpush1.msra.mxu0 %v372
    %2688 = vmatprep.mubr.f32.mxu0 %v34
    %2689 = vmatmul.mubr.f32.gmra.mrb[0].mxu0 %v33
    %v2690 = vpop.f32.mrb[0].mxu0
    %v2691 = vadd.f32 %v2621, %v2690
    %v2692 = vpop.f32.mrb[0].mxu0
    %2693 = vdwg.mxu0
    %2694 = vmatprep.subr.mxu0 0.0
    %2695 = vmatpush1.msra.mxu0 %v373
    %2696 = vmatprep.subr.mxu0 0.0
    %2697 = vmatpush1.msra.mxu0 %v374
    %2698 = vmatprep.subr.mxu0 0.0
    %2699 = vmatpush1.msra.mxu0 %v375
    %2700 = vmatprep.subr.mxu0 0.0
    %2701 = vmatpush1.msra.mxu0 %v376
    %2702 = vmatprep.subr.mxu0 0.0
    %2703 = vmatpush1.msra.mxu0 %v377
    %2704 = vmatprep.subr.mxu0 0.0
    %2705 = vmatpush1.msra.mxu0 %v378
    %2706 = vmatprep.subr.mxu0 0.0
    %2707 = vmatpush1.msra.mxu0 %v379
    %2708 = vmatprep.subr.mxu0 0.0
    %2709 = vmatpush1.msra.mxu0 %v380
    %2710 = vmatprep.subr.mxu0 0.0
    %2711 = vmatpush1.msra.mxu0 %v381
    %2712 = vmatprep.subr.mxu0 0.0
    %2713 = vmatpush1.msra.mxu0 %v382
    %2714 = vmatprep.subr.mxu0 0.0
    %2715 = vmatpush1.msra.mxu0 %v383
    %2716 = vmatprep.subr.mxu0 0.0
    %2717 = vmatpush1.msra.mxu0 %v384
    %2718 = vmatprep.subr.mxu0 0.0
    %2719 = vmatpush1.msra.mxu0 %v385
    %2720 = vmatprep.subr.mxu0 0.0
    %2721 = vmatpush1.msra.mxu0 %v386
    %2722 = vmatprep.subr.mxu0 0.0
    %2723 = vmatpush1.msra.mxu0 %v387
    %2724 = vmatprep.subr.mxu0 0.0
    %2725 = vmatpush1.msra.mxu0 %v388
    %2726 = vmatprep.subr.mxu0 0.0
    %2727 = vmatpush1.msra.mxu0 %v389
    %2728 = vmatprep.subr.mxu0 0.0
    %2729 = vmatpush1.msra.mxu0 %v390
    %2730 = vmatprep.subr.mxu0 0.0
    %2731 = vmatpush1.msra.mxu0 %v391
    %2732 = vmatprep.subr.mxu0 0.0
    %2733 = vmatpush1.msra.mxu0 %v392
    %2734 = vmatprep.subr.mxu0 0.0
    %2735 = vmatpush1.msra.mxu0 %v393
    %2736 = vmatprep.subr.mxu0 0.0
    %2737 = vmatpush1.msra.mxu0 %v394
    %2738 = vmatprep.subr.mxu0 0.0
    %2739 = vmatpush1.msra.mxu0 %v395
    %2740 = vmatprep.subr.mxu0 0.0
    %2741 = vmatpush1.msra.mxu0 %v396
    %2742 = vmatprep.subr.mxu0 0.0
    %2743 = vmatpush1.msra.mxu0 %v397
    %2744 = vmatprep.subr.mxu0 0.0
    %2745 = vmatpush1.msra.mxu0 %v398
    %2746 = vmatprep.subr.mxu0 0.0
    %2747 = vmatpush1.msra.mxu0 %v399
    %2748 = vmatprep.subr.mxu0 0.0
    %2749 = vmatpush1.msra.mxu0 %v400
    %2750 = vmatprep.subr.mxu0 0.0
    %2751 = vmatpush1.msra.mxu0 %v401
    %2752 = vmatprep.subr.mxu0 0.0
    %2753 = vmatpush1.msra.mxu0 %v402
    %2754 = vmatprep.subr.mxu0 0.0
    %2755 = vmatpush1.msra.mxu0 %v403
    %2756 = vmatprep.subr.mxu0 0.0
    %2757 = vmatpush1.msra.mxu0 %v404
    %2758 = vmatprep.mubr.f32.mxu0 %v36
    %2759 = vmatmul.mubr.f32.gmra.mrb[0].mxu0 %v35
    %v2760 = vpop.f32.mrb[0].mxu0
    %v2761 = vadd.f32 %v2691, %v2760
    %v2762 = vpop.f32.mrb[0].mxu0
    %2763 = vdwg.mxu0
    %2764 = vmatprep.subr.mxu0 0.0
    %2765 = vmatpush1.msra.mxu0 %v405
    %2766 = vmatprep.subr.mxu0 0.0
    %2767 = vmatpush1.msra.mxu0 %v406
    %2768 = vmatprep.subr.mxu0 0.0
    %2769 = vmatpush1.msra.mxu0 %v407
    %2770 = vmatprep.subr.mxu0 0.0
    %2771 = vmatpush1.msra.mxu0 %v408
    %2772 = vmatprep.subr.mxu0 0.0
    %2773 = vmatpush1.msra.mxu0 %v409
    %2774 = vmatprep.subr.mxu0 0.0
    %2775 = vmatpush1.msra.mxu0 %v410
    %2776 = vmatprep.subr.mxu0 0.0
    %2777 = vmatpush1.msra.mxu0 %v411
    %2778 = vmatprep.subr.mxu0 0.0
    %2779 = vmatpush1.msra.mxu0 %v412
    %2780 = vmatprep.subr.mxu0 0.0
    %2781 = vmatpush1.msra.mxu0 %v413
    %2782 = vmatprep.subr.mxu0 0.0
    %2783 = vmatpush1.msra.mxu0 %v414
    %2784 = vmatprep.subr.mxu0 0.0
    %2785 = vmatpush1.msra.mxu0 %v415
    %2786 = vmatprep.subr.mxu0 0.0
    %2787 = vmatpush1.msra.mxu0 %v416
    %2788 = vmatprep.subr.mxu0 0.0
    %2789 = vmatpush1.msra.mxu0 %v417
    %2790 = vmatprep.subr.mxu0 0.0
    %2791 = vmatpush1.msra.mxu0 %v418
    %2792 = vmatprep.subr.mxu0 0.0
    %2793 = vmatpush1.msra.mxu0 %v419
    %2794 = vmatprep.subr.mxu0 0.0
    %2795 = vmatpush1.msra.mxu0 %v420
    %2796 = vmatprep.subr.mxu0 0.0
    %2797 = vmatpush1.msra.mxu0 %v421
    %2798 = vmatprep.subr.mxu0 0.0
    %2799 = vmatpush1.msra.mxu0 %v422
    %2800 = vmatprep.subr.mxu0 0.0
    %2801 = vmatpush1.msra.mxu0 %v423
    %2802 = vmatprep.subr.mxu0 0.0
    %2803 = vmatpush1.msra.mxu0 %v424
    %2804 = vmatprep.subr.mxu0 0.0
    %2805 = vmatpush1.msra.mxu0 %v425
    %2806 = vmatprep.subr.mxu0 0.0
    %2807 = vmatpush1.msra.mxu0 %v426
    %2808 = vmatprep.subr.mxu0 0.0
    %2809 = vmatpush1.msra.mxu0 %v427
    %2810 = vmatprep.subr.mxu0 0.0
    %2811 = vmatpush1.msra.mxu0 %v428
    %2812 = vmatprep.subr.mxu0 0.0
    %2813 = vmatpush1.msra.mxu0 %v429
    %2814 = vmatprep.subr.mxu0 0.0
    %2815 = vmatpush1.msra.mxu0 %v430
    %2816 = vmatprep.subr.mxu0 0.0
    %2817 = vmatpush1.msra.mxu0 %v431
    %2818 = vmatprep.subr.mxu0 0.0
    %2819 = vmatpush1.msra.mxu0 %v432
    %2820 = vmatprep.subr.mxu0 0.0
    %2821 = vmatpush1.msra.mxu0 %v433
    %2822 = vmatprep.subr.mxu0 0.0
    %2823 = vmatpush1.msra.mxu0 %v434
    %2824 = vmatprep.subr.mxu0 0.0
    %2825 = vmatpush1.msra.mxu0 %v435
    %2826 = vmatprep.subr.mxu0 0.0
    %2827 = vmatpush1.msra.mxu0 %v436
    %2828 = vmatprep.mubr.f32.mxu0 %v38
    %2829 = vmatmul.mubr.f32.gmra.mrb[0].mxu0 %v37
    %v2830 = vpop.f32.mrb[0].mxu0
    %v2831 = vadd.f32 %v2761, %v2830
    %v2832 = vpop.f32.mrb[0].mxu0
    %2833 = vdwg.mxu0
    %2834 = vmatprep.subr.mxu0 0.0
    %2835 = vmatpush1.msra.mxu0 %v437
    %2836 = vmatprep.subr.mxu0 0.0
    %2837 = vmatpush1.msra.mxu0 %v438
    %2838 = vmatprep.subr.mxu0 0.0
    %2839 = vmatpush1.msra.mxu0 %v439
    %2840 = vmatprep.subr.mxu0 0.0
    %2841 = vmatpush1.msra.mxu0 %v440
    %2842 = vmatprep.subr.mxu0 0.0
    %2843 = vmatpush1.msra.mxu0 %v441
    %2844 = vmatprep.subr.mxu0 0.0
    %2845 = vmatpush1.msra.mxu0 %v442
    %2846 = vmatprep.subr.mxu0 0.0
    %2847 = vmatpush1.msra.mxu0 %v443
    %2848 = vmatprep.subr.mxu0 0.0
    %2849 = vmatpush1.msra.mxu0 %v444
    %2850 = vmatprep.subr.mxu0 0.0
    %2851 = vmatpush1.msra.mxu0 %v445
    %2852 = vmatprep.subr.mxu0 0.0
    %2853 = vmatpush1.msra.mxu0 %v446
    %2854 = vmatprep.subr.mxu0 0.0
    %2855 = vmatpush1.msra.mxu0 %v447
    %2856 = vmatprep.subr.mxu0 0.0
    %2857 = vmatpush1.msra.mxu0 %v448
    %2858 = vmatprep.subr.mxu0 0.0
    %2859 = vmatpush1.msra.mxu0 %v449
    %2860 = vmatprep.subr.mxu0 0.0
    %2861 = vmatpush1.msra.mxu0 %v450
    %2862 = vmatprep.subr.mxu0 0.0
    %2863 = vmatpush1.msra.mxu0 %v451
    %2864 = vmatprep.subr.mxu0 0.0
    %2865 = vmatpush1.msra.mxu0 %v452
    %2866 = vmatprep.subr.mxu0 0.0
    %2867 = vmatpush1.msra.mxu0 %v453
    %2868 = vmatprep.subr.mxu0 0.0
    %2869 = vmatpush1.msra.mxu0 %v454
    %2870 = vmatprep.subr.mxu0 0.0
    %2871 = vmatpush1.msra.mxu0 %v455
    %2872 = vmatprep.subr.mxu0 0.0
    %2873 = vmatpush1.msra.mxu0 %v456
    %2874 = vmatprep.subr.mxu0 0.0
    %2875 = vmatpush1.msra.mxu0 %v457
    %2876 = vmatprep.subr.mxu0 0.0
    %2877 = vmatpush1.msra.mxu0 %v458
    %2878 = vmatprep.subr.mxu0 0.0
    %2879 = vmatpush1.msra.mxu0 %v459
    %2880 = vmatprep.subr.mxu0 0.0
    %2881 = vmatpush1.msra.mxu0 %v460
    %2882 = vmatprep.subr.mxu0 0.0
    %2883 = vmatpush1.msra.mxu0 %v461
    %2884 = vmatprep.subr.mxu0 0.0
    %2885 = vmatpush1.msra.mxu0 %v462
    %2886 = vmatprep.subr.mxu0 0.0
    %2887 = vmatpush1.msra.mxu0 %v463
    %2888 = vmatprep.subr.mxu0 0.0
    %2889 = vmatpush1.msra.mxu0 %v464
    %2890 = vmatprep.subr.mxu0 0.0
    %2891 = vmatpush1.msra.mxu0 %v465
    %2892 = vmatprep.subr.mxu0 0.0
    %2893 = vmatpush1.msra.mxu0 %v466
    %2894 = vmatprep.subr.mxu0 0.0
    %2895 = vmatpush1.msra.mxu0 %v467
    %2896 = vmatprep.subr.mxu0 0.0
    %2897 = vmatpush1.msra.mxu0 %v468
    %2898 = vmatprep.mubr.f32.mxu0 %v40
    %2899 = vmatmul.mubr.f32.gmra.mrb[0].mxu0 %v39
    %v2900 = vpop.f32.mrb[0].mxu0
    %v2901 = vadd.f32 %v2831, %v2900
    %v2902 = vpop.f32.mrb[0].mxu0
    %2903 = vdwg.mxu0
    %2904 = vmatprep.subr.mxu0 0.0
    %2905 = vmatpush1.msra.mxu0 %v469
    %2906 = vmatprep.subr.mxu0 0.0
    %2907 = vmatpush1.msra.mxu0 %v470
    %2908 = vmatprep.subr.mxu0 0.0
    %2909 = vmatpush1.msra.mxu0 %v471
    %2910 = vmatprep.subr.mxu0 0.0
    %2911 = vmatpush1.msra.mxu0 %v472
    %2912 = vmatprep.subr.mxu0 0.0
    %2913 = vmatpush1.msra.mxu0 %v473
    %2914 = vmatprep.subr.mxu0 0.0
    %2915 = vmatpush1.msra.mxu0 %v474
    %2916 = vmatprep.subr.mxu0 0.0
    %2917 = vmatpush1.msra.mxu0 %v475
    %2918 = vmatprep.subr.mxu0 0.0
    %2919 = vmatpush1.msra.mxu0 %v476
    %2920 = vmatprep.subr.mxu0 0.0
    %2921 = vmatpush1.msra.mxu0 %v477
    %2922 = vmatprep.subr.mxu0 0.0
    %2923 = vmatpush1.msra.mxu0 %v478
    %2924 = vmatprep.subr.mxu0 0.0
    %2925 = vmatpush1.msra.mxu0 %v479
    %2926 = vmatprep.subr.mxu0 0.0
    %2927 = vmatpush1.msra.mxu0 %v480
    %2928 = vmatprep.subr.mxu0 0.0
    %2929 = vmatpush1.msra.mxu0 %v481
    %2930 = vmatprep.subr.mxu0 0.0
    %2931 = vmatpush1.msra.mxu0 %v482
    %2932 = vmatprep.subr.mxu0 0.0
    %2933 = vmatpush1.msra.mxu0 %v483
    %2934 = vmatprep.subr.mxu0 0.0
    %2935 = vmatpush1.msra.mxu0 %v484
    %2936 = vmatprep.subr.mxu0 0.0
    %2937 = vmatpush1.msra.mxu0 %v485
    %2938 = vmatprep.subr.mxu0 0.0
    %2939 = vmatpush1.msra.mxu0 %v486
    %2940 = vmatprep.subr.mxu0 0.0
    %2941 = vmatpush1.msra.mxu0 %v487
    %2942 = vmatprep.subr.mxu0 0.0
    %2943 = vmatpush1.msra.mxu0 %v488
    %2944 = vmatprep.subr.mxu0 0.0
    %2945 = vmatpush1.msra.mxu0 %v489
    %2946 = vmatprep.subr.mxu0 0.0
    %2947 = vmatpush1.msra.mxu0 %v490
    %2948 = vmatprep.subr.mxu0 0.0
    %2949 = vmatpush1.msra.mxu0 %v491
    %2950 = vmatprep.subr.mxu0 0.0
    %2951 = vmatpush1.msra.mxu0 %v492
    %2952 = vmatprep.subr.mxu0 0.0
    %2953 = vmatpush1.msra.mxu0 %v493
    %2954 = vmatprep.subr.mxu0 0.0
    %2955 = vmatpush1.msra.mxu0 %v494
    %2956 = vmatprep.subr.mxu0 0.0
    %2957 = vmatpush1.msra.mxu0 %v495
    %2958 = vmatprep.subr.mxu0 0.0
    %2959 = vmatpush1.msra.mxu0 %v496
    %2960 = vmatprep.subr.mxu0 0.0
    %2961 = vmatpush1.msra.mxu0 %v497
    %2962 = vmatprep.subr.mxu0 0.0
    %2963 = vmatpush1.msra.mxu0 %v498
    %2964 = vmatprep.subr.mxu0 0.0
    %2965 = vmatpush1.msra.mxu0 %v499
    %2966 = vmatprep.subr.mxu0 0.0
    %2967 = vmatpush1.msra.mxu0 %v500
    %2968 = vmatprep.mubr.f32.mxu0 %v42
    %2969 = vmatmul.mubr.f32.gmra.mrb[0].mxu0 %v41
    %v2970 = vpop.f32.mrb[0].mxu0
    %v2971 = vadd.f32 %v2901, %v2970
    %v2972 = vpop.f32.mrb[0].mxu0
    %2973 = vdwg.mxu0
    %2974 = vmatprep.subr.mxu0 0.0
    %2975 = vmatpush1.msra.mxu0 %v501
    %2976 = vmatprep.subr.mxu0 0.0
    %2977 = vmatpush1.msra.mxu0 %v502
    %2978 = vmatprep.subr.mxu0 0.0
    %2979 = vmatpush1.msra.mxu0 %v503
    %2980 = vmatprep.subr.mxu0 0.0
    %2981 = vmatpush1.msra.mxu0 %v504
    %2982 = vmatprep.subr.mxu0 0.0
    %2983 = vmatpush1.msra.mxu0 %v505
    %2984 = vmatprep.subr.mxu0 0.0
    %2985 = vmatpush1.msra.mxu0 %v506
    %2986 = vmatprep.subr.mxu0 0.0
    %2987 = vmatpush1.msra.mxu0 %v507
    %2988 = vmatprep.subr.mxu0 0.0
    %2989 = vmatpush1.msra.mxu0 %v508
    %2990 = vmatprep.subr.mxu0 0.0
    %2991 = vmatpush1.msra.mxu0 %v509
    %2992 = vmatprep.subr.mxu0 0.0
    %2993 = vmatpush1.msra.mxu0 %v510
    %2994 = vmatprep.subr.mxu0 0.0
    %2995 = vmatpush1.msra.mxu0 %v511
    %2996 = vmatprep.subr.mxu0 0.0
    %2997 = vmatpush1.msra.mxu0 %v512
    %2998 = vmatprep.subr.mxu0 0.0
    %2999 = vmatpush1.msra.mxu0 %v513
    %3000 = vmatprep.subr.mxu0 0.0
    %3001 = vmatpush1.msra.mxu0 %v514
    %3002 = vmatprep.subr.mxu0 0.0
    %3003 = vmatpush1.msra.mxu0 %v515
    %3004 = vmatprep.subr.mxu0 0.0
    %3005 = vmatpush1.msra.mxu0 %v516
    %3006 = vmatprep.subr.mxu0 0.0
    %3007 = vmatpush1.msra.mxu0 %v517
    %3008 = vmatprep.subr.mxu0 0.0
    %3009 = vmatpush1.msra.mxu0 %v518
    %3010 = vmatprep.subr.mxu0 0.0
    %3011 = vmatpush1.msra.mxu0 %v519
    %3012 = vmatprep.subr.mxu0 0.0
    %3013 = vmatpush1.msra.mxu0 %v520
    %3014 = vmatprep.subr.mxu0 0.0
    %3015 = vmatpush1.msra.mxu0 %v521
    %3016 = vmatprep.subr.mxu0 0.0
    %3017 = vmatpush1.msra.mxu0 %v522
    %3018 = vmatprep.subr.mxu0 0.0
    %3019 = vmatpush1.msra.mxu0 %v523
    %3020 = vmatprep.subr.mxu0 0.0
    %3021 = vmatpush1.msra.mxu0 %v524
    %3022 = vmatprep.subr.mxu0 0.0
    %3023 = vmatpush1.msra.mxu0 %v525
    %3024 = vmatprep.subr.mxu0 0.0
    %3025 = vmatpush1.msra.mxu0 %v526
    %3026 = vmatprep.subr.mxu0 0.0
    %3027 = vmatpush1.msra.mxu0 %v527
    %3028 = vmatprep.subr.mxu0 0.0
    %3029 = vmatpush1.msra.mxu0 %v528
    %3030 = vmatprep.subr.mxu0 0.0
    %3031 = vmatpush1.msra.mxu0 %v529
    %3032 = vmatprep.subr.mxu0 0.0
    %3033 = vmatpush1.msra.mxu0 %v530
    %3034 = vmatprep.subr.mxu0 0.0
    %3035 = vmatpush1.msra.mxu0 %v531
    %3036 = vmatprep.subr.mxu0 0.0
    %3037 = vmatpush1.msra.mxu0 %v532
    %3038 = vmatprep.mubr.f32.mxu0 %v44
    %3039 = vmatmul.mubr.f32.gmra.mrb[0].mxu0 %v43
    %v3040 = vpop.f32.mrb[0].mxu0
    %v3041 = vadd.f32 %v2971, %v3040
    %v3042 = vpop.f32.mrb[0].mxu0
    %3043 = vdwg.mxu0
    %3044 = vmatprep.subr.mxu0 0.0
    %3045 = vmatpush1.msra.mxu0 %v533
    %3046 = vmatprep.subr.mxu0 0.0
    %3047 = vmatpush1.msra.mxu0 %v534
    %3048 = vmatprep.subr.mxu0 0.0
    %3049 = vmatpush1.msra.mxu0 %v535
    %3050 = vmatprep.subr.mxu0 0.0
    %3051 = vmatpush1.msra.mxu0 %v536
    %3052 = vmatprep.subr.mxu0 0.0
    %3053 = vmatpush1.msra.mxu0 %v537
    %3054 = vmatprep.subr.mxu0 0.0
    %3055 = vmatpush1.msra.mxu0 %v538
    %3056 = vmatprep.subr.mxu0 0.0
    %3057 = vmatpush1.msra.mxu0 %v539
    %3058 = vmatprep.subr.mxu0 0.0
    %3059 = vmatpush1.msra.mxu0 %v540
    %3060 = vmatprep.subr.mxu0 0.0
    %3061 = vmatpush1.msra.mxu0 %v541
    %3062 = vmatprep.subr.mxu0 0.0
    %3063 = vmatpush1.msra.mxu0 %v542
    %3064 = vmatprep.subr.mxu0 0.0
    %3065 = vmatpush1.msra.mxu0 %v543
    %3066 = vmatprep.subr.mxu0 0.0
    %3067 = vmatpush1.msra.mxu0 %v544
    %3068 = vmatprep.subr.mxu0 0.0
    %3069 = vmatpush1.msra.mxu0 %v545
    %3070 = vmatprep.subr.mxu0 0.0
    %3071 = vmatpush1.msra.mxu0 %v546
    %3072 = vmatprep.subr.mxu0 0.0
    %3073 = vmatpush1.msra.mxu0 %v547
    %3074 = vmatprep.subr.mxu0 0.0
    %3075 = vmatpush1.msra.mxu0 %v548
    %3076 = vmatprep.subr.mxu0 0.0
    %3077 = vmatpush1.msra.mxu0 %v549
    %3078 = vmatprep.subr.mxu0 0.0
    %3079 = vmatpush1.msra.mxu0 %v550
    %3080 = vmatprep.subr.mxu0 0.0
    %3081 = vmatpush1.msra.mxu0 %v551
    %3082 = vmatprep.subr.mxu0 0.0
    %3083 = vmatpush1.msra.mxu0 %v552
    %3084 = vmatprep.subr.mxu0 0.0
    %3085 = vmatpush1.msra.mxu0 %v553
    %3086 = vmatprep.subr.mxu0 0.0
    %3087 = vmatpush1.msra.mxu0 %v554
    %3088 = vmatprep.subr.mxu0 0.0
    %3089 = vmatpush1.msra.mxu0 %v555
    %3090 = vmatprep.subr.mxu0 0.0
    %3091 = vmatpush1.msra.mxu0 %v556
    %3092 = vmatprep.subr.mxu0 0.0
    %3093 = vmatpush1.msra.mxu0 %v557
    %3094 = vmatprep.subr.mxu0 0.0
    %3095 = vmatpush1.msra.mxu0 %v558
    %3096 = vmatprep.subr.mxu0 0.0
    %3097 = vmatpush1.msra.mxu0 %v559
    %3098 = vmatprep.subr.mxu0 0.0
    %3099 = vmatpush1.msra.mxu0 %v560
    %3100 = vmatprep.subr.mxu0 0.0
    %3101 = vmatpush1.msra.mxu0 %v561
    %3102 = vmatprep.subr.mxu0 0.0
    %3103 = vmatpush1.msra.mxu0 %v562
    %3104 = vmatprep.subr.mxu0 0.0
    %3105 = vmatpush1.msra.mxu0 %v563
    %3106 = vmatprep.subr.mxu0 0.0
    %3107 = vmatpush1.msra.mxu0 %v564
    %3108 = vmatprep.mubr.f32.mxu0 %v46
    %3109 = vmatmul.mubr.f32.gmra.mrb[0].mxu0 %v45
    %v3110 = vpop.f32.mrb[0].mxu0
    %v3111 = vadd.f32 %v3041, %v3110
    %v3112 = vpop.f32.mrb[0].mxu0
    %3113 = vdwg.mxu0
    %3114 = vmatprep.subr.mxu0 0.0
    %3115 = vmatpush1.msra.mxu0 %v565
    %3116 = vmatprep.subr.mxu0 0.0
    %3117 = vmatpush1.msra.mxu0 %v566
    %3118 = vmatprep.subr.mxu0 0.0
    %3119 = vmatpush1.msra.mxu0 %v567
    %3120 = vmatprep.subr.mxu0 0.0
    %3121 = vmatpush1.msra.mxu0 %v568
    %3122 = vmatprep.subr.mxu0 0.0
    %3123 = vmatpush1.msra.mxu0 %v569
    %3124 = vmatprep.subr.mxu0 0.0
    %3125 = vmatpush1.msra.mxu0 %v570
    %3126 = vmatprep.subr.mxu0 0.0
    %3127 = vmatpush1.msra.mxu0 %v571
    %3128 = vmatprep.subr.mxu0 0.0
    %3129 = vmatpush1.msra.mxu0 %v572
    %3130 = vmatprep.subr.mxu0 0.0
    %3131 = vmatpush1.msra.mxu0 %v573
    %3132 = vmatprep.subr.mxu0 0.0
    %3133 = vmatpush1.msra.mxu0 %v574
    %3134 = vmatprep.subr.mxu0 0.0
    %3135 = vmatpush1.msra.mxu0 %v575
    %3136 = vmatprep.subr.mxu0 0.0
    %3137 = vmatpush1.msra.mxu0 %v576
    %3138 = vmatprep.subr.mxu0 0.0
    %3139 = vmatpush1.msra.mxu0 %v577
    %3140 = vmatprep.subr.mxu0 0.0
    %3141 = vmatpush1.msra.mxu0 %v578
    %3142 = vmatprep.subr.mxu0 0.0
    %3143 = vmatpush1.msra.mxu0 %v579
    %3144 = vmatprep.subr.mxu0 0.0
    %3145 = vmatpush1.msra.mxu0 %v580
    %3146 = vmatprep.subr.mxu0 0.0
    %3147 = vmatpush1.msra.mxu0 %v581
    %3148 = vmatprep.subr.mxu0 0.0
    %3149 = vmatpush1.msra.mxu0 %v582
    %3150 = vmatprep.subr.mxu0 0.0
    %3151 = vmatpush1.msra.mxu0 %v583
    %3152 = vmatprep.subr.mxu0 0.0
    %3153 = vmatpush1.msra.mxu0 %v584
    %3154 = vmatprep.subr.mxu0 0.0
    %3155 = vmatpush1.msra.mxu0 %v585
    %3156 = vmatprep.subr.mxu0 0.0
    %3157 = vmatpush1.msra.mxu0 %v586
    %3158 = vmatprep.subr.mxu0 0.0
    %3159 = vmatpush1.msra.mxu0 %v587
    %3160 = vmatprep.subr.mxu0 0.0
    %3161 = vmatpush1.msra.mxu0 %v588
    %3162 = vmatprep.subr.mxu0 0.0
    %3163 = vmatpush1.msra.mxu0 %v589
    %3164 = vmatprep.subr.mxu0 0.0
    %3165 = vmatpush1.msra.mxu0 %v590
    %3166 = vmatprep.subr.mxu0 0.0
    %3167 = vmatpush1.msra.mxu0 %v591
    %3168 = vmatprep.subr.mxu0 0.0
    %3169 = vmatpush1.msra.mxu0 %v592
    %3170 = vmatprep.subr.mxu0 0.0
    %3171 = vmatpush1.msra.mxu0 %v593
    %3172 = vmatprep.subr.mxu0 0.0
    %3173 = vmatpush1.msra.mxu0 %v594
    %3174 = vmatprep.subr.mxu0 0.0
    %3175 = vmatpush1.msra.mxu0 %v595
    %3176 = vmatprep.subr.mxu0 0.0
    %3177 = vmatpush1.msra.mxu0 %v596
    %3178 = vmatprep.mubr.f32.mxu0 %v48
    %3179 = vmatmul.mubr.f32.gmra.mrb[0].mxu0 %v47
    %v3180 = vpop.f32.mrb[0].mxu0
    %v3181 = vadd.f32 %v3111, %v3180
    %v3182 = vpop.f32.mrb[0].mxu0
    %3183 = vdwg.mxu0
    %3184 = vmatprep.subr.mxu0 0.0
    %3185 = vmatpush1.msra.mxu0 %v597
    %3186 = vmatprep.subr.mxu0 0.0
    %3187 = vmatpush1.msra.mxu0 %v598
    %3188 = vmatprep.subr.mxu0 0.0
    %3189 = vmatpush1.msra.mxu0 %v599
    %3190 = vmatprep.subr.mxu0 0.0
    %3191 = vmatpush1.msra.mxu0 %v600
    %3192 = vmatprep.subr.mxu0 0.0
    %3193 = vmatpush1.msra.mxu0 %v601
    %3194 = vmatprep.subr.mxu0 0.0
    %3195 = vmatpush1.msra.mxu0 %v602
    %3196 = vmatprep.subr.mxu0 0.0
    %3197 = vmatpush1.msra.mxu0 %v603
    %3198 = vmatprep.subr.mxu0 0.0
    %3199 = vmatpush1.msra.mxu0 %v604
    %3200 = vmatprep.subr.mxu0 0.0
    %3201 = vmatpush1.msra.mxu0 %v605
    %3202 = vmatprep.subr.mxu0 0.0
    %3203 = vmatpush1.msra.mxu0 %v606
    %3204 = vmatprep.subr.mxu0 0.0
    %3205 = vmatpush1.msra.mxu0 %v607
    %3206 = vmatprep.subr.mxu0 0.0
    %3207 = vmatpush1.msra.mxu0 %v608
    %3208 = vmatprep.subr.mxu0 0.0
    %3209 = vmatpush1.msra.mxu0 %v609
    %3210 = vmatprep.subr.mxu0 0.0
    %3211 = vmatpush1.msra.mxu0 %v610
    %3212 = vmatprep.subr.mxu0 0.0
    %3213 = vmatpush1.msra.mxu0 %v611
    %3214 = vmatprep.subr.mxu0 0.0
    %3215 = vmatpush1.msra.mxu0 %v612
    %3216 = vmatprep.subr.mxu0 0.0
    %3217 = vmatpush1.msra.mxu0 %v613
    %3218 = vmatprep.subr.mxu0 0.0
    %3219 = vmatpush1.msra.mxu0 %v614
    %3220 = vmatprep.subr.mxu0 0.0
    %3221 = vmatpush1.msra.mxu0 %v615
    %3222 = vmatprep.subr.mxu0 0.0
    %3223 = vmatpush1.msra.mxu0 %v616
    %3224 = vmatprep.subr.mxu0 0.0
    %3225 = vmatpush1.msra.mxu0 %v617
    %3226 = vmatprep.subr.mxu0 0.0
    %3227 = vmatpush1.msra.mxu0 %v618
    %3228 = vmatprep.subr.mxu0 0.0
    %3229 = vmatpush1.msra.mxu0 %v619
    %3230 = vmatprep.subr.mxu0 0.0
    %3231 = vmatpush1.msra.mxu0 %v620
    %3232 = vmatprep.subr.mxu0 0.0
    %3233 = vmatpush1.msra.mxu0 %v621
    %3234 = vmatprep.subr.mxu0 0.0
    %3235 = vmatpush1.msra.mxu0 %v622
    %3236 = vmatprep.subr.mxu0 0.0
    %3237 = vmatpush1.msra.mxu0 %v623
    %3238 = vmatprep.subr.mxu0 0.0
    %3239 = vmatpush1.msra.mxu0 %v624
    %3240 = vmatprep.subr.mxu0 0.0
    %3241 = vmatpush1.msra.mxu0 %v625
    %3242 = vmatprep.subr.mxu0 0.0
    %3243 = vmatpush1.msra.mxu0 %v626
    %3244 = vmatprep.subr.mxu0 0.0
    %3245 = vmatpush1.msra.mxu0 %v627
    %3246 = vmatprep.subr.mxu0 0.0
    %3247 = vmatpush1.msra.mxu0 %v628
    %3248 = vmatprep.mubr.f32.mxu0 %v50
    %3249 = vmatmul.mubr.f32.gmra.mrb[0].mxu0 %v49
    %v3250 = vpop.f32.mrb[0].mxu0
    %v3251 = vadd.f32 %v3181, %v3250
    %v3252 = vpop.f32.mrb[0].mxu0
    %3253 = vdwg.mxu0
    %3254 = vmatprep.subr.mxu0 0.0
    %3255 = vmatpush1.msra.mxu0 %v629
    %3256 = vmatprep.subr.mxu0 0.0
    %3257 = vmatpush1.msra.mxu0 %v630
    %3258 = vmatprep.subr.mxu0 0.0
    %3259 = vmatpush1.msra.mxu0 %v631
    %3260 = vmatprep.subr.mxu0 0.0
    %3261 = vmatpush1.msra.mxu0 %v632
    %3262 = vmatprep.subr.mxu0 0.0
    %3263 = vmatpush1.msra.mxu0 %v633
    %3264 = vmatprep.subr.mxu0 0.0
    %3265 = vmatpush1.msra.mxu0 %v634
    %3266 = vmatprep.subr.mxu0 0.0
    %3267 = vmatpush1.msra.mxu0 %v635
    %3268 = vmatprep.subr.mxu0 0.0
    %3269 = vmatpush1.msra.mxu0 %v636
    %3270 = vmatprep.subr.mxu0 0.0
    %3271 = vmatpush1.msra.mxu0 %v637
    %3272 = vmatprep.subr.mxu0 0.0
    %3273 = vmatpush1.msra.mxu0 %v638
    %3274 = vmatprep.subr.mxu0 0.0
    %3275 = vmatpush1.msra.mxu0 %v639
    %3276 = vmatprep.subr.mxu0 0.0
    %3277 = vmatpush1.msra.mxu0 %v640
    %3278 = vmatprep.subr.mxu0 0.0
    %3279 = vmatpush1.msra.mxu0 %v641
    %3280 = vmatprep.subr.mxu0 0.0
    %3281 = vmatpush1.msra.mxu0 %v642
    %3282 = vmatprep.subr.mxu0 0.0
    %3283 = vmatpush1.msra.mxu0 %v643
    %3284 = vmatprep.subr.mxu0 0.0
    %3285 = vmatpush1.msra.mxu0 %v644
    %3286 = vmatprep.subr.mxu0 0.0
    %3287 = vmatpush1.msra.mxu0 %v645
    %3288 = vmatprep.subr.mxu0 0.0
    %3289 = vmatpush1.msra.mxu0 %v646
    %3290 = vmatprep.subr.mxu0 0.0
    %3291 = vmatpush1.msra.mxu0 %v647
    %3292 = vmatprep.subr.mxu0 0.0
    %3293 = vmatpush1.msra.mxu0 %v648
    %3294 = vmatprep.subr.mxu0 0.0
    %3295 = vmatpush1.msra.mxu0 %v649
    %3296 = vmatprep.subr.mxu0 0.0
    %3297 = vmatpush1.msra.mxu0 %v650
    %3298 = vmatprep.subr.mxu0 0.0
    %3299 = vmatpush1.msra.mxu0 %v651
    %3300 = vmatprep.subr.mxu0 0.0
    %3301 = vmatpush1.msra.mxu0 %v652
    %3302 = vmatprep.subr.mxu0 0.0
    %3303 = vmatpush1.msra.mxu0 %v653
    %3304 = vmatprep.subr.mxu0 0.0
    %3305 = vmatpush1.msra.mxu0 %v654
    %3306 = vmatprep.subr.mxu0 0.0
    %3307 = vmatpush1.msra.mxu0 %v655
    %3308 = vmatprep.subr.mxu0 0.0
    %3309 = vmatpush1.msra.mxu0 %v656
    %3310 = vmatprep.subr.mxu0 0.0
    %3311 = vmatpush1.msra.mxu0 %v657
    %3312 = vmatprep.subr.mxu0 0.0
    %3313 = vmatpush1.msra.mxu0 %v658
    %3314 = vmatprep.subr.mxu0 0.0
    %3315 = vmatpush1.msra.mxu0 %v659
    %3316 = vmatprep.subr.mxu0 0.0
    %3317 = vmatpush1.msra.mxu0 %v660
    %3318 = vmatprep.mubr.f32.mxu0 %v52
    %3319 = vmatmul.mubr.f32.gmra.mrb[0].mxu0 %v51
    %v3320 = vpop.f32.mrb[0].mxu0
    %v3321 = vadd.f32 %v3251, %v3320
    %v3322 = vpop.f32.mrb[0].mxu0
    %3323 = vdwg.mxu0
    %3324 = vmatprep.subr.mxu0 0.0
    %3325 = vmatpush1.msra.mxu0 %v661
    %3326 = vmatprep.subr.mxu0 0.0
    %3327 = vmatpush1.msra.mxu0 %v662
    %3328 = vmatprep.subr.mxu0 0.0
    %3329 = vmatpush1.msra.mxu0 %v663
    %3330 = vmatprep.subr.mxu0 0.0
    %3331 = vmatpush1.msra.mxu0 %v664
    %3332 = vmatprep.subr.mxu0 0.0
    %3333 = vmatpush1.msra.mxu0 %v665
    %3334 = vmatprep.subr.mxu0 0.0
    %3335 = vmatpush1.msra.mxu0 %v666
    %3336 = vmatprep.subr.mxu0 0.0
    %3337 = vmatpush1.msra.mxu0 %v667
    %3338 = vmatprep.subr.mxu0 0.0
    %3339 = vmatpush1.msra.mxu0 %v668
    %3340 = vmatprep.subr.mxu0 0.0
    %3341 = vmatpush1.msra.mxu0 %v669
    %3342 = vmatprep.subr.mxu0 0.0
    %3343 = vmatpush1.msra.mxu0 %v670
    %3344 = vmatprep.subr.mxu0 0.0
    %3345 = vmatpush1.msra.mxu0 %v671
    %3346 = vmatprep.subr.mxu0 0.0
    %3347 = vmatpush1.msra.mxu0 %v672
    %3348 = vmatprep.subr.mxu0 0.0
    %3349 = vmatpush1.msra.mxu0 %v673
    %3350 = vmatprep.subr.mxu0 0.0
    %3351 = vmatpush1.msra.mxu0 %v674
    %3352 = vmatprep.subr.mxu0 0.0
    %3353 = vmatpush1.msra.mxu0 %v675
    %3354 = vmatprep.subr.mxu0 0.0
    %3355 = vmatpush1.msra.mxu0 %v676
    %3356 = vmatprep.subr.mxu0 0.0
    %3357 = vmatpush1.msra.mxu0 %v677
    %3358 = vmatprep.subr.mxu0 0.0
    %3359 = vmatpush1.msra.mxu0 %v678
    %3360 = vmatprep.subr.mxu0 0.0
    %3361 = vmatpush1.msra.mxu0 %v679
    %3362 = vmatprep.subr.mxu0 0.0
    %3363 = vmatpush1.msra.mxu0 %v680
    %3364 = vmatprep.subr.mxu0 0.0
    %3365 = vmatpush1.msra.mxu0 %v681
    %3366 = vmatprep.subr.mxu0 0.0
    %3367 = vmatpush1.msra.mxu0 %v682
    %3368 = vmatprep.subr.mxu0 0.0
    %3369 = vmatpush1.msra.mxu0 %v683
    %3370 = vmatprep.subr.mxu0 0.0
    %3371 = vmatpush1.msra.mxu0 %v684
    %3372 = vmatprep.subr.mxu0 0.0
    %3373 = vmatpush1.msra.mxu0 %v685
    %3374 = vmatprep.subr.mxu0 0.0
    %3375 = vmatpush1.msra.mxu0 %v686
    %3376 = vmatprep.subr.mxu0 0.0
    %3377 = vmatpush1.msra.mxu0 %v687
    %3378 = vmatprep.subr.mxu0 0.0
    %3379 = vmatpush1.msra.mxu0 %v688
    %3380 = vmatprep.subr.mxu0 0.0
    %3381 = vmatpush1.msra.mxu0 %v689
    %3382 = vmatprep.subr.mxu0 0.0
    %3383 = vmatpush1.msra.mxu0 %v690
    %3384 = vmatprep.subr.mxu0 0.0
    %3385 = vmatpush1.msra.mxu0 %v691
    %3386 = vmatprep.subr.mxu0 0.0
    %3387 = vmatpush1.msra.mxu0 %v692
    %3388 = vmatprep.mubr.f32.mxu0 %v54
    %3389 = vmatmul.mubr.f32.gmra.mrb[0].mxu0 %v53
    %v3390 = vpop.f32.mrb[0].mxu0
    %v3391 = vadd.f32 %v3321, %v3390
    %v3392 = vpop.f32.mrb[0].mxu0
    %3393 = vdwg.mxu0
    %3394 = vmatprep.subr.mxu0 0.0
    %3395 = vmatpush1.msra.mxu0 %v693
    %3396 = vmatprep.subr.mxu0 0.0
    %3397 = vmatpush1.msra.mxu0 %v694
    %3398 = vmatprep.subr.mxu0 0.0
    %3399 = vmatpush1.msra.mxu0 %v695
    %3400 = vmatprep.subr.mxu0 0.0
    %3401 = vmatpush1.msra.mxu0 %v696
    %3402 = vmatprep.subr.mxu0 0.0
    %3403 = vmatpush1.msra.mxu0 %v697
    %3404 = vmatprep.subr.mxu0 0.0
    %3405 = vmatpush1.msra.mxu0 %v698
    %3406 = vmatprep.subr.mxu0 0.0
    %3407 = vmatpush1.msra.mxu0 %v699
    %3408 = vmatprep.subr.mxu0 0.0
    %3409 = vmatpush1.msra.mxu0 %v700
    %3410 = vmatprep.subr.mxu0 0.0
    %3411 = vmatpush1.msra.mxu0 %v701
    %3412 = vmatprep.subr.mxu0 0.0
    %3413 = vmatpush1.msra.mxu0 %v702
    %3414 = vmatprep.subr.mxu0 0.0
    %3415 = vmatpush1.msra.mxu0 %v703
    %3416 = vmatprep.subr.mxu0 0.0
    %3417 = vmatpush1.msra.mxu0 %v704
    %3418 = vmatprep.subr.mxu0 0.0
    %3419 = vmatpush1.msra.mxu0 %v705
    %3420 = vmatprep.subr.mxu0 0.0
    %3421 = vmatpush1.msra.mxu0 %v706
    %3422 = vmatprep.subr.mxu0 0.0
    %3423 = vmatpush1.msra.mxu0 %v707
    %3424 = vmatprep.subr.mxu0 0.0
    %3425 = vmatpush1.msra.mxu0 %v708
    %3426 = vmatprep.subr.mxu0 0.0
    %3427 = vmatpush1.msra.mxu0 %v709
    %3428 = vmatprep.subr.mxu0 0.0
    %3429 = vmatpush1.msra.mxu0 %v710
    %3430 = vmatprep.subr.mxu0 0.0
    %3431 = vmatpush1.msra.mxu0 %v711
    %3432 = vmatprep.subr.mxu0 0.0
    %3433 = vmatpush1.msra.mxu0 %v712
    %3434 = vmatprep.subr.mxu0 0.0
    %3435 = vmatpush1.msra.mxu0 %v713
    %3436 = vmatprep.subr.mxu0 0.0
    %3437 = vmatpush1.msra.mxu0 %v714
    %3438 = vmatprep.subr.mxu0 0.0
    %3439 = vmatpush1.msra.mxu0 %v715
    %3440 = vmatprep.subr.mxu0 0.0
    %3441 = vmatpush1.msra.mxu0 %v716
    %3442 = vmatprep.subr.mxu0 0.0
    %3443 = vmatpush1.msra.mxu0 %v717
    %3444 = vmatprep.subr.mxu0 0.0
    %3445 = vmatpush1.msra.mxu0 %v718
    %3446 = vmatprep.subr.mxu0 0.0
    %3447 = vmatpush1.msra.mxu0 %v719
    %3448 = vmatprep.subr.mxu0 0.0
    %3449 = vmatpush1.msra.mxu0 %v720
    %3450 = vmatprep.subr.mxu0 0.0
    %3451 = vmatpush1.msra.mxu0 %v721
    %3452 = vmatprep.subr.mxu0 0.0
    %3453 = vmatpush1.msra.mxu0 %v722
    %3454 = vmatprep.subr.mxu0 0.0
    %3455 = vmatpush1.msra.mxu0 %v723
    %3456 = vmatprep.subr.mxu0 0.0
    %3457 = vmatpush1.msra.mxu0 %v724
    %3458 = vmatprep.mubr.f32.mxu0 %v56
    %3459 = vmatmul.mubr.f32.gmra.mrb[0].mxu0 %v55
    %v3460 = vpop.f32.mrb[0].mxu0
    %v3461 = vadd.f32 %v3391, %v3460
    %v3462 = vpop.f32.mrb[0].mxu0
    %3463 = vdwg.mxu0
    %3464 = vmatprep.subr.mxu0 0.0
    %3465 = vmatpush1.msra.mxu0 %v725
    %3466 = vmatprep.subr.mxu0 0.0
    %3467 = vmatpush1.msra.mxu0 %v726
    %3468 = vmatprep.subr.mxu0 0.0
    %3469 = vmatpush1.msra.mxu0 %v727
    %3470 = vmatprep.subr.mxu0 0.0
    %3471 = vmatpush1.msra.mxu0 %v728
    %3472 = vmatprep.subr.mxu0 0.0
    %3473 = vmatpush1.msra.mxu0 %v729
    %3474 = vmatprep.subr.mxu0 0.0
    %3475 = vmatpush1.msra.mxu0 %v730
    %3476 = vmatprep.subr.mxu0 0.0
    %3477 = vmatpush1.msra.mxu0 %v731
    %3478 = vmatprep.subr.mxu0 0.0
    %3479 = vmatpush1.msra.mxu0 %v732
    %3480 = vmatprep.subr.mxu0 0.0
    %3481 = vmatpush1.msra.mxu0 %v733
    %3482 = vmatprep.subr.mxu0 0.0
    %3483 = vmatpush1.msra.mxu0 %v734
    %3484 = vmatprep.subr.mxu0 0.0
    %3485 = vmatpush1.msra.mxu0 %v735
    %3486 = vmatprep.subr.mxu0 0.0
    %3487 = vmatpush1.msra.mxu0 %v736
    %3488 = vmatprep.subr.mxu0 0.0
    %3489 = vmatpush1.msra.mxu0 %v737
    %3490 = vmatprep.subr.mxu0 0.0
    %3491 = vmatpush1.msra.mxu0 %v738
    %3492 = vmatprep.subr.mxu0 0.0
    %3493 = vmatpush1.msra.mxu0 %v739
    %3494 = vmatprep.subr.mxu0 0.0
    %3495 = vmatpush1.msra.mxu0 %v740
    %3496 = vmatprep.subr.mxu0 0.0
    %3497 = vmatpush1.msra.mxu0 %v741
    %3498 = vmatprep.subr.mxu0 0.0
    %3499 = vmatpush1.msra.mxu0 %v742
    %3500 = vmatprep.subr.mxu0 0.0
    %3501 = vmatpush1.msra.mxu0 %v743
    %3502 = vmatprep.subr.mxu0 0.0
    %3503 = vmatpush1.msra.mxu0 %v744
    %3504 = vmatprep.subr.mxu0 0.0
    %3505 = vmatpush1.msra.mxu0 %v745
    %3506 = vmatprep.subr.mxu0 0.0
    %3507 = vmatpush1.msra.mxu0 %v746
    %3508 = vmatprep.subr.mxu0 0.0
    %3509 = vmatpush1.msra.mxu0 %v747
    %3510 = vmatprep.subr.mxu0 0.0
    %3511 = vmatpush1.msra.mxu0 %v748
    %3512 = vmatprep.subr.mxu0 0.0
    %3513 = vmatpush1.msra.mxu0 %v749
    %3514 = vmatprep.subr.mxu0 0.0
    %3515 = vmatpush1.msra.mxu0 %v750
    %3516 = vmatprep.subr.mxu0 0.0
    %3517 = vmatpush1.msra.mxu0 %v751
    %3518 = vmatprep.subr.mxu0 0.0
    %3519 = vmatpush1.msra.mxu0 %v752
    %3520 = vmatprep.subr.mxu0 0.0
    %3521 = vmatpush1.msra.mxu0 %v753
    %3522 = vmatprep.subr.mxu0 0.0
    %3523 = vmatpush1.msra.mxu0 %v754
    %3524 = vmatprep.subr.mxu0 0.0
    %3525 = vmatpush1.msra.mxu0 %v755
    %3526 = vmatprep.subr.mxu0 0.0
    %3527 = vmatpush1.msra.mxu0 %v756
    %3528 = vmatprep.mubr.f32.mxu0 %v58
    %3529 = vmatmul.mubr.f32.gmra.mrb[0].mxu0 %v57
    %v3530 = vpop.f32.mrb[0].mxu0
    %v3531 = vadd.f32 %v3461, %v3530
    %v3532 = vpop.f32.mrb[0].mxu0
    %3533 = vdwg.mxu0
    %3534 = vmatprep.subr.mxu0 0.0
    %3535 = vmatpush1.msra.mxu0 %v757
    %3536 = vmatprep.subr.mxu0 0.0
    %3537 = vmatpush1.msra.mxu0 %v758
    %3538 = vmatprep.subr.mxu0 0.0
    %3539 = vmatpush1.msra.mxu0 %v759
    %3540 = vmatprep.subr.mxu0 0.0
    %3541 = vmatpush1.msra.mxu0 %v760
    %3542 = vmatprep.subr.mxu0 0.0
    %3543 = vmatpush1.msra.mxu0 %v761
    %3544 = vmatprep.subr.mxu0 0.0
    %3545 = vmatpush1.msra.mxu0 %v762
    %3546 = vmatprep.subr.mxu0 0.0
    %3547 = vmatpush1.msra.mxu0 %v763
    %3548 = vmatprep.subr.mxu0 0.0
    %3549 = vmatpush1.msra.mxu0 %v764
    %3550 = vmatprep.subr.mxu0 0.0
    %3551 = vmatpush1.msra.mxu0 %v765
    %3552 = vmatprep.subr.mxu0 0.0
    %3553 = vmatpush1.msra.mxu0 %v766
    %3554 = vmatprep.subr.mxu0 0.0
    %3555 = vmatpush1.msra.mxu0 %v767
    %3556 = vmatprep.subr.mxu0 0.0
    %3557 = vmatpush1.msra.mxu0 %v768
    %3558 = vmatprep.subr.mxu0 0.0
    %3559 = vmatpush1.msra.mxu0 %v769
    %3560 = vmatprep.subr.mxu0 0.0
    %3561 = vmatpush1.msra.mxu0 %v770
    %3562 = vmatprep.subr.mxu0 0.0
    %3563 = vmatpush1.msra.mxu0 %v771
    %3564 = vmatprep.subr.mxu0 0.0
    %3565 = vmatpush1.msra.mxu0 %v772
    %3566 = vmatprep.subr.mxu0 0.0
    %3567 = vmatpush1.msra.mxu0 %v773
    %3568 = vmatprep.subr.mxu0 0.0
    %3569 = vmatpush1.msra.mxu0 %v774
    %3570 = vmatprep.subr.mxu0 0.0
    %3571 = vmatpush1.msra.mxu0 %v775
    %3572 = vmatprep.subr.mxu0 0.0
    %3573 = vmatpush1.msra.mxu0 %v776
    %3574 = vmatprep.subr.mxu0 0.0
    %3575 = vmatpush1.msra.mxu0 %v777
    %3576 = vmatprep.subr.mxu0 0.0
    %3577 = vmatpush1.msra.mxu0 %v778
    %3578 = vmatprep.subr.mxu0 0.0
    %3579 = vmatpush1.msra.mxu0 %v779
    %3580 = vmatprep.subr.mxu0 0.0
    %3581 = vmatpush1.msra.mxu0 %v780
    %3582 = vmatprep.subr.mxu0 0.0
    %3583 = vmatpush1.msra.mxu0 %v781
    %3584 = vmatprep.subr.mxu0 0.0
    %3585 = vmatpush1.msra.mxu0 %v782
    %3586 = vmatprep.subr.mxu0 0.0
    %3587 = vmatpush1.msra.mxu0 %v783
    %3588 = vmatprep.subr.mxu0 0.0
    %3589 = vmatpush1.msra.mxu0 %v784
    %3590 = vmatprep.subr.mxu0 0.0
    %3591 = vmatpush1.msra.mxu0 %v785
    %3592 = vmatprep.subr.mxu0 0.0
    %3593 = vmatpush1.msra.mxu0 %v786
    %3594 = vmatprep.subr.mxu0 0.0
    %3595 = vmatpush1.msra.mxu0 %v787
    %3596 = vmatprep.subr.mxu0 0.0
    %3597 = vmatpush1.msra.mxu0 %v788
    %3598 = vmatprep.mubr.f32.mxu0 %v60
    %3599 = vmatmul.mubr.f32.gmra.mrb[0].mxu0 %v59
    %v3600 = vpop.f32.mrb[0].mxu0
    %v3601 = vadd.f32 %v3531, %v3600
    %v3602 = vpop.f32.mrb[0].mxu0
    %3603 = vdwg.mxu0
    %3604 = vmatprep.subr.mxu0 0.0
    %3605 = vmatpush1.msra.mxu0 %v789
    %3606 = vmatprep.subr.mxu0 0.0
    %3607 = vmatpush1.msra.mxu0 %v790
    %3608 = vmatprep.subr.mxu0 0.0
    %3609 = vmatpush1.msra.mxu0 %v791
    %3610 = vmatprep.subr.mxu0 0.0
    %3611 = vmatpush1.msra.mxu0 %v792
    %3612 = vmatprep.subr.mxu0 0.0
    %3613 = vmatpush1.msra.mxu0 %v793
    %3614 = vmatprep.subr.mxu0 0.0
    %3615 = vmatpush1.msra.mxu0 %v794
    %3616 = vmatprep.subr.mxu0 0.0
    %3617 = vmatpush1.msra.mxu0 %v795
    %3618 = vmatprep.subr.mxu0 0.0
    %3619 = vmatpush1.msra.mxu0 %v796
    %3620 = vmatprep.subr.mxu0 0.0
    %3621 = vmatpush1.msra.mxu0 %v797
    %3622 = vmatprep.subr.mxu0 0.0
    %3623 = vmatpush1.msra.mxu0 %v798
    %3624 = vmatprep.subr.mxu0 0.0
    %3625 = vmatpush1.msra.mxu0 %v799
    %3626 = vmatprep.subr.mxu0 0.0
    %3627 = vmatpush1.msra.mxu0 %v800
    %3628 = vmatprep.subr.mxu0 0.0
    %3629 = vmatpush1.msra.mxu0 %v801
    %3630 = vmatprep.subr.mxu0 0.0
    %3631 = vmatpush1.msra.mxu0 %v802
    %3632 = vmatprep.subr.mxu0 0.0
    %3633 = vmatpush1.msra.mxu0 %v803
    %3634 = vmatprep.subr.mxu0 0.0
    %3635 = vmatpush1.msra.mxu0 %v804
    %3636 = vmatprep.subr.mxu0 0.0
    %3637 = vmatpush1.msra.mxu0 %v805
    %3638 = vmatprep.subr.mxu0 0.0
    %3639 = vmatpush1.msra.mxu0 %v806
    %3640 = vmatprep.subr.mxu0 0.0
    %3641 = vmatpush1.msra.mxu0 %v807
    %3642 = vmatprep.subr.mxu0 0.0
    %3643 = vmatpush1.msra.mxu0 %v808
    %3644 = vmatprep.subr.mxu0 0.0
    %3645 = vmatpush1.msra.mxu0 %v809
    %3646 = vmatprep.subr.mxu0 0.0
    %3647 = vmatpush1.msra.mxu0 %v810
    %3648 = vmatprep.subr.mxu0 0.0
    %3649 = vmatpush1.msra.mxu0 %v811
    %3650 = vmatprep.subr.mxu0 0.0
    %3651 = vmatpush1.msra.mxu0 %v812
    %3652 = vmatprep.subr.mxu0 0.0
    %3653 = vmatpush1.msra.mxu0 %v813
    %3654 = vmatprep.subr.mxu0 0.0
    %3655 = vmatpush1.msra.mxu0 %v814
    %3656 = vmatprep.subr.mxu0 0.0
    %3657 = vmatpush1.msra.mxu0 %v815
    %3658 = vmatprep.subr.mxu0 0.0
    %3659 = vmatpush1.msra.mxu0 %v816
    %3660 = vmatprep.subr.mxu0 0.0
    %3661 = vmatpush1.msra.mxu0 %v817
    %3662 = vmatprep.subr.mxu0 0.0
    %3663 = vmatpush1.msra.mxu0 %v818
    %3664 = vmatprep.subr.mxu0 0.0
    %3665 = vmatpush1.msra.mxu0 %v819
    %3666 = vmatprep.subr.mxu0 0.0
    %3667 = vmatpush1.msra.mxu0 %v820
    %3668 = vmatprep.mubr.f32.mxu0 %v62
    %3669 = vmatmul.mubr.f32.gmra.mrb[0].mxu0 %v61
    %v3670 = vpop.f32.mrb[0].mxu0
    %v3671 = vadd.f32 %v3601, %v3670
    %v3672 = vpop.f32.mrb[0].mxu0
    %3673 = vdwg.mxu0
    %3674 = vmatprep.subr.mxu0 0.0
    %3675 = vmatpush1.msra.mxu0 %v821
    %3676 = vmatprep.subr.mxu0 0.0
    %3677 = vmatpush1.msra.mxu0 %v822
    %3678 = vmatprep.subr.mxu0 0.0
    %3679 = vmatpush1.msra.mxu0 %v823
    %3680 = vmatprep.subr.mxu0 0.0
    %3681 = vmatpush1.msra.mxu0 %v824
    %3682 = vmatprep.subr.mxu0 0.0
    %3683 = vmatpush1.msra.mxu0 %v825
    %3684 = vmatprep.subr.mxu0 0.0
    %3685 = vmatpush1.msra.mxu0 %v826
    %3686 = vmatprep.subr.mxu0 0.0
    %3687 = vmatpush1.msra.mxu0 %v827
    %3688 = vmatprep.subr.mxu0 0.0
    %3689 = vmatpush1.msra.mxu0 %v828
    %3690 = vmatprep.subr.mxu0 0.0
    %3691 = vmatpush1.msra.mxu0 %v829
    %3692 = vmatprep.subr.mxu0 0.0
    %3693 = vmatpush1.msra.mxu0 %v830
    %3694 = vmatprep.subr.mxu0 0.0
    %3695 = vmatpush1.msra.mxu0 %v831
    %3696 = vmatprep.subr.mxu0 0.0
    %3697 = vmatpush1.msra.mxu0 %v832
    %3698 = vmatprep.subr.mxu0 0.0
    %3699 = vmatpush1.msra.mxu0 %v833
    %3700 = vmatprep.subr.mxu0 0.0
    %3701 = vmatpush1.msra.mxu0 %v834
    %3702 = vmatprep.subr.mxu0 0.0
    %3703 = vmatpush1.msra.mxu0 %v835
    %3704 = vmatprep.subr.mxu0 0.0
    %3705 = vmatpush1.msra.mxu0 %v836
    %3706 = vmatprep.subr.mxu0 0.0
    %3707 = vmatpush1.msra.mxu0 %v837
    %3708 = vmatprep.subr.mxu0 0.0
    %3709 = vmatpush1.msra.mxu0 %v838
    %3710 = vmatprep.subr.mxu0 0.0
    %3711 = vmatpush1.msra.mxu0 %v839
    %3712 = vmatprep.subr.mxu0 0.0
    %3713 = vmatpush1.msra.mxu0 %v840
    %3714 = vmatprep.subr.mxu0 0.0
    %3715 = vmatpush1.msra.mxu0 %v841
    %3716 = vmatprep.subr.mxu0 0.0
    %3717 = vmatpush1.msra.mxu0 %v842
    %3718 = vmatprep.subr.mxu0 0.0
    %3719 = vmatpush1.msra.mxu0 %v843
    %3720 = vmatprep.subr.mxu0 0.0
    %3721 = vmatpush1.msra.mxu0 %v844
    %3722 = vmatprep.subr.mxu0 0.0
    %3723 = vmatpush1.msra.mxu0 %v845
    %3724 = vmatprep.subr.mxu0 0.0
    %3725 = vmatpush1.msra.mxu0 %v846
    %3726 = vmatprep.subr.mxu0 0.0
    %3727 = vmatpush1.msra.mxu0 %v847
    %3728 = vmatprep.subr.mxu0 0.0
    %3729 = vmatpush1.msra.mxu0 %v848
    %3730 = vmatprep.subr.mxu0 0.0
    %3731 = vmatpush1.msra.mxu0 %v849
    %3732 = vmatprep.subr.mxu0 0.0
    %3733 = vmatpush1.msra.mxu0 %v850
    %3734 = vmatprep.subr.mxu0 0.0
    %3735 = vmatpush1.msra.mxu0 %v851
    %3736 = vmatprep.subr.mxu0 0.0
    %3737 = vmatpush1.msra.mxu0 %v852
    %3738 = vmatprep.mubr.f32.mxu0 %v64
    %3739 = vmatmul.mubr.f32.gmra.mrb[0].mxu0 %v63
    %v3740 = vpop.f32.mrb[0].mxu0
    %v3741 = vadd.f32 %v3671, %v3740
    %v3742 = vpop.f32.mrb[0].mxu0
    %3743 = vdwg.mxu0
    %3744 = vmatprep.subr.mxu0 0.0
    %3745 = vmatpush1.msra.mxu0 %v853
    %3746 = vmatprep.subr.mxu0 0.0
    %3747 = vmatpush1.msra.mxu0 %v854
    %3748 = vmatprep.subr.mxu0 0.0
    %3749 = vmatpush1.msra.mxu0 %v855
    %3750 = vmatprep.subr.mxu0 0.0
    %3751 = vmatpush1.msra.mxu0 %v856
    %3752 = vmatprep.subr.mxu0 0.0
    %3753 = vmatpush1.msra.mxu0 %v857
    %3754 = vmatprep.subr.mxu0 0.0
    %3755 = vmatpush1.msra.mxu0 %v858
    %3756 = vmatprep.subr.mxu0 0.0
    %3757 = vmatpush1.msra.mxu0 %v859
    %3758 = vmatprep.subr.mxu0 0.0
    %3759 = vmatpush1.msra.mxu0 %v860
    %3760 = vmatprep.subr.mxu0 0.0
    %3761 = vmatpush1.msra.mxu0 %v861
    %3762 = vmatprep.subr.mxu0 0.0
    %3763 = vmatpush1.msra.mxu0 %v862
    %3764 = vmatprep.subr.mxu0 0.0
    %3765 = vmatpush1.msra.mxu0 %v863
    %3766 = vmatprep.subr.mxu0 0.0
    %3767 = vmatpush1.msra.mxu0 %v864
    %3768 = vmatprep.subr.mxu0 0.0
    %3769 = vmatpush1.msra.mxu0 %v865
    %3770 = vmatprep.subr.mxu0 0.0
    %3771 = vmatpush1.msra.mxu0 %v866
    %3772 = vmatprep.subr.mxu0 0.0
    %3773 = vmatpush1.msra.mxu0 %v867
    %3774 = vmatprep.subr.mxu0 0.0
    %3775 = vmatpush1.msra.mxu0 %v868
    %3776 = vmatprep.subr.mxu0 0.0
    %3777 = vmatpush1.msra.mxu0 %v869
    %3778 = vmatprep.subr.mxu0 0.0
    %3779 = vmatpush1.msra.mxu0 %v870
    %3780 = vmatprep.subr.mxu0 0.0
    %3781 = vmatpush1.msra.mxu0 %v871
    %3782 = vmatprep.subr.mxu0 0.0
    %3783 = vmatpush1.msra.mxu0 %v872
    %3784 = vmatprep.subr.mxu0 0.0
    %3785 = vmatpush1.msra.mxu0 %v873
    %3786 = vmatprep.subr.mxu0 0.0
    %3787 = vmatpush1.msra.mxu0 %v874
    %3788 = vmatprep.subr.mxu0 0.0
    %3789 = vmatpush1.msra.mxu0 %v875
    %3790 = vmatprep.subr.mxu0 0.0
    %3791 = vmatpush1.msra.mxu0 %v876
    %3792 = vmatprep.subr.mxu0 0.0
    %3793 = vmatpush1.msra.mxu0 %v877
    %3794 = vmatprep.subr.mxu0 0.0
    %3795 = vmatpush1.msra.mxu0 %v878
    %3796 = vmatprep.subr.mxu0 0.0
    %3797 = vmatpush1.msra.mxu0 %v879
    %3798 = vmatprep.subr.mxu0 0.0
    %3799 = vmatpush1.msra.mxu0 %v880
    %3800 = vmatprep.subr.mxu0 0.0
    %3801 = vmatpush1.msra.mxu0 %v881
    %3802 = vmatprep.subr.mxu0 0.0
    %3803 = vmatpush1.msra.mxu0 %v882
    %3804 = vmatprep.subr.mxu0 0.0
    %3805 = vmatpush1.msra.mxu0 %v883
    %3806 = vmatprep.subr.mxu0 0.0
    %3807 = vmatpush1.msra.mxu0 %v884
    %3808 = vmatprep.mubr.f32.mxu0 %v66
    %3809 = vmatmul.mubr.f32.gmra.mrb[0].mxu0 %v65
    %v3810 = vpop.f32.mrb[0].mxu0
    %v3811 = vadd.f32 %v3741, %v3810
    %v3812 = vpop.f32.mrb[0].mxu0
    %3813 = vdwg.mxu0
    %3814 = vmatprep.subr.mxu0 0.0
    %3815 = vmatpush1.msra.mxu0 %v885
    %3816 = vmatprep.subr.mxu0 0.0
    %3817 = vmatpush1.msra.mxu0 %v886
    %3818 = vmatprep.subr.mxu0 0.0
    %3819 = vmatpush1.msra.mxu0 %v887
    %3820 = vmatprep.subr.mxu0 0.0
    %3821 = vmatpush1.msra.mxu0 %v888
    %3822 = vmatprep.subr.mxu0 0.0
    %3823 = vmatpush1.msra.mxu0 %v889
    %3824 = vmatprep.subr.mxu0 0.0
    %3825 = vmatpush1.msra.mxu0 %v890
    %3826 = vmatprep.subr.mxu0 0.0
    %3827 = vmatpush1.msra.mxu0 %v891
    %3828 = vmatprep.subr.mxu0 0.0
    %3829 = vmatpush1.msra.mxu0 %v892
    %3830 = vmatprep.subr.mxu0 0.0
    %3831 = vmatpush1.msra.mxu0 %v893
    %3832 = vmatprep.subr.mxu0 0.0
    %3833 = vmatpush1.msra.mxu0 %v894
    %3834 = vmatprep.subr.mxu0 0.0
    %3835 = vmatpush1.msra.mxu0 %v895
    %3836 = vmatprep.subr.mxu0 0.0
    %3837 = vmatpush1.msra.mxu0 %v896
    %3838 = vmatprep.subr.mxu0 0.0
    %3839 = vmatpush1.msra.mxu0 %v897
    %3840 = vmatprep.subr.mxu0 0.0
    %3841 = vmatpush1.msra.mxu0 %v898
    %3842 = vmatprep.subr.mxu0 0.0
    %3843 = vmatpush1.msra.mxu0 %v899
    %3844 = vmatprep.subr.mxu0 0.0
    %3845 = vmatpush1.msra.mxu0 %v900
    %3846 = vmatprep.subr.mxu0 0.0
    %3847 = vmatpush1.msra.mxu0 %v901
    %3848 = vmatprep.subr.mxu0 0.0
    %3849 = vmatpush1.msra.mxu0 %v902
    %3850 = vmatprep.subr.mxu0 0.0
    %3851 = vmatpush1.msra.mxu0 %v903
    %3852 = vmatprep.subr.mxu0 0.0
    %3853 = vmatpush1.msra.mxu0 %v904
    %3854 = vmatprep.subr.mxu0 0.0
    %3855 = vmatpush1.msra.mxu0 %v905
    %3856 = vmatprep.subr.mxu0 0.0
    %3857 = vmatpush1.msra.mxu0 %v906
    %3858 = vmatprep.subr.mxu0 0.0
    %3859 = vmatpush1.msra.mxu0 %v907
    %3860 = vmatprep.subr.mxu0 0.0
    %3861 = vmatpush1.msra.mxu0 %v908
    %3862 = vmatprep.subr.mxu0 0.0
    %3863 = vmatpush1.msra.mxu0 %v909
    %3864 = vmatprep.subr.mxu0 0.0
    %3865 = vmatpush1.msra.mxu0 %v910
    %3866 = vmatprep.subr.mxu0 0.0
    %3867 = vmatpush1.msra.mxu0 %v911
    %3868 = vmatprep.subr.mxu0 0.0
    %3869 = vmatpush1.msra.mxu0 %v912
    %3870 = vmatprep.subr.mxu0 0.0
    %3871 = vmatpush1.msra.mxu0 %v913
    %3872 = vmatprep.subr.mxu0 0.0
    %3873 = vmatpush1.msra.mxu0 %v914
    %3874 = vmatprep.subr.mxu0 0.0
    %3875 = vmatpush1.msra.mxu0 %v915
    %3876 = vmatprep.subr.mxu0 0.0
    %3877 = vmatpush1.msra.mxu0 %v916
    %3878 = vmatprep.mubr.f32.mxu0 %v68
    %3879 = vmatmul.mubr.f32.gmra.mrb[0].mxu0 %v67
    %v3880 = vpop.f32.mrb[0].mxu0
    %v3881 = vadd.f32 %v3811, %v3880
    %v3882 = vpop.f32.mrb[0].mxu0
    %3883 = vdwg.mxu0
    %3884 = vmatprep.subr.mxu0 0.0
    %3885 = vmatpush1.msra.mxu0 %v917
    %3886 = vmatprep.subr.mxu0 0.0
    %3887 = vmatpush1.msra.mxu0 %v918
    %3888 = vmatprep.subr.mxu0 0.0
    %3889 = vmatpush1.msra.mxu0 %v919
    %3890 = vmatprep.subr.mxu0 0.0
    %3891 = vmatpush1.msra.mxu0 %v920
    %3892 = vmatprep.subr.mxu0 0.0
    %3893 = vmatpush1.msra.mxu0 %v921
    %3894 = vmatprep.subr.mxu0 0.0
    %3895 = vmatpush1.msra.mxu0 %v922
    %3896 = vmatprep.subr.mxu0 0.0
    %3897 = vmatpush1.msra.mxu0 %v923
    %3898 = vmatprep.subr.mxu0 0.0
    %3899 = vmatpush1.msra.mxu0 %v924
    %3900 = vmatprep.subr.mxu0 0.0
    %3901 = vmatpush1.msra.mxu0 %v925
    %3902 = vmatprep.subr.mxu0 0.0
    %3903 = vmatpush1.msra.mxu0 %v926
    %3904 = vmatprep.subr.mxu0 0.0
    %3905 = vmatpush1.msra.mxu0 %v927
    %3906 = vmatprep.subr.mxu0 0.0
    %3907 = vmatpush1.msra.mxu0 %v928
    %3908 = vmatprep.subr.mxu0 0.0
    %3909 = vmatpush1.msra.mxu0 %v929
    %3910 = vmatprep.subr.mxu0 0.0
    %3911 = vmatpush1.msra.mxu0 %v930
    %3912 = vmatprep.subr.mxu0 0.0
    %3913 = vmatpush1.msra.mxu0 %v931
    %3914 = vmatprep.subr.mxu0 0.0
    %3915 = vmatpush1.msra.mxu0 %v932
    %3916 = vmatprep.subr.mxu0 0.0
    %3917 = vmatpush1.msra.mxu0 %v933
    %3918 = vmatprep.subr.mxu0 0.0
    %3919 = vmatpush1.msra.mxu0 %v934
    %3920 = vmatprep.subr.mxu0 0.0
    %3921 = vmatpush1.msra.mxu0 %v935
    %3922 = vmatprep.subr.mxu0 0.0
    %3923 = vmatpush1.msra.mxu0 %v936
    %3924 = vmatprep.subr.mxu0 0.0
    %3925 = vmatpush1.msra.mxu0 %v937
    %3926 = vmatprep.subr.mxu0 0.0
    %3927 = vmatpush1.msra.mxu0 %v938
    %3928 = vmatprep.subr.mxu0 0.0
    %3929 = vmatpush1.msra.mxu0 %v939
    %3930 = vmatprep.subr.mxu0 0.0
    %3931 = vmatpush1.msra.mxu0 %v940
    %3932 = vmatprep.subr.mxu0 0.0
    %3933 = vmatpush1.msra.mxu0 %v941
    %3934 = vmatprep.subr.mxu0 0.0
    %3935 = vmatpush1.msra.mxu0 %v942
    %3936 = vmatprep.subr.mxu0 0.0
    %3937 = vmatpush1.msra.mxu0 %v943
    %3938 = vmatprep.subr.mxu0 0.0
    %3939 = vmatpush1.msra.mxu0 %v944
    %3940 = vmatprep.subr.mxu0 0.0
    %3941 = vmatpush1.msra.mxu0 %v945
    %3942 = vmatprep.subr.mxu0 0.0
    %3943 = vmatpush1.msra.mxu0 %v946
    %3944 = vmatprep.subr.mxu0 0.0
    %3945 = vmatpush1.msra.mxu0 %v947
    %3946 = vmatprep.subr.mxu0 0.0
    %3947 = vmatpush1.msra.mxu0 %v948
    %3948 = vmatprep.mubr.f32.mxu0 %v70
    %3949 = vmatmul.mubr.f32.gmra.mrb[0].mxu0 %v69
    %v3950 = vpop.f32.mrb[0].mxu0
    %v3951 = vadd.f32 %v3881, %v3950
    %v3952 = vpop.f32.mrb[0].mxu0
    %3953 = vdwg.mxu0
    %3954 = vmatprep.subr.mxu0 0.0
    %3955 = vmatpush1.msra.mxu0 %v949
    %3956 = vmatprep.subr.mxu0 0.0
    %3957 = vmatpush1.msra.mxu0 %v950
    %3958 = vmatprep.subr.mxu0 0.0
    %3959 = vmatpush1.msra.mxu0 %v951
    %3960 = vmatprep.subr.mxu0 0.0
    %3961 = vmatpush1.msra.mxu0 %v952
    %3962 = vmatprep.subr.mxu0 0.0
    %3963 = vmatpush1.msra.mxu0 %v953
    %3964 = vmatprep.subr.mxu0 0.0
    %3965 = vmatpush1.msra.mxu0 %v954
    %3966 = vmatprep.subr.mxu0 0.0
    %3967 = vmatpush1.msra.mxu0 %v955
    %3968 = vmatprep.subr.mxu0 0.0
    %3969 = vmatpush1.msra.mxu0 %v956
    %3970 = vmatprep.subr.mxu0 0.0
    %3971 = vmatpush1.msra.mxu0 %v957
    %3972 = vmatprep.subr.mxu0 0.0
    %3973 = vmatpush1.msra.mxu0 %v958
    %3974 = vmatprep.subr.mxu0 0.0
    %3975 = vmatpush1.msra.mxu0 %v959
    %3976 = vmatprep.subr.mxu0 0.0
    %3977 = vmatpush1.msra.mxu0 %v960
    %3978 = vmatprep.subr.mxu0 0.0
    %3979 = vmatpush1.msra.mxu0 %v961
    %3980 = vmatprep.subr.mxu0 0.0
    %3981 = vmatpush1.msra.mxu0 %v962
    %3982 = vmatprep.subr.mxu0 0.0
    %3983 = vmatpush1.msra.mxu0 %v963
    %3984 = vmatprep.subr.mxu0 0.0
    %3985 = vmatpush1.msra.mxu0 %v964
    %3986 = vmatprep.subr.mxu0 0.0
    %3987 = vmatpush1.msra.mxu0 %v965
    %3988 = vmatprep.subr.mxu0 0.0
    %3989 = vmatpush1.msra.mxu0 %v966
    %3990 = vmatprep.subr.mxu0 0.0
    %3991 = vmatpush1.msra.mxu0 %v967
    %3992 = vmatprep.subr.mxu0 0.0
    %3993 = vmatpush1.msra.mxu0 %v968
    %3994 = vmatprep.subr.mxu0 0.0
    %3995 = vmatpush1.msra.mxu0 %v969
    %3996 = vmatprep.subr.mxu0 0.0
    %3997 = vmatpush1.msra.mxu0 %v970
    %3998 = vmatprep.subr.mxu0 0.0
    %3999 = vmatpush1.msra.mxu0 %v971
    %4000 = vmatprep.subr.mxu0 0.0
    %4001 = vmatpush1.msra.mxu0 %v972
    %4002 = vmatprep.subr.mxu0 0.0
    %4003 = vmatpush1.msra.mxu0 %v973
    %4004 = vmatprep.subr.mxu0 0.0
    %4005 = vmatpush1.msra.mxu0 %v974
    %4006 = vmatprep.subr.mxu0 0.0
    %4007 = vmatpush1.msra.mxu0 %v975
    %4008 = vmatprep.subr.mxu0 0.0
    %4009 = vmatpush1.msra.mxu0 %v976
    %4010 = vmatprep.subr.mxu0 0.0
    %4011 = vmatpush1.msra.mxu0 %v977
    %4012 = vmatprep.subr.mxu0 0.0
    %4013 = vmatpush1.msra.mxu0 %v978
    %4014 = vmatprep.subr.mxu0 0.0
    %4015 = vmatpush1.msra.mxu0 %v979
    %4016 = vmatprep.subr.mxu0 0.0
    %4017 = vmatpush1.msra.mxu0 %v980
    %4018 = vmatprep.mubr.f32.mxu0 %v72
    %4019 = vmatmul.mubr.f32.gmra.mrb[0].mxu0 %v71
    %v4020 = vpop.f32.mrb[0].mxu0
    %v4021 = vadd.f32 %v3951, %v4020
    %v4022 = vpop.f32.mrb[0].mxu0
    %4023 = vdwg.mxu0
    %4024 = vmatprep.subr.mxu0 0.0
    %4025 = vmatpush1.msra.mxu0 %v981
    %4026 = vmatprep.subr.mxu0 0.0
    %4027 = vmatpush1.msra.mxu0 %v982
    %4028 = vmatprep.subr.mxu0 0.0
    %4029 = vmatpush1.msra.mxu0 %v983
    %4030 = vmatprep.subr.mxu0 0.0
    %4031 = vmatpush1.msra.mxu0 %v984
    %4032 = vmatprep.subr.mxu0 0.0
    %4033 = vmatpush1.msra.mxu0 %v985
    %4034 = vmatprep.subr.mxu0 0.0
    %4035 = vmatpush1.msra.mxu0 %v986
    %4036 = vmatprep.subr.mxu0 0.0
    %4037 = vmatpush1.msra.mxu0 %v987
    %4038 = vmatprep.subr.mxu0 0.0
    %4039 = vmatpush1.msra.mxu0 %v988
    %4040 = vmatprep.subr.mxu0 0.0
    %4041 = vmatpush1.msra.mxu0 %v989
    %4042 = vmatprep.subr.mxu0 0.0
    %4043 = vmatpush1.msra.mxu0 %v990
    %4044 = vmatprep.subr.mxu0 0.0
    %4045 = vmatpush1.msra.mxu0 %v991
    %4046 = vmatprep.subr.mxu0 0.0
    %4047 = vmatpush1.msra.mxu0 %v992
    %4048 = vmatprep.subr.mxu0 0.0
    %4049 = vmatpush1.msra.mxu0 %v993
    %4050 = vmatprep.subr.mxu0 0.0
    %4051 = vmatpush1.msra.mxu0 %v994
    %4052 = vmatprep.subr.mxu0 0.0
    %4053 = vmatpush1.msra.mxu0 %v995
    %4054 = vmatprep.subr.mxu0 0.0
    %4055 = vmatpush1.msra.mxu0 %v996
    %4056 = vmatprep.subr.mxu0 0.0
    %4057 = vmatpush1.msra.mxu0 %v997
    %4058 = vmatprep.subr.mxu0 0.0
    %4059 = vmatpush1.msra.mxu0 %v998
    %4060 = vmatprep.subr.mxu0 0.0
    %4061 = vmatpush1.msra.mxu0 %v999
    %4062 = vmatprep.subr.mxu0 0.0
    %4063 = vmatpush1.msra.mxu0 %v1000
    %4064 = vmatprep.subr.mxu0 0.0
    %4065 = vmatpush1.msra.mxu0 %v1001
    %4066 = vmatprep.subr.mxu0 0.0
    %4067 = vmatpush1.msra.mxu0 %v1002
    %4068 = vmatprep.subr.mxu0 0.0
    %4069 = vmatpush1.msra.mxu0 %v1003
    %4070 = vmatprep.subr.mxu0 0.0
    %4071 = vmatpush1.msra.mxu0 %v1004
    %4072 = vmatprep.subr.mxu0 0.0
    %4073 = vmatpush1.msra.mxu0 %v1005
    %4074 = vmatprep.subr.mxu0 0.0
    %4075 = vmatpush1.msra.mxu0 %v1006
    %4076 = vmatprep.subr.mxu0 0.0
    %4077 = vmatpush1.msra.mxu0 %v1007
    %4078 = vmatprep.subr.mxu0 0.0
    %4079 = vmatpush1.msra.mxu0 %v1008
    %4080 = vmatprep.subr.mxu0 0.0
    %4081 = vmatpush1.msra.mxu0 %v1009
    %4082 = vmatprep.subr.mxu0 0.0
    %4083 = vmatpush1.msra.mxu0 %v1010
    %4084 = vmatprep.subr.mxu0 0.0
    %4085 = vmatpush1.msra.mxu0 %v1011
    %4086 = vmatprep.subr.mxu0 0.0
    %4087 = vmatpush1.msra.mxu0 %v1012
    %4088 = vmatprep.mubr.f32.mxu0 %v74
    %4089 = vmatmul.mubr.f32.gmra.mrb[0].mxu0 %v73
    %v4090 = vpop.f32.mrb[0].mxu0
    %v4091 = vadd.f32 %v4021, %v4090
    %v4092 = vpop.f32.mrb[0].mxu0
    %4093 = vdwg.mxu0
    %4094 = vmatprep.subr.mxu0 0.0
    %4095 = vmatpush1.msra.mxu0 %v1013
    %4096 = vmatprep.subr.mxu0 0.0
    %4097 = vmatpush1.msra.mxu0 %v1014
    %4098 = vmatprep.subr.mxu0 0.0
    %4099 = vmatpush1.msra.mxu0 %v1015
    %4100 = vmatprep.subr.mxu0 0.0
    %4101 = vmatpush1.msra.mxu0 %v1016
    %4102 = vmatprep.subr.mxu0 0.0
    %4103 = vmatpush1.msra.mxu0 %v1017
    %4104 = vmatprep.subr.mxu0 0.0
    %4105 = vmatpush1.msra.mxu0 %v1018
    %4106 = vmatprep.subr.mxu0 0.0
    %4107 = vmatpush1.msra.mxu0 %v1019
    %4108 = vmatprep.subr.mxu0 0.0
    %4109 = vmatpush1.msra.mxu0 %v1020
    %4110 = vmatprep.subr.mxu0 0.0
    %4111 = vmatpush1.msra.mxu0 %v1021
    %4112 = vmatprep.subr.mxu0 0.0
    %4113 = vmatpush1.msra.mxu0 %v1022
    %4114 = vmatprep.subr.mxu0 0.0
    %4115 = vmatpush1.msra.mxu0 %v1023
    %4116 = vmatprep.subr.mxu0 0.0
    %4117 = vmatpush1.msra.mxu0 %v1024
    %4118 = vmatprep.subr.mxu0 0.0
    %4119 = vmatpush1.msra.mxu0 %v1025
    %4120 = vmatprep.subr.mxu0 0.0
    %4121 = vmatpush1.msra.mxu0 %v1026
    %4122 = vmatprep.subr.mxu0 0.0
    %4123 = vmatpush1.msra.mxu0 %v1027
    %4124 = vmatprep.subr.mxu0 0.0
    %4125 = vmatpush1.msra.mxu0 %v1028
    %4126 = vmatprep.subr.mxu0 0.0
    %4127 = vmatpush1.msra.mxu0 %v1029
    %4128 = vmatprep.subr.mxu0 0.0
    %4129 = vmatpush1.msra.mxu0 %v1030
    %4130 = vmatprep.subr.mxu0 0.0
    %4131 = vmatpush1.msra.mxu0 %v1031
    %4132 = vmatprep.subr.mxu0 0.0
    %4133 = vmatpush1.msra.mxu0 %v1032
    %4134 = vmatprep.subr.mxu0 0.0
    %4135 = vmatpush1.msra.mxu0 %v1033
    %4136 = vmatprep.subr.mxu0 0.0
    %4137 = vmatpush1.msra.mxu0 %v1034
    %4138 = vmatprep.subr.mxu0 0.0
    %4139 = vmatpush1.msra.mxu0 %v1035
    %4140 = vmatprep.subr.mxu0 0.0
    %4141 = vmatpush1.msra.mxu0 %v1036
    %4142 = vmatprep.subr.mxu0 0.0
    %4143 = vmatpush1.msra.mxu0 %v1037
    %4144 = vmatprep.subr.mxu0 0.0
    %4145 = vmatpush1.msra.mxu0 %v1038
    %4146 = vmatprep.subr.mxu0 0.0
    %4147 = vmatpush1.msra.mxu0 %v1039
    %4148 = vmatprep.subr.mxu0 0.0
    %4149 = vmatpush1.msra.mxu0 %v1040
    %4150 = vmatprep.subr.mxu0 0.0
    %4151 = vmatpush1.msra.mxu0 %v1041
    %4152 = vmatprep.subr.mxu0 0.0
    %4153 = vmatpush1.msra.mxu0 %v1042
    %4154 = vmatprep.subr.mxu0 0.0
    %4155 = vmatpush1.msra.mxu0 %v1043
    %4156 = vmatprep.subr.mxu0 0.0
    %4157 = vmatpush1.msra.mxu0 %v1044
    %4158 = vmatprep.mubr.f32.mxu0 %v76
    %4159 = vmatmul.mubr.f32.gmra.mrb[0].mxu0 %v75
    %v4160 = vpop.f32.mrb[0].mxu0
    %v4161 = vadd.f32 %v4091, %v4160
    %v4162 = vpop.f32.mrb[0].mxu0
    %4163 = vdwg.mxu0
    %4164 = vmatprep.subr.mxu0 0.0
    %4165 = vmatpush1.msra.mxu0 %v1045
    %4166 = vmatprep.subr.mxu0 0.0
    %4167 = vmatpush1.msra.mxu0 %v1046
    %4168 = vmatprep.subr.mxu0 0.0
    %4169 = vmatpush1.msra.mxu0 %v1047
    %4170 = vmatprep.subr.mxu0 0.0
    %4171 = vmatpush1.msra.mxu0 %v1048
    %4172 = vmatprep.subr.mxu0 0.0
    %4173 = vmatpush1.msra.mxu0 %v1049
    %4174 = vmatprep.subr.mxu0 0.0
    %4175 = vmatpush1.msra.mxu0 %v1050
    %4176 = vmatprep.subr.mxu0 0.0
    %4177 = vmatpush1.msra.mxu0 %v1051
    %4178 = vmatprep.subr.mxu0 0.0
    %4179 = vmatpush1.msra.mxu0 %v1052
    %4180 = vmatprep.subr.mxu0 0.0
    %4181 = vmatpush1.msra.mxu0 %v1053
    %4182 = vmatprep.subr.mxu0 0.0
    %4183 = vmatpush1.msra.mxu0 %v1054
    %4184 = vmatprep.subr.mxu0 0.0
    %4185 = vmatpush1.msra.mxu0 %v1055
    %4186 = vmatprep.subr.mxu0 0.0
    %4187 = vmatpush1.msra.mxu0 %v1056
    %4188 = vmatprep.subr.mxu0 0.0
    %4189 = vmatpush1.msra.mxu0 %v1057
    %4190 = vmatprep.subr.mxu0 0.0
    %4191 = vmatpush1.msra.mxu0 %v1058
    %4192 = vmatprep.subr.mxu0 0.0
    %4193 = vmatpush1.msra.mxu0 %v1059
    %4194 = vmatprep.subr.mxu0 0.0
    %4195 = vmatpush1.msra.mxu0 %v1060
    %4196 = vmatprep.subr.mxu0 0.0
    %4197 = vmatpush1.msra.mxu0 %v1061
    %4198 = vmatprep.subr.mxu0 0.0
    %4199 = vmatpush1.msra.mxu0 %v1062
    %4200 = vmatprep.subr.mxu0 0.0
    %4201 = vmatpush1.msra.mxu0 %v1063
    %4202 = vmatprep.subr.mxu0 0.0
    %4203 = vmatpush1.msra.mxu0 %v1064
    %4204 = vmatprep.subr.mxu0 0.0
    %4205 = vmatpush1.msra.mxu0 %v1065
    %4206 = vmatprep.subr.mxu0 0.0
    %4207 = vmatpush1.msra.mxu0 %v1066
    %4208 = vmatprep.subr.mxu0 0.0
    %4209 = vmatpush1.msra.mxu0 %v1067
    %4210 = vmatprep.subr.mxu0 0.0
    %4211 = vmatpush1.msra.mxu0 %v1068
    %4212 = vmatprep.subr.mxu0 0.0
    %4213 = vmatpush1.msra.mxu0 %v1069
    %4214 = vmatprep.subr.mxu0 0.0
    %4215 = vmatpush1.msra.mxu0 %v1070
    %4216 = vmatprep.subr.mxu0 0.0
    %4217 = vmatpush1.msra.mxu0 %v1071
    %4218 = vmatprep.subr.mxu0 0.0
    %4219 = vmatpush1.msra.mxu0 %v1072
    %4220 = vmatprep.subr.mxu0 0.0
    %4221 = vmatpush1.msra.mxu0 %v1073
    %4222 = vmatprep.subr.mxu0 0.0
    %4223 = vmatpush1.msra.mxu0 %v1074
    %4224 = vmatprep.subr.mxu0 0.0
    %4225 = vmatpush1.msra.mxu0 %v1075
    %4226 = vmatprep.subr.mxu0 0.0
    %4227 = vmatpush1.msra.mxu0 %v1076
    %4228 = vmatprep.mubr.f32.mxu0 %v78
    %4229 = vmatmul.mubr.f32.gmra.mrb[0].mxu0 %v77
    %v4230 = vpop.f32.mrb[0].mxu0
    %v4231 = vadd.f32 %v4161, %v4230
    %v4232 = vpop.f32.mrb[0].mxu0
    %4233 = vdwg.mxu0
    %4234 = vmatprep.subr.mxu0 0.0
    %4235 = vmatpush1.msra.mxu0 %v1077
    %4236 = vmatprep.subr.mxu0 0.0
    %4237 = vmatpush1.msra.mxu0 %v1078
    %4238 = vmatprep.subr.mxu0 0.0
    %4239 = vmatpush1.msra.mxu0 %v1079
    %4240 = vmatprep.subr.mxu0 0.0
    %4241 = vmatpush1.msra.mxu0 %v1080
    %4242 = vmatprep.subr.mxu0 0.0
    %4243 = vmatpush1.msra.mxu0 %v1081
    %4244 = vmatprep.subr.mxu0 0.0
    %4245 = vmatpush1.msra.mxu0 %v1082
    %4246 = vmatprep.subr.mxu0 0.0
    %4247 = vmatpush1.msra.mxu0 %v1083
    %4248 = vmatprep.subr.mxu0 0.0
    %4249 = vmatpush1.msra.mxu0 %v1084
    %4250 = vmatprep.subr.mxu0 0.0
    %4251 = vmatpush1.msra.mxu0 %v1085
    %4252 = vmatprep.subr.mxu0 0.0
    %4253 = vmatpush1.msra.mxu0 %v1086
    %4254 = vmatprep.subr.mxu0 0.0
    %4255 = vmatpush1.msra.mxu0 %v1087
    %4256 = vmatprep.subr.mxu0 0.0
    %4257 = vmatpush1.msra.mxu0 %v1088
    %4258 = vmatprep.subr.mxu0 0.0
    %4259 = vmatpush1.msra.mxu0 %v1089
    %4260 = vmatprep.subr.mxu0 0.0
    %4261 = vmatpush1.msra.mxu0 %v1090
    %4262 = vmatprep.subr.mxu0 0.0
    %4263 = vmatpush1.msra.mxu0 %v1091
    %4264 = vmatprep.subr.mxu0 0.0
    %4265 = vmatpush1.msra.mxu0 %v1092
    %4266 = vmatprep.subr.mxu0 0.0
    %4267 = vmatpush1.msra.mxu0 %v1093
    %4268 = vmatprep.subr.mxu0 0.0
    %4269 = vmatpush1.msra.mxu0 %v1094
    %4270 = vmatprep.subr.mxu0 0.0
    %4271 = vmatpush1.msra.mxu0 %v1095
    %4272 = vmatprep.subr.mxu0 0.0
    %4273 = vmatpush1.msra.mxu0 %v1096
    %4274 = vmatprep.subr.mxu0 0.0
    %4275 = vmatpush1.msra.mxu0 %v1097
    %4276 = vmatprep.subr.mxu0 0.0
    %4277 = vmatpush1.msra.mxu0 %v1098
    %4278 = vmatprep.subr.mxu0 0.0
    %4279 = vmatpush1.msra.mxu0 %v1099
    %4280 = vmatprep.subr.mxu0 0.0
    %4281 = vmatpush1.msra.mxu0 %v1100
    %4282 = vmatprep.subr.mxu0 0.0
    %4283 = vmatpush1.msra.mxu0 %v1101
    %4284 = vmatprep.subr.mxu0 0.0
    %4285 = vmatpush1.msra.mxu0 %v1102
    %4286 = vmatprep.subr.mxu0 0.0
    %4287 = vmatpush1.msra.mxu0 %v1103
    %4288 = vmatprep.subr.mxu0 0.0
    %4289 = vmatpush1.msra.mxu0 %v1104
    %4290 = vmatprep.subr.mxu0 0.0
    %4291 = vmatpush1.msra.mxu0 %v1105
    %4292 = vmatprep.subr.mxu0 0.0
    %4293 = vmatpush1.msra.mxu0 %v1106
    %4294 = vmatprep.subr.mxu0 0.0
    %4295 = vmatpush1.msra.mxu0 %v1107
    %4296 = vmatprep.subr.mxu0 0.0
    %4297 = vmatpush1.msra.mxu0 %v1108
    %4298 = vmatprep.mubr.f32.mxu0 %v80
    %4299 = vmatmul.mubr.f32.gmra.mrb[0].mxu0 %v79
    %v4300 = vpop.f32.mrb[0].mxu0
    %v4301 = vadd.f32 %v4231, %v4300
    %v4302 = vpop.f32.mrb[0].mxu0
    %4303 = vdwg.mxu0
    %4304 = vmatprep.subr.mxu0 0.0
    %4305 = vmatpush1.msra.mxu0 %v1109
    %4306 = vmatprep.subr.mxu0 0.0
    %4307 = vmatpush1.msra.mxu0 %v1110
    %4308 = vmatprep.subr.mxu0 0.0
    %4309 = vmatpush1.msra.mxu0 %v1111
    %4310 = vmatprep.subr.mxu0 0.0
    %4311 = vmatpush1.msra.mxu0 %v1112
    %4312 = vmatprep.subr.mxu0 0.0
    %4313 = vmatpush1.msra.mxu0 %v1113
    %4314 = vmatprep.subr.mxu0 0.0
    %4315 = vmatpush1.msra.mxu0 %v1114
    %4316 = vmatprep.subr.mxu0 0.0
    %4317 = vmatpush1.msra.mxu0 %v1115
    %4318 = vmatprep.subr.mxu0 0.0
    %4319 = vmatpush1.msra.mxu0 %v1116
    %4320 = vmatprep.subr.mxu0 0.0
    %4321 = vmatpush1.msra.mxu0 %v1117
    %4322 = vmatprep.subr.mxu0 0.0
    %4323 = vmatpush1.msra.mxu0 %v1118
    %4324 = vmatprep.subr.mxu0 0.0
    %4325 = vmatpush1.msra.mxu0 %v1119
    %4326 = vmatprep.subr.mxu0 0.0
    %4327 = vmatpush1.msra.mxu0 %v1120
    %4328 = vmatprep.subr.mxu0 0.0
    %4329 = vmatpush1.msra.mxu0 %v1121
    %4330 = vmatprep.subr.mxu0 0.0
    %4331 = vmatpush1.msra.mxu0 %v1122
    %4332 = vmatprep.subr.mxu0 0.0
    %4333 = vmatpush1.msra.mxu0 %v1123
    %4334 = vmatprep.subr.mxu0 0.0
    %4335 = vmatpush1.msra.mxu0 %v1124
    %4336 = vmatprep.subr.mxu0 0.0
    %4337 = vmatpush1.msra.mxu0 %v1125
    %4338 = vmatprep.subr.mxu0 0.0
    %4339 = vmatpush1.msra.mxu0 %v1126
    %4340 = vmatprep.subr.mxu0 0.0
    %4341 = vmatpush1.msra.mxu0 %v1127
    %4342 = vmatprep.subr.mxu0 0.0
    %4343 = vmatpush1.msra.mxu0 %v1128
    %4344 = vmatprep.subr.mxu0 0.0
    %4345 = vmatpush1.msra.mxu0 %v1129
    %4346 = vmatprep.subr.mxu0 0.0
    %4347 = vmatpush1.msra.mxu0 %v1130
    %4348 = vmatprep.subr.mxu0 0.0
    %4349 = vmatpush1.msra.mxu0 %v1131
    %4350 = vmatprep.subr.mxu0 0.0
    %4351 = vmatpush1.msra.mxu0 %v1132
    %4352 = vmatprep.subr.mxu0 0.0
    %4353 = vmatpush1.msra.mxu0 %v1133
    %4354 = vmatprep.subr.mxu0 0.0
    %4355 = vmatpush1.msra.mxu0 %v1134
    %4356 = vmatprep.subr.mxu0 0.0
    %4357 = vmatpush1.msra.mxu0 %v1135
    %4358 = vmatprep.subr.mxu0 0.0
    %4359 = vmatpush1.msra.mxu0 %v1136
    %4360 = vmatprep.subr.mxu0 0.0
    %4361 = vmatpush1.msra.mxu0 %v1137
    %4362 = vmatprep.subr.mxu0 0.0
    %4363 = vmatpush1.msra.mxu0 %v1138
    %4364 = vmatprep.subr.mxu0 0.0
    %4365 = vmatpush1.msra.mxu0 %v1139
    %4366 = vmatprep.subr.mxu0 0.0
    %4367 = vmatpush1.msra.mxu0 %v1140
    %4368 = vmatprep.mubr.f32.mxu0 %v82
    %4369 = vmatmul.mubr.f32.gmra.mrb[0].mxu0 %v81
    %v4370 = vpop.f32.mrb[0].mxu0
    %v4371 = vadd.f32 %v4301, %v4370
    %v4372 = vpop.f32.mrb[0].mxu0
    %4373 = vdwg.mxu0
    %4374 = vmatprep.subr.mxu0 0.0
    %4375 = vmatpush1.msra.mxu0 %v1141
    %4376 = vmatprep.subr.mxu0 0.0
    %4377 = vmatpush1.msra.mxu0 %v1142
    %4378 = vmatprep.subr.mxu0 0.0
    %4379 = vmatpush1.msra.mxu0 %v1143
    %4380 = vmatprep.subr.mxu0 0.0
    %4381 = vmatpush1.msra.mxu0 %v1144
    %4382 = vmatprep.subr.mxu0 0.0
    %4383 = vmatpush1.msra.mxu0 %v1145
    %4384 = vmatprep.subr.mxu0 0.0
    %4385 = vmatpush1.msra.mxu0 %v1146
    %4386 = vmatprep.subr.mxu0 0.0
    %4387 = vmatpush1.msra.mxu0 %v1147
    %4388 = vmatprep.subr.mxu0 0.0
    %4389 = vmatpush1.msra.mxu0 %v1148
    %4390 = vmatprep.subr.mxu0 0.0
    %4391 = vmatpush1.msra.mxu0 %v1149
    %4392 = vmatprep.subr.mxu0 0.0
    %4393 = vmatpush1.msra.mxu0 %v1150
    %4394 = vmatprep.subr.mxu0 0.0
    %4395 = vmatpush1.msra.mxu0 %v1151
    %4396 = vmatprep.subr.mxu0 0.0
    %4397 = vmatpush1.msra.mxu0 %v1152
    %4398 = vmatprep.subr.mxu0 0.0
    %4399 = vmatpush1.msra.mxu0 %v1153
    %4400 = vmatprep.subr.mxu0 0.0
    %4401 = vmatpush1.msra.mxu0 %v1154
    %4402 = vmatprep.subr.mxu0 0.0
    %4403 = vmatpush1.msra.mxu0 %v1155
    %4404 = vmatprep.subr.mxu0 0.0
    %4405 = vmatpush1.msra.mxu0 %v1156
    %4406 = vmatprep.subr.mxu0 0.0
    %4407 = vmatpush1.msra.mxu0 %v1157
    %4408 = vmatprep.subr.mxu0 0.0
    %4409 = vmatpush1.msra.mxu0 %v1158
    %4410 = vmatprep.subr.mxu0 0.0
    %4411 = vmatpush1.msra.mxu0 %v1159
    %4412 = vmatprep.subr.mxu0 0.0
    %4413 = vmatpush1.msra.mxu0 %v1160
    %4414 = vmatprep.subr.mxu0 0.0
    %4415 = vmatpush1.msra.mxu0 %v1161
    %4416 = vmatprep.subr.mxu0 0.0
    %4417 = vmatpush1.msra.mxu0 %v1162
    %4418 = vmatprep.subr.mxu0 0.0
    %4419 = vmatpush1.msra.mxu0 %v1163
    %4420 = vmatprep.subr.mxu0 0.0
    %4421 = vmatpush1.msra.mxu0 %v1164
    %4422 = vmatprep.subr.mxu0 0.0
    %4423 = vmatpush1.msra.mxu0 %v1165
    %4424 = vmatprep.subr.mxu0 0.0
    %4425 = vmatpush1.msra.mxu0 %v1166
    %4426 = vmatprep.subr.mxu0 0.0
    %4427 = vmatpush1.msra.mxu0 %v1167
    %4428 = vmatprep.subr.mxu0 0.0
    %4429 = vmatpush1.msra.mxu0 %v1168
    %4430 = vmatprep.subr.mxu0 0.0
    %4431 = vmatpush1.msra.mxu0 %v1169
    %4432 = vmatprep.subr.mxu0 0.0
    %4433 = vmatpush1.msra.mxu0 %v1170
    %4434 = vmatprep.subr.mxu0 0.0
    %4435 = vmatpush1.msra.mxu0 %v1171
    %4436 = vmatprep.subr.mxu0 0.0
    %4437 = vmatpush1.msra.mxu0 %v1172
    %4438 = vmatprep.mubr.f32.mxu0 %v84
    %4439 = vmatmul.mubr.f32.gmra.mrb[0].mxu0 %v83
    %v4440 = vpop.f32.mrb[0].mxu0
    %v4441 = vadd.f32 %v4371, %v4440
    %v4442 = vpop.f32.mrb[0].mxu0
    %4443 = vdwg.mxu0
    %4444 = vmatprep.subr.mxu0 0.0
    %4445 = vmatpush1.msra.mxu0 %v1173
    %4446 = vmatprep.subr.mxu0 0.0
    %4447 = vmatpush1.msra.mxu0 %v1174
    %4448 = vmatprep.subr.mxu0 0.0
    %4449 = vmatpush1.msra.mxu0 %v1175
    %4450 = vmatprep.subr.mxu0 0.0
    %4451 = vmatpush1.msra.mxu0 %v1176
    %4452 = vmatprep.subr.mxu0 0.0
    %4453 = vmatpush1.msra.mxu0 %v1177
    %4454 = vmatprep.subr.mxu0 0.0
    %4455 = vmatpush1.msra.mxu0 %v1178
    %4456 = vmatprep.subr.mxu0 0.0
    %4457 = vmatpush1.msra.mxu0 %v1179
    %4458 = vmatprep.subr.mxu0 0.0
    %4459 = vmatpush1.msra.mxu0 %v1180
    %4460 = vmatprep.subr.mxu0 0.0
    %4461 = vmatpush1.msra.mxu0 %v1181
    %4462 = vmatprep.subr.mxu0 0.0
    %4463 = vmatpush1.msra.mxu0 %v1182
    %4464 = vmatprep.subr.mxu0 0.0
    %4465 = vmatpush1.msra.mxu0 %v1183
    %4466 = vmatprep.subr.mxu0 0.0
    %4467 = vmatpush1.msra.mxu0 %v1184
    %4468 = vmatprep.subr.mxu0 0.0
    %4469 = vmatpush1.msra.mxu0 %v1185
    %4470 = vmatprep.subr.mxu0 0.0
    %4471 = vmatpush1.msra.mxu0 %v1186
    %4472 = vmatprep.subr.mxu0 0.0
    %4473 = vmatpush1.msra.mxu0 %v1187
    %4474 = vmatprep.subr.mxu0 0.0
    %4475 = vmatpush1.msra.mxu0 %v1188
    %4476 = vmatprep.subr.mxu0 0.0
    %4477 = vmatpush1.msra.mxu0 %v1189
    %4478 = vmatprep.subr.mxu0 0.0
    %4479 = vmatpush1.msra.mxu0 %v1190
    %4480 = vmatprep.subr.mxu0 0.0
    %4481 = vmatpush1.msra.mxu0 %v1191
    %4482 = vmatprep.subr.mxu0 0.0
    %4483 = vmatpush1.msra.mxu0 %v1192
    %4484 = vmatprep.subr.mxu0 0.0
    %4485 = vmatpush1.msra.mxu0 %v1193
    %4486 = vmatprep.subr.mxu0 0.0
    %4487 = vmatpush1.msra.mxu0 %v1194
    %4488 = vmatprep.subr.mxu0 0.0
    %4489 = vmatpush1.msra.mxu0 %v1195
    %4490 = vmatprep.subr.mxu0 0.0
    %4491 = vmatpush1.msra.mxu0 %v1196
    %4492 = vmatprep.subr.mxu0 0.0
    %4493 = vmatpush1.msra.mxu0 %v1197
    %4494 = vmatprep.subr.mxu0 0.0
    %4495 = vmatpush1.msra.mxu0 %v1198
    %4496 = vmatprep.subr.mxu0 0.0
    %4497 = vmatpush1.msra.mxu0 %v1199
    %4498 = vmatprep.subr.mxu0 0.0
    %4499 = vmatpush1.msra.mxu0 %v1200
    %4500 = vmatprep.subr.mxu0 0.0
    %4501 = vmatpush1.msra.mxu0 %v1201
    %4502 = vmatprep.subr.mxu0 0.0
    %4503 = vmatpush1.msra.mxu0 %v1202
    %4504 = vmatprep.subr.mxu0 0.0
    %4505 = vmatpush1.msra.mxu0 %v1203
    %4506 = vmatprep.subr.mxu0 0.0
    %4507 = vmatpush1.msra.mxu0 %v1204
    %4508 = vmatprep.mubr.f32.mxu0 %v86
    %4509 = vmatmul.mubr.f32.gmra.mrb[0].mxu0 %v85
    %v4510 = vpop.f32.mrb[0].mxu0
    %v4511 = vadd.f32 %v4441, %v4510
    %v4512 = vpop.f32.mrb[0].mxu0
    %4513 = vdwg.mxu0
    %4514 = vmatprep.subr.mxu0 0.0
    %4515 = vmatpush1.msra.mxu0 %v1205
    %4516 = vmatprep.subr.mxu0 0.0
    %4517 = vmatpush1.msra.mxu0 %v1206
    %4518 = vmatprep.subr.mxu0 0.0
    %4519 = vmatpush1.msra.mxu0 %v1207
    %4520 = vmatprep.subr.mxu0 0.0
    %4521 = vmatpush1.msra.mxu0 %v1208
    %4522 = vmatprep.subr.mxu0 0.0
    %4523 = vmatpush1.msra.mxu0 %v1209
    %4524 = vmatprep.subr.mxu0 0.0
    %4525 = vmatpush1.msra.mxu0 %v1210
    %4526 = vmatprep.subr.mxu0 0.0
    %4527 = vmatpush1.msra.mxu0 %v1211
    %4528 = vmatprep.subr.mxu0 0.0
    %4529 = vmatpush1.msra.mxu0 %v1212
    %4530 = vmatprep.subr.mxu0 0.0
    %4531 = vmatpush1.msra.mxu0 %v1213
    %4532 = vmatprep.subr.mxu0 0.0
    %4533 = vmatpush1.msra.mxu0 %v1214
    %4534 = vmatprep.subr.mxu0 0.0
    %4535 = vmatpush1.msra.mxu0 %v1215
    %4536 = vmatprep.subr.mxu0 0.0
    %4537 = vmatpush1.msra.mxu0 %v1216
    %4538 = vmatprep.subr.mxu0 0.0
    %4539 = vmatpush1.msra.mxu0 %v1217
    %4540 = vmatprep.subr.mxu0 0.0
    %4541 = vmatpush1.msra.mxu0 %v1218
    %4542 = vmatprep.subr.mxu0 0.0
    %4543 = vmatpush1.msra.mxu0 %v1219
    %4544 = vmatprep.subr.mxu0 0.0
    %4545 = vmatpush1.msra.mxu0 %v1220
    %4546 = vmatprep.subr.mxu0 0.0
    %4547 = vmatpush1.msra.mxu0 %v1221
    %4548 = vmatprep.subr.mxu0 0.0
    %4549 = vmatpush1.msra.mxu0 %v1222
    %4550 = vmatprep.subr.mxu0 0.0
    %4551 = vmatpush1.msra.mxu0 %v1223
    %4552 = vmatprep.subr.mxu0 0.0
    %4553 = vmatpush1.msra.mxu0 %v1224
    %4554 = vmatprep.subr.mxu0 0.0
    %4555 = vmatpush1.msra.mxu0 %v1225
    %4556 = vmatprep.subr.mxu0 0.0
    %4557 = vmatpush1.msra.mxu0 %v1226
    %4558 = vmatprep.subr.mxu0 0.0
    %4559 = vmatpush1.msra.mxu0 %v1227
    %4560 = vmatprep.subr.mxu0 0.0
    %4561 = vmatpush1.msra.mxu0 %v1228
    %4562 = vmatprep.subr.mxu0 0.0
    %4563 = vmatpush1.msra.mxu0 %v1229
    %4564 = vmatprep.subr.mxu0 0.0
    %4565 = vmatpush1.msra.mxu0 %v1230
    %4566 = vmatprep.subr.mxu0 0.0
    %4567 = vmatpush1.msra.mxu0 %v1231
    %4568 = vmatprep.subr.mxu0 0.0
    %4569 = vmatpush1.msra.mxu0 %v1232
    %4570 = vmatprep.subr.mxu0 0.0
    %4571 = vmatpush1.msra.mxu0 %v1233
    %4572 = vmatprep.subr.mxu0 0.0
    %4573 = vmatpush1.msra.mxu0 %v1234
    %4574 = vmatprep.subr.mxu0 0.0
    %4575 = vmatpush1.msra.mxu0 %v1235
    %4576 = vmatprep.subr.mxu0 0.0
    %4577 = vmatpush1.msra.mxu0 %v1236
    %4578 = vmatprep.mubr.f32.mxu0 %v88
    %4579 = vmatmul.mubr.f32.gmra.mrb[0].mxu0 %v87
    %v4580 = vpop.f32.mrb[0].mxu0
    %v4581 = vadd.f32 %v4511, %v4580
    %v4582 = vpop.f32.mrb[0].mxu0
    %4583 = vdwg.mxu0
    %4584 = vmatprep.subr.mxu0 0.0
    %4585 = vmatpush1.msra.mxu0 %v1237
    %4586 = vmatprep.subr.mxu0 0.0
    %4587 = vmatpush1.msra.mxu0 %v1238
    %4588 = vmatprep.subr.mxu0 0.0
    %4589 = vmatpush1.msra.mxu0 %v1239
    %4590 = vmatprep.subr.mxu0 0.0
    %4591 = vmatpush1.msra.mxu0 %v1240
    %4592 = vmatprep.subr.mxu0 0.0
    %4593 = vmatpush1.msra.mxu0 %v1241
    %4594 = vmatprep.subr.mxu0 0.0
    %4595 = vmatpush1.msra.mxu0 %v1242
    %4596 = vmatprep.subr.mxu0 0.0
    %4597 = vmatpush1.msra.mxu0 %v1243
    %4598 = vmatprep.subr.mxu0 0.0
    %4599 = vmatpush1.msra.mxu0 %v1244
    %4600 = vmatprep.subr.mxu0 0.0
    %4601 = vmatpush1.msra.mxu0 %v1245
    %4602 = vmatprep.subr.mxu0 0.0
    %4603 = vmatpush1.msra.mxu0 %v1246
    %4604 = vmatprep.subr.mxu0 0.0
    %4605 = vmatpush1.msra.mxu0 %v1247
    %4606 = vmatprep.subr.mxu0 0.0
    %4607 = vmatpush1.msra.mxu0 %v1248
    %4608 = vmatprep.subr.mxu0 0.0
    %4609 = vmatpush1.msra.mxu0 %v1249
    %4610 = vmatprep.subr.mxu0 0.0
    %4611 = vmatpush1.msra.mxu0 %v1250
    %4612 = vmatprep.subr.mxu0 0.0
    %4613 = vmatpush1.msra.mxu0 %v1251
    %4614 = vmatprep.subr.mxu0 0.0
    %4615 = vmatpush1.msra.mxu0 %v1252
    %4616 = vmatprep.subr.mxu0 0.0
    %4617 = vmatpush1.msra.mxu0 %v1253
    %4618 = vmatprep.subr.mxu0 0.0
    %4619 = vmatpush1.msra.mxu0 %v1254
    %4620 = vmatprep.subr.mxu0 0.0
    %4621 = vmatpush1.msra.mxu0 %v1255
    %4622 = vmatprep.subr.mxu0 0.0
    %4623 = vmatpush1.msra.mxu0 %v1256
    %4624 = vmatprep.subr.mxu0 0.0
    %4625 = vmatpush1.msra.mxu0 %v1257
    %4626 = vmatprep.subr.mxu0 0.0
    %4627 = vmatpush1.msra.mxu0 %v1258
    %4628 = vmatprep.subr.mxu0 0.0
    %4629 = vmatpush1.msra.mxu0 %v1259
    %4630 = vmatprep.subr.mxu0 0.0
    %4631 = vmatpush1.msra.mxu0 %v1260
    %4632 = vmatprep.subr.mxu0 0.0
    %4633 = vmatpush1.msra.mxu0 %v1261
    %4634 = vmatprep.subr.mxu0 0.0
    %4635 = vmatpush1.msra.mxu0 %v1262
    %4636 = vmatprep.subr.mxu0 0.0
    %4637 = vmatpush1.msra.mxu0 %v1263
    %4638 = vmatprep.subr.mxu0 0.0
    %4639 = vmatpush1.msra.mxu0 %v1264
    %4640 = vmatprep.subr.mxu0 0.0
    %4641 = vmatpush1.msra.mxu0 %v1265
    %4642 = vmatprep.subr.mxu0 0.0
    %4643 = vmatpush1.msra.mxu0 %v1266
    %4644 = vmatprep.subr.mxu0 0.0
    %4645 = vmatpush1.msra.mxu0 %v1267
    %4646 = vmatprep.subr.mxu0 0.0
    %4647 = vmatpush1.msra.mxu0 %v1268
    %4648 = vmatprep.mubr.f32.mxu0 %v90
    %4649 = vmatmul.mubr.f32.gmra.mrb[0].mxu0 %v89
    %v4650 = vpop.f32.mrb[0].mxu0
    %v4651 = vadd.f32 %v4581, %v4650
    %v4652 = vpop.f32.mrb[0].mxu0
    %4653 = vdwg.mxu0
    %4654 = vmatprep.subr.mxu0 0.0
    %4655 = vmatpush1.msra.mxu0 %v1269
    %4656 = vmatprep.subr.mxu0 0.0
    %4657 = vmatpush1.msra.mxu0 %v1270
    %4658 = vmatprep.subr.mxu0 0.0
    %4659 = vmatpush1.msra.mxu0 %v1271
    %4660 = vmatprep.subr.mxu0 0.0
    %4661 = vmatpush1.msra.mxu0 %v1272
    %4662 = vmatprep.subr.mxu0 0.0
    %4663 = vmatpush1.msra.mxu0 %v1273
    %4664 = vmatprep.subr.mxu0 0.0
    %4665 = vmatpush1.msra.mxu0 %v1274
    %4666 = vmatprep.subr.mxu0 0.0
    %4667 = vmatpush1.msra.mxu0 %v1275
    %4668 = vmatprep.subr.mxu0 0.0
    %4669 = vmatpush1.msra.mxu0 %v1276
    %4670 = vmatprep.subr.mxu0 0.0
    %4671 = vmatpush1.msra.mxu0 %v1277
    %4672 = vmatprep.subr.mxu0 0.0
    %4673 = vmatpush1.msra.mxu0 %v1278
    %4674 = vmatprep.subr.mxu0 0.0
    %4675 = vmatpush1.msra.mxu0 %v1279
    %4676 = vmatprep.subr.mxu0 0.0
    %4677 = vmatpush1.msra.mxu0 %v1280
    %4678 = vmatprep.subr.mxu0 0.0
    %4679 = vmatpush1.msra.mxu0 %v1281
    %4680 = vmatprep.subr.mxu0 0.0
    %4681 = vmatpush1.msra.mxu0 %v1282
    %4682 = vmatprep.subr.mxu0 0.0
    %4683 = vmatpush1.msra.mxu0 %v1283
    %4684 = vmatprep.subr.mxu0 0.0
    %4685 = vmatpush1.msra.mxu0 %v1284
    %4686 = vmatprep.subr.mxu0 0.0
    %4687 = vmatpush1.msra.mxu0 %v1285
    %4688 = vmatprep.subr.mxu0 0.0
    %4689 = vmatpush1.msra.mxu0 %v1286
    %4690 = vmatprep.subr.mxu0 0.0
    %4691 = vmatpush1.msra.mxu0 %v1287
    %4692 = vmatprep.subr.mxu0 0.0
    %4693 = vmatpush1.msra.mxu0 %v1288
    %4694 = vmatprep.subr.mxu0 0.0
    %4695 = vmatpush1.msra.mxu0 %v1289
    %4696 = vmatprep.subr.mxu0 0.0
    %4697 = vmatpush1.msra.mxu0 %v1290
    %4698 = vmatprep.subr.mxu0 0.0
    %4699 = vmatpush1.msra.mxu0 %v1291
    %4700 = vmatprep.subr.mxu0 0.0
    %4701 = vmatpush1.msra.mxu0 %v1292
    %4702 = vmatprep.subr.mxu0 0.0
    %4703 = vmatpush1.msra.mxu0 %v1293
    %4704 = vmatprep.subr.mxu0 0.0
    %4705 = vmatpush1.msra.mxu0 %v1294
    %4706 = vmatprep.subr.mxu0 0.0
    %4707 = vmatpush1.msra.mxu0 %v1295
    %4708 = vmatprep.subr.mxu0 0.0
    %4709 = vmatpush1.msra.mxu0 %v1296
    %4710 = vmatprep.subr.mxu0 0.0
    %4711 = vmatpush1.msra.mxu0 %v1297
    %4712 = vmatprep.subr.mxu0 0.0
    %4713 = vmatpush1.msra.mxu0 %v1298
    %4714 = vmatprep.subr.mxu0 0.0
    %4715 = vmatpush1.msra.mxu0 %v1299
    %4716 = vmatprep.subr.mxu0 0.0
    %4717 = vmatpush1.msra.mxu0 %v1300
    %4718 = vmatprep.mubr.f32.mxu0 %v92
    %4719 = vmatmul.mubr.f32.gmra.mrb[0].mxu0 %v91
    %v4720 = vpop.f32.mrb[0].mxu0
    %v4721 = vadd.f32 %v4651, %v4720
    %v4722 = vpop.f32.mrb[0].mxu0
    %4723 = vdwg.mxu0
    %4724 = vmatprep.subr.mxu0 0.0
    %4725 = vmatpush1.msra.mxu0 %v1301
    %4726 = vmatprep.subr.mxu0 0.0
    %4727 = vmatpush1.msra.mxu0 %v1302
    %4728 = vmatprep.subr.mxu0 0.0
    %4729 = vmatpush1.msra.mxu0 %v1303
    %4730 = vmatprep.subr.mxu0 0.0
    %4731 = vmatpush1.msra.mxu0 %v1304
    %4732 = vmatprep.subr.mxu0 0.0
    %4733 = vmatpush1.msra.mxu0 %v1305
    %4734 = vmatprep.subr.mxu0 0.0
    %4735 = vmatpush1.msra.mxu0 %v1306
    %4736 = vmatprep.subr.mxu0 0.0
    %4737 = vmatpush1.msra.mxu0 %v1307
    %4738 = vmatprep.subr.mxu0 0.0
    %4739 = vmatpush1.msra.mxu0 %v1308
    %4740 = vmatprep.subr.mxu0 0.0
    %4741 = vmatpush1.msra.mxu0 %v1309
    %4742 = vmatprep.subr.mxu0 0.0
    %4743 = vmatpush1.msra.mxu0 %v1310
    %4744 = vmatprep.subr.mxu0 0.0
    %4745 = vmatpush1.msra.mxu0 %v1311
    %4746 = vmatprep.subr.mxu0 0.0
    %4747 = vmatpush1.msra.mxu0 %v1312
    %4748 = vmatprep.subr.mxu0 0.0
    %4749 = vmatpush1.msra.mxu0 %v1313
    %4750 = vmatprep.subr.mxu0 0.0
    %4751 = vmatpush1.msra.mxu0 %v1314
    %4752 = vmatprep.subr.mxu0 0.0
    %4753 = vmatpush1.msra.mxu0 %v1315
    %4754 = vmatprep.subr.mxu0 0.0
    %4755 = vmatpush1.msra.mxu0 %v1316
    %4756 = vmatprep.subr.mxu0 0.0
    %4757 = vmatpush1.msra.mxu0 %v1317
    %4758 = vmatprep.subr.mxu0 0.0
    %4759 = vmatpush1.msra.mxu0 %v1318
    %4760 = vmatprep.subr.mxu0 0.0
    %4761 = vmatpush1.msra.mxu0 %v1319
    %4762 = vmatprep.subr.mxu0 0.0
    %4763 = vmatpush1.msra.mxu0 %v1320
    %4764 = vmatprep.subr.mxu0 0.0
    %4765 = vmatpush1.msra.mxu0 %v1321
    %4766 = vmatprep.subr.mxu0 0.0
    %4767 = vmatpush1.msra.mxu0 %v1322
    %4768 = vmatprep.subr.mxu0 0.0
    %4769 = vmatpush1.msra.mxu0 %v1323
    %4770 = vmatprep.subr.mxu0 0.0
    %4771 = vmatpush1.msra.mxu0 %v1324
    %4772 = vmatprep.subr.mxu0 0.0
    %4773 = vmatpush1.msra.mxu0 %v1325
    %4774 = vmatprep.subr.mxu0 0.0
    %4775 = vmatpush1.msra.mxu0 %v1326
    %4776 = vmatprep.subr.mxu0 0.0
    %4777 = vmatpush1.msra.mxu0 %v1327
    %4778 = vmatprep.subr.mxu0 0.0
    %4779 = vmatpush1.msra.mxu0 %v1328
    %4780 = vmatprep.subr.mxu0 0.0
    %4781 = vmatpush1.msra.mxu0 %v1329
    %4782 = vmatprep.subr.mxu0 0.0
    %4783 = vmatpush1.msra.mxu0 %v1330
    %4784 = vmatprep.subr.mxu0 0.0
    %4785 = vmatpush1.msra.mxu0 %v1331
    %4786 = vmatprep.subr.mxu0 0.0
    %4787 = vmatpush1.msra.mxu0 %v1332
    %4788 = vmatprep.mubr.f32.mxu0 %v94
    %4789 = vmatmul.mubr.f32.gmra.mrb[0].mxu0 %v93
    %v4790 = vpop.f32.mrb[0].mxu0
    %v4791 = vadd.f32 %v4721, %v4790
    %v4792 = vpop.f32.mrb[0].mxu0
    %4793 = vdwg.mxu0
    %4794 = vmatprep.subr.mxu0 0.0
    %4795 = vmatpush1.msra.mxu0 %v1333
    %4796 = vmatprep.subr.mxu0 0.0
    %4797 = vmatpush1.msra.mxu0 %v1334
    %4798 = vmatprep.subr.mxu0 0.0
    %4799 = vmatpush1.msra.mxu0 %v1335
    %4800 = vmatprep.subr.mxu0 0.0
    %4801 = vmatpush1.msra.mxu0 %v1336
    %4802 = vmatprep.subr.mxu0 0.0
    %4803 = vmatpush1.msra.mxu0 %v1337
    %4804 = vmatprep.subr.mxu0 0.0
    %4805 = vmatpush1.msra.mxu0 %v1338
    %4806 = vmatprep.subr.mxu0 0.0
    %4807 = vmatpush1.msra.mxu0 %v1339
    %4808 = vmatprep.subr.mxu0 0.0
    %4809 = vmatpush1.msra.mxu0 %v1340
    %4810 = vmatprep.subr.mxu0 0.0
    %4811 = vmatpush1.msra.mxu0 %v1341
    %4812 = vmatprep.subr.mxu0 0.0
    %4813 = vmatpush1.msra.mxu0 %v1342
    %4814 = vmatprep.subr.mxu0 0.0
    %4815 = vmatpush1.msra.mxu0 %v1343
    %4816 = vmatprep.subr.mxu0 0.0
    %4817 = vmatpush1.msra.mxu0 %v1344
    %4818 = vmatprep.subr.mxu0 0.0
    %4819 = vmatpush1.msra.mxu0 %v1345
    %4820 = vmatprep.subr.mxu0 0.0
    %4821 = vmatpush1.msra.mxu0 %v1346
    %4822 = vmatprep.subr.mxu0 0.0
    %4823 = vmatpush1.msra.mxu0 %v1347
    %4824 = vmatprep.subr.mxu0 0.0
    %4825 = vmatpush1.msra.mxu0 %v1348
    %4826 = vmatprep.subr.mxu0 0.0
    %4827 = vmatpush1.msra.mxu0 %v1349
    %4828 = vmatprep.subr.mxu0 0.0
    %4829 = vmatpush1.msra.mxu0 %v1350
    %4830 = vmatprep.subr.mxu0 0.0
    %4831 = vmatpush1.msra.mxu0 %v1351
    %4832 = vmatprep.subr.mxu0 0.0
    %4833 = vmatpush1.msra.mxu0 %v1352
    %4834 = vmatprep.subr.mxu0 0.0
    %4835 = vmatpush1.msra.mxu0 %v1353
    %4836 = vmatprep.subr.mxu0 0.0
    %4837 = vmatpush1.msra.mxu0 %v1354
    %4838 = vmatprep.subr.mxu0 0.0
    %4839 = vmatpush1.msra.mxu0 %v1355
    %4840 = vmatprep.subr.mxu0 0.0
    %4841 = vmatpush1.msra.mxu0 %v1356
    %4842 = vmatprep.subr.mxu0 0.0
    %4843 = vmatpush1.msra.mxu0 %v1357
    %4844 = vmatprep.subr.mxu0 0.0
    %4845 = vmatpush1.msra.mxu0 %v1358
    %4846 = vmatprep.subr.mxu0 0.0
    %4847 = vmatpush1.msra.mxu0 %v1359
    %4848 = vmatprep.subr.mxu0 0.0
    %4849 = vmatpush1.msra.mxu0 %v1360
    %4850 = vmatprep.subr.mxu0 0.0
    %4851 = vmatpush1.msra.mxu0 %v1361
    %4852 = vmatprep.subr.mxu0 0.0
    %4853 = vmatpush1.msra.mxu0 %v1362
    %4854 = vmatprep.subr.mxu0 0.0
    %4855 = vmatpush1.msra.mxu0 %v1363
    %4856 = vmatprep.subr.mxu0 0.0
    %4857 = vmatpush1.msra.mxu0 %v1364
    %4858 = vmatprep.mubr.f32.mxu0 %v96
    %4859 = vmatmul.mubr.f32.gmra.mrb[0].mxu0 %v95
    %v4860 = vpop.f32.mrb[0].mxu0
    %v4861 = vadd.f32 %v4791, %v4860
    %v4862 = vpop.f32.mrb[0].mxu0
    %4863 = vdwg.mxu0
    %4864 = vmatprep.subr.mxu0 0.0
    %4865 = vmatpush1.msra.mxu0 %v1365
    %4866 = vmatprep.subr.mxu0 0.0
    %4867 = vmatpush1.msra.mxu0 %v1366
    %4868 = vmatprep.subr.mxu0 0.0
    %4869 = vmatpush1.msra.mxu0 %v1367
    %4870 = vmatprep.subr.mxu0 0.0
    %4871 = vmatpush1.msra.mxu0 %v1368
    %4872 = vmatprep.subr.mxu0 0.0
    %4873 = vmatpush1.msra.mxu0 %v1369
    %4874 = vmatprep.subr.mxu0 0.0
    %4875 = vmatpush1.msra.mxu0 %v1370
    %4876 = vmatprep.subr.mxu0 0.0
    %4877 = vmatpush1.msra.mxu0 %v1371
    %4878 = vmatprep.subr.mxu0 0.0
    %4879 = vmatpush1.msra.mxu0 %v1372
    %4880 = vmatprep.subr.mxu0 0.0
    %4881 = vmatpush1.msra.mxu0 %v1373
    %4882 = vmatprep.subr.mxu0 0.0
    %4883 = vmatpush1.msra.mxu0 %v1374
    %4884 = vmatprep.subr.mxu0 0.0
    %4885 = vmatpush1.msra.mxu0 %v1375
    %4886 = vmatprep.subr.mxu0 0.0
    %4887 = vmatpush1.msra.mxu0 %v1376
    %4888 = vmatprep.subr.mxu0 0.0
    %4889 = vmatpush1.msra.mxu0 %v1377
    %4890 = vmatprep.subr.mxu0 0.0
    %4891 = vmatpush1.msra.mxu0 %v1378
    %4892 = vmatprep.subr.mxu0 0.0
    %4893 = vmatpush1.msra.mxu0 %v1379
    %4894 = vmatprep.subr.mxu0 0.0
    %4895 = vmatpush1.msra.mxu0 %v1380
    %4896 = vmatprep.subr.mxu0 0.0
    %4897 = vmatpush1.msra.mxu0 %v1381
    %4898 = vmatprep.subr.mxu0 0.0
    %4899 = vmatpush1.msra.mxu0 %v1382
    %4900 = vmatprep.subr.mxu0 0.0
    %4901 = vmatpush1.msra.mxu0 %v1383
    %4902 = vmatprep.subr.mxu0 0.0
    %4903 = vmatpush1.msra.mxu0 %v1384
    %4904 = vmatprep.subr.mxu0 0.0
    %4905 = vmatpush1.msra.mxu0 %v1385
    %4906 = vmatprep.subr.mxu0 0.0
    %4907 = vmatpush1.msra.mxu0 %v1386
    %4908 = vmatprep.subr.mxu0 0.0
    %4909 = vmatpush1.msra.mxu0 %v1387
    %4910 = vmatprep.subr.mxu0 0.0
    %4911 = vmatpush1.msra.mxu0 %v1388
    %4912 = vmatprep.subr.mxu0 0.0
    %4913 = vmatpush1.msra.mxu0 %v1389
    %4914 = vmatprep.subr.mxu0 0.0
    %4915 = vmatpush1.msra.mxu0 %v1390
    %4916 = vmatprep.subr.mxu0 0.0
    %4917 = vmatpush1.msra.mxu0 %v1391
    %4918 = vmatprep.subr.mxu0 0.0
    %4919 = vmatpush1.msra.mxu0 %v1392
    %4920 = vmatprep.subr.mxu0 0.0
    %4921 = vmatpush1.msra.mxu0 %v1393
    %4922 = vmatprep.subr.mxu0 0.0
    %4923 = vmatpush1.msra.mxu0 %v1394
    %4924 = vmatprep.subr.mxu0 0.0
    %4925 = vmatpush1.msra.mxu0 %v1395
    %4926 = vmatprep.subr.mxu0 0.0
    %4927 = vmatpush1.msra.mxu0 %v1396
    %4928 = vmatprep.mubr.f32.mxu0 %v98
    %4929 = vmatmul.mubr.f32.gmra.mrb[0].mxu0 %v97
    %v4930 = vpop.f32.mrb[0].mxu0
    %v4931 = vadd.f32 %v4861, %v4930
    %v4932 = vpop.f32.mrb[0].mxu0
    %4933 = vdwg.mxu0
    %4934 = vmatprep.subr.mxu0 0.0
    %4935 = vmatpush1.msra.mxu0 %v1397
    %4936 = vmatprep.subr.mxu0 0.0
    %4937 = vmatpush1.msra.mxu0 %v1398
    %4938 = vmatprep.subr.mxu0 0.0
    %4939 = vmatpush1.msra.mxu0 %v1399
    %4940 = vmatprep.subr.mxu0 0.0
    %4941 = vmatpush1.msra.mxu0 %v1400
    %4942 = vmatprep.subr.mxu0 0.0
    %4943 = vmatpush1.msra.mxu0 %v1401
    %4944 = vmatprep.subr.mxu0 0.0
    %4945 = vmatpush1.msra.mxu0 %v1402
    %4946 = vmatprep.subr.mxu0 0.0
    %4947 = vmatpush1.msra.mxu0 %v1403
    %4948 = vmatprep.subr.mxu0 0.0
    %4949 = vmatpush1.msra.mxu0 %v1404
    %4950 = vmatprep.subr.mxu0 0.0
    %4951 = vmatpush1.msra.mxu0 %v1405
    %4952 = vmatprep.subr.mxu0 0.0
    %4953 = vmatpush1.msra.mxu0 %v1406
    %4954 = vmatprep.subr.mxu0 0.0
    %4955 = vmatpush1.msra.mxu0 %v1407
    %4956 = vmatprep.subr.mxu0 0.0
    %4957 = vmatpush1.msra.mxu0 %v1408
    %4958 = vmatprep.subr.mxu0 0.0
    %4959 = vmatpush1.msra.mxu0 %v1409
    %4960 = vmatprep.subr.mxu0 0.0
    %4961 = vmatpush1.msra.mxu0 %v1410
    %4962 = vmatprep.subr.mxu0 0.0
    %4963 = vmatpush1.msra.mxu0 %v1411
    %4964 = vmatprep.subr.mxu0 0.0
    %4965 = vmatpush1.msra.mxu0 %v1412
    %4966 = vmatprep.subr.mxu0 0.0
    %4967 = vmatpush1.msra.mxu0 %v1413
    %4968 = vmatprep.subr.mxu0 0.0
    %4969 = vmatpush1.msra.mxu0 %v1414
    %4970 = vmatprep.subr.mxu0 0.0
    %4971 = vmatpush1.msra.mxu0 %v1415
    %4972 = vmatprep.subr.mxu0 0.0
    %4973 = vmatpush1.msra.mxu0 %v1416
    %4974 = vmatprep.subr.mxu0 0.0
    %4975 = vmatpush1.msra.mxu0 %v1417
    %4976 = vmatprep.subr.mxu0 0.0
    %4977 = vmatpush1.msra.mxu0 %v1418
    %4978 = vmatprep.subr.mxu0 0.0
    %4979 = vmatpush1.msra.mxu0 %v1419
    %4980 = vmatprep.subr.mxu0 0.0
    %4981 = vmatpush1.msra.mxu0 %v1420
    %4982 = vmatprep.subr.mxu0 0.0
    %4983 = vmatpush1.msra.mxu0 %v1421
    %4984 = vmatprep.subr.mxu0 0.0
    %4985 = vmatpush1.msra.mxu0 %v1422
    %4986 = vmatprep.subr.mxu0 0.0
    %4987 = vmatpush1.msra.mxu0 %v1423
    %4988 = vmatprep.subr.mxu0 0.0
    %4989 = vmatpush1.msra.mxu0 %v1424
    %4990 = vmatprep.subr.mxu0 0.0
    %4991 = vmatpush1.msra.mxu0 %v1425
    %4992 = vmatprep.subr.mxu0 0.0
    %4993 = vmatpush1.msra.mxu0 %v1426
    %4994 = vmatprep.subr.mxu0 0.0
    %4995 = vmatpush1.msra.mxu0 %v1427
    %4996 = vmatprep.subr.mxu0 0.0
    %4997 = vmatpush1.msra.mxu0 %v1428
    %4998 = vmatprep.mubr.f32.mxu0 %v100
    %4999 = vmatmul.mubr.f32.gmra.mrb[0].mxu0 %v99
    %v5000 = vpop.f32.mrb[0].mxu0
    %v5001 = vadd.f32 %v4931, %v5000
    %v5002 = vpop.f32.mrb[0].mxu0
    %5003 = vdwg.mxu0
    %5004 = vmatprep.subr.mxu0 0.0
    %5005 = vmatpush1.msra.mxu0 %v1429
    %5006 = vmatprep.subr.mxu0 0.0
    %5007 = vmatpush1.msra.mxu0 %v1430
    %5008 = vmatprep.subr.mxu0 0.0
    %5009 = vmatpush1.msra.mxu0 %v1431
    %5010 = vmatprep.subr.mxu0 0.0
    %5011 = vmatpush1.msra.mxu0 %v1432
    %5012 = vmatprep.subr.mxu0 0.0
    %5013 = vmatpush1.msra.mxu0 %v1433
    %5014 = vmatprep.subr.mxu0 0.0
    %5015 = vmatpush1.msra.mxu0 %v1434
    %5016 = vmatprep.subr.mxu0 0.0
    %5017 = vmatpush1.msra.mxu0 %v1435
    %5018 = vmatprep.subr.mxu0 0.0
    %5019 = vmatpush1.msra.mxu0 %v1436
    %5020 = vmatprep.subr.mxu0 0.0
    %5021 = vmatpush1.msra.mxu0 %v1437
    %5022 = vmatprep.subr.mxu0 0.0
    %5023 = vmatpush1.msra.mxu0 %v1438
    %5024 = vmatprep.subr.mxu0 0.0
    %5025 = vmatpush1.msra.mxu0 %v1439
    %5026 = vmatprep.subr.mxu0 0.0
    %5027 = vmatpush1.msra.mxu0 %v1440
    %5028 = vmatprep.subr.mxu0 0.0
    %5029 = vmatpush1.msra.mxu0 %v1441
    %5030 = vmatprep.subr.mxu0 0.0
    %5031 = vmatpush1.msra.mxu0 %v1442
    %5032 = vmatprep.subr.mxu0 0.0
    %5033 = vmatpush1.msra.mxu0 %v1443
    %5034 = vmatprep.subr.mxu0 0.0
    %5035 = vmatpush1.msra.mxu0 %v1444
    %5036 = vmatprep.subr.mxu0 0.0
    %5037 = vmatpush1.msra.mxu0 %v1445
    %5038 = vmatprep.subr.mxu0 0.0
    %5039 = vmatpush1.msra.mxu0 %v1446
    %5040 = vmatprep.subr.mxu0 0.0
    %5041 = vmatpush1.msra.mxu0 %v1447
    %5042 = vmatprep.subr.mxu0 0.0
    %5043 = vmatpush1.msra.mxu0 %v1448
    %5044 = vmatprep.subr.mxu0 0.0
    %5045 = vmatpush1.msra.mxu0 %v1449
    %5046 = vmatprep.subr.mxu0 0.0
    %5047 = vmatpush1.msra.mxu0 %v1450
    %5048 = vmatprep.subr.mxu0 0.0
    %5049 = vmatpush1.msra.mxu0 %v1451
    %5050 = vmatprep.subr.mxu0 0.0
    %5051 = vmatpush1.msra.mxu0 %v1452
    %5052 = vmatprep.subr.mxu0 0.0
    %5053 = vmatpush1.msra.mxu0 %v1453
    %5054 = vmatprep.subr.mxu0 0.0
    %5055 = vmatpush1.msra.mxu0 %v1454
    %5056 = vmatprep.subr.mxu0 0.0
    %5057 = vmatpush1.msra.mxu0 %v1455
    %5058 = vmatprep.subr.mxu0 0.0
    %5059 = vmatpush1.msra.mxu0 %v1456
    %5060 = vmatprep.subr.mxu0 0.0
    %5061 = vmatpush1.msra.mxu0 %v1457
    %5062 = vmatprep.subr.mxu0 0.0
    %5063 = vmatpush1.msra.mxu0 %v1458
    %5064 = vmatprep.subr.mxu0 0.0
    %5065 = vmatpush1.msra.mxu0 %v1459
    %5066 = vmatprep.subr.mxu0 0.0
    %5067 = vmatpush1.msra.mxu0 %v1460
    %5068 = vmatprep.mubr.f32.mxu0 %v102
    %5069 = vmatmul.mubr.f32.gmra.mrb[0].mxu0 %v101
    %v5070 = vpop.f32.mrb[0].mxu0
    %v5071 = vadd.f32 %v5001, %v5070
    %v5072 = vpop.f32.mrb[0].mxu0
    %5073 = vdwg.mxu0
    %5074 = vmatprep.subr.mxu0 0.0
    %5075 = vmatpush1.msra.mxu0 %v1461
    %5076 = vmatprep.subr.mxu0 0.0
    %5077 = vmatpush1.msra.mxu0 %v1462
    %5078 = vmatprep.subr.mxu0 0.0
    %5079 = vmatpush1.msra.mxu0 %v1463
    %5080 = vmatprep.subr.mxu0 0.0
    %5081 = vmatpush1.msra.mxu0 %v1464
    %5082 = vmatprep.subr.mxu0 0.0
    %5083 = vmatpush1.msra.mxu0 %v1465
    %5084 = vmatprep.subr.mxu0 0.0
    %5085 = vmatpush1.msra.mxu0 %v1466
    %5086 = vmatprep.subr.mxu0 0.0
    %5087 = vmatpush1.msra.mxu0 %v1467
    %5088 = vmatprep.subr.mxu0 0.0
    %5089 = vmatpush1.msra.mxu0 %v1468
    %5090 = vmatprep.subr.mxu0 0.0
    %5091 = vmatpush1.msra.mxu0 %v1469
    %5092 = vmatprep.subr.mxu0 0.0
    %5093 = vmatpush1.msra.mxu0 %v1470
    %5094 = vmatprep.subr.mxu0 0.0
    %5095 = vmatpush1.msra.mxu0 %v1471
    %5096 = vmatprep.subr.mxu0 0.0
    %5097 = vmatpush1.msra.mxu0 %v1472
    %5098 = vmatprep.subr.mxu0 0.0
    %5099 = vmatpush1.msra.mxu0 %v1473
    %5100 = vmatprep.subr.mxu0 0.0
    %5101 = vmatpush1.msra.mxu0 %v1474
    %5102 = vmatprep.subr.mxu0 0.0
    %5103 = vmatpush1.msra.mxu0 %v1475
    %5104 = vmatprep.subr.mxu0 0.0
    %5105 = vmatpush1.msra.mxu0 %v1476
    %5106 = vmatprep.subr.mxu0 0.0
    %5107 = vmatpush1.msra.mxu0 %v1477
    %5108 = vmatprep.subr.mxu0 0.0
    %5109 = vmatpush1.msra.mxu0 %v1478
    %5110 = vmatprep.subr.mxu0 0.0
    %5111 = vmatpush1.msra.mxu0 %v1479
    %5112 = vmatprep.subr.mxu0 0.0
    %5113 = vmatpush1.msra.mxu0 %v1480
    %5114 = vmatprep.subr.mxu0 0.0
    %5115 = vmatpush1.msra.mxu0 %v1481
    %5116 = vmatprep.subr.mxu0 0.0
    %5117 = vmatpush1.msra.mxu0 %v1482
    %5118 = vmatprep.subr.mxu0 0.0
    %5119 = vmatpush1.msra.mxu0 %v1483
    %5120 = vmatprep.subr.mxu0 0.0
    %5121 = vmatpush1.msra.mxu0 %v1484
    %5122 = vmatprep.subr.mxu0 0.0
    %5123 = vmatpush1.msra.mxu0 %v1485
    %5124 = vmatprep.subr.mxu0 0.0
    %5125 = vmatpush1.msra.mxu0 %v1486
    %5126 = vmatprep.subr.mxu0 0.0
    %5127 = vmatpush1.msra.mxu0 %v1487
    %5128 = vmatprep.subr.mxu0 0.0
    %5129 = vmatpush1.msra.mxu0 %v1488
    %5130 = vmatprep.subr.mxu0 0.0
    %5131 = vmatpush1.msra.mxu0 %v1489
    %5132 = vmatprep.subr.mxu0 0.0
    %5133 = vmatpush1.msra.mxu0 %v1490
    %5134 = vmatprep.subr.mxu0 0.0
    %5135 = vmatpush1.msra.mxu0 %v1491
    %5136 = vmatprep.subr.mxu0 0.0
    %5137 = vmatpush1.msra.mxu0 %v1492
    %5138 = vmatprep.mubr.f32.mxu0 %v104
    %5139 = vmatmul.mubr.f32.gmra.mrb[0].mxu0 %v103
    %v5140 = vpop.f32.mrb[0].mxu0
    %v5141 = vadd.f32 %v5071, %v5140
    %v5142 = vpop.f32.mrb[0].mxu0
    %5143 = vdwg.mxu0
    %5144 = vmatprep.subr.mxu0 0.0
    %5145 = vmatpush1.msra.mxu0 %v1493
    %5146 = vmatprep.subr.mxu0 0.0
    %5147 = vmatpush1.msra.mxu0 %v1494
    %5148 = vmatprep.subr.mxu0 0.0
    %5149 = vmatpush1.msra.mxu0 %v1495
    %5150 = vmatprep.subr.mxu0 0.0
    %5151 = vmatpush1.msra.mxu0 %v1496
    %5152 = vmatprep.subr.mxu0 0.0
    %5153 = vmatpush1.msra.mxu0 %v1497
    %5154 = vmatprep.subr.mxu0 0.0
    %5155 = vmatpush1.msra.mxu0 %v1498
    %5156 = vmatprep.subr.mxu0 0.0
    %5157 = vmatpush1.msra.mxu0 %v1499
    %5158 = vmatprep.subr.mxu0 0.0
    %5159 = vmatpush1.msra.mxu0 %v1500
    %5160 = vmatprep.subr.mxu0 0.0
    %5161 = vmatpush1.msra.mxu0 %v1501
    %5162 = vmatprep.subr.mxu0 0.0
    %5163 = vmatpush1.msra.mxu0 %v1502
    %5164 = vmatprep.subr.mxu0 0.0
    %5165 = vmatpush1.msra.mxu0 %v1503
    %5166 = vmatprep.subr.mxu0 0.0
    %5167 = vmatpush1.msra.mxu0 %v1504
    %5168 = vmatprep.subr.mxu0 0.0
    %5169 = vmatpush1.msra.mxu0 %v1505
    %5170 = vmatprep.subr.mxu0 0.0
    %5171 = vmatpush1.msra.mxu0 %v1506
    %5172 = vmatprep.subr.mxu0 0.0
    %5173 = vmatpush1.msra.mxu0 %v1507
    %5174 = vmatprep.subr.mxu0 0.0
    %5175 = vmatpush1.msra.mxu0 %v1508
    %5176 = vmatprep.subr.mxu0 0.0
    %5177 = vmatpush1.msra.mxu0 %v1509
    %5178 = vmatprep.subr.mxu0 0.0
    %5179 = vmatpush1.msra.mxu0 %v1510
    %5180 = vmatprep.subr.mxu0 0.0
    %5181 = vmatpush1.msra.mxu0 %v1511
    %5182 = vmatprep.subr.mxu0 0.0
    %5183 = vmatpush1.msra.mxu0 %v1512
    %5184 = vmatprep.subr.mxu0 0.0
    %5185 = vmatpush1.msra.mxu0 %v1513
    %5186 = vmatprep.subr.mxu0 0.0
    %5187 = vmatpush1.msra.mxu0 %v1514
    %5188 = vmatprep.subr.mxu0 0.0
    %5189 = vmatpush1.msra.mxu0 %v1515
    %5190 = vmatprep.subr.mxu0 0.0
    %5191 = vmatpush1.msra.mxu0 %v1516
    %5192 = vmatprep.subr.mxu0 0.0
    %5193 = vmatpush1.msra.mxu0 %v1517
    %5194 = vmatprep.subr.mxu0 0.0
    %5195 = vmatpush1.msra.mxu0 %v1518
    %5196 = vmatprep.subr.mxu0 0.0
    %5197 = vmatpush1.msra.mxu0 %v1519
    %5198 = vmatprep.subr.mxu0 0.0
    %5199 = vmatpush1.msra.mxu0 %v1520
    %5200 = vmatprep.subr.mxu0 0.0
    %5201 = vmatpush1.msra.mxu0 %v1521
    %5202 = vmatprep.subr.mxu0 0.0
    %5203 = vmatpush1.msra.mxu0 %v1522
    %5204 = vmatprep.subr.mxu0 0.0
    %5205 = vmatpush1.msra.mxu0 %v1523
    %5206 = vmatprep.subr.mxu0 0.0
    %5207 = vmatpush1.msra.mxu0 %v1524
    %5208 = vmatprep.mubr.f32.mxu0 %v106
    %5209 = vmatmul.mubr.f32.gmra.mrb[0].mxu0 %v105
    %v5210 = vpop.f32.mrb[0].mxu0
    %v5211 = vadd.f32 %v5141, %v5210
    %v5212 = vpop.f32.mrb[0].mxu0
    %5213 = vdwg.mxu0
    %5214 = vmatprep.subr.mxu0 0.0
    %5215 = vmatpush1.msra.mxu0 %v1525
    %5216 = vmatprep.subr.mxu0 0.0
    %5217 = vmatpush1.msra.mxu0 %v1526
    %5218 = vmatprep.subr.mxu0 0.0
    %5219 = vmatpush1.msra.mxu0 %v1527
    %5220 = vmatprep.subr.mxu0 0.0
    %5221 = vmatpush1.msra.mxu0 %v1528
    %5222 = vmatprep.subr.mxu0 0.0
    %5223 = vmatpush1.msra.mxu0 %v1529
    %5224 = vmatprep.subr.mxu0 0.0
    %5225 = vmatpush1.msra.mxu0 %v1530
    %5226 = vmatprep.subr.mxu0 0.0
    %5227 = vmatpush1.msra.mxu0 %v1531
    %5228 = vmatprep.subr.mxu0 0.0
    %5229 = vmatpush1.msra.mxu0 %v1532
    %5230 = vmatprep.subr.mxu0 0.0
    %5231 = vmatpush1.msra.mxu0 %v1533
    %5232 = vmatprep.subr.mxu0 0.0
    %5233 = vmatpush1.msra.mxu0 %v1534
    %5234 = vmatprep.subr.mxu0 0.0
    %5235 = vmatpush1.msra.mxu0 %v1535
    %5236 = vmatprep.subr.mxu0 0.0
    %5237 = vmatpush1.msra.mxu0 %v1536
    %5238 = vmatprep.subr.mxu0 0.0
    %5239 = vmatpush1.msra.mxu0 %v1537
    %5240 = vmatprep.subr.mxu0 0.0
    %5241 = vmatpush1.msra.mxu0 %v1538
    %5242 = vmatprep.subr.mxu0 0.0
    %5243 = vmatpush1.msra.mxu0 %v1539
    %5244 = vmatprep.subr.mxu0 0.0
    %5245 = vmatpush1.msra.mxu0 %v1540
    %5246 = vmatprep.subr.mxu0 0.0
    %5247 = vmatpush1.msra.mxu0 %v1541
    %5248 = vmatprep.subr.mxu0 0.0
    %5249 = vmatpush1.msra.mxu0 %v1542
    %5250 = vmatprep.subr.mxu0 0.0
    %5251 = vmatpush1.msra.mxu0 %v1543
    %5252 = vmatprep.subr.mxu0 0.0
    %5253 = vmatpush1.msra.mxu0 %v1544
    %5254 = vmatprep.subr.mxu0 0.0
    %5255 = vmatpush1.msra.mxu0 %v1545
    %5256 = vmatprep.subr.mxu0 0.0
    %5257 = vmatpush1.msra.mxu0 %v1546
    %5258 = vmatprep.subr.mxu0 0.0
    %5259 = vmatpush1.msra.mxu0 %v1547
    %5260 = vmatprep.subr.mxu0 0.0
    %5261 = vmatpush1.msra.mxu0 %v1548
    %5262 = vmatprep.subr.mxu0 0.0
    %5263 = vmatpush1.msra.mxu0 %v1549
    %5264 = vmatprep.subr.mxu0 0.0
    %5265 = vmatpush1.msra.mxu0 %v1550
    %5266 = vmatprep.subr.mxu0 0.0
    %5267 = vmatpush1.msra.mxu0 %v1551
    %5268 = vmatprep.subr.mxu0 0.0
    %5269 = vmatpush1.msra.mxu0 %v1552
    %5270 = vmatprep.subr.mxu0 0.0
    %5271 = vmatpush1.msra.mxu0 %v1553
    %5272 = vmatprep.subr.mxu0 0.0
    %5273 = vmatpush1.msra.mxu0 %v1554
    %5274 = vmatprep.subr.mxu0 0.0
    %5275 = vmatpush1.msra.mxu0 %v1555
    %5276 = vmatprep.subr.mxu0 0.0
    %5277 = vmatpush1.msra.mxu0 %v1556
    %5278 = vmatprep.mubr.f32.mxu0 %v108
    %5279 = vmatmul.mubr.f32.gmra.mrb[0].mxu0 %v107
    %v5280 = vpop.f32.mrb[0].mxu0
    %v5281 = vadd.f32 %v5211, %v5280
    %v5282 = vpop.f32.mrb[0].mxu0
    %5283 = vdwg.mxu0
    %5284 = vmatprep.subr.mxu0 0.0
    %5285 = vmatpush1.msra.mxu0 %v1557
    %5286 = vmatprep.subr.mxu0 0.0
    %5287 = vmatpush1.msra.mxu0 %v1558
    %5288 = vmatprep.subr.mxu0 0.0
    %5289 = vmatpush1.msra.mxu0 %v1559
    %5290 = vmatprep.subr.mxu0 0.0
    %5291 = vmatpush1.msra.mxu0 %v1560
    %5292 = vmatprep.subr.mxu0 0.0
    %5293 = vmatpush1.msra.mxu0 %v1561
    %5294 = vmatprep.subr.mxu0 0.0
    %5295 = vmatpush1.msra.mxu0 %v1562
    %5296 = vmatprep.subr.mxu0 0.0
    %5297 = vmatpush1.msra.mxu0 %v1563
    %5298 = vmatprep.subr.mxu0 0.0
    %5299 = vmatpush1.msra.mxu0 %v1564
    %5300 = vmatprep.subr.mxu0 0.0
    %5301 = vmatpush1.msra.mxu0 %v1565
    %5302 = vmatprep.subr.mxu0 0.0
    %5303 = vmatpush1.msra.mxu0 %v1566
    %5304 = vmatprep.subr.mxu0 0.0
    %5305 = vmatpush1.msra.mxu0 %v1567
    %5306 = vmatprep.subr.mxu0 0.0
    %5307 = vmatpush1.msra.mxu0 %v1568
    %5308 = vmatprep.subr.mxu0 0.0
    %5309 = vmatpush1.msra.mxu0 %v1569
    %5310 = vmatprep.subr.mxu0 0.0
    %5311 = vmatpush1.msra.mxu0 %v1570
    %5312 = vmatprep.subr.mxu0 0.0
    %5313 = vmatpush1.msra.mxu0 %v1571
    %5314 = vmatprep.subr.mxu0 0.0
    %5315 = vmatpush1.msra.mxu0 %v1572
    %5316 = vmatprep.subr.mxu0 0.0
    %5317 = vmatpush1.msra.mxu0 %v1573
    %5318 = vmatprep.subr.mxu0 0.0
    %5319 = vmatpush1.msra.mxu0 %v1574
    %5320 = vmatprep.subr.mxu0 0.0
    %5321 = vmatpush1.msra.mxu0 %v1575
    %5322 = vmatprep.subr.mxu0 0.0
    %5323 = vmatpush1.msra.mxu0 %v1576
    %5324 = vmatprep.subr.mxu0 0.0
    %5325 = vmatpush1.msra.mxu0 %v1577
    %5326 = vmatprep.subr.mxu0 0.0
    %5327 = vmatpush1.msra.mxu0 %v1578
    %5328 = vmatprep.subr.mxu0 0.0
    %5329 = vmatpush1.msra.mxu0 %v1579
    %5330 = vmatprep.subr.mxu0 0.0
    %5331 = vmatpush1.msra.mxu0 %v1580
    %5332 = vmatprep.subr.mxu0 0.0
    %5333 = vmatpush1.msra.mxu0 %v1581
    %5334 = vmatprep.subr.mxu0 0.0
    %5335 = vmatpush1.msra.mxu0 %v1582
    %5336 = vmatprep.subr.mxu0 0.0
    %5337 = vmatpush1.msra.mxu0 %v1583
    %5338 = vmatprep.subr.mxu0 0.0
    %5339 = vmatpush1.msra.mxu0 %v1584
    %5340 = vmatprep.subr.mxu0 0.0
    %5341 = vmatpush1.msra.mxu0 %v1585
    %5342 = vmatprep.subr.mxu0 0.0
    %5343 = vmatpush1.msra.mxu0 %v1586
    %5344 = vmatprep.subr.mxu0 0.0
    %5345 = vmatpush1.msra.mxu0 %v1587
    %5346 = vmatprep.subr.mxu0 0.0
    %5347 = vmatpush1.msra.mxu0 %v1588
    %5348 = vmatprep.mubr.f32.mxu0 %v110
    %5349 = vmatmul.mubr.f32.gmra.mrb[0].mxu0 %v109
    %v5350 = vpop.f32.mrb[0].mxu0
    %v5351 = vadd.f32 %v5281, %v5350
    %v5352 = vpop.f32.mrb[0].mxu0
    %5353 = vdwg.mxu0
    %5354 = vmatprep.subr.mxu0 0.0
    %5355 = vmatpush1.msra.mxu0 %v1589
    %5356 = vmatprep.subr.mxu0 0.0
    %5357 = vmatpush1.msra.mxu0 %v1590
    %5358 = vmatprep.subr.mxu0 0.0
    %5359 = vmatpush1.msra.mxu0 %v1591
    %5360 = vmatprep.subr.mxu0 0.0
    %5361 = vmatpush1.msra.mxu0 %v1592
    %5362 = vmatprep.subr.mxu0 0.0
    %5363 = vmatpush1.msra.mxu0 %v1593
    %5364 = vmatprep.subr.mxu0 0.0
    %5365 = vmatpush1.msra.mxu0 %v1594
    %5366 = vmatprep.subr.mxu0 0.0
    %5367 = vmatpush1.msra.mxu0 %v1595
    %5368 = vmatprep.subr.mxu0 0.0
    %5369 = vmatpush1.msra.mxu0 %v1596
    %5370 = vmatprep.subr.mxu0 0.0
    %5371 = vmatpush1.msra.mxu0 %v1597
    %5372 = vmatprep.subr.mxu0 0.0
    %5373 = vmatpush1.msra.mxu0 %v1598
    %5374 = vmatprep.subr.mxu0 0.0
    %5375 = vmatpush1.msra.mxu0 %v1599
    %5376 = vmatprep.subr.mxu0 0.0
    %5377 = vmatpush1.msra.mxu0 %v1600
    %5378 = vmatprep.subr.mxu0 0.0
    %5379 = vmatpush1.msra.mxu0 %v1601
    %5380 = vmatprep.subr.mxu0 0.0
    %5381 = vmatpush1.msra.mxu0 %v1602
    %5382 = vmatprep.subr.mxu0 0.0
    %5383 = vmatpush1.msra.mxu0 %v1603
    %5384 = vmatprep.subr.mxu0 0.0
    %5385 = vmatpush1.msra.mxu0 %v1604
    %5386 = vmatprep.subr.mxu0 0.0
    %5387 = vmatpush1.msra.mxu0 %v1605
    %5388 = vmatprep.subr.mxu0 0.0
    %5389 = vmatpush1.msra.mxu0 %v1606
    %5390 = vmatprep.subr.mxu0 0.0
    %5391 = vmatpush1.msra.mxu0 %v1607
    %5392 = vmatprep.subr.mxu0 0.0
    %5393 = vmatpush1.msra.mxu0 %v1608
    %5394 = vmatprep.subr.mxu0 0.0
    %5395 = vmatpush1.msra.mxu0 %v1609
    %5396 = vmatprep.subr.mxu0 0.0
    %5397 = vmatpush1.msra.mxu0 %v1610
    %5398 = vmatprep.subr.mxu0 0.0
    %5399 = vmatpush1.msra.mxu0 %v1611
    %5400 = vmatprep.subr.mxu0 0.0
    %5401 = vmatpush1.msra.mxu0 %v1612
    %5402 = vmatprep.subr.mxu0 0.0
    %5403 = vmatpush1.msra.mxu0 %v1613
    %5404 = vmatprep.subr.mxu0 0.0
    %5405 = vmatpush1.msra.mxu0 %v1614
    %5406 = vmatprep.subr.mxu0 0.0
    %5407 = vmatpush1.msra.mxu0 %v1615
    %5408 = vmatprep.subr.mxu0 0.0
    %5409 = vmatpush1.msra.mxu0 %v1616
    %5410 = vmatprep.subr.mxu0 0.0
    %5411 = vmatpush1.msra.mxu0 %v1617
    %5412 = vmatprep.subr.mxu0 0.0
    %5413 = vmatpush1.msra.mxu0 %v1618
    %5414 = vmatprep.subr.mxu0 0.0
    %5415 = vmatpush1.msra.mxu0 %v1619
    %5416 = vmatprep.subr.mxu0 0.0
    %5417 = vmatpush1.msra.mxu0 %v1620
    %5418 = vmatprep.mubr.f32.mxu0 %v112
    %5419 = vmatmul.mubr.f32.gmra.mrb[0].mxu0 %v111
    %v5420 = vpop.f32.mrb[0].mxu0
    %v5421 = vadd.f32 %v5351, %v5420
    %v5422 = vpop.f32.mrb[0].mxu0
    %5423 = vdwg.mxu0
    %5424 = vmatprep.subr.mxu0 0.0
    %5425 = vmatpush1.msra.mxu0 %v1621
    %5426 = vmatprep.subr.mxu0 0.0
    %5427 = vmatpush1.msra.mxu0 %v1622
    %5428 = vmatprep.subr.mxu0 0.0
    %5429 = vmatpush1.msra.mxu0 %v1623
    %5430 = vmatprep.subr.mxu0 0.0
    %5431 = vmatpush1.msra.mxu0 %v1624
    %5432 = vmatprep.subr.mxu0 0.0
    %5433 = vmatpush1.msra.mxu0 %v1625
    %5434 = vmatprep.subr.mxu0 0.0
    %5435 = vmatpush1.msra.mxu0 %v1626
    %5436 = vmatprep.subr.mxu0 0.0
    %5437 = vmatpush1.msra.mxu0 %v1627
    %5438 = vmatprep.subr.mxu0 0.0
    %5439 = vmatpush1.msra.mxu0 %v1628
    %5440 = vmatprep.subr.mxu0 0.0
    %5441 = vmatpush1.msra.mxu0 %v1629
    %5442 = vmatprep.subr.mxu0 0.0
    %5443 = vmatpush1.msra.mxu0 %v1630
    %5444 = vmatprep.subr.mxu0 0.0
    %5445 = vmatpush1.msra.mxu0 %v1631
    %5446 = vmatprep.subr.mxu0 0.0
    %5447 = vmatpush1.msra.mxu0 %v1632
    %5448 = vmatprep.subr.mxu0 0.0
    %5449 = vmatpush1.msra.mxu0 %v1633
    %5450 = vmatprep.subr.mxu0 0.0
    %5451 = vmatpush1.msra.mxu0 %v1634
    %5452 = vmatprep.subr.mxu0 0.0
    %5453 = vmatpush1.msra.mxu0 %v1635
    %5454 = vmatprep.subr.mxu0 0.0
    %5455 = vmatpush1.msra.mxu0 %v1636
    %5456 = vmatprep.subr.mxu0 0.0
    %5457 = vmatpush1.msra.mxu0 %v1637
    %5458 = vmatprep.subr.mxu0 0.0
    %5459 = vmatpush1.msra.mxu0 %v1638
    %5460 = vmatprep.subr.mxu0 0.0
    %5461 = vmatpush1.msra.mxu0 %v1639
    %5462 = vmatprep.subr.mxu0 0.0
    %5463 = vmatpush1.msra.mxu0 %v1640
    %5464 = vmatprep.subr.mxu0 0.0
    %5465 = vmatpush1.msra.mxu0 %v1641
    %5466 = vmatprep.subr.mxu0 0.0
    %5467 = vmatpush1.msra.mxu0 %v1642
    %5468 = vmatprep.subr.mxu0 0.0
    %5469 = vmatpush1.msra.mxu0 %v1643
    %5470 = vmatprep.subr.mxu0 0.0
    %5471 = vmatpush1.msra.mxu0 %v1644
    %5472 = vmatprep.subr.mxu0 0.0
    %5473 = vmatpush1.msra.mxu0 %v1645
    %5474 = vmatprep.subr.mxu0 0.0
    %5475 = vmatpush1.msra.mxu0 %v1646
    %5476 = vmatprep.subr.mxu0 0.0
    %5477 = vmatpush1.msra.mxu0 %v1647
    %5478 = vmatprep.subr.mxu0 0.0
    %5479 = vmatpush1.msra.mxu0 %v1648
    %5480 = vmatprep.subr.mxu0 0.0
    %5481 = vmatpush1.msra.mxu0 %v1649
    %5482 = vmatprep.subr.mxu0 0.0
    %5483 = vmatpush1.msra.mxu0 %v1650
    %5484 = vmatprep.subr.mxu0 0.0
    %5485 = vmatpush1.msra.mxu0 %v1651
    %5486 = vmatprep.subr.mxu0 0.0
    %5487 = vmatpush1.msra.mxu0 %v1652
    %5488 = vmatprep.mubr.f32.mxu0 %v114
    %5489 = vmatmul.mubr.f32.gmra.mrb[0].mxu0 %v113
    %v5490 = vpop.f32.mrb[0].mxu0
    %v5491 = vadd.f32 %v5421, %v5490
    %v5492 = vpop.f32.mrb[0].mxu0
    %5493 = vdwg.mxu0
    %5494 = vmatprep.subr.mxu0 0.0
    %5495 = vmatpush1.msra.mxu0 %v1653
    %5496 = vmatprep.subr.mxu0 0.0
    %5497 = vmatpush1.msra.mxu0 %v1654
    %5498 = vmatprep.subr.mxu0 0.0
    %5499 = vmatpush1.msra.mxu0 %v1655
    %5500 = vmatprep.subr.mxu0 0.0
    %5501 = vmatpush1.msra.mxu0 %v1656
    %5502 = vmatprep.subr.mxu0 0.0
    %5503 = vmatpush1.msra.mxu0 %v1657
    %5504 = vmatprep.subr.mxu0 0.0
    %5505 = vmatpush1.msra.mxu0 %v1658
    %5506 = vmatprep.subr.mxu0 0.0
    %5507 = vmatpush1.msra.mxu0 %v1659
    %5508 = vmatprep.subr.mxu0 0.0
    %5509 = vmatpush1.msra.mxu0 %v1660
    %5510 = vmatprep.subr.mxu0 0.0
    %5511 = vmatpush1.msra.mxu0 %v1661
    %5512 = vmatprep.subr.mxu0 0.0
    %5513 = vmatpush1.msra.mxu0 %v1662
    %5514 = vmatprep.subr.mxu0 0.0
    %5515 = vmatpush1.msra.mxu0 %v1663
    %5516 = vmatprep.subr.mxu0 0.0
    %5517 = vmatpush1.msra.mxu0 %v1664
    %5518 = vmatprep.subr.mxu0 0.0
    %5519 = vmatpush1.msra.mxu0 %v1665
    %5520 = vmatprep.subr.mxu0 0.0
    %5521 = vmatpush1.msra.mxu0 %v1666
    %5522 = vmatprep.subr.mxu0 0.0
    %5523 = vmatpush1.msra.mxu0 %v1667
    %5524 = vmatprep.subr.mxu0 0.0
    %5525 = vmatpush1.msra.mxu0 %v1668
    %5526 = vmatprep.subr.mxu0 0.0
    %5527 = vmatpush1.msra.mxu0 %v1669
    %5528 = vmatprep.subr.mxu0 0.0
    %5529 = vmatpush1.msra.mxu0 %v1670
    %5530 = vmatprep.subr.mxu0 0.0
    %5531 = vmatpush1.msra.mxu0 %v1671
    %5532 = vmatprep.subr.mxu0 0.0
    %5533 = vmatpush1.msra.mxu0 %v1672
    %5534 = vmatprep.subr.mxu0 0.0
    %5535 = vmatpush1.msra.mxu0 %v1673
    %5536 = vmatprep.subr.mxu0 0.0
    %5537 = vmatpush1.msra.mxu0 %v1674
    %5538 = vmatprep.subr.mxu0 0.0
    %5539 = vmatpush1.msra.mxu0 %v1675
    %5540 = vmatprep.subr.mxu0 0.0
    %5541 = vmatpush1.msra.mxu0 %v1676
    %5542 = vmatprep.subr.mxu0 0.0
    %5543 = vmatpush1.msra.mxu0 %v1677
    %5544 = vmatprep.subr.mxu0 0.0
    %5545 = vmatpush1.msra.mxu0 %v1678
    %5546 = vmatprep.subr.mxu0 0.0
    %5547 = vmatpush1.msra.mxu0 %v1679
    %5548 = vmatprep.subr.mxu0 0.0
    %5549 = vmatpush1.msra.mxu0 %v1680
    %5550 = vmatprep.subr.mxu0 0.0
    %5551 = vmatpush1.msra.mxu0 %v1681
    %5552 = vmatprep.subr.mxu0 0.0
    %5553 = vmatpush1.msra.mxu0 %v1682
    %5554 = vmatprep.subr.mxu0 0.0
    %5555 = vmatpush1.msra.mxu0 %v1683
    %5556 = vmatprep.subr.mxu0 0.0
    %5557 = vmatpush1.msra.mxu0 %v1684
    %5558 = vmatprep.mubr.f32.mxu0 %v116
    %5559 = vmatmul.mubr.f32.gmra.mrb[0].mxu0 %v115
    %v5560 = vpop.f32.mrb[0].mxu0
    %v5561 = vadd.f32 %v5491, %v5560
    %v5562 = vpop.f32.mrb[0].mxu0
    %5563 = vdwg.mxu0
    %5564 = vmatprep.subr.mxu0 0.0
    %5565 = vmatpush1.msra.mxu0 %v1685
    %5566 = vmatprep.subr.mxu0 0.0
    %5567 = vmatpush1.msra.mxu0 %v1686
    %5568 = vmatprep.subr.mxu0 0.0
    %5569 = vmatpush1.msra.mxu0 %v1687
    %5570 = vmatprep.subr.mxu0 0.0
    %5571 = vmatpush1.msra.mxu0 %v1688
    %5572 = vmatprep.subr.mxu0 0.0
    %5573 = vmatpush1.msra.mxu0 %v1689
    %5574 = vmatprep.subr.mxu0 0.0
    %5575 = vmatpush1.msra.mxu0 %v1690
    %5576 = vmatprep.subr.mxu0 0.0
    %5577 = vmatpush1.msra.mxu0 %v1691
    %5578 = vmatprep.subr.mxu0 0.0
    %5579 = vmatpush1.msra.mxu0 %v1692
    %5580 = vmatprep.subr.mxu0 0.0
    %5581 = vmatpush1.msra.mxu0 %v1693
    %5582 = vmatprep.subr.mxu0 0.0
    %5583 = vmatpush1.msra.mxu0 %v1694
    %5584 = vmatprep.subr.mxu0 0.0
    %5585 = vmatpush1.msra.mxu0 %v1695
    %5586 = vmatprep.subr.mxu0 0.0
    %5587 = vmatpush1.msra.mxu0 %v1696
    %5588 = vmatprep.subr.mxu0 0.0
    %5589 = vmatpush1.msra.mxu0 %v1697
    %5590 = vmatprep.subr.mxu0 0.0
    %5591 = vmatpush1.msra.mxu0 %v1698
    %5592 = vmatprep.subr.mxu0 0.0
    %5593 = vmatpush1.msra.mxu0 %v1699
    %5594 = vmatprep.subr.mxu0 0.0
    %5595 = vmatpush1.msra.mxu0 %v1700
    %5596 = vmatprep.subr.mxu0 0.0
    %5597 = vmatpush1.msra.mxu0 %v1701
    %5598 = vmatprep.subr.mxu0 0.0
    %5599 = vmatpush1.msra.mxu0 %v1702
    %5600 = vmatprep.subr.mxu0 0.0
    %5601 = vmatpush1.msra.mxu0 %v1703
    %5602 = vmatprep.subr.mxu0 0.0
    %5603 = vmatpush1.msra.mxu0 %v1704
    %5604 = vmatprep.subr.mxu0 0.0
    %5605 = vmatpush1.msra.mxu0 %v1705
    %5606 = vmatprep.subr.mxu0 0.0
    %5607 = vmatpush1.msra.mxu0 %v1706
    %5608 = vmatprep.subr.mxu0 0.0
    %5609 = vmatpush1.msra.mxu0 %v1707
    %5610 = vmatprep.subr.mxu0 0.0
    %5611 = vmatpush1.msra.mxu0 %v1708
    %5612 = vmatprep.subr.mxu0 0.0
    %5613 = vmatpush1.msra.mxu0 %v1709
    %5614 = vmatprep.subr.mxu0 0.0
    %5615 = vmatpush1.msra.mxu0 %v1710
    %5616 = vmatprep.subr.mxu0 0.0
    %5617 = vmatpush1.msra.mxu0 %v1711
    %5618 = vmatprep.subr.mxu0 0.0
    %5619 = vmatpush1.msra.mxu0 %v1712
    %5620 = vmatprep.subr.mxu0 0.0
    %5621 = vmatpush1.msra.mxu0 %v1713
    %5622 = vmatprep.subr.mxu0 0.0
    %5623 = vmatpush1.msra.mxu0 %v1714
    %5624 = vmatprep.subr.mxu0 0.0
    %5625 = vmatpush1.msra.mxu0 %v1715
    %5626 = vmatprep.subr.mxu0 0.0
    %5627 = vmatpush1.msra.mxu0 %v1716
    %5628 = vmatprep.mubr.f32.mxu0 %v118
    %5629 = vmatmul.mubr.f32.gmra.mrb[0].mxu0 %v117
    %v5630 = vpop.f32.mrb[0].mxu0
    %v5631 = vadd.f32 %v5561, %v5630
    %v5632 = vpop.f32.mrb[0].mxu0
    %5633 = vdwg.mxu0
    %5634 = vmatprep.subr.mxu0 0.0
    %5635 = vmatpush1.msra.mxu0 %v1717
    %5636 = vmatprep.subr.mxu0 0.0
    %5637 = vmatpush1.msra.mxu0 %v1718
    %5638 = vmatprep.subr.mxu0 0.0
    %5639 = vmatpush1.msra.mxu0 %v1719
    %5640 = vmatprep.subr.mxu0 0.0
    %5641 = vmatpush1.msra.mxu0 %v1720
    %5642 = vmatprep.subr.mxu0 0.0
    %5643 = vmatpush1.msra.mxu0 %v1721
    %5644 = vmatprep.subr.mxu0 0.0
    %5645 = vmatpush1.msra.mxu0 %v1722
    %5646 = vmatprep.subr.mxu0 0.0
    %5647 = vmatpush1.msra.mxu0 %v1723
    %5648 = vmatprep.subr.mxu0 0.0
    %5649 = vmatpush1.msra.mxu0 %v1724
    %5650 = vmatprep.subr.mxu0 0.0
    %5651 = vmatpush1.msra.mxu0 %v1725
    %5652 = vmatprep.subr.mxu0 0.0
    %5653 = vmatpush1.msra.mxu0 %v1726
    %5654 = vmatprep.subr.mxu0 0.0
    %5655 = vmatpush1.msra.mxu0 %v1727
    %5656 = vmatprep.subr.mxu0 0.0
    %5657 = vmatpush1.msra.mxu0 %v1728
    %5658 = vmatprep.subr.mxu0 0.0
    %5659 = vmatpush1.msra.mxu0 %v1729
    %5660 = vmatprep.subr.mxu0 0.0
    %5661 = vmatpush1.msra.mxu0 %v1730
    %5662 = vmatprep.subr.mxu0 0.0
    %5663 = vmatpush1.msra.mxu0 %v1731
    %5664 = vmatprep.subr.mxu0 0.0
    %5665 = vmatpush1.msra.mxu0 %v1732
    %5666 = vmatprep.subr.mxu0 0.0
    %5667 = vmatpush1.msra.mxu0 %v1733
    %5668 = vmatprep.subr.mxu0 0.0
    %5669 = vmatpush1.msra.mxu0 %v1734
    %5670 = vmatprep.subr.mxu0 0.0
    %5671 = vmatpush1.msra.mxu0 %v1735
    %5672 = vmatprep.subr.mxu0 0.0
    %5673 = vmatpush1.msra.mxu0 %v1736
    %5674 = vmatprep.subr.mxu0 0.0
    %5675 = vmatpush1.msra.mxu0 %v1737
    %5676 = vmatprep.subr.mxu0 0.0
    %5677 = vmatpush1.msra.mxu0 %v1738
    %5678 = vmatprep.subr.mxu0 0.0
    %5679 = vmatpush1.msra.mxu0 %v1739
    %5680 = vmatprep.subr.mxu0 0.0
    %5681 = vmatpush1.msra.mxu0 %v1740
    %5682 = vmatprep.subr.mxu0 0.0
    %5683 = vmatpush1.msra.mxu0 %v1741
    %5684 = vmatprep.subr.mxu0 0.0
    %5685 = vmatpush1.msra.mxu0 %v1742
    %5686 = vmatprep.subr.mxu0 0.0
    %5687 = vmatpush1.msra.mxu0 %v1743
    %5688 = vmatprep.subr.mxu0 0.0
    %5689 = vmatpush1.msra.mxu0 %v1744
    %5690 = vmatprep.subr.mxu0 0.0
    %5691 = vmatpush1.msra.mxu0 %v1745
    %5692 = vmatprep.subr.mxu0 0.0
    %5693 = vmatpush1.msra.mxu0 %v1746
    %5694 = vmatprep.subr.mxu0 0.0
    %5695 = vmatpush1.msra.mxu0 %v1747
    %5696 = vmatprep.subr.mxu0 0.0
    %5697 = vmatpush1.msra.mxu0 %v1748
    %5698 = vmatprep.mubr.f32.mxu0 %v120
    %5699 = vmatmul.mubr.f32.gmra.mrb[0].mxu0 %v119
    %v5700 = vpop.f32.mrb[0].mxu0
    %v5701 = vadd.f32 %v5631, %v5700
    %v5702 = vpop.f32.mrb[0].mxu0
    %5703 = vdwg.mxu0
    %5704 = vmatprep.subr.mxu0 0.0
    %5705 = vmatpush1.msra.mxu0 %v1749
    %5706 = vmatprep.subr.mxu0 0.0
    %5707 = vmatpush1.msra.mxu0 %v1750
    %5708 = vmatprep.subr.mxu0 0.0
    %5709 = vmatpush1.msra.mxu0 %v1751
    %5710 = vmatprep.subr.mxu0 0.0
    %5711 = vmatpush1.msra.mxu0 %v1752
    %5712 = vmatprep.subr.mxu0 0.0
    %5713 = vmatpush1.msra.mxu0 %v1753
    %5714 = vmatprep.subr.mxu0 0.0
    %5715 = vmatpush1.msra.mxu0 %v1754
    %5716 = vmatprep.subr.mxu0 0.0
    %5717 = vmatpush1.msra.mxu0 %v1755
    %5718 = vmatprep.subr.mxu0 0.0
    %5719 = vmatpush1.msra.mxu0 %v1756
    %5720 = vmatprep.subr.mxu0 0.0
    %5721 = vmatpush1.msra.mxu0 %v1757
    %5722 = vmatprep.subr.mxu0 0.0
    %5723 = vmatpush1.msra.mxu0 %v1758
    %5724 = vmatprep.subr.mxu0 0.0
    %5725 = vmatpush1.msra.mxu0 %v1759
    %5726 = vmatprep.subr.mxu0 0.0
    %5727 = vmatpush1.msra.mxu0 %v1760
    %5728 = vmatprep.subr.mxu0 0.0
    %5729 = vmatpush1.msra.mxu0 %v1761
    %5730 = vmatprep.subr.mxu0 0.0
    %5731 = vmatpush1.msra.mxu0 %v1762
    %5732 = vmatprep.subr.mxu0 0.0
    %5733 = vmatpush1.msra.mxu0 %v1763
    %5734 = vmatprep.subr.mxu0 0.0
    %5735 = vmatpush1.msra.mxu0 %v1764
    %5736 = vmatprep.subr.mxu0 0.0
    %5737 = vmatpush1.msra.mxu0 %v1765
    %5738 = vmatprep.subr.mxu0 0.0
    %5739 = vmatpush1.msra.mxu0 %v1766
    %5740 = vmatprep.subr.mxu0 0.0
    %5741 = vmatpush1.msra.mxu0 %v1767
    %5742 = vmatprep.subr.mxu0 0.0
    %5743 = vmatpush1.msra.mxu0 %v1768
    %5744 = vmatprep.subr.mxu0 0.0
    %5745 = vmatpush1.msra.mxu0 %v1769
    %5746 = vmatprep.subr.mxu0 0.0
    %5747 = vmatpush1.msra.mxu0 %v1770
    %5748 = vmatprep.subr.mxu0 0.0
    %5749 = vmatpush1.msra.mxu0 %v1771
    %5750 = vmatprep.subr.mxu0 0.0
    %5751 = vmatpush1.msra.mxu0 %v1772
    %5752 = vmatprep.subr.mxu0 0.0
    %5753 = vmatpush1.msra.mxu0 %v1773
    %5754 = vmatprep.subr.mxu0 0.0
    %5755 = vmatpush1.msra.mxu0 %v1774
    %5756 = vmatprep.subr.mxu0 0.0
    %5757 = vmatpush1.msra.mxu0 %v1775
    %5758 = vmatprep.subr.mxu0 0.0
    %5759 = vmatpush1.msra.mxu0 %v1776
    %5760 = vmatprep.subr.mxu0 0.0
    %5761 = vmatpush1.msra.mxu0 %v1777
    %5762 = vmatprep.subr.mxu0 0.0
    %5763 = vmatpush1.msra.mxu0 %v1778
    %5764 = vmatprep.subr.mxu0 0.0
    %5765 = vmatpush1.msra.mxu0 %v1779
    %5766 = vmatprep.subr.mxu0 0.0
    %5767 = vmatpush1.msra.mxu0 %v1780
    %5768 = vmatprep.mubr.f32.mxu0 %v122
    %5769 = vmatmul.mubr.f32.gmra.mrb[0].mxu0 %v121
    %v5770 = vpop.f32.mrb[0].mxu0
    %v5771 = vadd.f32 %v5701, %v5770
    %v5772 = vpop.f32.mrb[0].mxu0
    %5773 = vdwg.mxu0
    %5774 = vmatprep.subr.mxu0 0.0
    %5775 = vmatpush1.msra.mxu0 %v1781
    %5776 = vmatprep.subr.mxu0 0.0
    %5777 = vmatpush1.msra.mxu0 %v1782
    %5778 = vmatprep.subr.mxu0 0.0
    %5779 = vmatpush1.msra.mxu0 %v1783
    %5780 = vmatprep.subr.mxu0 0.0
    %5781 = vmatpush1.msra.mxu0 %v1784
    %5782 = vmatprep.subr.mxu0 0.0
    %5783 = vmatpush1.msra.mxu0 %v1785
    %5784 = vmatprep.subr.mxu0 0.0
    %5785 = vmatpush1.msra.mxu0 %v1786
    %5786 = vmatprep.subr.mxu0 0.0
    %5787 = vmatpush1.msra.mxu0 %v1787
    %5788 = vmatprep.subr.mxu0 0.0
    %5789 = vmatpush1.msra.mxu0 %v1788
    %5790 = vmatprep.subr.mxu0 0.0
    %5791 = vmatpush1.msra.mxu0 %v1789
    %5792 = vmatprep.subr.mxu0 0.0
    %5793 = vmatpush1.msra.mxu0 %v1790
    %5794 = vmatprep.subr.mxu0 0.0
    %5795 = vmatpush1.msra.mxu0 %v1791
    %5796 = vmatprep.subr.mxu0 0.0
    %5797 = vmatpush1.msra.mxu0 %v1792
    %5798 = vmatprep.subr.mxu0 0.0
    %5799 = vmatpush1.msra.mxu0 %v1793
    %5800 = vmatprep.subr.mxu0 0.0
    %5801 = vmatpush1.msra.mxu0 %v1794
    %5802 = vmatprep.subr.mxu0 0.0
    %5803 = vmatpush1.msra.mxu0 %v1795
    %5804 = vmatprep.subr.mxu0 0.0
    %5805 = vmatpush1.msra.mxu0 %v1796
    %5806 = vmatprep.subr.mxu0 0.0
    %5807 = vmatpush1.msra.mxu0 %v1797
    %5808 = vmatprep.subr.mxu0 0.0
    %5809 = vmatpush1.msra.mxu0 %v1798
    %5810 = vmatprep.subr.mxu0 0.0
    %5811 = vmatpush1.msra.mxu0 %v1799
    %5812 = vmatprep.subr.mxu0 0.0
    %5813 = vmatpush1.msra.mxu0 %v1800
    %5814 = vmatprep.subr.mxu0 0.0
    %5815 = vmatpush1.msra.mxu0 %v1801
    %5816 = vmatprep.subr.mxu0 0.0
    %5817 = vmatpush1.msra.mxu0 %v1802
    %5818 = vmatprep.subr.mxu0 0.0
    %5819 = vmatpush1.msra.mxu0 %v1803
    %5820 = vmatprep.subr.mxu0 0.0
    %5821 = vmatpush1.msra.mxu0 %v1804
    %5822 = vmatprep.subr.mxu0 0.0
    %5823 = vmatpush1.msra.mxu0 %v1805
    %5824 = vmatprep.subr.mxu0 0.0
    %5825 = vmatpush1.msra.mxu0 %v1806
    %5826 = vmatprep.subr.mxu0 0.0
    %5827 = vmatpush1.msra.mxu0 %v1807
    %5828 = vmatprep.subr.mxu0 0.0
    %5829 = vmatpush1.msra.mxu0 %v1808
    %5830 = vmatprep.subr.mxu0 0.0
    %5831 = vmatpush1.msra.mxu0 %v1809
    %5832 = vmatprep.subr.mxu0 0.0
    %5833 = vmatpush1.msra.mxu0 %v1810
    %5834 = vmatprep.subr.mxu0 0.0
    %5835 = vmatpush1.msra.mxu0 %v1811
    %5836 = vmatprep.subr.mxu0 0.0
    %5837 = vmatpush1.msra.mxu0 %v1812
    %5838 = vmatprep.mubr.f32.mxu0 %v124
    %5839 = vmatmul.mubr.f32.gmra.mrb[0].mxu0 %v123
    %v5840 = vpop.f32.mrb[0].mxu0
    %v5841 = vadd.f32 %v5771, %v5840
    %v5842 = vpop.f32.mrb[0].mxu0
    %5843 = vdwg.mxu0
    %5844 = vmatprep.subr.mxu0 0.0
    %5845 = vmatpush1.msra.mxu0 %v1813
    %5846 = vmatprep.subr.mxu0 0.0
    %5847 = vmatpush1.msra.mxu0 %v1814
    %5848 = vmatprep.subr.mxu0 0.0
    %5849 = vmatpush1.msra.mxu0 %v1815
    %5850 = vmatprep.subr.mxu0 0.0
    %5851 = vmatpush1.msra.mxu0 %v1816
    %5852 = vmatprep.subr.mxu0 0.0
    %5853 = vmatpush1.msra.mxu0 %v1817
    %5854 = vmatprep.subr.mxu0 0.0
    %5855 = vmatpush1.msra.mxu0 %v1818
    %5856 = vmatprep.subr.mxu0 0.0
    %5857 = vmatpush1.msra.mxu0 %v1819
    %5858 = vmatprep.subr.mxu0 0.0
    %5859 = vmatpush1.msra.mxu0 %v1820
    %5860 = vmatprep.subr.mxu0 0.0
    %5861 = vmatpush1.msra.mxu0 %v1821
    %5862 = vmatprep.subr.mxu0 0.0
    %5863 = vmatpush1.msra.mxu0 %v1822
    %5864 = vmatprep.subr.mxu0 0.0
    %5865 = vmatpush1.msra.mxu0 %v1823
    %5866 = vmatprep.subr.mxu0 0.0
    %5867 = vmatpush1.msra.mxu0 %v1824
    %5868 = vmatprep.subr.mxu0 0.0
    %5869 = vmatpush1.msra.mxu0 %v1825
    %5870 = vmatprep.subr.mxu0 0.0
    %5871 = vmatpush1.msra.mxu0 %v1826
    %5872 = vmatprep.subr.mxu0 0.0
    %5873 = vmatpush1.msra.mxu0 %v1827
    %5874 = vmatprep.subr.mxu0 0.0
    %5875 = vmatpush1.msra.mxu0 %v1828
    %5876 = vmatprep.subr.mxu0 0.0
    %5877 = vmatpush1.msra.mxu0 %v1829
    %5878 = vmatprep.subr.mxu0 0.0
    %5879 = vmatpush1.msra.mxu0 %v1830
    %5880 = vmatprep.subr.mxu0 0.0
    %5881 = vmatpush1.msra.mxu0 %v1831
    %5882 = vmatprep.subr.mxu0 0.0
    %5883 = vmatpush1.msra.mxu0 %v1832
    %5884 = vmatprep.subr.mxu0 0.0
    %5885 = vmatpush1.msra.mxu0 %v1833
    %5886 = vmatprep.subr.mxu0 0.0
    %5887 = vmatpush1.msra.mxu0 %v1834
    %5888 = vmatprep.subr.mxu0 0.0
    %5889 = vmatpush1.msra.mxu0 %v1835
    %5890 = vmatprep.subr.mxu0 0.0
    %5891 = vmatpush1.msra.mxu0 %v1836
    %5892 = vmatprep.subr.mxu0 0.0
    %5893 = vmatpush1.msra.mxu0 %v1837
    %5894 = vmatprep.subr.mxu0 0.0
    %5895 = vmatpush1.msra.mxu0 %v1838
    %5896 = vmatprep.subr.mxu0 0.0
    %5897 = vmatpush1.msra.mxu0 %v1839
    %5898 = vmatprep.subr.mxu0 0.0
    %5899 = vmatpush1.msra.mxu0 %v1840
    %5900 = vmatprep.subr.mxu0 0.0
    %5901 = vmatpush1.msra.mxu0 %v1841
    %5902 = vmatprep.subr.mxu0 0.0
    %5903 = vmatpush1.msra.mxu0 %v1842
    %5904 = vmatprep.subr.mxu0 0.0
    %5905 = vmatpush1.msra.mxu0 %v1843
    %5906 = vmatprep.subr.mxu0 0.0
    %5907 = vmatpush1.msra.mxu0 %v1844
    %5908 = vmatprep.mubr.f32.mxu0 %v126
    %5909 = vmatmul.mubr.f32.gmra.mrb[0].mxu0 %v125
    %v5910 = vpop.f32.mrb[0].mxu0
    %v5911 = vadd.f32 %v5841, %v5910
    %v5912 = vpop.f32.mrb[0].mxu0
    %5913 = vdwg.mxu0
    %5914 = vmatprep.subr.mxu0 0.0
    %5915 = vmatpush1.msra.mxu0 %v1845
    %5916 = vmatprep.subr.mxu0 0.0
    %5917 = vmatpush1.msra.mxu0 %v1846
    %5918 = vmatprep.subr.mxu0 0.0
    %5919 = vmatpush1.msra.mxu0 %v1847
    %5920 = vmatprep.subr.mxu0 0.0
    %5921 = vmatpush1.msra.mxu0 %v1848
    %5922 = vmatprep.subr.mxu0 0.0
    %5923 = vmatpush1.msra.mxu0 %v1849
    %5924 = vmatprep.subr.mxu0 0.0
    %5925 = vmatpush1.msra.mxu0 %v1850
    %5926 = vmatprep.subr.mxu0 0.0
    %5927 = vmatpush1.msra.mxu0 %v1851
    %5928 = vmatprep.subr.mxu0 0.0
    %5929 = vmatpush1.msra.mxu0 %v1852
    %5930 = vmatprep.subr.mxu0 0.0
    %5931 = vmatpush1.msra.mxu0 %v1853
    %5932 = vmatprep.subr.mxu0 0.0
    %5933 = vmatpush1.msra.mxu0 %v1854
    %5934 = vmatprep.subr.mxu0 0.0
    %5935 = vmatpush1.msra.mxu0 %v1855
    %5936 = vmatprep.subr.mxu0 0.0
    %5937 = vmatpush1.msra.mxu0 %v1856
    %5938 = vmatprep.subr.mxu0 0.0
    %5939 = vmatpush1.msra.mxu0 %v1857
    %5940 = vmatprep.subr.mxu0 0.0
    %5941 = vmatpush1.msra.mxu0 %v1858
    %5942 = vmatprep.subr.mxu0 0.0
    %5943 = vmatpush1.msra.mxu0 %v1859
    %5944 = vmatprep.subr.mxu0 0.0
    %5945 = vmatpush1.msra.mxu0 %v1860
    %5946 = vmatprep.subr.mxu0 0.0
    %5947 = vmatpush1.msra.mxu0 %v1861
    %5948 = vmatprep.subr.mxu0 0.0
    %5949 = vmatpush1.msra.mxu0 %v1862
    %5950 = vmatprep.subr.mxu0 0.0
    %5951 = vmatpush1.msra.mxu0 %v1863
    %5952 = vmatprep.subr.mxu0 0.0
    %5953 = vmatpush1.msra.mxu0 %v1864
    %5954 = vmatprep.subr.mxu0 0.0
    %5955 = vmatpush1.msra.mxu0 %v1865
    %5956 = vmatprep.subr.mxu0 0.0
    %5957 = vmatpush1.msra.mxu0 %v1866
    %5958 = vmatprep.subr.mxu0 0.0
    %5959 = vmatpush1.msra.mxu0 %v1867
    %5960 = vmatprep.subr.mxu0 0.0
    %5961 = vmatpush1.msra.mxu0 %v1868
    %5962 = vmatprep.subr.mxu0 0.0
    %5963 = vmatpush1.msra.mxu0 %v1869
    %5964 = vmatprep.subr.mxu0 0.0
    %5965 = vmatpush1.msra.mxu0 %v1870
    %5966 = vmatprep.subr.mxu0 0.0
    %5967 = vmatpush1.msra.mxu0 %v1871
    %5968 = vmatprep.subr.mxu0 0.0
    %5969 = vmatpush1.msra.mxu0 %v1872
    %5970 = vmatprep.subr.mxu0 0.0
    %5971 = vmatpush1.msra.mxu0 %v1873
    %5972 = vmatprep.subr.mxu0 0.0
    %5973 = vmatpush1.msra.mxu0 %v1874
    %5974 = vmatprep.subr.mxu0 0.0
    %5975 = vmatpush1.msra.mxu0 %v1875
    %5976 = vmatprep.subr.mxu0 0.0
    %5977 = vmatpush1.msra.mxu0 %v1876
    %5978 = vmatprep.mubr.f32.mxu0 %v128
    %5979 = vmatmul.mubr.f32.gmra.mrb[0].mxu0 %v127
    %v5980 = vpop.f32.mrb[0].mxu0
    %v5981 = vadd.f32 %v5911, %v5980
    %v5982 = vpop.f32.mrb[0].mxu0
    %5983 = vdwg.mxu0
    %5984 = vmatprep.subr.mxu0 0.0
    %5985 = vmatpush1.msra.mxu0 %v1877
    %5986 = vmatprep.subr.mxu0 0.0
    %5987 = vmatpush1.msra.mxu0 %v1878
    %5988 = vmatprep.subr.mxu0 0.0
    %5989 = vmatpush1.msra.mxu0 %v1879
    %5990 = vmatprep.subr.mxu0 0.0
    %5991 = vmatpush1.msra.mxu0 %v1880
    %5992 = vmatprep.subr.mxu0 0.0
    %5993 = vmatpush1.msra.mxu0 %v1881
    %5994 = vmatprep.subr.mxu0 0.0
    %5995 = vmatpush1.msra.mxu0 %v1882
    %5996 = vmatprep.subr.mxu0 0.0
    %5997 = vmatpush1.msra.mxu0 %v1883
    %5998 = vmatprep.subr.mxu0 0.0
    %5999 = vmatpush1.msra.mxu0 %v1884
    %6000 = vmatprep.subr.mxu0 0.0
    %6001 = vmatpush1.msra.mxu0 %v1885
    %6002 = vmatprep.subr.mxu0 0.0
    %6003 = vmatpush1.msra.mxu0 %v1886
    %6004 = vmatprep.subr.mxu0 0.0
    %6005 = vmatpush1.msra.mxu0 %v1887
    %6006 = vmatprep.subr.mxu0 0.0
    %6007 = vmatpush1.msra.mxu0 %v1888
    %6008 = vmatprep.subr.mxu0 0.0
    %6009 = vmatpush1.msra.mxu0 %v1889
    %6010 = vmatprep.subr.mxu0 0.0
    %6011 = vmatpush1.msra.mxu0 %v1890
    %6012 = vmatprep.subr.mxu0 0.0
    %6013 = vmatpush1.msra.mxu0 %v1891
    %6014 = vmatprep.subr.mxu0 0.0
    %6015 = vmatpush1.msra.mxu0 %v1892
    %6016 = vmatprep.subr.mxu0 0.0
    %6017 = vmatpush1.msra.mxu0 %v1893
    %6018 = vmatprep.subr.mxu0 0.0
    %6019 = vmatpush1.msra.mxu0 %v1894
    %6020 = vmatprep.subr.mxu0 0.0
    %6021 = vmatpush1.msra.mxu0 %v1895
    %6022 = vmatprep.subr.mxu0 0.0
    %6023 = vmatpush1.msra.mxu0 %v1896
    %6024 = vmatprep.subr.mxu0 0.0
    %6025 = vmatpush1.msra.mxu0 %v1897
    %6026 = vmatprep.subr.mxu0 0.0
    %6027 = vmatpush1.msra.mxu0 %v1898
    %6028 = vmatprep.subr.mxu0 0.0
    %6029 = vmatpush1.msra.mxu0 %v1899
    %6030 = vmatprep.subr.mxu0 0.0
    %6031 = vmatpush1.msra.mxu0 %v1900
    %6032 = vmatprep.subr.mxu0 0.0
    %6033 = vmatpush1.msra.mxu0 %v1901
    %6034 = vmatprep.subr.mxu0 0.0
    %6035 = vmatpush1.msra.mxu0 %v1902
    %6036 = vmatprep.subr.mxu0 0.0
    %6037 = vmatpush1.msra.mxu0 %v1903
    %6038 = vmatprep.subr.mxu0 0.0
    %6039 = vmatpush1.msra.mxu0 %v1904
    %6040 = vmatprep.subr.mxu0 0.0
    %6041 = vmatpush1.msra.mxu0 %v1905
    %6042 = vmatprep.subr.mxu0 0.0
    %6043 = vmatpush1.msra.mxu0 %v1906
    %6044 = vmatprep.subr.mxu0 0.0
    %6045 = vmatpush1.msra.mxu0 %v1907
    %6046 = vmatprep.subr.mxu0 0.0
    %6047 = vmatpush1.msra.mxu0 %v1908
    %6048 = vmatprep.mubr.f32.mxu0 %v130
    %6049 = vmatmul.mubr.f32.gmra.mrb[0].mxu0 %v129
    %v6050 = vpop.f32.mrb[0].mxu0
    %v6051 = vadd.f32 %v5981, %v6050
    %v6052 = vpop.f32.mrb[0].mxu0
    %6053 = vdwg.mxu0
    %6054 = vmatprep.subr.mxu0 0.0
    %6055 = vmatpush1.msra.mxu0 %v1909
    %6056 = vmatprep.subr.mxu0 0.0
    %6057 = vmatpush1.msra.mxu0 %v1910
    %6058 = vmatprep.subr.mxu0 0.0
    %6059 = vmatpush1.msra.mxu0 %v1911
    %6060 = vmatprep.subr.mxu0 0.0
    %6061 = vmatpush1.msra.mxu0 %v1912
    %6062 = vmatprep.subr.mxu0 0.0
    %6063 = vmatpush1.msra.mxu0 %v1913
    %6064 = vmatprep.subr.mxu0 0.0
    %6065 = vmatpush1.msra.mxu0 %v1914
    %6066 = vmatprep.subr.mxu0 0.0
    %6067 = vmatpush1.msra.mxu0 %v1915
    %6068 = vmatprep.subr.mxu0 0.0
    %6069 = vmatpush1.msra.mxu0 %v1916
    %6070 = vmatprep.subr.mxu0 0.0
    %6071 = vmatpush1.msra.mxu0 %v1917
    %6072 = vmatprep.subr.mxu0 0.0
    %6073 = vmatpush1.msra.mxu0 %v1918
    %6074 = vmatprep.subr.mxu0 0.0
    %6075 = vmatpush1.msra.mxu0 %v1919
    %6076 = vmatprep.subr.mxu0 0.0
    %6077 = vmatpush1.msra.mxu0 %v1920
    %6078 = vmatprep.subr.mxu0 0.0
    %6079 = vmatpush1.msra.mxu0 %v1921
    %6080 = vmatprep.subr.mxu0 0.0
    %6081 = vmatpush1.msra.mxu0 %v1922
    %6082 = vmatprep.subr.mxu0 0.0
    %6083 = vmatpush1.msra.mxu0 %v1923
    %6084 = vmatprep.subr.mxu0 0.0
    %6085 = vmatpush1.msra.mxu0 %v1924
    %6086 = vmatprep.subr.mxu0 0.0
    %6087 = vmatpush1.msra.mxu0 %v1925
    %6088 = vmatprep.subr.mxu0 0.0
    %6089 = vmatpush1.msra.mxu0 %v1926
    %6090 = vmatprep.subr.mxu0 0.0
    %6091 = vmatpush1.msra.mxu0 %v1927
    %6092 = vmatprep.subr.mxu0 0.0
    %6093 = vmatpush1.msra.mxu0 %v1928
    %6094 = vmatprep.subr.mxu0 0.0
    %6095 = vmatpush1.msra.mxu0 %v1929
    %6096 = vmatprep.subr.mxu0 0.0
    %6097 = vmatpush1.msra.mxu0 %v1930
    %6098 = vmatprep.subr.mxu0 0.0
    %6099 = vmatpush1.msra.mxu0 %v1931
    %6100 = vmatprep.subr.mxu0 0.0
    %6101 = vmatpush1.msra.mxu0 %v1932
    %6102 = vmatprep.subr.mxu0 0.0
    %6103 = vmatpush1.msra.mxu0 %v1933
    %6104 = vmatprep.subr.mxu0 0.0
    %6105 = vmatpush1.msra.mxu0 %v1934
    %6106 = vmatprep.subr.mxu0 0.0
    %6107 = vmatpush1.msra.mxu0 %v1935
    %6108 = vmatprep.subr.mxu0 0.0
    %6109 = vmatpush1.msra.mxu0 %v1936
    %6110 = vmatprep.subr.mxu0 0.0
    %6111 = vmatpush1.msra.mxu0 %v1937
    %6112 = vmatprep.subr.mxu0 0.0
    %6113 = vmatpush1.msra.mxu0 %v1938
    %6114 = vmatprep.subr.mxu0 0.0
    %6115 = vmatpush1.msra.mxu0 %v1939
    %6116 = vmatprep.subr.mxu0 0.0
    %6117 = vmatpush1.msra.mxu0 %v1940
    %6118 = vmatprep.mubr.f32.mxu0 %v132
    %6119 = vmatmul.mubr.f32.gmra.mrb[0].mxu0 %v131
    %v6120 = vpop.f32.mrb[0].mxu0
    %v6121 = vadd.f32 %v6051, %v6120
    %v6122 = vpop.f32.mrb[0].mxu0
    %6123 = vdwg.mxu0
    %6124 = vmatprep.subr.mxu0 0.0
    %6125 = vmatpush1.msra.mxu0 %v1941
    %6126 = vmatprep.subr.mxu0 0.0
    %6127 = vmatpush1.msra.mxu0 %v1942
    %6128 = vmatprep.subr.mxu0 0.0
    %6129 = vmatpush1.msra.mxu0 %v1943
    %6130 = vmatprep.subr.mxu0 0.0
    %6131 = vmatpush1.msra.mxu0 %v1944
    %6132 = vmatprep.subr.mxu0 0.0
    %6133 = vmatpush1.msra.mxu0 %v1945
    %6134 = vmatprep.subr.mxu0 0.0
    %6135 = vmatpush1.msra.mxu0 %v1946
    %6136 = vmatprep.subr.mxu0 0.0
    %6137 = vmatpush1.msra.mxu0 %v1947
    %6138 = vmatprep.subr.mxu0 0.0
    %6139 = vmatpush1.msra.mxu0 %v1948
    %6140 = vmatprep.subr.mxu0 0.0
    %6141 = vmatpush1.msra.mxu0 %v1949
    %6142 = vmatprep.subr.mxu0 0.0
    %6143 = vmatpush1.msra.mxu0 %v1950
    %6144 = vmatprep.subr.mxu0 0.0
    %6145 = vmatpush1.msra.mxu0 %v1951
    %6146 = vmatprep.subr.mxu0 0.0
    %6147 = vmatpush1.msra.mxu0 %v1952
    %6148 = vmatprep.subr.mxu0 0.0
    %6149 = vmatpush1.msra.mxu0 %v1953
    %6150 = vmatprep.subr.mxu0 0.0
    %6151 = vmatpush1.msra.mxu0 %v1954
    %6152 = vmatprep.subr.mxu0 0.0
    %6153 = vmatpush1.msra.mxu0 %v1955
    %6154 = vmatprep.subr.mxu0 0.0
    %6155 = vmatpush1.msra.mxu0 %v1956
    %6156 = vmatprep.subr.mxu0 0.0
    %6157 = vmatpush1.msra.mxu0 %v1957
    %6158 = vmatprep.subr.mxu0 0.0
    %6159 = vmatpush1.msra.mxu0 %v1958
    %6160 = vmatprep.subr.mxu0 0.0
    %6161 = vmatpush1.msra.mxu0 %v1959
    %6162 = vmatprep.subr.mxu0 0.0
    %6163 = vmatpush1.msra.mxu0 %v1960
    %6164 = vmatprep.subr.mxu0 0.0
    %6165 = vmatpush1.msra.mxu0 %v1961
    %6166 = vmatprep.subr.mxu0 0.0
    %6167 = vmatpush1.msra.mxu0 %v1962
    %6168 = vmatprep.subr.mxu0 0.0
    %6169 = vmatpush1.msra.mxu0 %v1963
    %6170 = vmatprep.subr.mxu0 0.0
    %6171 = vmatpush1.msra.mxu0 %v1964
    %6172 = vmatprep.subr.mxu0 0.0
    %6173 = vmatpush1.msra.mxu0 %v1965
    %6174 = vmatprep.subr.mxu0 0.0
    %6175 = vmatpush1.msra.mxu0 %v1966
    %6176 = vmatprep.subr.mxu0 0.0
    %6177 = vmatpush1.msra.mxu0 %v1967
    %6178 = vmatprep.subr.mxu0 0.0
    %6179 = vmatpush1.msra.mxu0 %v1968
    %6180 = vmatprep.subr.mxu0 0.0
    %6181 = vmatpush1.msra.mxu0 %v1969
    %6182 = vmatprep.subr.mxu0 0.0
    %6183 = vmatpush1.msra.mxu0 %v1970
    %6184 = vmatprep.subr.mxu0 0.0
    %6185 = vmatpush1.msra.mxu0 %v1971
    %6186 = vmatprep.subr.mxu0 0.0
    %6187 = vmatpush1.msra.mxu0 %v1972
    %6188 = vmatprep.mubr.f32.mxu0 %v134
    %6189 = vmatmul.mubr.f32.gmra.mrb[0].mxu0 %v133
    %v6190 = vpop.f32.mrb[0].mxu0
    %v6191 = vadd.f32 %v6121, %v6190
    %v6192 = vpop.f32.mrb[0].mxu0
    %6193 = vdwg.mxu0
    %6194 = vmatprep.subr.mxu0 0.0
    %6195 = vmatpush1.msra.mxu0 %v1973
    %6196 = vmatprep.subr.mxu0 0.0
    %6197 = vmatpush1.msra.mxu0 %v1974
    %6198 = vmatprep.subr.mxu0 0.0
    %6199 = vmatpush1.msra.mxu0 %v1975
    %6200 = vmatprep.subr.mxu0 0.0
    %6201 = vmatpush1.msra.mxu0 %v1976
    %6202 = vmatprep.subr.mxu0 0.0
    %6203 = vmatpush1.msra.mxu0 %v1977
    %6204 = vmatprep.subr.mxu0 0.0
    %6205 = vmatpush1.msra.mxu0 %v1978
    %6206 = vmatprep.subr.mxu0 0.0
    %6207 = vmatpush1.msra.mxu0 %v1979
    %6208 = vmatprep.subr.mxu0 0.0
    %6209 = vmatpush1.msra.mxu0 %v1980
    %6210 = vmatprep.subr.mxu0 0.0
    %6211 = vmatpush1.msra.mxu0 %v1981
    %6212 = vmatprep.subr.mxu0 0.0
    %6213 = vmatpush1.msra.mxu0 %v1982
    %6214 = vmatprep.subr.mxu0 0.0
    %6215 = vmatpush1.msra.mxu0 %v1983
    %6216 = vmatprep.subr.mxu0 0.0
    %6217 = vmatpush1.msra.mxu0 %v1984
    %6218 = vmatprep.subr.mxu0 0.0
    %6219 = vmatpush1.msra.mxu0 %v1985
    %6220 = vmatprep.subr.mxu0 0.0
    %6221 = vmatpush1.msra.mxu0 %v1986
    %6222 = vmatprep.subr.mxu0 0.0
    %6223 = vmatpush1.msra.mxu0 %v1987
    %6224 = vmatprep.subr.mxu0 0.0
    %6225 = vmatpush1.msra.mxu0 %v1988
    %6226 = vmatprep.subr.mxu0 0.0
    %6227 = vmatpush1.msra.mxu0 %v1989
    %6228 = vmatprep.subr.mxu0 0.0
    %6229 = vmatpush1.msra.mxu0 %v1990
    %6230 = vmatprep.subr.mxu0 0.0
    %6231 = vmatpush1.msra.mxu0 %v1991
    %6232 = vmatprep.subr.mxu0 0.0
    %6233 = vmatpush1.msra.mxu0 %v1992
    %6234 = vmatprep.subr.mxu0 0.0
    %6235 = vmatpush1.msra.mxu0 %v1993
    %6236 = vmatprep.subr.mxu0 0.0
    %6237 = vmatpush1.msra.mxu0 %v1994
    %6238 = vmatprep.subr.mxu0 0.0
    %6239 = vmatpush1.msra.mxu0 %v1995
    %6240 = vmatprep.subr.mxu0 0.0
    %6241 = vmatpush1.msra.mxu0 %v1996
    %6242 = vmatprep.subr.mxu0 0.0
    %6243 = vmatpush1.msra.mxu0 %v1997
    %6244 = vmatprep.subr.mxu0 0.0
    %6245 = vmatpush1.msra.mxu0 %v1998
    %6246 = vmatprep.subr.mxu0 0.0
    %6247 = vmatpush1.msra.mxu0 %v1999
    %6248 = vmatprep.subr.mxu0 0.0
    %6249 = vmatpush1.msra.mxu0 %v2000
    %6250 = vmatprep.subr.mxu0 0.0
    %6251 = vmatpush1.msra.mxu0 %v2001
    %6252 = vmatprep.subr.mxu0 0.0
    %6253 = vmatpush1.msra.mxu0 %v2002
    %6254 = vmatprep.subr.mxu0 0.0
    %6255 = vmatpush1.msra.mxu0 %v2003
    %6256 = vmatprep.subr.mxu0 0.0
    %6257 = vmatpush1.msra.mxu0 %v2004
    %6258 = vmatprep.mubr.f32.mxu0 %v136
    %6259 = vmatmul.mubr.f32.gmra.mrb[0].mxu0 %v135
    %v6260 = vpop.f32.mrb[0].mxu0
    %v6261 = vadd.f32 %v6191, %v6260
    %v6262 = vpop.f32.mrb[0].mxu0
    %6263 = vdwg.mxu0
    %6264 = vmatprep.subr.mxu0 0.0
    %6265 = vmatpush1.msra.mxu0 %v2005
    %6266 = vmatprep.subr.mxu0 0.0
    %6267 = vmatpush1.msra.mxu0 %v2006
    %6268 = vmatprep.subr.mxu0 0.0
    %6269 = vmatpush1.msra.mxu0 %v2007
    %6270 = vmatprep.subr.mxu0 0.0
    %6271 = vmatpush1.msra.mxu0 %v2008
    %6272 = vmatprep.subr.mxu0 0.0
    %6273 = vmatpush1.msra.mxu0 %v2009
    %6274 = vmatprep.subr.mxu0 0.0
    %6275 = vmatpush1.msra.mxu0 %v2010
    %6276 = vmatprep.subr.mxu0 0.0
    %6277 = vmatpush1.msra.mxu0 %v2011
    %6278 = vmatprep.subr.mxu0 0.0
    %6279 = vmatpush1.msra.mxu0 %v2012
    %6280 = vmatprep.subr.mxu0 0.0
    %6281 = vmatpush1.msra.mxu0 %v2013
    %6282 = vmatprep.subr.mxu0 0.0
    %6283 = vmatpush1.msra.mxu0 %v2014
    %6284 = vmatprep.subr.mxu0 0.0
    %6285 = vmatpush1.msra.mxu0 %v2015
    %6286 = vmatprep.subr.mxu0 0.0
    %6287 = vmatpush1.msra.mxu0 %v2016
    %6288 = vmatprep.subr.mxu0 0.0
    %6289 = vmatpush1.msra.mxu0 %v2017
    %6290 = vmatprep.subr.mxu0 0.0
    %6291 = vmatpush1.msra.mxu0 %v2018
    %6292 = vmatprep.subr.mxu0 0.0
    %6293 = vmatpush1.msra.mxu0 %v2019
    %6294 = vmatprep.subr.mxu0 0.0
    %6295 = vmatpush1.msra.mxu0 %v2020
    %6296 = vmatprep.subr.mxu0 0.0
    %6297 = vmatpush1.msra.mxu0 %v2021
    %6298 = vmatprep.subr.mxu0 0.0
    %6299 = vmatpush1.msra.mxu0 %v2022
    %6300 = vmatprep.subr.mxu0 0.0
    %6301 = vmatpush1.msra.mxu0 %v2023
    %6302 = vmatprep.subr.mxu0 0.0
    %6303 = vmatpush1.msra.mxu0 %v2024
    %6304 = vmatprep.subr.mxu0 0.0
    %6305 = vmatpush1.msra.mxu0 %v2025
    %6306 = vmatprep.subr.mxu0 0.0
    %6307 = vmatpush1.msra.mxu0 %v2026
    %6308 = vmatprep.subr.mxu0 0.0
    %6309 = vmatpush1.msra.mxu0 %v2027
    %6310 = vmatprep.subr.mxu0 0.0
    %6311 = vmatpush1.msra.mxu0 %v2028
    %6312 = vmatprep.subr.mxu0 0.0
    %6313 = vmatpush1.msra.mxu0 %v2029
    %6314 = vmatprep.subr.mxu0 0.0
    %6315 = vmatpush1.msra.mxu0 %v2030
    %6316 = vmatprep.subr.mxu0 0.0
    %6317 = vmatpush1.msra.mxu0 %v2031
    %6318 = vmatprep.subr.mxu0 0.0
    %6319 = vmatpush1.msra.mxu0 %v2032
    %6320 = vmatprep.subr.mxu0 0.0
    %6321 = vmatpush1.msra.mxu0 %v2033
    %6322 = vmatprep.subr.mxu0 0.0
    %6323 = vmatpush1.msra.mxu0 %v2034
    %6324 = vmatprep.subr.mxu0 0.0
    %6325 = vmatpush1.msra.mxu0 %v2035
    %6326 = vmatprep.subr.mxu0 0.0
    %6327 = vmatpush1.msra.mxu0 %v2036
    %6328 = vmatprep.mubr.f32.mxu0 %v138
    %6329 = vmatmul.mubr.f32.gmra.mrb[0].mxu0 %v137
    %v6330 = vpop.f32.mrb[0].mxu0
    %v6331 = vadd.f32 %v6261, %v6330
    %v6332 = vpop.f32.mrb[0].mxu0
    %6333 = vdwg.mxu0
    %6334 = vmatprep.subr.mxu0 0.0
    %6335 = vmatpush1.msra.mxu0 %v2037
    %6336 = vmatprep.subr.mxu0 0.0
    %6337 = vmatpush1.msra.mxu0 %v2038
    %6338 = vmatprep.subr.mxu0 0.0
    %6339 = vmatpush1.msra.mxu0 %v2039
    %6340 = vmatprep.subr.mxu0 0.0
    %6341 = vmatpush1.msra.mxu0 %v2040
    %6342 = vmatprep.subr.mxu0 0.0
    %6343 = vmatpush1.msra.mxu0 %v2041
    %6344 = vmatprep.subr.mxu0 0.0
    %6345 = vmatpush1.msra.mxu0 %v2042
    %6346 = vmatprep.subr.mxu0 0.0
    %6347 = vmatpush1.msra.mxu0 %v2043
    %6348 = vmatprep.subr.mxu0 0.0
    %6349 = vmatpush1.msra.mxu0 %v2044
    %6350 = vmatprep.subr.mxu0 0.0
    %6351 = vmatpush1.msra.mxu0 %v2045
    %6352 = vmatprep.subr.mxu0 0.0
    %6353 = vmatpush1.msra.mxu0 %v2046
    %6354 = vmatprep.subr.mxu0 0.0
    %6355 = vmatpush1.msra.mxu0 %v2047
    %6356 = vmatprep.subr.mxu0 0.0
    %6357 = vmatpush1.msra.mxu0 %v2048
    %6358 = vmatprep.subr.mxu0 0.0
    %6359 = vmatpush1.msra.mxu0 %v2049
    %6360 = vmatprep.subr.mxu0 0.0
    %6361 = vmatpush1.msra.mxu0 %v2050
    %6362 = vmatprep.subr.mxu0 0.0
    %6363 = vmatpush1.msra.mxu0 %v2051
    %6364 = vmatprep.subr.mxu0 0.0
    %6365 = vmatpush1.msra.mxu0 %v2052
    %6366 = vmatprep.subr.mxu0 0.0
    %6367 = vmatpush1.msra.mxu0 %v2053
    %6368 = vmatprep.subr.mxu0 0.0
    %6369 = vmatpush1.msra.mxu0 %v2054
    %6370 = vmatprep.subr.mxu0 0.0
    %6371 = vmatpush1.msra.mxu0 %v2055
    %6372 = vmatprep.subr.mxu0 0.0
    %6373 = vmatpush1.msra.mxu0 %v2056
    %6374 = vmatprep.subr.mxu0 0.0
    %6375 = vmatpush1.msra.mxu0 %v2057
    %6376 = vmatprep.subr.mxu0 0.0
    %6377 = vmatpush1.msra.mxu0 %v2058
    %6378 = vmatprep.subr.mxu0 0.0
    %6379 = vmatpush1.msra.mxu0 %v2059
    %6380 = vmatprep.subr.mxu0 0.0
    %6381 = vmatpush1.msra.mxu0 %v2060
    %6382 = vmatprep.subr.mxu0 0.0
    %6383 = vmatpush1.msra.mxu0 %v2061
    %6384 = vmatprep.subr.mxu0 0.0
    %6385 = vmatpush1.msra.mxu0 %v2062
    %6386 = vmatprep.subr.mxu0 0.0
    %6387 = vmatpush1.msra.mxu0 %v2063
    %6388 = vmatprep.subr.mxu0 0.0
    %6389 = vmatpush1.msra.mxu0 %v2064
    %6390 = vmatprep.subr.mxu0 0.0
    %6391 = vmatpush1.msra.mxu0 %v2065
    %6392 = vmatprep.subr.mxu0 0.0
    %6393 = vmatpush1.msra.mxu0 %v2066
    %6394 = vmatprep.subr.mxu0 0.0
    %6395 = vmatpush1.msra.mxu0 %v2067
    %6396 = vmatprep.subr.mxu0 0.0
    %6397 = vmatpush1.msra.mxu0 %v2068
    %6398 = vmatprep.mubr.f32.mxu0 %v140
    %6399 = vmatmul.mubr.f32.gmra.mrb[0].mxu0 %v139
    %v6400 = vpop.f32.mrb[0].mxu0
    %v6401 = vadd.f32 %v6331, %v6400
    %v6402 = vpop.f32.mrb[0].mxu0
    %6403 = vdwg.mxu0
    %6404 = vmatprep.subr.mxu0 0.0
    %6405 = vmatpush1.msra.mxu0 %v2069
    %6406 = vmatprep.subr.mxu0 0.0
    %6407 = vmatpush1.msra.mxu0 %v2070
    %6408 = vmatprep.subr.mxu0 0.0
    %6409 = vmatpush1.msra.mxu0 %v2071
    %6410 = vmatprep.subr.mxu0 0.0
    %6411 = vmatpush1.msra.mxu0 %v2072
    %6412 = vmatprep.subr.mxu0 0.0
    %6413 = vmatpush1.msra.mxu0 %v2073
    %6414 = vmatprep.subr.mxu0 0.0
    %6415 = vmatpush1.msra.mxu0 %v2074
    %6416 = vmatprep.subr.mxu0 0.0
    %6417 = vmatpush1.msra.mxu0 %v2075
    %6418 = vmatprep.subr.mxu0 0.0
    %6419 = vmatpush1.msra.mxu0 %v2076
    %6420 = vmatprep.subr.mxu0 0.0
    %6421 = vmatpush1.msra.mxu0 %v2077
    %6422 = vmatprep.subr.mxu0 0.0
    %6423 = vmatpush1.msra.mxu0 %v2078
    %6424 = vmatprep.subr.mxu0 0.0
    %6425 = vmatpush1.msra.mxu0 %v2079
    %6426 = vmatprep.subr.mxu0 0.0
    %6427 = vmatpush1.msra.mxu0 %v2080
    %6428 = vmatprep.subr.mxu0 0.0
    %6429 = vmatpush1.msra.mxu0 %v2081
    %6430 = vmatprep.subr.mxu0 0.0
    %6431 = vmatpush1.msra.mxu0 %v2082
    %6432 = vmatprep.subr.mxu0 0.0
    %6433 = vmatpush1.msra.mxu0 %v2083
    %6434 = vmatprep.subr.mxu0 0.0
    %6435 = vmatpush1.msra.mxu0 %v2084
    %6436 = vmatprep.subr.mxu0 0.0
    %6437 = vmatpush1.msra.mxu0 %v2085
    %6438 = vmatprep.subr.mxu0 0.0
    %6439 = vmatpush1.msra.mxu0 %v2086
    %6440 = vmatprep.subr.mxu0 0.0
    %6441 = vmatpush1.msra.mxu0 %v2087
    %6442 = vmatprep.subr.mxu0 0.0
    %6443 = vmatpush1.msra.mxu0 %v2088
    %6444 = vmatprep.subr.mxu0 0.0
    %6445 = vmatpush1.msra.mxu0 %v2089
    %6446 = vmatprep.subr.mxu0 0.0
    %6447 = vmatpush1.msra.mxu0 %v2090
    %6448 = vmatprep.subr.mxu0 0.0
    %6449 = vmatpush1.msra.mxu0 %v2091
    %6450 = vmatprep.subr.mxu0 0.0
    %6451 = vmatpush1.msra.mxu0 %v2092
    %6452 = vmatprep.subr.mxu0 0.0
    %6453 = vmatpush1.msra.mxu0 %v2093
    %6454 = vmatprep.subr.mxu0 0.0
    %6455 = vmatpush1.msra.mxu0 %v2094
    %6456 = vmatprep.subr.mxu0 0.0
    %6457 = vmatpush1.msra.mxu0 %v2095
    %6458 = vmatprep.subr.mxu0 0.0
    %6459 = vmatpush1.msra.mxu0 %v2096
    %6460 = vmatprep.subr.mxu0 0.0
    %6461 = vmatpush1.msra.mxu0 %v2097
    %6462 = vmatprep.subr.mxu0 0.0
    %6463 = vmatpush1.msra.mxu0 %v2098
    %6464 = vmatprep.subr.mxu0 0.0
    %6465 = vmatpush1.msra.mxu0 %v2099
    %6466 = vmatprep.subr.mxu0 0.0
    %6467 = vmatpush1.msra.mxu0 %v2100
    %6468 = vmatprep.mubr.f32.mxu0 %v142
    %6469 = vmatmul.mubr.f32.gmra.mrb[0].mxu0 %v141
    %v6470 = vpop.f32.mrb[0].mxu0
    %v6471 = vadd.f32 %v6401, %v6470
    %v6472 = vpop.f32.mrb[0].mxu0
    %6473 = vdwg.mxu0
    %6474 = vmatprep.subr.mxu0 0.0
    %6475 = vmatpush1.msra.mxu0 %v2101
    %6476 = vmatprep.subr.mxu0 0.0
    %6477 = vmatpush1.msra.mxu0 %v2102
    %6478 = vmatprep.subr.mxu0 0.0
    %6479 = vmatpush1.msra.mxu0 %v2103
    %6480 = vmatprep.subr.mxu0 0.0
    %6481 = vmatpush1.msra.mxu0 %v2104
    %6482 = vmatprep.subr.mxu0 0.0
    %6483 = vmatpush1.msra.mxu0 %v2105
    %6484 = vmatprep.subr.mxu0 0.0
    %6485 = vmatpush1.msra.mxu0 %v2106
    %6486 = vmatprep.subr.mxu0 0.0
    %6487 = vmatpush1.msra.mxu0 %v2107
    %6488 = vmatprep.subr.mxu0 0.0
    %6489 = vmatpush1.msra.mxu0 %v2108
    %6490 = vmatprep.subr.mxu0 0.0
    %6491 = vmatpush1.msra.mxu0 %v2109
    %6492 = vmatprep.subr.mxu0 0.0
    %6493 = vmatpush1.msra.mxu0 %v2110
    %6494 = vmatprep.subr.mxu0 0.0
    %6495 = vmatpush1.msra.mxu0 %v2111
    %6496 = vmatprep.subr.mxu0 0.0
    %6497 = vmatpush1.msra.mxu0 %v2112
    %6498 = vmatprep.subr.mxu0 0.0
    %6499 = vmatpush1.msra.mxu0 %v2113
    %6500 = vmatprep.subr.mxu0 0.0
    %6501 = vmatpush1.msra.mxu0 %v2114
    %6502 = vmatprep.subr.mxu0 0.0
    %6503 = vmatpush1.msra.mxu0 %v2115
    %6504 = vmatprep.subr.mxu0 0.0
    %6505 = vmatpush1.msra.mxu0 %v2116
    %6506 = vmatprep.subr.mxu0 0.0
    %6507 = vmatpush1.msra.mxu0 %v2117
    %6508 = vmatprep.subr.mxu0 0.0
    %6509 = vmatpush1.msra.mxu0 %v2118
    %6510 = vmatprep.subr.mxu0 0.0
    %6511 = vmatpush1.msra.mxu0 %v2119
    %6512 = vmatprep.subr.mxu0 0.0
    %6513 = vmatpush1.msra.mxu0 %v2120
    %6514 = vmatprep.subr.mxu0 0.0
    %6515 = vmatpush1.msra.mxu0 %v2121
    %6516 = vmatprep.subr.mxu0 0.0
    %6517 = vmatpush1.msra.mxu0 %v2122
    %6518 = vmatprep.subr.mxu0 0.0
    %6519 = vmatpush1.msra.mxu0 %v2123
    %6520 = vmatprep.subr.mxu0 0.0
    %6521 = vmatpush1.msra.mxu0 %v2124
    %6522 = vmatprep.subr.mxu0 0.0
    %6523 = vmatpush1.msra.mxu0 %v2125
    %6524 = vmatprep.subr.mxu0 0.0
    %6525 = vmatpush1.msra.mxu0 %v2126
    %6526 = vmatprep.subr.mxu0 0.0
    %6527 = vmatpush1.msra.mxu0 %v2127
    %6528 = vmatprep.subr.mxu0 0.0
    %6529 = vmatpush1.msra.mxu0 %v2128
    %6530 = vmatprep.subr.mxu0 0.0
    %6531 = vmatpush1.msra.mxu0 %v2129
    %6532 = vmatprep.subr.mxu0 0.0
    %6533 = vmatpush1.msra.mxu0 %v2130
    %6534 = vmatprep.subr.mxu0 0.0
    %6535 = vmatpush1.msra.mxu0 %v2131
    %6536 = vmatprep.subr.mxu0 0.0
    %6537 = vmatpush1.msra.mxu0 %v2132
    %6538 = vmatprep.mubr.f32.mxu0 %v144
    %6539 = vmatmul.mubr.f32.gmra.mrb[0].mxu0 %v143
    %v6540 = vpop.f32.mrb[0].mxu0
    %v6541 = vadd.f32 %v6471, %v6540
    %v6542 = vpop.f32.mrb[0].mxu0
    %6543 = vdwg.mxu0
    %6544 = vmatprep.subr.mxu0 0.0
    %6545 = vmatpush1.msra.mxu0 %v2133
    %6546 = vmatprep.subr.mxu0 0.0
    %6547 = vmatpush1.msra.mxu0 %v2134
    %6548 = vmatprep.subr.mxu0 0.0
    %6549 = vmatpush1.msra.mxu0 %v2135
    %6550 = vmatprep.subr.mxu0 0.0
    %6551 = vmatpush1.msra.mxu0 %v2136
    %6552 = vmatprep.subr.mxu0 0.0
    %6553 = vmatpush1.msra.mxu0 %v2137
    %6554 = vmatprep.subr.mxu0 0.0
    %6555 = vmatpush1.msra.mxu0 %v2138
    %6556 = vmatprep.subr.mxu0 0.0
    %6557 = vmatpush1.msra.mxu0 %v2139
    %6558 = vmatprep.subr.mxu0 0.0
    %6559 = vmatpush1.msra.mxu0 %v2140
    %6560 = vmatprep.subr.mxu0 0.0
    %6561 = vmatpush1.msra.mxu0 %v2141
    %6562 = vmatprep.subr.mxu0 0.0
    %6563 = vmatpush1.msra.mxu0 %v2142
    %6564 = vmatprep.subr.mxu0 0.0
    %6565 = vmatpush1.msra.mxu0 %v2143
    %6566 = vmatprep.subr.mxu0 0.0
    %6567 = vmatpush1.msra.mxu0 %v2144
    %6568 = vmatprep.subr.mxu0 0.0
    %6569 = vmatpush1.msra.mxu0 %v2145
    %6570 = vmatprep.subr.mxu0 0.0
    %6571 = vmatpush1.msra.mxu0 %v2146
    %6572 = vmatprep.subr.mxu0 0.0
    %6573 = vmatpush1.msra.mxu0 %v2147
    %6574 = vmatprep.subr.mxu0 0.0
    %6575 = vmatpush1.msra.mxu0 %v2148
    %6576 = vmatprep.subr.mxu0 0.0
    %6577 = vmatpush1.msra.mxu0 %v2149
    %6578 = vmatprep.subr.mxu0 0.0
    %6579 = vmatpush1.msra.mxu0 %v2150
    %6580 = vmatprep.subr.mxu0 0.0
    %6581 = vmatpush1.msra.mxu0 %v2151
    %6582 = vmatprep.subr.mxu0 0.0
    %6583 = vmatpush1.msra.mxu0 %v2152
    %6584 = vmatprep.subr.mxu0 0.0
    %6585 = vmatpush1.msra.mxu0 %v2153
    %6586 = vmatprep.subr.mxu0 0.0
    %6587 = vmatpush1.msra.mxu0 %v2154
    %6588 = vmatprep.subr.mxu0 0.0
    %6589 = vmatpush1.msra.mxu0 %v2155
    %6590 = vmatprep.subr.mxu0 0.0
    %6591 = vmatpush1.msra.mxu0 %v2156
    %6592 = vmatprep.subr.mxu0 0.0
    %6593 = vmatpush1.msra.mxu0 %v2157
    %6594 = vmatprep.subr.mxu0 0.0
    %6595 = vmatpush1.msra.mxu0 %v2158
    %6596 = vmatprep.subr.mxu0 0.0
    %6597 = vmatpush1.msra.mxu0 %v2159
    %6598 = vmatprep.subr.mxu0 0.0
    %6599 = vmatpush1.msra.mxu0 %v2160
    %6600 = vmatprep.subr.mxu0 0.0
    %6601 = vmatpush1.msra.mxu0 %v2161
    %6602 = vmatprep.subr.mxu0 0.0
    %6603 = vmatpush1.msra.mxu0 %v2162
    %6604 = vmatprep.subr.mxu0 0.0
    %6605 = vmatpush1.msra.mxu0 %v2163
    %6606 = vmatprep.subr.mxu0 0.0
    %6607 = vmatpush1.msra.mxu0 %v2164
    %6608 = vmatprep.mubr.f32.mxu0 %v146
    %6609 = vmatmul.mubr.f32.gmra.mrb[0].mxu0 %v145
    %v6610 = vpop.f32.mrb[0].mxu0
    %v6611 = vadd.f32 %v6541, %v6610
    %v6612 = vpop.f32.mrb[0].mxu0
    %6613 = vdwg.mxu0
    %6614 = vmatprep.subr.mxu0 0.0
    %6615 = vmatpush1.msra.mxu0 %v2165
    %6616 = vmatprep.subr.mxu0 0.0
    %6617 = vmatpush1.msra.mxu0 %v2166
    %6618 = vmatprep.subr.mxu0 0.0
    %6619 = vmatpush1.msra.mxu0 %v2167
    %6620 = vmatprep.subr.mxu0 0.0
    %6621 = vmatpush1.msra.mxu0 %v2168
    %6622 = vmatprep.subr.mxu0 0.0
    %6623 = vmatpush1.msra.mxu0 %v2169
    %6624 = vmatprep.subr.mxu0 0.0
    %6625 = vmatpush1.msra.mxu0 %v2170
    %6626 = vmatprep.subr.mxu0 0.0
    %6627 = vmatpush1.msra.mxu0 %v2171
    %6628 = vmatprep.subr.mxu0 0.0
    %6629 = vmatpush1.msra.mxu0 %v2172
    %6630 = vmatprep.subr.mxu0 0.0
    %6631 = vmatpush1.msra.mxu0 %v2173
    %6632 = vmatprep.subr.mxu0 0.0
    %6633 = vmatpush1.msra.mxu0 %v2174
    %6634 = vmatprep.subr.mxu0 0.0
    %6635 = vmatpush1.msra.mxu0 %v2175
    %6636 = vmatprep.subr.mxu0 0.0
    %6637 = vmatpush1.msra.mxu0 %v2176
    %6638 = vmatprep.subr.mxu0 0.0
    %6639 = vmatpush1.msra.mxu0 %v2177
    %6640 = vmatprep.subr.mxu0 0.0
    %6641 = vmatpush1.msra.mxu0 %v2178
    %6642 = vmatprep.subr.mxu0 0.0
    %6643 = vmatpush1.msra.mxu0 %v2179
    %6644 = vmatprep.subr.mxu0 0.0
    %6645 = vmatpush1.msra.mxu0 %v2180
    %6646 = vmatprep.subr.mxu0 0.0
    %6647 = vmatpush1.msra.mxu0 %v2181
    %6648 = vmatprep.subr.mxu0 0.0
    %6649 = vmatpush1.msra.mxu0 %v2182
    %6650 = vmatprep.subr.mxu0 0.0
    %6651 = vmatpush1.msra.mxu0 %v2183
    %6652 = vmatprep.subr.mxu0 0.0
    %6653 = vmatpush1.msra.mxu0 %v2184
    %6654 = vmatprep.subr.mxu0 0.0
    %6655 = vmatpush1.msra.mxu0 %v2185
    %6656 = vmatprep.subr.mxu0 0.0
    %6657 = vmatpush1.msra.mxu0 %v2186
    %6658 = vmatprep.subr.mxu0 0.0
    %6659 = vmatpush1.msra.mxu0 %v2187
    %6660 = vmatprep.subr.mxu0 0.0
    %6661 = vmatpush1.msra.mxu0 %v2188
    %6662 = vmatprep.subr.mxu0 0.0
    %6663 = vmatpush1.msra.mxu0 %v2189
    %6664 = vmatprep.subr.mxu0 0.0
    %6665 = vmatpush1.msra.mxu0 %v2190
    %6666 = vmatprep.subr.mxu0 0.0
    %6667 = vmatpush1.msra.mxu0 %v2191
    %6668 = vmatprep.subr.mxu0 0.0
    %6669 = vmatpush1.msra.mxu0 %v2192
    %6670 = vmatprep.subr.mxu0 0.0
    %6671 = vmatpush1.msra.mxu0 %v2193
    %6672 = vmatprep.subr.mxu0 0.0
    %6673 = vmatpush1.msra.mxu0 %v2194
    %6674 = vmatprep.subr.mxu0 0.0
    %6675 = vmatpush1.msra.mxu0 %v2195
    %6676 = vmatprep.subr.mxu0 0.0
    %6677 = vmatpush1.msra.mxu0 %v2196
    %6678 = vmatprep.mubr.f32.mxu0 %v148
    %6679 = vmatmul.mubr.f32.gmra.mrb[0].mxu0 %v147
    %v6680 = vpop.f32.mrb[0].mxu0
    %v6681 = vadd.f32 %v6611, %v6680
    %v6682 = vpop.f32.mrb[0].mxu0
    %6683 = vdwg.mxu0
    %v6684 = vmax.f32 %v6681, 0.0
    %v6685 = vld [vmem:[%s3] sm:$0xff]
    %v6686 = vld [vmem:[%s3 + $0x8] sm:$0xff]
    %v6687 = vld [vmem:[%s3 + $0x10] sm:$0xff]
    %v6688 = vld [vmem:[%s3 + $0x18] sm:$0xff]
    %v6689 = vld [vmem:[%s4] sm:$0x1]
    %v6691 = vlaneseq
    %v6692 = vshrl.u32 %v6691, 7
    %v6693 = vsub.s32 0, %v6692
    %v6694 = vrot.slane %v6689, %v6693
    %vm6696 = vcmask 261120
    %v6698 = vsel %vm6696, %v6684, 0
    %6700 = vmatprep.subr.mxu0 0.0
    %6701 = vmatpush1.msra.mxu0 %v6685
    %6702 = vmatprep.subr.mxu0 0.0
    %6703 = vmatpush1.msra.mxu0 %v6686
    %6704 = vmatprep.subr.mxu0 0.0
    %6705 = vmatpush1.msra.mxu0 %v6687
    %6706 = vmatprep.subr.mxu0 0.0
    %6707 = vmatpush1.msra.mxu0 %v6688
    %6708 = vmatprep.subr.mxu0 0.0
    %6709 = vmatpush1.msra.mxu0 0.0
    %6710 = vmatprep.subr.mxu0 0.0
    %6711 = vmatpush1.msra.mxu0 0.0
    %6712 = vmatprep.subr.mxu0 0.0
    %6713 = vmatpush1.msra.mxu0 0.0
    %6714 = vmatprep.subr.mxu0 0.0
    %6715 = vmatpush1.msra.mxu0 0.0
    %6716 = vmatprep.subr.mxu0 0.0
    %6717 = vmatpush1.msra.mxu0 0.0
    %6718 = vmatprep.subr.mxu0 0.0
    %6719 = vmatpush1.msra.mxu0 0.0
    %6720 = vmatprep.subr.mxu0 0.0
    %6721 = vmatpush1.msra.mxu0 0.0
    %6722 = vmatprep.subr.mxu0 0.0
    %6723 = vmatpush1.msra.mxu0 0.0
    %6724 = vmatprep.subr.mxu0 0.0
    %6725 = vmatpush1.msra.mxu0 0.0
    %6726 = vmatprep.subr.mxu0 0.0
    %6727 = vmatpush1.msra.mxu0 0.0
    %6728 = vmatprep.subr.mxu0 0.0
    %6729 = vmatpush1.msra.mxu0 0.0
    %6730 = vmatprep.subr.mxu0 0.0
    %6731 = vmatpush1.msra.mxu0 0.0
    %6732 = vmatprep.subr.mxu0 0.0
    %6733 = vmatpush1.msra.mxu0 0.0
    %6734 = vmatprep.subr.mxu0 0.0
    %6735 = vmatpush1.msra.mxu0 0.0
    %6736 = vmatprep.subr.mxu0 0.0
    %6737 = vmatpush1.msra.mxu0 0.0
    %6738 = vmatprep.subr.mxu0 0.0
    %6739 = vmatpush1.msra.mxu0 0.0
    %6740 = vmatprep.subr.mxu0 0.0
    %6741 = vmatpush1.msra.mxu0 0.0
    %6742 = vmatprep.subr.mxu0 0.0
    %6743 = vmatpush1.msra.mxu0 0.0
    %6744 = vmatprep.subr.mxu0 0.0
    %6745 = vmatpush1.msra.mxu0 0.0
    %6746 = vmatprep.subr.mxu0 0.0
    %6747 = vmatpush1.msra.mxu0 0.0
    %6748 = vmatprep.subr.mxu0 0.0
    %6749 = vmatpush1.msra.mxu0 0.0
    %6750 = vmatprep.subr.mxu0 0.0
    %6751 = vmatpush1.msra.mxu0 0.0
    %6752 = vmatprep.subr.mxu0 0.0
    %6753 = vmatpush1.msra.mxu0 0.0
    %6754 = vmatprep.subr.mxu0 0.0
    %6755 = vmatpush1.msra.mxu0 0.0
    %6756 = vmatprep.subr.mxu0 0.0
    %6757 = vmatpush1.msra.mxu0 0.0
    %6758 = vmatprep.subr.mxu0 0.0
    %6759 = vmatpush1.msra.mxu0 0.0
    %6760 = vmatprep.subr.mxu0 0.0
    %6761 = vmatpush1.msra.mxu0 0.0
    %6762 = vmatprep.subr.mxu0 0.0
    %6763 = vmatpush1.msra.mxu0 0.0
    %6764 = vmatprep.mubr.f32.mxu0 0.0
    %6765 = vmatmul.mubr.f32.gmra.mrb[0].mxu0 %v6698
    %v6766 = vpop.f32.mrb[0].mxu0
    %v6767 = vadd.f32 %v6694, %v6766
    %v6768 = vpop.f32.mrb[0].mxu0
    %6769 = vdwg.mxu0
    %6770 = vst [vmem:[#allocation2] sm:$0xff] %v6767
    // Predicated region
    $region22: #{tpu_custom_call.1} parent=1 // pred_check
      _
    $region23: #{tpu_custom_call.1} parent=1 // pred_check_branch
      %6772 = sbr.rel (0) target = $region25
    $region24: #{tpu_custom_call.1} parent=1 // pred_region
      %s6774 = ssub.s32 128, 128
      %6775 = vsyncadd [#allocation3], %s6774
      %s6777 = sshll.u32 [#allocation2], 4
      %s6778 = int_to_ptr.vmem [resolvable:$true] %s6777
      %6780 = dma.vmem_to_hbm [thread:$0]  %s6778, 128, %s5, [#allocation3]
    $region25: #{tpu_custom_call.1} parent=1 // pred_fallthru
      _
    // Predicated region
    $region26: #{tpu_custom_call.1} parent=1 // pred_check
      _
    $region27: #{tpu_custom_call.1} parent=1 // pred_check_branch
      %6782 = sbr.rel (0) target = $region29
    $region28: #{tpu_custom_call.1} parent=1 // pred_region
      %6783 = dma.done [#allocation3], 128
    $region29: #{tpu_custom_call.1} parent=1 // pred_fallthru
      _
    %6784 = vsyncpa [#allocation3], 1

</llo_original>
